<compile_context>
chip_gen: v7x
topology: tpu7x:2x2x1
jax: 0.10.0
libtpu: 0.0.40
codegen_flags: <defaults>
</compile_context>

<pallas_src>
import jax
import jax.numpy as jnp
from jax import lax
from jax.experimental import pallas as pl
from jax.experimental.pallas import tpu as pltpu


# ----------------------------------------------------------------------------
# Fused kernel: encoder1 -> encoder2, decoder1 -> decoder2 -> dense, all in one
# invocation.  Inputs are time-major (T, B, D); weights are pre-fused to
# (H + Din, 4H) with row order [W_hh^T ; W_ih^T].
# ----------------------------------------------------------------------------
def _seq2seq_kernel(enc_x_ref, dec_x_ref,
                    we1_ref, be1_ref, we2_ref, be2_ref,
                    wd1_ref, bd1_ref, wd2_ref, bd2_ref,
                    wdense_ref, bdense_ref,
                    enc_out_ref, out_ref):
    H = we1_ref.shape[1] // 4

    def lstm_seq(xs, w_ref, b_ref):
        """xs: list of T arrays (B, Din).  Returns list of T arrays (B, H)."""
        B = xs[0].shape[0]
        bb = jnp.broadcast_to(b_ref[...], (B, 4 * H))   # hoisted broadcast
        h = jnp.zeros((B, H), jnp.float32)
        c = jnp.zeros((B, H), jnp.float32)
        hs = []
        # Fully-unrolled recurrence (T is small & static): one fused matmul
        # per step, weight load kept inside the loop to keep live ranges small.
        for x_t in xs:
            z = jnp.concatenate([h, x_t], axis=-1)       # (B, H + Din)
            gates = jnp.dot(z, w_ref[...],
                            preferred_element_type=jnp.float32) + bb
            i = jax.nn.sigmoid(gates[:, 0 * H:1 * H])
            f = jax.nn.sigmoid(gates[:, 1 * H:2 * H])
            g = jnp.tanh(gates[:, 2 * H:3 * H])
            o = jax.nn.sigmoid(gates[:, 3 * H:4 * H])
            c = f * c + i * g
            h = o * jnp.tanh(c)
            hs.append(h)
        return hs

    enc_x = enc_x_ref[...].astype(jnp.float32)           # (T_enc, B, D)
    dec_x = dec_x_ref[...].astype(jnp.float32)           # (T_dec, B, O)
    T_enc = enc_x.shape[0]
    T_dec = dec_x.shape[0]

    # ---- encoder path (executed as in the PyTorch module; does not feed the
    #      returned `output`) --------------------------------------------------
    enc_steps = [enc_x[t] for t in range(T_enc)]
    e1 = lstm_seq(enc_steps, we1_ref, be1_ref)
    e2 = lstm_seq(e1, we2_ref, be2_ref)
    enc_out_ref[...] = jnp.concatenate(e2, axis=0).astype(enc_out_ref.dtype)

    # ---- decoder path + dense head ------------------------------------------
    dec_steps = [dec_x[t] for t in range(T_dec)]
    d1 = lstm_seq(dec_steps, wd1_ref, bd1_ref)
    d2 = lstm_seq(d1, wd2_ref, bd2_ref)
    d2_flat = jnp.concatenate(d2, axis=0)                 # (T_dec*B, H)
    y = (jnp.dot(d2_flat, wdense_ref[...],
                 preferred_element_type=jnp.float32)
         + bdense_ref[...])                               # (T_dec*B, O)
    out_ref[...] = y.astype(out_ref.dtype)


# ----------------------------------------------------------------------------
# Parameter init (PyTorch parameter shapes, deterministic U(-k, k)).
# ----------------------------------------------------------------------------
def init_lstm_params(key, in_dim, hidden):
    k = 1.0 / jnp.sqrt(jnp.float32(hidden))
    k1, k2, k3, k4 = jax.random.split(key, 4)
    return dict(
        w_ih=jax.random.uniform(k1, (4 * hidden, in_dim), jnp.float32, -k, k),
        w_hh=jax.random.uniform(k2, (4 * hidden, hidden), jnp.float32, -k, k),
        b_ih=jax.random.uniform(k3, (4 * hidden,), jnp.float32, -k, k),
        b_hh=jax.random.uniform(k4, (4 * hidden,), jnp.float32, -k, k),
    )


def init_params(key, input_size, hidden_size, output_size):
    keys = jax.random.split(key, 6)
    k = 1.0 / jnp.sqrt(jnp.float32(hidden_size))
    return dict(
        encoder1=init_lstm_params(keys[0], input_size, hidden_size),
        encoder2=init_lstm_params(keys[1], hidden_size, hidden_size),
        decoder_lstm1=init_lstm_params(keys[2], output_size, hidden_size),
        decoder_lstm2=init_lstm_params(keys[3], hidden_size, hidden_size),
        dense_w=jax.random.uniform(keys[4], (output_size, hidden_size),
                                   jnp.float32, -k, k),
        dense_b=jax.random.uniform(keys[5], (output_size,), jnp.float32, -k, k),
    )


# ----------------------------------------------------------------------------
# Forward pass: weight prep + one fused pallas_call.
# ----------------------------------------------------------------------------
def _prep_lstm(p):
    # Fused weight: rows [W_hh^T ; W_ih^T] -> (H + Din, 4H); bias = b_ih + b_hh.
    w = jnp.concatenate([p["w_hh"].T, p["w_ih"].T], axis=0)
    b = (p["b_ih"] + p["b_hh"])[None, :]
    return w, b


def seq2seq_forward(params, encoder_input, decoder_input):
    B, T_enc, _ = encoder_input.shape
    _, T_dec, O = decoder_input.shape
    H = params["encoder1"]["w_hh"].shape[1]

    # time-major kernel inputs (tiny, <1 KB each)
    enc_x_tm = jnp.transpose(encoder_input, (1, 0, 2))   # (T_enc, B, D)
    dec_x_tm = jnp.transpose(decoder_input, (1, 0, 2))   # (T_dec, B, O)

    we1, be1 = _prep_lstm(params["encoder1"])
    we2, be2 = _prep_lstm(params["encoder2"])
    wd1, bd1 = _prep_lstm(params["decoder_lstm1"])
    wd2, bd2 = _prep_lstm(params["decoder_lstm2"])
    wdense = params["dense_w"].T                         # (H, O)
    bdense = params["dense_b"][None, :]                  # (1, O)

    vmem = lambda: pl.BlockSpec(memory_space=pltpu.MemorySpace.VMEM)
    enc2_flat, out_flat = pl.pallas_call(
        _seq2seq_kernel,
        out_shape=(jax.ShapeDtypeStruct((T_enc * B, H), jnp.float32),
                   jax.ShapeDtypeStruct((T_dec * B, O), jnp.float32)),
        in_specs=[vmem() for _ in range(12)],
        out_specs=(vmem(), vmem()),
    )(enc_x_tm, dec_x_tm, we1, be1, we2, be2, wd1, bd1, wd2, bd2,
      wdense, bdense)

    enc2 = jnp.transpose(enc2_flat.reshape(T_enc, B, H), (1, 0, 2))
    output = jnp.transpose(out_flat.reshape(T_dec, B, O), (1, 0, 2))
    return output, enc2


# ----------------------------------------------------------------------------
# Pure-JAX reference (correctness check only).
# ----------------------------------------------------------------------------
def _lstm_ref(p, x_bf):
    B = x_bf.shape[0]
    H = p["w_hh"].shape[1]
    b = p["b_ih"] + p["b_hh"]

    def step(carry, x_t):
        h, c = carry
        gates = x_t @ p["w_ih"].T + h @ p["w_hh"].T + b
        i, f, g, o = jnp.split(gates, 4, axis=-1)
        c = jax.nn.sigmoid(f) * c + jax.nn.sigmoid(i) * jnp.tanh(g)
        h = jax.nn.sigmoid(o) * jnp.tanh(c)
        return (h, c), h

    init = (jnp.zeros((B, H), jnp.float32), jnp.zeros((B, H), jnp.float32))
    _, ys = lax.scan(step, init, jnp.transpose(x_bf, (1, 0, 2)))
    return jnp.transpose(ys, (1, 0, 2))


def seq2seq_ref(params, encoder_input, decoder_input):
    enc2 = _lstm_ref(params["encoder2"], _lstm_ref(params["encoder1"], encoder_input))
    dec1 = _lstm_ref(params["decoder_lstm1"], decoder_input)
    dec2 = _lstm_ref(params["decoder_lstm2"], dec1)
    out = dec2 @ params["dense_w"].T + params["dense_b"]
    return out, enc2


# ----------------------------------------------------------------------------
if __name__ == "__main__":
    batch, t_enc, t_dec = 2, 10, 8
    input_size, hidden_size, output_size = 3, 128, 3   # matches the module spec

    root = jax.random.PRNGKey(0)
    kp, ke, kd = jax.random.split(root, 3)
    params = init_params(kp, input_size, hidden_size, output_size)
    encoder_input = jax.random.normal(ke, (batch, t_enc, input_size), jnp.float32)
    decoder_input = jax.random.normal(kd, (batch, t_dec, output_size), jnp.float32)

    fwd = jax.jit(seq2seq_forward)
    output, enc2 = fwd(params, encoder_input, decoder_input)
    output = jax.block_until_ready(output)
    enc2 = jax.block_until_ready(enc2)

    ref_out, ref_enc2 = seq2seq_ref(params, encoder_input, decoder_input)
    assert output.shape == (batch, t_dec, output_size)
    assert jnp.allclose(output, ref_out, rtol=2e-3, atol=2e-3), (
        float(jnp.max(jnp.abs(output - ref_out))))
    assert jnp.allclose(enc2, ref_enc2, rtol=2e-3, atol=2e-3), (
        float(jnp.max(jnp.abs(enc2 - ref_enc2))))

    print("KERNEL_OK")
</pallas_src>

<mosaic_0001>
module attributes {stable_mosaic.version = 11 : i64} {
  func.func @_seq2seq_kernel(%arg0: memref<10x2x3xf32, #tpu.memory_space<vmem>>, %arg1: memref<8x2x3xf32, #tpu.memory_space<vmem>>, %arg2: memref<131x512xf32, #tpu.memory_space<vmem>>, %arg3: memref<1x512xf32, #tpu.memory_space<vmem>>, %arg4: memref<256x512xf32, #tpu.memory_space<vmem>>, %arg5: memref<1x512xf32, #tpu.memory_space<vmem>>, %arg6: memref<131x512xf32, #tpu.memory_space<vmem>>, %arg7: memref<1x512xf32, #tpu.memory_space<vmem>>, %arg8: memref<256x512xf32, #tpu.memory_space<vmem>>, %arg9: memref<1x512xf32, #tpu.memory_space<vmem>>, %arg10: memref<128x3xf32, #tpu.memory_space<vmem>>, %arg11: memref<1x3xf32, #tpu.memory_space<vmem>>, %arg12: memref<20x128xf32, #tpu.memory_space<vmem>>, %arg13: memref<16x3xf32, #tpu.memory_space<vmem>>) attributes {dimension_semantics = [], scalar_prefetch = 0 : i64, scratch_operands = 0 : i64, tpu.core_type = #tpu.core_type<tc>} {
    %c0 = arith.constant 0 : index
    %c0_0 = arith.constant 0 : index
    %c0_1 = arith.constant 0 : index
    %0 = vector.load %arg0[%c0, %c0_0, %c0_1] : memref<10x2x3xf32, #tpu.memory_space<vmem>>, vector<10x2x3xf32>
    %c0_2 = arith.constant 0 : index
    %c0_3 = arith.constant 0 : index
    %c0_4 = arith.constant 0 : index
    %1 = vector.load %arg1[%c0_2, %c0_3, %c0_4] : memref<8x2x3xf32, #tpu.memory_space<vmem>>, vector<8x2x3xf32>
    %2 = vector.extract_strided_slice %0 {offsets = [0, 0, 0], sizes = [1, 2, 3], strides = [1, 1, 1]} : vector<10x2x3xf32> to vector<1x2x3xf32>
    %3 = vector.shape_cast %2 : vector<1x2x3xf32> to vector<2x3xf32>
    %4 = vector.extract_strided_slice %0 {offsets = [1, 0, 0], sizes = [1, 2, 3], strides = [1, 1, 1]} : vector<10x2x3xf32> to vector<1x2x3xf32>
    %5 = vector.shape_cast %4 : vector<1x2x3xf32> to vector<2x3xf32>
    %6 = vector.extract_strided_slice %0 {offsets = [2, 0, 0], sizes = [1, 2, 3], strides = [1, 1, 1]} : vector<10x2x3xf32> to vector<1x2x3xf32>
    %7 = vector.shape_cast %6 : vector<1x2x3xf32> to vector<2x3xf32>
    %8 = vector.extract_strided_slice %0 {offsets = [3, 0, 0], sizes = [1, 2, 3], strides = [1, 1, 1]} : vector<10x2x3xf32> to vector<1x2x3xf32>
    %9 = vector.shape_cast %8 : vector<1x2x3xf32> to vector<2x3xf32>
    %10 = vector.extract_strided_slice %0 {offsets = [4, 0, 0], sizes = [1, 2, 3], strides = [1, 1, 1]} : vector<10x2x3xf32> to vector<1x2x3xf32>
    %11 = vector.shape_cast %10 : vector<1x2x3xf32> to vector<2x3xf32>
    %12 = vector.extract_strided_slice %0 {offsets = [5, 0, 0], sizes = [1, 2, 3], strides = [1, 1, 1]} : vector<10x2x3xf32> to vector<1x2x3xf32>
    %13 = vector.shape_cast %12 : vector<1x2x3xf32> to vector<2x3xf32>
    %14 = vector.extract_strided_slice %0 {offsets = [6, 0, 0], sizes = [1, 2, 3], strides = [1, 1, 1]} : vector<10x2x3xf32> to vector<1x2x3xf32>
    %15 = vector.shape_cast %14 : vector<1x2x3xf32> to vector<2x3xf32>
    %16 = vector.extract_strided_slice %0 {offsets = [7, 0, 0], sizes = [1, 2, 3], strides = [1, 1, 1]} : vector<10x2x3xf32> to vector<1x2x3xf32>
    %17 = vector.shape_cast %16 : vector<1x2x3xf32> to vector<2x3xf32>
    %18 = vector.extract_strided_slice %0 {offsets = [8, 0, 0], sizes = [1, 2, 3], strides = [1, 1, 1]} : vector<10x2x3xf32> to vector<1x2x3xf32>
    %19 = vector.shape_cast %18 : vector<1x2x3xf32> to vector<2x3xf32>
    %20 = vector.extract_strided_slice %0 {offsets = [9, 0, 0], sizes = [1, 2, 3], strides = [1, 1, 1]} : vector<10x2x3xf32> to vector<1x2x3xf32>
    %21 = vector.shape_cast %20 : vector<1x2x3xf32> to vector<2x3xf32>
    %c0_5 = arith.constant 0 : index
    %c0_6 = arith.constant 0 : index
    %22 = vector.load %arg3[%c0_5, %c0_6] : memref<1x512xf32, #tpu.memory_space<vmem>>, vector<1x512xf32>
    %23 = vector.shape_cast %22 : vector<1x512xf32> to vector<1x512xf32>
    %24 = vector.broadcast %23 : vector<1x512xf32> to vector<2x512xf32>
    %cst = arith.constant 0.000000e+00 : f32
    %25 = vector.broadcast %cst : f32 to vector<2x128xf32>
    %cst_7 = arith.constant 0.000000e+00 : f32
    %26 = vector.broadcast %cst_7 : f32 to vector<2x128xf32>
    %27 = tpu.concatenate %25, %3 in 1 : vector<2x128xf32>, vector<2x3xf32> -> vector<2x131xf32>
    %c0_8 = arith.constant 0 : index
    %c0_9 = arith.constant 0 : index
    %28 = vector.load %arg2[%c0_8, %c0_9] : memref<131x512xf32, #tpu.memory_space<vmem>>, vector<131x512xf32>
    %cst_10 = arith.constant dense<0.000000e+00> : vector<2x512xf32>
    %29 = tpu.matmul %27, %28, %cst_10 {dimension_numbers = #tpu.dot_dimension_numbers<[1], [0], [0], [1], [0, 0, 1, 1], [], []>} : vector<2x131xf32>, vector<131x512xf32>, vector<2x512xf32> -> vector<2x512xf32>
    %30 = arith.addf %29, %24 : vector<2x512xf32>
    %31 = vector.extract_strided_slice %30 {offsets = [0, 0], sizes = [2, 128], strides = [1, 1]} : vector<2x512xf32> to vector<2x128xf32>
    %32 = arith.negf %31 : vector<2x128xf32>
    %33 = math.exp %32 : vector<2x128xf32>
    %cst_11 = arith.constant 1.000000e+00 : f32
    %34 = vector.broadcast %cst_11 : f32 to vector<2x128xf32>
    %35 = arith.addf %34, %33 : vector<2x128xf32>
    %36 = arith.divf %34, %35 : vector<2x128xf32>
    %37 = vector.extract_strided_slice %30 {offsets = [0, 128], sizes = [2, 128], strides = [1, 1]} : vector<2x512xf32> to vector<2x128xf32>
    %38 = arith.negf %37 : vector<2x128xf32>
    %39 = math.exp %38 : vector<2x128xf32>
    %cst_12 = arith.constant 1.000000e+00 : f32
    %40 = vector.broadcast %cst_12 : f32 to vector<2x128xf32>
    %41 = arith.addf %40, %39 : vector<2x128xf32>
    %42 = arith.divf %40, %41 : vector<2x128xf32>
    %43 = vector.extract_strided_slice %30 {offsets = [0, 256], sizes = [2, 128], strides = [1, 1]} : vector<2x512xf32> to vector<2x128xf32>
    %44 = math.tanh %43 : vector<2x128xf32>
    %45 = vector.extract_strided_slice %30 {offsets = [0, 384], sizes = [2, 128], strides = [1, 1]} : vector<2x512xf32> to vector<2x128xf32>
    %46 = arith.negf %45 : vector<2x128xf32>
    %47 = math.exp %46 : vector<2x128xf32>
    %cst_13 = arith.constant 1.000000e+00 : f32
    %48 = vector.broadcast %cst_13 : f32 to vector<2x128xf32>
    %49 = arith.addf %48, %47 : vector<2x128xf32>
    %50 = arith.divf %48, %49 : vector<2x128xf32>
    %51 = arith.mulf %42, %26 : vector<2x128xf32>
    %52 = arith.mulf %36, %44 : vector<2x128xf32>
    %53 = arith.addf %51, %52 : vector<2x128xf32>
    %54 = math.tanh %53 : vector<2x128xf32>
    %55 = arith.mulf %50, %54 : vector<2x128xf32>
    %56 = tpu.concatenate %55, %5 in 1 : vector<2x128xf32>, vector<2x3xf32> -> vector<2x131xf32>
    %c0_14 = arith.constant 0 : index
    %c0_15 = arith.constant 0 : index
    %57 = vector.load %arg2[%c0_14, %c0_15] : memref<131x512xf32, #tpu.memory_space<vmem>>, vector<131x512xf32>
    %cst_16 = arith.constant dense<0.000000e+00> : vector<2x512xf32>
    %58 = tpu.matmul %56, %57, %cst_16 {dimension_numbers = #tpu.dot_dimension_numbers<[1], [0], [0], [1], [0, 0, 1, 1], [], []>} : vector<2x131xf32>, vector<131x512xf32>, vector<2x512xf32> -> vector<2x512xf32>
    %59 = arith.addf %58, %24 : vector<2x512xf32>
    %60 = vector.extract_strided_slice %59 {offsets = [0, 0], sizes = [2, 128], strides = [1, 1]} : vector<2x512xf32> to vector<2x128xf32>
    %61 = arith.negf %60 : vector<2x128xf32>
    %62 = math.exp %61 : vector<2x128xf32>
    %cst_17 = arith.constant 1.000000e+00 : f32
    %63 = vector.broadcast %cst_17 : f32 to vector<2x128xf32>
    %64 = arith.addf %63, %62 : vector<2x128xf32>
    %65 = arith.divf %63, %64 : vector<2x128xf32>
    %66 = vector.extract_strided_slice %59 {offsets = [0, 128], sizes = [2, 128], strides = [1, 1]} : vector<2x512xf32> to vector<2x128xf32>
    %67 = arith.negf %66 : vector<2x128xf32>
    %68 = math.exp %67 : vector<2x128xf32>
    %cst_18 = arith.constant 1.000000e+00 : f32
    %69 = vector.broadcast %cst_18 : f32 to vector<2x128xf32>
    %70 = arith.addf %69, %68 : vector<2x128xf32>
    %71 = arith.divf %69, %70 : vector<2x128xf32>
    %72 = vector.extract_strided_slice %59 {offsets = [0, 256], sizes = [2, 128], strides = [1, 1]} : vector<2x512xf32> to vector<2x128xf32>
    %73 = math.tanh %72 : vector<2x128xf32>
    %74 = vector.extract_strided_slice %59 {offsets = [0, 384], sizes = [2, 128], strides = [1, 1]} : vector<2x512xf32> to vector<2x128xf32>
    %75 = arith.negf %74 : vector<2x128xf32>
    %76 = math.exp %75 : vector<2x128xf32>
    %cst_19 = arith.constant 1.000000e+00 : f32
    %77 = vector.broadcast %cst_19 : f32 to vector<2x128xf32>
    %78 = arith.addf %77, %76 : vector<2x128xf32>
    %79 = arith.divf %77, %78 : vector<2x128xf32>
    %80 = arith.mulf %71, %53 : vector<2x128xf32>
    %81 = arith.mulf %65, %73 : vector<2x128xf32>
    %82 = arith.addf %80, %81 : vector<2x128xf32>
    %83 = math.tanh %82 : vector<2x128xf32>
    %84 = arith.mulf %79, %83 : vector<2x128xf32>
    %85 = tpu.concatenate %84, %7 in 1 : vector<2x128xf32>, vector<2x3xf32> -> vector<2x131xf32>
    %c0_20 = arith.constant 0 : index
    %c0_21 = arith.constant 0 : index
    %86 = vector.load %arg2[%c0_20, %c0_21] : memref<131x512xf32, #tpu.memory_space<vmem>>, vector<131x512xf32>
    %cst_22 = arith.constant dense<0.000000e+00> : vector<2x512xf32>
    %87 = tpu.matmul %85, %86, %cst_22 {dimension_numbers = #tpu.dot_dimension_numbers<[1], [0], [0], [1], [0, 0, 1, 1], [], []>} : vector<2x131xf32>, vector<131x512xf32>, vector<2x512xf32> -> vector<2x512xf32>
    %88 = arith.addf %87, %24 : vector<2x512xf32>
    %89 = vector.extract_strided_slice %88 {offsets = [0, 0], sizes = [2, 128], strides = [1, 1]} : vector<2x512xf32> to vector<2x128xf32>
    %90 = arith.negf %89 : vector<2x128xf32>
    %91 = math.exp %90 : vector<2x128xf32>
    %cst_23 = arith.constant 1.000000e+00 : f32
    %92 = vector.broadcast %cst_23 : f32 to vector<2x128xf32>
    %93 = arith.addf %92, %91 : vector<2x128xf32>
    %94 = arith.divf %92, %93 : vector<2x128xf32>
    %95 = vector.extract_strided_slice %88 {offsets = [0, 128], sizes = [2, 128], strides = [1, 1]} : vector<2x512xf32> to vector<2x128xf32>
    %96 = arith.negf %95 : vector<2x128xf32>
    %97 = math.exp %96 : vector<2x128xf32>
    %cst_24 = arith.constant 1.000000e+00 : f32
    %98 = vector.broadcast %cst_24 : f32 to vector<2x128xf32>
    %99 = arith.addf %98, %97 : vector<2x128xf32>
    %100 = arith.divf %98, %99 : vector<2x128xf32>
    %101 = vector.extract_strided_slice %88 {offsets = [0, 256], sizes = [2, 128], strides = [1, 1]} : vector<2x512xf32> to vector<2x128xf32>
    %102 = math.tanh %101 : vector<2x128xf32>
    %103 = vector.extract_strided_slice %88 {offsets = [0, 384], sizes = [2, 128], strides = [1, 1]} : vector<2x512xf32> to vector<2x128xf32>
    %104 = arith.negf %103 : vector<2x128xf32>
    %105 = math.exp %104 : vector<2x128xf32>
    %cst_25 = arith.constant 1.000000e+00 : f32
    %106 = vector.broadcast %cst_25 : f32 to vector<2x128xf32>
    %107 = arith.addf %106, %105 : vector<2x128xf32>
    %108 = arith.divf %106, %107 : vector<2x128xf32>
    %109 = arith.mulf %100, %82 : vector<2x128xf32>
    %110 = arith.mulf %94, %102 : vector<2x128xf32>
    %111 = arith.addf %109, %110 : vector<2x128xf32>
    %112 = math.tanh %111 : vector<2x128xf32>
    %113 = arith.mulf %108, %112 : vector<2x128xf32>
    %114 = tpu.concatenate %113, %9 in 1 : vector<2x128xf32>, vector<2x3xf32> -> vector<2x131xf32>
    %c0_26 = arith.constant 0 : index
    %c0_27 = arith.constant 0 : index
    %115 = vector.load %arg2[%c0_26, %c0_27] : memref<131x512xf32, #tpu.memory_space<vmem>>, vector<131x512xf32>
    %cst_28 = arith.constant dense<0.000000e+00> : vector<2x512xf32>
    %116 = tpu.matmul %114, %115, %cst_28 {dimension_numbers = #tpu.dot_dimension_numbers<[1], [0], [0], [1], [0, 0, 1, 1], [], []>} : vector<2x131xf32>, vector<131x512xf32>, vector<2x512xf32> -> vector<2x512xf32>
    %117 = arith.addf %116, %24 : vector<2x512xf32>
    %118 = vector.extract_strided_slice %117 {offsets = [0, 0], sizes = [2, 128], strides = [1, 1]} : vector<2x512xf32> to vector<2x128xf32>
    %119 = arith.negf %118 : vector<2x128xf32>
    %120 = math.exp %119 : vector<2x128xf32>
    %cst_29 = arith.constant 1.000000e+00 : f32
    %121 = vector.broadcast %cst_29 : f32 to vector<2x128xf32>
    %122 = arith.addf %121, %120 : vector<2x128xf32>
    %123 = arith.divf %121, %122 : vector<2x128xf32>
    %124 = vector.extract_strided_slice %117 {offsets = [0, 128], sizes = [2, 128], strides = [1, 1]} : vector<2x512xf32> to vector<2x128xf32>
    %125 = arith.negf %124 : vector<2x128xf32>
    %126 = math.exp %125 : vector<2x128xf32>
    %cst_30 = arith.constant 1.000000e+00 : f32
    %127 = vector.broadcast %cst_30 : f32 to vector<2x128xf32>
    %128 = arith.addf %127, %126 : vector<2x128xf32>
    %129 = arith.divf %127, %128 : vector<2x128xf32>
    %130 = vector.extract_strided_slice %117 {offsets = [0, 256], sizes = [2, 128], strides = [1, 1]} : vector<2x512xf32> to vector<2x128xf32>
    %131 = math.tanh %130 : vector<2x128xf32>
    %132 = vector.extract_strided_slice %117 {offsets = [0, 384], sizes = [2, 128], strides = [1, 1]} : vector<2x512xf32> to vector<2x128xf32>
    %133 = arith.negf %132 : vector<2x128xf32>
    %134 = math.exp %133 : vector<2x128xf32>
    %cst_31 = arith.constant 1.000000e+00 : f32
    %135 = vector.broadcast %cst_31 : f32 to vector<2x128xf32>
    %136 = arith.addf %135, %134 : vector<2x128xf32>
    %137 = arith.divf %135, %136 : vector<2x128xf32>
    %138 = arith.mulf %129, %111 : vector<2x128xf32>
    %139 = arith.mulf %123, %131 : vector<2x128xf32>
    %140 = arith.addf %138, %139 : vector<2x128xf32>
    %141 = math.tanh %140 : vector<2x128xf32>
    %142 = arith.mulf %137, %141 : vector<2x128xf32>
    %143 = tpu.concatenate %142, %11 in 1 : vector<2x128xf32>, vector<2x3xf32> -> vector<2x131xf32>
    %c0_32 = arith.constant 0 : index
    %c0_33 = arith.constant 0 : index
    %144 = vector.load %arg2[%c0_32, %c0_33] : memref<131x512xf32, #tpu.memory_space<vmem>>, vector<131x512xf32>
    %cst_34 = arith.constant dense<0.000000e+00> : vector<2x512xf32>
    %145 = tpu.matmul %143, %144, %cst_34 {dimension_numbers = #tpu.dot_dimension_numbers<[1], [0], [0], [1], [0, 0, 1, 1], [], []>} : vector<2x131xf32>, vector<131x512xf32>, vector<2x512xf32> -> vector<2x512xf32>
    %146 = arith.addf %145, %24 : vector<2x512xf32>
    %147 = vector.extract_strided_slice %146 {offsets = [0, 0], sizes = [2, 128], strides = [1, 1]} : vector<2x512xf32> to vector<2x128xf32>
    %148 = arith.negf %147 : vector<2x128xf32>
    %149 = math.exp %148 : vector<2x128xf32>
    %cst_35 = arith.constant 1.000000e+00 : f32
    %150 = vector.broadcast %cst_35 : f32 to vector<2x128xf32>
    %151 = arith.addf %150, %149 : vector<2x128xf32>
    %152 = arith.divf %150, %151 : vector<2x128xf32>
    %153 = vector.extract_strided_slice %146 {offsets = [0, 128], sizes = [2, 128], strides = [1, 1]} : vector<2x512xf32> to vector<2x128xf32>
    %154 = arith.negf %153 : vector<2x128xf32>
    %155 = math.exp %154 : vector<2x128xf32>
    %cst_36 = arith.constant 1.000000e+00 : f32
    %156 = vector.broadcast %cst_36 : f32 to vector<2x128xf32>
    %157 = arith.addf %156, %155 : vector<2x128xf32>
    %158 = arith.divf %156, %157 : vector<2x128xf32>
    %159 = vector.extract_strided_slice %146 {offsets = [0, 256], sizes = [2, 128], strides = [1, 1]} : vector<2x512xf32> to vector<2x128xf32>
    %160 = math.tanh %159 : vector<2x128xf32>
    %161 = vector.extract_strided_slice %146 {offsets = [0, 384], sizes = [2, 128], strides = [1, 1]} : vector<2x512xf32> to vector<2x128xf32>
    %162 = arith.negf %161 : vector<2x128xf32>
    %163 = math.exp %162 : vector<2x128xf32>
    %cst_37 = arith.constant 1.000000e+00 : f32
    %164 = vector.broadcast %cst_37 : f32 to vector<2x128xf32>
    %165 = arith.addf %164, %163 : vector<2x128xf32>
    %166 = arith.divf %164, %165 : vector<2x128xf32>
    %167 = arith.mulf %158, %140 : vector<2x128xf32>
    %168 = arith.mulf %152, %160 : vector<2x128xf32>
    %169 = arith.addf %167, %168 : vector<2x128xf32>
    %170 = math.tanh %169 : vector<2x128xf32>
    %171 = arith.mulf %166, %170 : vector<2x128xf32>
    %172 = tpu.concatenate %171, %13 in 1 : vector<2x128xf32>, vector<2x3xf32> -> vector<2x131xf32>
    %c0_38 = arith.constant 0 : index
    %c0_39 = arith.constant 0 : index
    %173 = vector.load %arg2[%c0_38, %c0_39] : memref<131x512xf32, #tpu.memory_space<vmem>>, vector<131x512xf32>
    %cst_40 = arith.constant dense<0.000000e+00> : vector<2x512xf32>
    %174 = tpu.matmul %172, %173, %cst_40 {dimension_numbers = #tpu.dot_dimension_numbers<[1], [0], [0], [1], [0, 0, 1, 1], [], []>} : vector<2x131xf32>, vector<131x512xf32>, vector<2x512xf32> -> vector<2x512xf32>
    %175 = arith.addf %174, %24 : vector<2x512xf32>
    %176 = vector.extract_strided_slice %175 {offsets = [0, 0], sizes = [2, 128], strides = [1, 1]} : vector<2x512xf32> to vector<2x128xf32>
    %177 = arith.negf %176 : vector<2x128xf32>
    %178 = math.exp %177 : vector<2x128xf32>
    %cst_41 = arith.constant 1.000000e+00 : f32
    %179 = vector.broadcast %cst_41 : f32 to vector<2x128xf32>
    %180 = arith.addf %179, %178 : vector<2x128xf32>
    %181 = arith.divf %179, %180 : vector<2x128xf32>
    %182 = vector.extract_strided_slice %175 {offsets = [0, 128], sizes = [2, 128], strides = [1, 1]} : vector<2x512xf32> to vector<2x128xf32>
    %183 = arith.negf %182 : vector<2x128xf32>
    %184 = math.exp %183 : vector<2x128xf32>
    %cst_42 = arith.constant 1.000000e+00 : f32
    %185 = vector.broadcast %cst_42 : f32 to vector<2x128xf32>
    %186 = arith.addf %185, %184 : vector<2x128xf32>
    %187 = arith.divf %185, %186 : vector<2x128xf32>
    %188 = vector.extract_strided_slice %175 {offsets = [0, 256], sizes = [2, 128], strides = [1, 1]} : vector<2x512xf32> to vector<2x128xf32>
    %189 = math.tanh %188 : vector<2x128xf32>
    %190 = vector.extract_strided_slice %175 {offsets = [0, 384], sizes = [2, 128], strides = [1, 1]} : vector<2x512xf32> to vector<2x128xf32>
    %191 = arith.negf %190 : vector<2x128xf32>
    %192 = math.exp %191 : vector<2x128xf32>
    %cst_43 = arith.constant 1.000000e+00 : f32
    %193 = vector.broadcast %cst_43 : f32 to vector<2x128xf32>
    %194 = arith.addf %193, %192 : vector<2x128xf32>
    %195 = arith.divf %193, %194 : vector<2x128xf32>
    %196 = arith.mulf %187, %169 : vector<2x128xf32>
    %197 = arith.mulf %181, %189 : vector<2x128xf32>
    %198 = arith.addf %196, %197 : vector<2x128xf32>
    %199 = math.tanh %198 : vector<2x128xf32>
    %200 = arith.mulf %195, %199 : vector<2x128xf32>
    %201 = tpu.concatenate %200, %15 in 1 : vector<2x128xf32>, vector<2x3xf32> -> vector<2x131xf32>
    %c0_44 = arith.constant 0 : index
    %c0_45 = arith.constant 0 : index
    %202 = vector.load %arg2[%c0_44, %c0_45] : memref<131x512xf32, #tpu.memory_space<vmem>>, vector<131x512xf32>
    %cst_46 = arith.constant dense<0.000000e+00> : vector<2x512xf32>
    %203 = tpu.matmul %201, %202, %cst_46 {dimension_numbers = #tpu.dot_dimension_numbers<[1], [0], [0], [1], [0, 0, 1, 1], [], []>} : vector<2x131xf32>, vector<131x512xf32>, vector<2x512xf32> -> vector<2x512xf32>
    %204 = arith.addf %203, %24 : vector<2x512xf32>
    %205 = vector.extract_strided_slice %204 {offsets = [0, 0], sizes = [2, 128], strides = [1, 1]} : vector<2x512xf32> to vector<2x128xf32>
    %206 = arith.negf %205 : vector<2x128xf32>
    %207 = math.exp %206 : vector<2x128xf32>
    %cst_47 = arith.constant 1.000000e+00 : f32
    %208 = vector.broadcast %cst_47 : f32 to vector<2x128xf32>
    %209 = arith.addf %208, %207 : vector<2x128xf32>
    %210 = arith.divf %208, %209 : vector<2x128xf32>
    %211 = vector.extract_strided_slice %204 {offsets = [0, 128], sizes = [2, 128], strides = [1, 1]} : vector<2x512xf32> to vector<2x128xf32>
    %212 = arith.negf %211 : vector<2x128xf32>
    %213 = math.exp %212 : vector<2x128xf32>
    %cst_48 = arith.constant 1.000000e+00 : f32
    %214 = vector.broadcast %cst_48 : f32 to vector<2x128xf32>
    %215 = arith.addf %214, %213 : vector<2x128xf32>
    %216 = arith.divf %214, %215 : vector<2x128xf32>
    %217 = vector.extract_strided_slice %204 {offsets = [0, 256], sizes = [2, 128], strides = [1, 1]} : vector<2x512xf32> to vector<2x128xf32>
    %218 = math.tanh %217 : vector<2x128xf32>
    %219 = vector.extract_strided_slice %204 {offsets = [0, 384], sizes = [2, 128], strides = [1, 1]} : vector<2x512xf32> to vector<2x128xf32>
    %220 = arith.negf %219 : vector<2x128xf32>
    %221 = math.exp %220 : vector<2x128xf32>
    %cst_49 = arith.constant 1.000000e+00 : f32
    %222 = vector.broadcast %cst_49 : f32 to vector<2x128xf32>
    %223 = arith.addf %222, %221 : vector<2x128xf32>
    %224 = arith.divf %222, %223 : vector<2x128xf32>
    %225 = arith.mulf %216, %198 : vector<2x128xf32>
    %226 = arith.mulf %210, %218 : vector<2x128xf32>
    %227 = arith.addf %225, %226 : vector<2x128xf32>
    %228 = math.tanh %227 : vector<2x128xf32>
    %229 = arith.mulf %224, %228 : vector<2x128xf32>
    %230 = tpu.concatenate %229, %17 in 1 : vector<2x128xf32>, vector<2x3xf32> -> vector<2x131xf32>
    %c0_50 = arith.constant 0 : index
    %c0_51 = arith.constant 0 : index
    %231 = vector.load %arg2[%c0_50, %c0_51] : memref<131x512xf32, #tpu.memory_space<vmem>>, vector<131x512xf32>
    %cst_52 = arith.constant dense<0.000000e+00> : vector<2x512xf32>
    %232 = tpu.matmul %230, %231, %cst_52 {dimension_numbers = #tpu.dot_dimension_numbers<[1], [0], [0], [1], [0, 0, 1, 1], [], []>} : vector<2x131xf32>, vector<131x512xf32>, vector<2x512xf32> -> vector<2x512xf32>
    %233 = arith.addf %232, %24 : vector<2x512xf32>
    %234 = vector.extract_strided_slice %233 {offsets = [0, 0], sizes = [2, 128], strides = [1, 1]} : vector<2x512xf32> to vector<2x128xf32>
    %235 = arith.negf %234 : vector<2x128xf32>
    %236 = math.exp %235 : vector<2x128xf32>
    %cst_53 = arith.constant 1.000000e+00 : f32
    %237 = vector.broadcast %cst_53 : f32 to vector<2x128xf32>
    %238 = arith.addf %237, %236 : vector<2x128xf32>
    %239 = arith.divf %237, %238 : vector<2x128xf32>
    %240 = vector.extract_strided_slice %233 {offsets = [0, 128], sizes = [2, 128], strides = [1, 1]} : vector<2x512xf32> to vector<2x128xf32>
    %241 = arith.negf %240 : vector<2x128xf32>
    %242 = math.exp %241 : vector<2x128xf32>
    %cst_54 = arith.constant 1.000000e+00 : f32
    %243 = vector.broadcast %cst_54 : f32 to vector<2x128xf32>
    %244 = arith.addf %243, %242 : vector<2x128xf32>
    %245 = arith.divf %243, %244 : vector<2x128xf32>
    %246 = vector.extract_strided_slice %233 {offsets = [0, 256], sizes = [2, 128], strides = [1, 1]} : vector<2x512xf32> to vector<2x128xf32>
    %247 = math.tanh %246 : vector<2x128xf32>
    %248 = vector.extract_strided_slice %233 {offsets = [0, 384], sizes = [2, 128], strides = [1, 1]} : vector<2x512xf32> to vector<2x128xf32>
    %249 = arith.negf %248 : vector<2x128xf32>
    %250 = math.exp %249 : vector<2x128xf32>
    %cst_55 = arith.constant 1.000000e+00 : f32
    %251 = vector.broadcast %cst_55 : f32 to vector<2x128xf32>
    %252 = arith.addf %251, %250 : vector<2x128xf32>
    %253 = arith.divf %251, %252 : vector<2x128xf32>
    %254 = arith.mulf %245, %227 : vector<2x128xf32>
    %255 = arith.mulf %239, %247 : vector<2x128xf32>
    %256 = arith.addf %254, %255 : vector<2x128xf32>
    %257 = math.tanh %256 : vector<2x128xf32>
    %258 = arith.mulf %253, %257 : vector<2x128xf32>
    %259 = tpu.concatenate %258, %19 in 1 : vector<2x128xf32>, vector<2x3xf32> -> vector<2x131xf32>
    %c0_56 = arith.constant 0 : index
    %c0_57 = arith.constant 0 : index
    %260 = vector.load %arg2[%c0_56, %c0_57] : memref<131x512xf32, #tpu.memory_space<vmem>>, vector<131x512xf32>
    %cst_58 = arith.constant dense<0.000000e+00> : vector<2x512xf32>
    %261 = tpu.matmul %259, %260, %cst_58 {dimension_numbers = #tpu.dot_dimension_numbers<[1], [0], [0], [1], [0, 0, 1, 1], [], []>} : vector<2x131xf32>, vector<131x512xf32>, vector<2x512xf32> -> vector<2x512xf32>
    %262 = arith.addf %261, %24 : vector<2x512xf32>
    %263 = vector.extract_strided_slice %262 {offsets = [0, 0], sizes = [2, 128], strides = [1, 1]} : vector<2x512xf32> to vector<2x128xf32>
    %264 = arith.negf %263 : vector<2x128xf32>
    %265 = math.exp %264 : vector<2x128xf32>
    %cst_59 = arith.constant 1.000000e+00 : f32
    %266 = vector.broadcast %cst_59 : f32 to vector<2x128xf32>
    %267 = arith.addf %266, %265 : vector<2x128xf32>
    %268 = arith.divf %266, %267 : vector<2x128xf32>
    %269 = vector.extract_strided_slice %262 {offsets = [0, 128], sizes = [2, 128], strides = [1, 1]} : vector<2x512xf32> to vector<2x128xf32>
    %270 = arith.negf %269 : vector<2x128xf32>
    %271 = math.exp %270 : vector<2x128xf32>
    %cst_60 = arith.constant 1.000000e+00 : f32
    %272 = vector.broadcast %cst_60 : f32 to vector<2x128xf32>
    %273 = arith.addf %272, %271 : vector<2x128xf32>
    %274 = arith.divf %272, %273 : vector<2x128xf32>
    %275 = vector.extract_strided_slice %262 {offsets = [0, 256], sizes = [2, 128], strides = [1, 1]} : vector<2x512xf32> to vector<2x128xf32>
    %276 = math.tanh %275 : vector<2x128xf32>
    %277 = vector.extract_strided_slice %262 {offsets = [0, 384], sizes = [2, 128], strides = [1, 1]} : vector<2x512xf32> to vector<2x128xf32>
    %278 = arith.negf %277 : vector<2x128xf32>
    %279 = math.exp %278 : vector<2x128xf32>
    %cst_61 = arith.constant 1.000000e+00 : f32
    %280 = vector.broadcast %cst_61 : f32 to vector<2x128xf32>
    %281 = arith.addf %280, %279 : vector<2x128xf32>
    %282 = arith.divf %280, %281 : vector<2x128xf32>
    %283 = arith.mulf %274, %256 : vector<2x128xf32>
    %284 = arith.mulf %268, %276 : vector<2x128xf32>
    %285 = arith.addf %283, %284 : vector<2x128xf32>
    %286 = math.tanh %285 : vector<2x128xf32>
    %287 = arith.mulf %282, %286 : vector<2x128xf32>
    %288 = tpu.concatenate %287, %21 in 1 : vector<2x128xf32>, vector<2x3xf32> -> vector<2x131xf32>
    %c0_62 = arith.constant 0 : index
    %c0_63 = arith.constant 0 : index
    %289 = vector.load %arg2[%c0_62, %c0_63] : memref<131x512xf32, #tpu.memory_space<vmem>>, vector<131x512xf32>
    %cst_64 = arith.constant dense<0.000000e+00> : vector<2x512xf32>
    %290 = tpu.matmul %288, %289, %cst_64 {dimension_numbers = #tpu.dot_dimension_numbers<[1], [0], [0], [1], [0, 0, 1, 1], [], []>} : vector<2x131xf32>, vector<131x512xf32>, vector<2x512xf32> -> vector<2x512xf32>
    %291 = arith.addf %290, %24 : vector<2x512xf32>
    %292 = vector.extract_strided_slice %291 {offsets = [0, 0], sizes = [2, 128], strides = [1, 1]} : vector<2x512xf32> to vector<2x128xf32>
    %293 = arith.negf %292 : vector<2x128xf32>
    %294 = math.exp %293 : vector<2x128xf32>
    %cst_65 = arith.constant 1.000000e+00 : f32
    %295 = vector.broadcast %cst_65 : f32 to vector<2x128xf32>
    %296 = arith.addf %295, %294 : vector<2x128xf32>
    %297 = arith.divf %295, %296 : vector<2x128xf32>
    %298 = vector.extract_strided_slice %291 {offsets = [0, 128], sizes = [2, 128], strides = [1, 1]} : vector<2x512xf32> to vector<2x128xf32>
    %299 = arith.negf %298 : vector<2x128xf32>
    %300 = math.exp %299 : vector<2x128xf32>
    %cst_66 = arith.constant 1.000000e+00 : f32
    %301 = vector.broadcast %cst_66 : f32 to vector<2x128xf32>
    %302 = arith.addf %301, %300 : vector<2x128xf32>
    %303 = arith.divf %301, %302 : vector<2x128xf32>
    %304 = vector.extract_strided_slice %291 {offsets = [0, 256], sizes = [2, 128], strides = [1, 1]} : vector<2x512xf32> to vector<2x128xf32>
    %305 = math.tanh %304 : vector<2x128xf32>
    %306 = vector.extract_strided_slice %291 {offsets = [0, 384], sizes = [2, 128], strides = [1, 1]} : vector<2x512xf32> to vector<2x128xf32>
    %307 = arith.negf %306 : vector<2x128xf32>
    %308 = math.exp %307 : vector<2x128xf32>
    %cst_67 = arith.constant 1.000000e+00 : f32
    %309 = vector.broadcast %cst_67 : f32 to vector<2x128xf32>
    %310 = arith.addf %309, %308 : vector<2x128xf32>
    %311 = arith.divf %309, %310 : vector<2x128xf32>
    %312 = arith.mulf %303, %285 : vector<2x128xf32>
    %313 = arith.mulf %297, %305 : vector<2x128xf32>
    %314 = arith.addf %312, %313 : vector<2x128xf32>
    %315 = math.tanh %314 : vector<2x128xf32>
    %316 = arith.mulf %311, %315 : vector<2x128xf32>
    %c0_68 = arith.constant 0 : index
    %c0_69 = arith.constant 0 : index
    %317 = vector.load %arg5[%c0_68, %c0_69] : memref<1x512xf32, #tpu.memory_space<vmem>>, vector<1x512xf32>
    %318 = vector.shape_cast %317 : vector<1x512xf32> to vector<1x512xf32>
    %319 = vector.broadcast %318 : vector<1x512xf32> to vector<2x512xf32>
    %cst_70 = arith.constant 0.000000e+00 : f32
    %320 = vector.broadcast %cst_70 : f32 to vector<2x128xf32>
    %cst_71 = arith.constant 0.000000e+00 : f32
    %321 = vector.broadcast %cst_71 : f32 to vector<2x128xf32>
    %322 = tpu.concatenate %320, %55 in 1 : vector<2x128xf32>, vector<2x128xf32> -> vector<2x256xf32>
    %c0_72 = arith.constant 0 : index
    %c0_73 = arith.constant 0 : index
    %323 = vector.load %arg4[%c0_72, %c0_73] : memref<256x512xf32, #tpu.memory_space<vmem>>, vector<256x512xf32>
    %cst_74 = arith.constant dense<0.000000e+00> : vector<2x512xf32>
    %324 = tpu.matmul %322, %323, %cst_74 {dimension_numbers = #tpu.dot_dimension_numbers<[1], [0], [0], [1], [0, 0, 1, 1], [], []>} : vector<2x256xf32>, vector<256x512xf32>, vector<2x512xf32> -> vector<2x512xf32>
    %325 = arith.addf %324, %319 : vector<2x512xf32>
    %326 = vector.extract_strided_slice %325 {offsets = [0, 0], sizes = [2, 128], strides = [1, 1]} : vector<2x512xf32> to vector<2x128xf32>
    %327 = arith.negf %326 : vector<2x128xf32>
    %328 = math.exp %327 : vector<2x128xf32>
    %cst_75 = arith.constant 1.000000e+00 : f32
    %329 = vector.broadcast %cst_75 : f32 to vector<2x128xf32>
    %330 = arith.addf %329, %328 : vector<2x128xf32>
    %331 = arith.divf %329, %330 : vector<2x128xf32>
    %332 = vector.extract_strided_slice %325 {offsets = [0, 128], sizes = [2, 128], strides = [1, 1]} : vector<2x512xf32> to vector<2x128xf32>
    %333 = arith.negf %332 : vector<2x128xf32>
    %334 = math.exp %333 : vector<2x128xf32>
    %cst_76 = arith.constant 1.000000e+00 : f32
    %335 = vector.broadcast %cst_76 : f32 to vector<2x128xf32>
    %336 = arith.addf %335, %334 : vector<2x128xf32>
    %337 = arith.divf %335, %336 : vector<2x128xf32>
    %338 = vector.extract_strided_slice %325 {offsets = [0, 256], sizes = [2, 128], strides = [1, 1]} : vector<2x512xf32> to vector<2x128xf32>
    %339 = math.tanh %338 : vector<2x128xf32>
    %340 = vector.extract_strided_slice %325 {offsets = [0, 384], sizes = [2, 128], strides = [1, 1]} : vector<2x512xf32> to vector<2x128xf32>
    %341 = arith.negf %340 : vector<2x128xf32>
    %342 = math.exp %341 : vector<2x128xf32>
    %cst_77 = arith.constant 1.000000e+00 : f32
    %343 = vector.broadcast %cst_77 : f32 to vector<2x128xf32>
    %344 = arith.addf %343, %342 : vector<2x128xf32>
    %345 = arith.divf %343, %344 : vector<2x128xf32>
    %346 = arith.mulf %337, %321 : vector<2x128xf32>
    %347 = arith.mulf %331, %339 : vector<2x128xf32>
    %348 = arith.addf %346, %347 : vector<2x128xf32>
    %349 = math.tanh %348 : vector<2x128xf32>
    %350 = arith.mulf %345, %349 : vector<2x128xf32>
    %351 = tpu.concatenate %350, %84 in 1 : vector<2x128xf32>, vector<2x128xf32> -> vector<2x256xf32>
    %c0_78 = arith.constant 0 : index
    %c0_79 = arith.constant 0 : index
    %352 = vector.load %arg4[%c0_78, %c0_79] : memref<256x512xf32, #tpu.memory_space<vmem>>, vector<256x512xf32>
    %cst_80 = arith.constant dense<0.000000e+00> : vector<2x512xf32>
    %353 = tpu.matmul %351, %352, %cst_80 {dimension_numbers = #tpu.dot_dimension_numbers<[1], [0], [0], [1], [0, 0, 1, 1], [], []>} : vector<2x256xf32>, vector<256x512xf32>, vector<2x512xf32> -> vector<2x512xf32>
    %354 = arith.addf %353, %319 : vector<2x512xf32>
    %355 = vector.extract_strided_slice %354 {offsets = [0, 0], sizes = [2, 128], strides = [1, 1]} : vector<2x512xf32> to vector<2x128xf32>
    %356 = arith.negf %355 : vector<2x128xf32>
    %357 = math.exp %356 : vector<2x128xf32>
    %cst_81 = arith.constant 1.000000e+00 : f32
    %358 = vector.broadcast %cst_81 : f32 to vector<2x128xf32>
    %359 = arith.addf %358, %357 : vector<2x128xf32>
    %360 = arith.divf %358, %359 : vector<2x128xf32>
    %361 = vector.extract_strided_slice %354 {offsets = [0, 128], sizes = [2, 128], strides = [1, 1]} : vector<2x512xf32> to vector<2x128xf32>
    %362 = arith.negf %361 : vector<2x128xf32>
    %363 = math.exp %362 : vector<2x128xf32>
    %cst_82 = arith.constant 1.000000e+00 : f32
    %364 = vector.broadcast %cst_82 : f32 to vector<2x128xf32>
    %365 = arith.addf %364, %363 : vector<2x128xf32>
    %366 = arith.divf %364, %365 : vector<2x128xf32>
    %367 = vector.extract_strided_slice %354 {offsets = [0, 256], sizes = [2, 128], strides = [1, 1]} : vector<2x512xf32> to vector<2x128xf32>
    %368 = math.tanh %367 : vector<2x128xf32>
    %369 = vector.extract_strided_slice %354 {offsets = [0, 384], sizes = [2, 128], strides = [1, 1]} : vector<2x512xf32> to vector<2x128xf32>
    %370 = arith.negf %369 : vector<2x128xf32>
    %371 = math.exp %370 : vector<2x128xf32>
    %cst_83 = arith.constant 1.000000e+00 : f32
    %372 = vector.broadcast %cst_83 : f32 to vector<2x128xf32>
    %373 = arith.addf %372, %371 : vector<2x128xf32>
    %374 = arith.divf %372, %373 : vector<2x128xf32>
    %375 = arith.mulf %366, %348 : vector<2x128xf32>
    %376 = arith.mulf %360, %368 : vector<2x128xf32>
    %377 = arith.addf %375, %376 : vector<2x128xf32>
    %378 = math.tanh %377 : vector<2x128xf32>
    %379 = arith.mulf %374, %378 : vector<2x128xf32>
    %380 = tpu.concatenate %379, %113 in 1 : vector<2x128xf32>, vector<2x128xf32> -> vector<2x256xf32>
    %c0_84 = arith.constant 0 : index
    %c0_85 = arith.constant 0 : index
    %381 = vector.load %arg4[%c0_84, %c0_85] : memref<256x512xf32, #tpu.memory_space<vmem>>, vector<256x512xf32>
    %cst_86 = arith.constant dense<0.000000e+00> : vector<2x512xf32>
    %382 = tpu.matmul %380, %381, %cst_86 {dimension_numbers = #tpu.dot_dimension_numbers<[1], [0], [0], [1], [0, 0, 1, 1], [], []>} : vector<2x256xf32>, vector<256x512xf32>, vector<2x512xf32> -> vector<2x512xf32>
    %383 = arith.addf %382, %319 : vector<2x512xf32>
    %384 = vector.extract_strided_slice %383 {offsets = [0, 0], sizes = [2, 128], strides = [1, 1]} : vector<2x512xf32> to vector<2x128xf32>
    %385 = arith.negf %384 : vector<2x128xf32>
    %386 = math.exp %385 : vector<2x128xf32>
    %cst_87 = arith.constant 1.000000e+00 : f32
    %387 = vector.broadcast %cst_87 : f32 to vector<2x128xf32>
    %388 = arith.addf %387, %386 : vector<2x128xf32>
    %389 = arith.divf %387, %388 : vector<2x128xf32>
    %390 = vector.extract_strided_slice %383 {offsets = [0, 128], sizes = [2, 128], strides = [1, 1]} : vector<2x512xf32> to vector<2x128xf32>
    %391 = arith.negf %390 : vector<2x128xf32>
    %392 = math.exp %391 : vector<2x128xf32>
    %cst_88 = arith.constant 1.000000e+00 : f32
    %393 = vector.broadcast %cst_88 : f32 to vector<2x128xf32>
    %394 = arith.addf %393, %392 : vector<2x128xf32>
    %395 = arith.divf %393, %394 : vector<2x128xf32>
    %396 = vector.extract_strided_slice %383 {offsets = [0, 256], sizes = [2, 128], strides = [1, 1]} : vector<2x512xf32> to vector<2x128xf32>
    %397 = math.tanh %396 : vector<2x128xf32>
    %398 = vector.extract_strided_slice %383 {offsets = [0, 384], sizes = [2, 128], strides = [1, 1]} : vector<2x512xf32> to vector<2x128xf32>
    %399 = arith.negf %398 : vector<2x128xf32>
    %400 = math.exp %399 : vector<2x128xf32>
    %cst_89 = arith.constant 1.000000e+00 : f32
    %401 = vector.broadcast %cst_89 : f32 to vector<2x128xf32>
    %402 = arith.addf %401, %400 : vector<2x128xf32>
    %403 = arith.divf %401, %402 : vector<2x128xf32>
    %404 = arith.mulf %395, %377 : vector<2x128xf32>
    %405 = arith.mulf %389, %397 : vector<2x128xf32>
    %406 = arith.addf %404, %405 : vector<2x128xf32>
    %407 = math.tanh %406 : vector<2x128xf32>
    %408 = arith.mulf %403, %407 : vector<2x128xf32>
    %409 = tpu.concatenate %408, %142 in 1 : vector<2x128xf32>, vector<2x128xf32> -> vector<2x256xf32>
    %c0_90 = arith.constant 0 : index
    %c0_91 = arith.constant 0 : index
    %410 = vector.load %arg4[%c0_90, %c0_91] : memref<256x512xf32, #tpu.memory_space<vmem>>, vector<256x512xf32>
    %cst_92 = arith.constant dense<0.000000e+00> : vector<2x512xf32>
    %411 = tpu.matmul %409, %410, %cst_92 {dimension_numbers = #tpu.dot_dimension_numbers<[1], [0], [0], [1], [0, 0, 1, 1], [], []>} : vector<2x256xf32>, vector<256x512xf32>, vector<2x512xf32> -> vector<2x512xf32>
    %412 = arith.addf %411, %319 : vector<2x512xf32>
    %413 = vector.extract_strided_slice %412 {offsets = [0, 0], sizes = [2, 128], strides = [1, 1]} : vector<2x512xf32> to vector<2x128xf32>
    %414 = arith.negf %413 : vector<2x128xf32>
    %415 = math.exp %414 : vector<2x128xf32>
    %cst_93 = arith.constant 1.000000e+00 : f32
    %416 = vector.broadcast %cst_93 : f32 to vector<2x128xf32>
    %417 = arith.addf %416, %415 : vector<2x128xf32>
    %418 = arith.divf %416, %417 : vector<2x128xf32>
    %419 = vector.extract_strided_slice %412 {offsets = [0, 128], sizes = [2, 128], strides = [1, 1]} : vector<2x512xf32> to vector<2x128xf32>
    %420 = arith.negf %419 : vector<2x128xf32>
    %421 = math.exp %420 : vector<2x128xf32>
    %cst_94 = arith.constant 1.000000e+00 : f32
    %422 = vector.broadcast %cst_94 : f32 to vector<2x128xf32>
    %423 = arith.addf %422, %421 : vector<2x128xf32>
    %424 = arith.divf %422, %423 : vector<2x128xf32>
    %425 = vector.extract_strided_slice %412 {offsets = [0, 256], sizes = [2, 128], strides = [1, 1]} : vector<2x512xf32> to vector<2x128xf32>
    %426 = math.tanh %425 : vector<2x128xf32>
    %427 = vector.extract_strided_slice %412 {offsets = [0, 384], sizes = [2, 128], strides = [1, 1]} : vector<2x512xf32> to vector<2x128xf32>
    %428 = arith.negf %427 : vector<2x128xf32>
    %429 = math.exp %428 : vector<2x128xf32>
    %cst_95 = arith.constant 1.000000e+00 : f32
    %430 = vector.broadcast %cst_95 : f32 to vector<2x128xf32>
    %431 = arith.addf %430, %429 : vector<2x128xf32>
    %432 = arith.divf %430, %431 : vector<2x128xf32>
    %433 = arith.mulf %424, %406 : vector<2x128xf32>
    %434 = arith.mulf %418, %426 : vector<2x128xf32>
    %435 = arith.addf %433, %434 : vector<2x128xf32>
    %436 = math.tanh %435 : vector<2x128xf32>
    %437 = arith.mulf %432, %436 : vector<2x128xf32>
    %438 = tpu.concatenate %437, %171 in 1 : vector<2x128xf32>, vector<2x128xf32> -> vector<2x256xf32>
    %c0_96 = arith.constant 0 : index
    %c0_97 = arith.constant 0 : index
    %439 = vector.load %arg4[%c0_96, %c0_97] : memref<256x512xf32, #tpu.memory_space<vmem>>, vector<256x512xf32>
    %cst_98 = arith.constant dense<0.000000e+00> : vector<2x512xf32>
    %440 = tpu.matmul %438, %439, %cst_98 {dimension_numbers = #tpu.dot_dimension_numbers<[1], [0], [0], [1], [0, 0, 1, 1], [], []>} : vector<2x256xf32>, vector<256x512xf32>, vector<2x512xf32> -> vector<2x512xf32>
    %441 = arith.addf %440, %319 : vector<2x512xf32>
    %442 = vector.extract_strided_slice %441 {offsets = [0, 0], sizes = [2, 128], strides = [1, 1]} : vector<2x512xf32> to vector<2x128xf32>
    %443 = arith.negf %442 : vector<2x128xf32>
    %444 = math.exp %443 : vector<2x128xf32>
    %cst_99 = arith.constant 1.000000e+00 : f32
    %445 = vector.broadcast %cst_99 : f32 to vector<2x128xf32>
    %446 = arith.addf %445, %444 : vector<2x128xf32>
    %447 = arith.divf %445, %446 : vector<2x128xf32>
    %448 = vector.extract_strided_slice %441 {offsets = [0, 128], sizes = [2, 128], strides = [1, 1]} : vector<2x512xf32> to vector<2x128xf32>
    %449 = arith.negf %448 : vector<2x128xf32>
    %450 = math.exp %449 : vector<2x128xf32>
    %cst_100 = arith.constant 1.000000e+00 : f32
    %451 = vector.broadcast %cst_100 : f32 to vector<2x128xf32>
    %452 = arith.addf %451, %450 : vector<2x128xf32>
    %453 = arith.divf %451, %452 : vector<2x128xf32>
    %454 = vector.extract_strided_slice %441 {offsets = [0, 256], sizes = [2, 128], strides = [1, 1]} : vector<2x512xf32> to vector<2x128xf32>
    %455 = math.tanh %454 : vector<2x128xf32>
    %456 = vector.extract_strided_slice %441 {offsets = [0, 384], sizes = [2, 128], strides = [1, 1]} : vector<2x512xf32> to vector<2x128xf32>
    %457 = arith.negf %456 : vector<2x128xf32>
    %458 = math.exp %457 : vector<2x128xf32>
    %cst_101 = arith.constant 1.000000e+00 : f32
    %459 = vector.broadcast %cst_101 : f32 to vector<2x128xf32>
    %460 = arith.addf %459, %458 : vector<2x128xf32>
    %461 = arith.divf %459, %460 : vector<2x128xf32>
    %462 = arith.mulf %453, %435 : vector<2x128xf32>
    %463 = arith.mulf %447, %455 : vector<2x128xf32>
    %464 = arith.addf %462, %463 : vector<2x128xf32>
    %465 = math.tanh %464 : vector<2x128xf32>
    %466 = arith.mulf %461, %465 : vector<2x128xf32>
    %467 = tpu.concatenate %466, %200 in 1 : vector<2x128xf32>, vector<2x128xf32> -> vector<2x256xf32>
    %c0_102 = arith.constant 0 : index
    %c0_103 = arith.constant 0 : index
    %468 = vector.load %arg4[%c0_102, %c0_103] : memref<256x512xf32, #tpu.memory_space<vmem>>, vector<256x512xf32>
    %cst_104 = arith.constant dense<0.000000e+00> : vector<2x512xf32>
    %469 = tpu.matmul %467, %468, %cst_104 {dimension_numbers = #tpu.dot_dimension_numbers<[1], [0], [0], [1], [0, 0, 1, 1], [], []>} : vector<2x256xf32>, vector<256x512xf32>, vector<2x512xf32> -> vector<2x512xf32>
    %470 = arith.addf %469, %319 : vector<2x512xf32>
    %471 = vector.extract_strided_slice %470 {offsets = [0, 0], sizes = [2, 128], strides = [1, 1]} : vector<2x512xf32> to vector<2x128xf32>
    %472 = arith.negf %471 : vector<2x128xf32>
    %473 = math.exp %472 : vector<2x128xf32>
    %cst_105 = arith.constant 1.000000e+00 : f32
    %474 = vector.broadcast %cst_105 : f32 to vector<2x128xf32>
    %475 = arith.addf %474, %473 : vector<2x128xf32>
    %476 = arith.divf %474, %475 : vector<2x128xf32>
    %477 = vector.extract_strided_slice %470 {offsets = [0, 128], sizes = [2, 128], strides = [1, 1]} : vector<2x512xf32> to vector<2x128xf32>
    %478 = arith.negf %477 : vector<2x128xf32>
    %479 = math.exp %478 : vector<2x128xf32>
    %cst_106 = arith.constant 1.000000e+00 : f32
    %480 = vector.broadcast %cst_106 : f32 to vector<2x128xf32>
    %481 = arith.addf %480, %479 : vector<2x128xf32>
    %482 = arith.divf %480, %481 : vector<2x128xf32>
    %483 = vector.extract_strided_slice %470 {offsets = [0, 256], sizes = [2, 128], strides = [1, 1]} : vector<2x512xf32> to vector<2x128xf32>
    %484 = math.tanh %483 : vector<2x128xf32>
    %485 = vector.extract_strided_slice %470 {offsets = [0, 384], sizes = [2, 128], strides = [1, 1]} : vector<2x512xf32> to vector<2x128xf32>
    %486 = arith.negf %485 : vector<2x128xf32>
    %487 = math.exp %486 : vector<2x128xf32>
    %cst_107 = arith.constant 1.000000e+00 : f32
    %488 = vector.broadcast %cst_107 : f32 to vector<2x128xf32>
    %489 = arith.addf %488, %487 : vector<2x128xf32>
    %490 = arith.divf %488, %489 : vector<2x128xf32>
    %491 = arith.mulf %482, %464 : vector<2x128xf32>
    %492 = arith.mulf %476, %484 : vector<2x128xf32>
    %493 = arith.addf %491, %492 : vector<2x128xf32>
    %494 = math.tanh %493 : vector<2x128xf32>
    %495 = arith.mulf %490, %494 : vector<2x128xf32>
    %496 = tpu.concatenate %495, %229 in 1 : vector<2x128xf32>, vector<2x128xf32> -> vector<2x256xf32>
    %c0_108 = arith.constant 0 : index
    %c0_109 = arith.constant 0 : index
    %497 = vector.load %arg4[%c0_108, %c0_109] : memref<256x512xf32, #tpu.memory_space<vmem>>, vector<256x512xf32>
    %cst_110 = arith.constant dense<0.000000e+00> : vector<2x512xf32>
    %498 = tpu.matmul %496, %497, %cst_110 {dimension_numbers = #tpu.dot_dimension_numbers<[1], [0], [0], [1], [0, 0, 1, 1], [], []>} : vector<2x256xf32>, vector<256x512xf32>, vector<2x512xf32> -> vector<2x512xf32>
    %499 = arith.addf %498, %319 : vector<2x512xf32>
    %500 = vector.extract_strided_slice %499 {offsets = [0, 0], sizes = [2, 128], strides = [1, 1]} : vector<2x512xf32> to vector<2x128xf32>
    %501 = arith.negf %500 : vector<2x128xf32>
    %502 = math.exp %501 : vector<2x128xf32>
    %cst_111 = arith.constant 1.000000e+00 : f32
    %503 = vector.broadcast %cst_111 : f32 to vector<2x128xf32>
    %504 = arith.addf %503, %502 : vector<2x128xf32>
    %505 = arith.divf %503, %504 : vector<2x128xf32>
    %506 = vector.extract_strided_slice %499 {offsets = [0, 128], sizes = [2, 128], strides = [1, 1]} : vector<2x512xf32> to vector<2x128xf32>
    %507 = arith.negf %506 : vector<2x128xf32>
    %508 = math.exp %507 : vector<2x128xf32>
    %cst_112 = arith.constant 1.000000e+00 : f32
    %509 = vector.broadcast %cst_112 : f32 to vector<2x128xf32>
    %510 = arith.addf %509, %508 : vector<2x128xf32>
    %511 = arith.divf %509, %510 : vector<2x128xf32>
    %512 = vector.extract_strided_slice %499 {offsets = [0, 256], sizes = [2, 128], strides = [1, 1]} : vector<2x512xf32> to vector<2x128xf32>
    %513 = math.tanh %512 : vector<2x128xf32>
    %514 = vector.extract_strided_slice %499 {offsets = [0, 384], sizes = [2, 128], strides = [1, 1]} : vector<2x512xf32> to vector<2x128xf32>
    %515 = arith.negf %514 : vector<2x128xf32>
    %516 = math.exp %515 : vector<2x128xf32>
    %cst_113 = arith.constant 1.000000e+00 : f32
    %517 = vector.broadcast %cst_113 : f32 to vector<2x128xf32>
    %518 = arith.addf %517, %516 : vector<2x128xf32>
    %519 = arith.divf %517, %518 : vector<2x128xf32>
    %520 = arith.mulf %511, %493 : vector<2x128xf32>
    %521 = arith.mulf %505, %513 : vector<2x128xf32>
    %522 = arith.addf %520, %521 : vector<2x128xf32>
    %523 = math.tanh %522 : vector<2x128xf32>
    %524 = arith.mulf %519, %523 : vector<2x128xf32>
    %525 = tpu.concatenate %524, %258 in 1 : vector<2x128xf32>, vector<2x128xf32> -> vector<2x256xf32>
    %c0_114 = arith.constant 0 : index
    %c0_115 = arith.constant 0 : index
    %526 = vector.load %arg4[%c0_114, %c0_115] : memref<256x512xf32, #tpu.memory_space<vmem>>, vector<256x512xf32>
    %cst_116 = arith.constant dense<0.000000e+00> : vector<2x512xf32>
    %527 = tpu.matmul %525, %526, %cst_116 {dimension_numbers = #tpu.dot_dimension_numbers<[1], [0], [0], [1], [0, 0, 1, 1], [], []>} : vector<2x256xf32>, vector<256x512xf32>, vector<2x512xf32> -> vector<2x512xf32>
    %528 = arith.addf %527, %319 : vector<2x512xf32>
    %529 = vector.extract_strided_slice %528 {offsets = [0, 0], sizes = [2, 128], strides = [1, 1]} : vector<2x512xf32> to vector<2x128xf32>
    %530 = arith.negf %529 : vector<2x128xf32>
    %531 = math.exp %530 : vector<2x128xf32>
    %cst_117 = arith.constant 1.000000e+00 : f32
    %532 = vector.broadcast %cst_117 : f32 to vector<2x128xf32>
    %533 = arith.addf %532, %531 : vector<2x128xf32>
    %534 = arith.divf %532, %533 : vector<2x128xf32>
    %535 = vector.extract_strided_slice %528 {offsets = [0, 128], sizes = [2, 128], strides = [1, 1]} : vector<2x512xf32> to vector<2x128xf32>
    %536 = arith.negf %535 : vector<2x128xf32>
    %537 = math.exp %536 : vector<2x128xf32>
    %cst_118 = arith.constant 1.000000e+00 : f32
    %538 = vector.broadcast %cst_118 : f32 to vector<2x128xf32>
    %539 = arith.addf %538, %537 : vector<2x128xf32>
    %540 = arith.divf %538, %539 : vector<2x128xf32>
    %541 = vector.extract_strided_slice %528 {offsets = [0, 256], sizes = [2, 128], strides = [1, 1]} : vector<2x512xf32> to vector<2x128xf32>
    %542 = math.tanh %541 : vector<2x128xf32>
    %543 = vector.extract_strided_slice %528 {offsets = [0, 384], sizes = [2, 128], strides = [1, 1]} : vector<2x512xf32> to vector<2x128xf32>
    %544 = arith.negf %543 : vector<2x128xf32>
    %545 = math.exp %544 : vector<2x128xf32>
    %cst_119 = arith.constant 1.000000e+00 : f32
    %546 = vector.broadcast %cst_119 : f32 to vector<2x128xf32>
    %547 = arith.addf %546, %545 : vector<2x128xf32>
    %548 = arith.divf %546, %547 : vector<2x128xf32>
    %549 = arith.mulf %540, %522 : vector<2x128xf32>
    %550 = arith.mulf %534, %542 : vector<2x128xf32>
    %551 = arith.addf %549, %550 : vector<2x128xf32>
    %552 = math.tanh %551 : vector<2x128xf32>
    %553 = arith.mulf %548, %552 : vector<2x128xf32>
    %554 = tpu.concatenate %553, %287 in 1 : vector<2x128xf32>, vector<2x128xf32> -> vector<2x256xf32>
    %c0_120 = arith.constant 0 : index
    %c0_121 = arith.constant 0 : index
    %555 = vector.load %arg4[%c0_120, %c0_121] : memref<256x512xf32, #tpu.memory_space<vmem>>, vector<256x512xf32>
    %cst_122 = arith.constant dense<0.000000e+00> : vector<2x512xf32>
    %556 = tpu.matmul %554, %555, %cst_122 {dimension_numbers = #tpu.dot_dimension_numbers<[1], [0], [0], [1], [0, 0, 1, 1], [], []>} : vector<2x256xf32>, vector<256x512xf32>, vector<2x512xf32> -> vector<2x512xf32>
    %557 = arith.addf %556, %319 : vector<2x512xf32>
    %558 = vector.extract_strided_slice %557 {offsets = [0, 0], sizes = [2, 128], strides = [1, 1]} : vector<2x512xf32> to vector<2x128xf32>
    %559 = arith.negf %558 : vector<2x128xf32>
    %560 = math.exp %559 : vector<2x128xf32>
    %cst_123 = arith.constant 1.000000e+00 : f32
    %561 = vector.broadcast %cst_123 : f32 to vector<2x128xf32>
    %562 = arith.addf %561, %560 : vector<2x128xf32>
    %563 = arith.divf %561, %562 : vector<2x128xf32>
    %564 = vector.extract_strided_slice %557 {offsets = [0, 128], sizes = [2, 128], strides = [1, 1]} : vector<2x512xf32> to vector<2x128xf32>
    %565 = arith.negf %564 : vector<2x128xf32>
    %566 = math.exp %565 : vector<2x128xf32>
    %cst_124 = arith.constant 1.000000e+00 : f32
    %567 = vector.broadcast %cst_124 : f32 to vector<2x128xf32>
    %568 = arith.addf %567, %566 : vector<2x128xf32>
    %569 = arith.divf %567, %568 : vector<2x128xf32>
    %570 = vector.extract_strided_slice %557 {offsets = [0, 256], sizes = [2, 128], strides = [1, 1]} : vector<2x512xf32> to vector<2x128xf32>
    %571 = math.tanh %570 : vector<2x128xf32>
    %572 = vector.extract_strided_slice %557 {offsets = [0, 384], sizes = [2, 128], strides = [1, 1]} : vector<2x512xf32> to vector<2x128xf32>
    %573 = arith.negf %572 : vector<2x128xf32>
    %574 = math.exp %573 : vector<2x128xf32>
    %cst_125 = arith.constant 1.000000e+00 : f32
    %575 = vector.broadcast %cst_125 : f32 to vector<2x128xf32>
    %576 = arith.addf %575, %574 : vector<2x128xf32>
    %577 = arith.divf %575, %576 : vector<2x128xf32>
    %578 = arith.mulf %569, %551 : vector<2x128xf32>
    %579 = arith.mulf %563, %571 : vector<2x128xf32>
    %580 = arith.addf %578, %579 : vector<2x128xf32>
    %581 = math.tanh %580 : vector<2x128xf32>
    %582 = arith.mulf %577, %581 : vector<2x128xf32>
    %583 = tpu.concatenate %582, %316 in 1 : vector<2x128xf32>, vector<2x128xf32> -> vector<2x256xf32>
    %c0_126 = arith.constant 0 : index
    %c0_127 = arith.constant 0 : index
    %584 = vector.load %arg4[%c0_126, %c0_127] : memref<256x512xf32, #tpu.memory_space<vmem>>, vector<256x512xf32>
    %cst_128 = arith.constant dense<0.000000e+00> : vector<2x512xf32>
    %585 = tpu.matmul %583, %584, %cst_128 {dimension_numbers = #tpu.dot_dimension_numbers<[1], [0], [0], [1], [0, 0, 1, 1], [], []>} : vector<2x256xf32>, vector<256x512xf32>, vector<2x512xf32> -> vector<2x512xf32>
    %586 = arith.addf %585, %319 : vector<2x512xf32>
    %587 = vector.extract_strided_slice %586 {offsets = [0, 0], sizes = [2, 128], strides = [1, 1]} : vector<2x512xf32> to vector<2x128xf32>
    %588 = arith.negf %587 : vector<2x128xf32>
    %589 = math.exp %588 : vector<2x128xf32>
    %cst_129 = arith.constant 1.000000e+00 : f32
    %590 = vector.broadcast %cst_129 : f32 to vector<2x128xf32>
    %591 = arith.addf %590, %589 : vector<2x128xf32>
    %592 = arith.divf %590, %591 : vector<2x128xf32>
    %593 = vector.extract_strided_slice %586 {offsets = [0, 128], sizes = [2, 128], strides = [1, 1]} : vector<2x512xf32> to vector<2x128xf32>
    %594 = arith.negf %593 : vector<2x128xf32>
    %595 = math.exp %594 : vector<2x128xf32>
    %cst_130 = arith.constant 1.000000e+00 : f32
    %596 = vector.broadcast %cst_130 : f32 to vector<2x128xf32>
    %597 = arith.addf %596, %595 : vector<2x128xf32>
    %598 = arith.divf %596, %597 : vector<2x128xf32>
    %599 = vector.extract_strided_slice %586 {offsets = [0, 256], sizes = [2, 128], strides = [1, 1]} : vector<2x512xf32> to vector<2x128xf32>
    %600 = math.tanh %599 : vector<2x128xf32>
    %601 = vector.extract_strided_slice %586 {offsets = [0, 384], sizes = [2, 128], strides = [1, 1]} : vector<2x512xf32> to vector<2x128xf32>
    %602 = arith.negf %601 : vector<2x128xf32>
    %603 = math.exp %602 : vector<2x128xf32>
    %cst_131 = arith.constant 1.000000e+00 : f32
    %604 = vector.broadcast %cst_131 : f32 to vector<2x128xf32>
    %605 = arith.addf %604, %603 : vector<2x128xf32>
    %606 = arith.divf %604, %605 : vector<2x128xf32>
    %607 = arith.mulf %598, %580 : vector<2x128xf32>
    %608 = arith.mulf %592, %600 : vector<2x128xf32>
    %609 = arith.addf %607, %608 : vector<2x128xf32>
    %610 = math.tanh %609 : vector<2x128xf32>
    %611 = arith.mulf %606, %610 : vector<2x128xf32>
    %612 = tpu.concatenate %350, %379, %408, %437, %466, %495, %524, %553, %582, %611 in 0 : vector<2x128xf32>, vector<2x128xf32>, vector<2x128xf32>, vector<2x128xf32>, vector<2x128xf32>, vector<2x128xf32>, vector<2x128xf32>, vector<2x128xf32>, vector<2x128xf32>, vector<2x128xf32> -> vector<20x128xf32>
    %c0_132 = arith.constant 0 : index
    %c0_133 = arith.constant 0 : index
    %613 = vector.load %arg12[%c0_132, %c0_133] : memref<20x128xf32, #tpu.memory_space<vmem>>, vector<20x128xf32>
    tpu.vector_store %arg12[%c0_132, %c0_133], %612 {strides = array<i32>} : memref<20x128xf32, #tpu.memory_space<vmem>>, vector<20x128xf32>,
    %614 = vector.extract_strided_slice %1 {offsets = [0, 0, 0], sizes = [1, 2, 3], strides = [1, 1, 1]} : vector<8x2x3xf32> to vector<1x2x3xf32>
    %615 = vector.shape_cast %614 : vector<1x2x3xf32> to vector<2x3xf32>
    %616 = vector.extract_strided_slice %1 {offsets = [1, 0, 0], sizes = [1, 2, 3], strides = [1, 1, 1]} : vector<8x2x3xf32> to vector<1x2x3xf32>
    %617 = vector.shape_cast %616 : vector<1x2x3xf32> to vector<2x3xf32>
    %618 = vector.extract_strided_slice %1 {offsets = [2, 0, 0], sizes = [1, 2, 3], strides = [1, 1, 1]} : vector<8x2x3xf32> to vector<1x2x3xf32>
    %619 = vector.shape_cast %618 : vector<1x2x3xf32> to vector<2x3xf32>
    %620 = vector.extract_strided_slice %1 {offsets = [3, 0, 0], sizes = [1, 2, 3], strides = [1, 1, 1]} : vector<8x2x3xf32> to vector<1x2x3xf32>
    %621 = vector.shape_cast %620 : vector<1x2x3xf32> to vector<2x3xf32>
    %622 = vector.extract_strided_slice %1 {offsets = [4, 0, 0], sizes = [1, 2, 3], strides = [1, 1, 1]} : vector<8x2x3xf32> to vector<1x2x3xf32>
    %623 = vector.shape_cast %622 : vector<1x2x3xf32> to vector<2x3xf32>
    %624 = vector.extract_strided_slice %1 {offsets = [5, 0, 0], sizes = [1, 2, 3], strides = [1, 1, 1]} : vector<8x2x3xf32> to vector<1x2x3xf32>
    %625 = vector.shape_cast %624 : vector<1x2x3xf32> to vector<2x3xf32>
    %626 = vector.extract_strided_slice %1 {offsets = [6, 0, 0], sizes = [1, 2, 3], strides = [1, 1, 1]} : vector<8x2x3xf32> to vector<1x2x3xf32>
    %627 = vector.shape_cast %626 : vector<1x2x3xf32> to vector<2x3xf32>
    %628 = vector.extract_strided_slice %1 {offsets = [7, 0, 0], sizes = [1, 2, 3], strides = [1, 1, 1]} : vector<8x2x3xf32> to vector<1x2x3xf32>
    %629 = vector.shape_cast %628 : vector<1x2x3xf32> to vector<2x3xf32>
    %c0_134 = arith.constant 0 : index
    %c0_135 = arith.constant 0 : index
    %630 = vector.load %arg7[%c0_134, %c0_135] : memref<1x512xf32, #tpu.memory_space<vmem>>, vector<1x512xf32>
    %631 = vector.shape_cast %630 : vector<1x512xf32> to vector<1x512xf32>
    %632 = vector.broadcast %631 : vector<1x512xf32> to vector<2x512xf32>
    %cst_136 = arith.constant 0.000000e+00 : f32
    %633 = vector.broadcast %cst_136 : f32 to vector<2x128xf32>
    %cst_137 = arith.constant 0.000000e+00 : f32
    %634 = vector.broadcast %cst_137 : f32 to vector<2x128xf32>
    %635 = tpu.concatenate %633, %615 in 1 : vector<2x128xf32>, vector<2x3xf32> -> vector<2x131xf32>
    %c0_138 = arith.constant 0 : index
    %c0_139 = arith.constant 0 : index
    %636 = vector.load %arg6[%c0_138, %c0_139] : memref<131x512xf32, #tpu.memory_space<vmem>>, vector<131x512xf32>
    %cst_140 = arith.constant dense<0.000000e+00> : vector<2x512xf32>
    %637 = tpu.matmul %635, %636, %cst_140 {dimension_numbers = #tpu.dot_dimension_numbers<[1], [0], [0], [1], [0, 0, 1, 1], [], []>} : vector<2x131xf32>, vector<131x512xf32>, vector<2x512xf32> -> vector<2x512xf32>
    %638 = arith.addf %637, %632 : vector<2x512xf32>
    %639 = vector.extract_strided_slice %638 {offsets = [0, 0], sizes = [2, 128], strides = [1, 1]} : vector<2x512xf32> to vector<2x128xf32>
    %640 = arith.negf %639 : vector<2x128xf32>
    %641 = math.exp %640 : vector<2x128xf32>
    %cst_141 = arith.constant 1.000000e+00 : f32
    %642 = vector.broadcast %cst_141 : f32 to vector<2x128xf32>
    %643 = arith.addf %642, %641 : vector<2x128xf32>
    %644 = arith.divf %642, %643 : vector<2x128xf32>
    %645 = vector.extract_strided_slice %638 {offsets = [0, 128], sizes = [2, 128], strides = [1, 1]} : vector<2x512xf32> to vector<2x128xf32>
    %646 = arith.negf %645 : vector<2x128xf32>
    %647 = math.exp %646 : vector<2x128xf32>
    %cst_142 = arith.constant 1.000000e+00 : f32
    %648 = vector.broadcast %cst_142 : f32 to vector<2x128xf32>
    %649 = arith.addf %648, %647 : vector<2x128xf32>
    %650 = arith.divf %648, %649 : vector<2x128xf32>
    %651 = vector.extract_strided_slice %638 {offsets = [0, 256], sizes = [2, 128], strides = [1, 1]} : vector<2x512xf32> to vector<2x128xf32>
    %652 = math.tanh %651 : vector<2x128xf32>
    %653 = vector.extract_strided_slice %638 {offsets = [0, 384], sizes = [2, 128], strides = [1, 1]} : vector<2x512xf32> to vector<2x128xf32>
    %654 = arith.negf %653 : vector<2x128xf32>
    %655 = math.exp %654 : vector<2x128xf32>
    %cst_143 = arith.constant 1.000000e+00 : f32
    %656 = vector.broadcast %cst_143 : f32 to vector<2x128xf32>
    %657 = arith.addf %656, %655 : vector<2x128xf32>
    %658 = arith.divf %656, %657 : vector<2x128xf32>
    %659 = arith.mulf %650, %634 : vector<2x128xf32>
    %660 = arith.mulf %644, %652 : vector<2x128xf32>
    %661 = arith.addf %659, %660 : vector<2x128xf32>
    %662 = math.tanh %661 : vector<2x128xf32>
    %663 = arith.mulf %658, %662 : vector<2x128xf32>
    %664 = tpu.concatenate %663, %617 in 1 : vector<2x128xf32>, vector<2x3xf32> -> vector<2x131xf32>
    %c0_144 = arith.constant 0 : index
    %c0_145 = arith.constant 0 : index
    %665 = vector.load %arg6[%c0_144, %c0_145] : memref<131x512xf32, #tpu.memory_space<vmem>>, vector<131x512xf32>
    %cst_146 = arith.constant dense<0.000000e+00> : vector<2x512xf32>
    %666 = tpu.matmul %664, %665, %cst_146 {dimension_numbers = #tpu.dot_dimension_numbers<[1], [0], [0], [1], [0, 0, 1, 1], [], []>} : vector<2x131xf32>, vector<131x512xf32>, vector<2x512xf32> -> vector<2x512xf32>
    %667 = arith.addf %666, %632 : vector<2x512xf32>
    %668 = vector.extract_strided_slice %667 {offsets = [0, 0], sizes = [2, 128], strides = [1, 1]} : vector<2x512xf32> to vector<2x128xf32>
    %669 = arith.negf %668 : vector<2x128xf32>
    %670 = math.exp %669 : vector<2x128xf32>
    %cst_147 = arith.constant 1.000000e+00 : f32
    %671 = vector.broadcast %cst_147 : f32 to vector<2x128xf32>
    %672 = arith.addf %671, %670 : vector<2x128xf32>
    %673 = arith.divf %671, %672 : vector<2x128xf32>
    %674 = vector.extract_strided_slice %667 {offsets = [0, 128], sizes = [2, 128], strides = [1, 1]} : vector<2x512xf32> to vector<2x128xf32>
    %675 = arith.negf %674 : vector<2x128xf32>
    %676 = math.exp %675 : vector<2x128xf32>
    %cst_148 = arith.constant 1.000000e+00 : f32
    %677 = vector.broadcast %cst_148 : f32 to vector<2x128xf32>
    %678 = arith.addf %677, %676 : vector<2x128xf32>
    %679 = arith.divf %677, %678 : vector<2x128xf32>
    %680 = vector.extract_strided_slice %667 {offsets = [0, 256], sizes = [2, 128], strides = [1, 1]} : vector<2x512xf32> to vector<2x128xf32>
    %681 = math.tanh %680 : vector<2x128xf32>
    %682 = vector.extract_strided_slice %667 {offsets = [0, 384], sizes = [2, 128], strides = [1, 1]} : vector<2x512xf32> to vector<2x128xf32>
    %683 = arith.negf %682 : vector<2x128xf32>
    %684 = math.exp %683 : vector<2x128xf32>
    %cst_149 = arith.constant 1.000000e+00 : f32
    %685 = vector.broadcast %cst_149 : f32 to vector<2x128xf32>
    %686 = arith.addf %685, %684 : vector<2x128xf32>
    %687 = arith.divf %685, %686 : vector<2x128xf32>
    %688 = arith.mulf %679, %661 : vector<2x128xf32>
    %689 = arith.mulf %673, %681 : vector<2x128xf32>
    %690 = arith.addf %688, %689 : vector<2x128xf32>
    %691 = math.tanh %690 : vector<2x128xf32>
    %692 = arith.mulf %687, %691 : vector<2x128xf32>
    %693 = tpu.concatenate %692, %619 in 1 : vector<2x128xf32>, vector<2x3xf32> -> vector<2x131xf32>
    %c0_150 = arith.constant 0 : index
    %c0_151 = arith.constant 0 : index
    %694 = vector.load %arg6[%c0_150, %c0_151] : memref<131x512xf32, #tpu.memory_space<vmem>>, vector<131x512xf32>
    %cst_152 = arith.constant dense<0.000000e+00> : vector<2x512xf32>
    %695 = tpu.matmul %693, %694, %cst_152 {dimension_numbers = #tpu.dot_dimension_numbers<[1], [0], [0], [1], [0, 0, 1, 1], [], []>} : vector<2x131xf32>, vector<131x512xf32>, vector<2x512xf32> -> vector<2x512xf32>
    %696 = arith.addf %695, %632 : vector<2x512xf32>
    %697 = vector.extract_strided_slice %696 {offsets = [0, 0], sizes = [2, 128], strides = [1, 1]} : vector<2x512xf32> to vector<2x128xf32>
    %698 = arith.negf %697 : vector<2x128xf32>
    %699 = math.exp %698 : vector<2x128xf32>
    %cst_153 = arith.constant 1.000000e+00 : f32
    %700 = vector.broadcast %cst_153 : f32 to vector<2x128xf32>
    %701 = arith.addf %700, %699 : vector<2x128xf32>
    %702 = arith.divf %700, %701 : vector<2x128xf32>
    %703 = vector.extract_strided_slice %696 {offsets = [0, 128], sizes = [2, 128], strides = [1, 1]} : vector<2x512xf32> to vector<2x128xf32>
    %704 = arith.negf %703 : vector<2x128xf32>
    %705 = math.exp %704 : vector<2x128xf32>
    %cst_154 = arith.constant 1.000000e+00 : f32
    %706 = vector.broadcast %cst_154 : f32 to vector<2x128xf32>
    %707 = arith.addf %706, %705 : vector<2x128xf32>
    %708 = arith.divf %706, %707 : vector<2x128xf32>
    %709 = vector.extract_strided_slice %696 {offsets = [0, 256], sizes = [2, 128], strides = [1, 1]} : vector<2x512xf32> to vector<2x128xf32>
    %710 = math.tanh %709 : vector<2x128xf32>
    %711 = vector.extract_strided_slice %696 {offsets = [0, 384], sizes = [2, 128], strides = [1, 1]} : vector<2x512xf32> to vector<2x128xf32>
    %712 = arith.negf %711 : vector<2x128xf32>
    %713 = math.exp %712 : vector<2x128xf32>
    %cst_155 = arith.constant 1.000000e+00 : f32
    %714 = vector.broadcast %cst_155 : f32 to vector<2x128xf32>
    %715 = arith.addf %714, %713 : vector<2x128xf32>
    %716 = arith.divf %714, %715 : vector<2x128xf32>
    %717 = arith.mulf %708, %690 : vector<2x128xf32>
    %718 = arith.mulf %702, %710 : vector<2x128xf32>
    %719 = arith.addf %717, %718 : vector<2x128xf32>
    %720 = math.tanh %719 : vector<2x128xf32>
    %721 = arith.mulf %716, %720 : vector<2x128xf32>
    %722 = tpu.concatenate %721, %621 in 1 : vector<2x128xf32>, vector<2x3xf32> -> vector<2x131xf32>
    %c0_156 = arith.constant 0 : index
    %c0_157 = arith.constant 0 : index
    %723 = vector.load %arg6[%c0_156, %c0_157] : memref<131x512xf32, #tpu.memory_space<vmem>>, vector<131x512xf32>
    %cst_158 = arith.constant dense<0.000000e+00> : vector<2x512xf32>
    %724 = tpu.matmul %722, %723, %cst_158 {dimension_numbers = #tpu.dot_dimension_numbers<[1], [0], [0], [1], [0, 0, 1, 1], [], []>} : vector<2x131xf32>, vector<131x512xf32>, vector<2x512xf32> -> vector<2x512xf32>
    %725 = arith.addf %724, %632 : vector<2x512xf32>
    %726 = vector.extract_strided_slice %725 {offsets = [0, 0], sizes = [2, 128], strides = [1, 1]} : vector<2x512xf32> to vector<2x128xf32>
    %727 = arith.negf %726 : vector<2x128xf32>
    %728 = math.exp %727 : vector<2x128xf32>
    %cst_159 = arith.constant 1.000000e+00 : f32
    %729 = vector.broadcast %cst_159 : f32 to vector<2x128xf32>
    %730 = arith.addf %729, %728 : vector<2x128xf32>
    %731 = arith.divf %729, %730 : vector<2x128xf32>
    %732 = vector.extract_strided_slice %725 {offsets = [0, 128], sizes = [2, 128], strides = [1, 1]} : vector<2x512xf32> to vector<2x128xf32>
    %733 = arith.negf %732 : vector<2x128xf32>
    %734 = math.exp %733 : vector<2x128xf32>
    %cst_160 = arith.constant 1.000000e+00 : f32
    %735 = vector.broadcast %cst_160 : f32 to vector<2x128xf32>
    %736 = arith.addf %735, %734 : vector<2x128xf32>
    %737 = arith.divf %735, %736 : vector<2x128xf32>
    %738 = vector.extract_strided_slice %725 {offsets = [0, 256], sizes = [2, 128], strides = [1, 1]} : vector<2x512xf32> to vector<2x128xf32>
    %739 = math.tanh %738 : vector<2x128xf32>
    %740 = vector.extract_strided_slice %725 {offsets = [0, 384], sizes = [2, 128], strides = [1, 1]} : vector<2x512xf32> to vector<2x128xf32>
    %741 = arith.negf %740 : vector<2x128xf32>
    %742 = math.exp %741 : vector<2x128xf32>
    %cst_161 = arith.constant 1.000000e+00 : f32
    %743 = vector.broadcast %cst_161 : f32 to vector<2x128xf32>
    %744 = arith.addf %743, %742 : vector<2x128xf32>
    %745 = arith.divf %743, %744 : vector<2x128xf32>
    %746 = arith.mulf %737, %719 : vector<2x128xf32>
    %747 = arith.mulf %731, %739 : vector<2x128xf32>
    %748 = arith.addf %746, %747 : vector<2x128xf32>
    %749 = math.tanh %748 : vector<2x128xf32>
    %750 = arith.mulf %745, %749 : vector<2x128xf32>
    %751 = tpu.concatenate %750, %623 in 1 : vector<2x128xf32>, vector<2x3xf32> -> vector<2x131xf32>
    %c0_162 = arith.constant 0 : index
    %c0_163 = arith.constant 0 : index
    %752 = vector.load %arg6[%c0_162, %c0_163] : memref<131x512xf32, #tpu.memory_space<vmem>>, vector<131x512xf32>
    %cst_164 = arith.constant dense<0.000000e+00> : vector<2x512xf32>
    %753 = tpu.matmul %751, %752, %cst_164 {dimension_numbers = #tpu.dot_dimension_numbers<[1], [0], [0], [1], [0, 0, 1, 1], [], []>} : vector<2x131xf32>, vector<131x512xf32>, vector<2x512xf32> -> vector<2x512xf32>
    %754 = arith.addf %753, %632 : vector<2x512xf32>
    %755 = vector.extract_strided_slice %754 {offsets = [0, 0], sizes = [2, 128], strides = [1, 1]} : vector<2x512xf32> to vector<2x128xf32>
    %756 = arith.negf %755 : vector<2x128xf32>
    %757 = math.exp %756 : vector<2x128xf32>
    %cst_165 = arith.constant 1.000000e+00 : f32
    %758 = vector.broadcast %cst_165 : f32 to vector<2x128xf32>
    %759 = arith.addf %758, %757 : vector<2x128xf32>
    %760 = arith.divf %758, %759 : vector<2x128xf32>
    %761 = vector.extract_strided_slice %754 {offsets = [0, 128], sizes = [2, 128], strides = [1, 1]} : vector<2x512xf32> to vector<2x128xf32>
    %762 = arith.negf %761 : vector<2x128xf32>
    %763 = math.exp %762 : vector<2x128xf32>
    %cst_166 = arith.constant 1.000000e+00 : f32
    %764 = vector.broadcast %cst_166 : f32 to vector<2x128xf32>
    %765 = arith.addf %764, %763 : vector<2x128xf32>
    %766 = arith.divf %764, %765 : vector<2x128xf32>
    %767 = vector.extract_strided_slice %754 {offsets = [0, 256], sizes = [2, 128], strides = [1, 1]} : vector<2x512xf32> to vector<2x128xf32>
    %768 = math.tanh %767 : vector<2x128xf32>
    %769 = vector.extract_strided_slice %754 {offsets = [0, 384], sizes = [2, 128], strides = [1, 1]} : vector<2x512xf32> to vector<2x128xf32>
    %770 = arith.negf %769 : vector<2x128xf32>
    %771 = math.exp %770 : vector<2x128xf32>
    %cst_167 = arith.constant 1.000000e+00 : f32
    %772 = vector.broadcast %cst_167 : f32 to vector<2x128xf32>
    %773 = arith.addf %772, %771 : vector<2x128xf32>
    %774 = arith.divf %772, %773 : vector<2x128xf32>
    %775 = arith.mulf %766, %748 : vector<2x128xf32>
    %776 = arith.mulf %760, %768 : vector<2x128xf32>
    %777 = arith.addf %775, %776 : vector<2x128xf32>
    %778 = math.tanh %777 : vector<2x128xf32>
    %779 = arith.mulf %774, %778 : vector<2x128xf32>
    %780 = tpu.concatenate %779, %625 in 1 : vector<2x128xf32>, vector<2x3xf32> -> vector<2x131xf32>
    %c0_168 = arith.constant 0 : index
    %c0_169 = arith.constant 0 : index
    %781 = vector.load %arg6[%c0_168, %c0_169] : memref<131x512xf32, #tpu.memory_space<vmem>>, vector<131x512xf32>
    %cst_170 = arith.constant dense<0.000000e+00> : vector<2x512xf32>
    %782 = tpu.matmul %780, %781, %cst_170 {dimension_numbers = #tpu.dot_dimension_numbers<[1], [0], [0], [1], [0, 0, 1, 1], [], []>} : vector<2x131xf32>, vector<131x512xf32>, vector<2x512xf32> -> vector<2x512xf32>
    %783 = arith.addf %782, %632 : vector<2x512xf32>
    %784 = vector.extract_strided_slice %783 {offsets = [0, 0], sizes = [2, 128], strides = [1, 1]} : vector<2x512xf32> to vector<2x128xf32>
    %785 = arith.negf %784 : vector<2x128xf32>
    %786 = math.exp %785 : vector<2x128xf32>
    %cst_171 = arith.constant 1.000000e+00 : f32
    %787 = vector.broadcast %cst_171 : f32 to vector<2x128xf32>
    %788 = arith.addf %787, %786 : vector<2x128xf32>
    %789 = arith.divf %787, %788 : vector<2x128xf32>
    %790 = vector.extract_strided_slice %783 {offsets = [0, 128], sizes = [2, 128], strides = [1, 1]} : vector<2x512xf32> to vector<2x128xf32>
    %791 = arith.negf %790 : vector<2x128xf32>
    %792 = math.exp %791 : vector<2x128xf32>
    %cst_172 = arith.constant 1.000000e+00 : f32
    %793 = vector.broadcast %cst_172 : f32 to vector<2x128xf32>
    %794 = arith.addf %793, %792 : vector<2x128xf32>
    %795 = arith.divf %793, %794 : vector<2x128xf32>
    %796 = vector.extract_strided_slice %783 {offsets = [0, 256], sizes = [2, 128], strides = [1, 1]} : vector<2x512xf32> to vector<2x128xf32>
    %797 = math.tanh %796 : vector<2x128xf32>
    %798 = vector.extract_strided_slice %783 {offsets = [0, 384], sizes = [2, 128], strides = [1, 1]} : vector<2x512xf32> to vector<2x128xf32>
    %799 = arith.negf %798 : vector<2x128xf32>
    %800 = math.exp %799 : vector<2x128xf32>
    %cst_173 = arith.constant 1.000000e+00 : f32
    %801 = vector.broadcast %cst_173 : f32 to vector<2x128xf32>
    %802 = arith.addf %801, %800 : vector<2x128xf32>
    %803 = arith.divf %801, %802 : vector<2x128xf32>
    %804 = arith.mulf %795, %777 : vector<2x128xf32>
    %805 = arith.mulf %789, %797 : vector<2x128xf32>
    %806 = arith.addf %804, %805 : vector<2x128xf32>
    %807 = math.tanh %806 : vector<2x128xf32>
    %808 = arith.mulf %803, %807 : vector<2x128xf32>
    %809 = tpu.concatenate %808, %627 in 1 : vector<2x128xf32>, vector<2x3xf32> -> vector<2x131xf32>
    %c0_174 = arith.constant 0 : index
    %c0_175 = arith.constant 0 : index
    %810 = vector.load %arg6[%c0_174, %c0_175] : memref<131x512xf32, #tpu.memory_space<vmem>>, vector<131x512xf32>
    %cst_176 = arith.constant dense<0.000000e+00> : vector<2x512xf32>
    %811 = tpu.matmul %809, %810, %cst_176 {dimension_numbers = #tpu.dot_dimension_numbers<[1], [0], [0], [1], [0, 0, 1, 1], [], []>} : vector<2x131xf32>, vector<131x512xf32>, vector<2x512xf32> -> vector<2x512xf32>
    %812 = arith.addf %811, %632 : vector<2x512xf32>
    %813 = vector.extract_strided_slice %812 {offsets = [0, 0], sizes = [2, 128], strides = [1, 1]} : vector<2x512xf32> to vector<2x128xf32>
    %814 = arith.negf %813 : vector<2x128xf32>
    %815 = math.exp %814 : vector<2x128xf32>
    %cst_177 = arith.constant 1.000000e+00 : f32
    %816 = vector.broadcast %cst_177 : f32 to vector<2x128xf32>
    %817 = arith.addf %816, %815 : vector<2x128xf32>
    %818 = arith.divf %816, %817 : vector<2x128xf32>
    %819 = vector.extract_strided_slice %812 {offsets = [0, 128], sizes = [2, 128], strides = [1, 1]} : vector<2x512xf32> to vector<2x128xf32>
    %820 = arith.negf %819 : vector<2x128xf32>
    %821 = math.exp %820 : vector<2x128xf32>
    %cst_178 = arith.constant 1.000000e+00 : f32
    %822 = vector.broadcast %cst_178 : f32 to vector<2x128xf32>
    %823 = arith.addf %822, %821 : vector<2x128xf32>
    %824 = arith.divf %822, %823 : vector<2x128xf32>
    %825 = vector.extract_strided_slice %812 {offsets = [0, 256], sizes = [2, 128], strides = [1, 1]} : vector<2x512xf32> to vector<2x128xf32>
    %826 = math.tanh %825 : vector<2x128xf32>
    %827 = vector.extract_strided_slice %812 {offsets = [0, 384], sizes = [2, 128], strides = [1, 1]} : vector<2x512xf32> to vector<2x128xf32>
    %828 = arith.negf %827 : vector<2x128xf32>
    %829 = math.exp %828 : vector<2x128xf32>
    %cst_179 = arith.constant 1.000000e+00 : f32
    %830 = vector.broadcast %cst_179 : f32 to vector<2x128xf32>
    %831 = arith.addf %830, %829 : vector<2x128xf32>
    %832 = arith.divf %830, %831 : vector<2x128xf32>
    %833 = arith.mulf %824, %806 : vector<2x128xf32>
    %834 = arith.mulf %818, %826 : vector<2x128xf32>
    %835 = arith.addf %833, %834 : vector<2x128xf32>
    %836 = math.tanh %835 : vector<2x128xf32>
    %837 = arith.mulf %832, %836 : vector<2x128xf32>
    %838 = tpu.concatenate %837, %629 in 1 : vector<2x128xf32>, vector<2x3xf32> -> vector<2x131xf32>
    %c0_180 = arith.constant 0 : index
    %c0_181 = arith.constant 0 : index
    %839 = vector.load %arg6[%c0_180, %c0_181] : memref<131x512xf32, #tpu.memory_space<vmem>>, vector<131x512xf32>
    %cst_182 = arith.constant dense<0.000000e+00> : vector<2x512xf32>
    %840 = tpu.matmul %838, %839, %cst_182 {dimension_numbers = #tpu.dot_dimension_numbers<[1], [0], [0], [1], [0, 0, 1, 1], [], []>} : vector<2x131xf32>, vector<131x512xf32>, vector<2x512xf32> -> vector<2x512xf32>
    %841 = arith.addf %840, %632 : vector<2x512xf32>
    %842 = vector.extract_strided_slice %841 {offsets = [0, 0], sizes = [2, 128], strides = [1, 1]} : vector<2x512xf32> to vector<2x128xf32>
    %843 = arith.negf %842 : vector<2x128xf32>
    %844 = math.exp %843 : vector<2x128xf32>
    %cst_183 = arith.constant 1.000000e+00 : f32
    %845 = vector.broadcast %cst_183 : f32 to vector<2x128xf32>
    %846 = arith.addf %845, %844 : vector<2x128xf32>
    %847 = arith.divf %845, %846 : vector<2x128xf32>
    %848 = vector.extract_strided_slice %841 {offsets = [0, 128], sizes = [2, 128], strides = [1, 1]} : vector<2x512xf32> to vector<2x128xf32>
    %849 = arith.negf %848 : vector<2x128xf32>
    %850 = math.exp %849 : vector<2x128xf32>
    %cst_184 = arith.constant 1.000000e+00 : f32
    %851 = vector.broadcast %cst_184 : f32 to vector<2x128xf32>
    %852 = arith.addf %851, %850 : vector<2x128xf32>
    %853 = arith.divf %851, %852 : vector<2x128xf32>
    %854 = vector.extract_strided_slice %841 {offsets = [0, 256], sizes = [2, 128], strides = [1, 1]} : vector<2x512xf32> to vector<2x128xf32>
    %855 = math.tanh %854 : vector<2x128xf32>
    %856 = vector.extract_strided_slice %841 {offsets = [0, 384], sizes = [2, 128], strides = [1, 1]} : vector<2x512xf32> to vector<2x128xf32>
    %857 = arith.negf %856 : vector<2x128xf32>
    %858 = math.exp %857 : vector<2x128xf32>
    %cst_185 = arith.constant 1.000000e+00 : f32
    %859 = vector.broadcast %cst_185 : f32 to vector<2x128xf32>
    %860 = arith.addf %859, %858 : vector<2x128xf32>
    %861 = arith.divf %859, %860 : vector<2x128xf32>
    %862 = arith.mulf %853, %835 : vector<2x128xf32>
    %863 = arith.mulf %847, %855 : vector<2x128xf32>
    %864 = arith.addf %862, %863 : vector<2x128xf32>
    %865 = math.tanh %864 : vector<2x128xf32>
    %866 = arith.mulf %861, %865 : vector<2x128xf32>
    %c0_186 = arith.constant 0 : index
    %c0_187 = arith.constant 0 : index
    %867 = vector.load %arg9[%c0_186, %c0_187] : memref<1x512xf32, #tpu.memory_space<vmem>>, vector<1x512xf32>
    %868 = vector.shape_cast %867 : vector<1x512xf32> to vector<1x512xf32>
    %869 = vector.broadcast %868 : vector<1x512xf32> to vector<2x512xf32>
    %cst_188 = arith.constant 0.000000e+00 : f32
    %870 = vector.broadcast %cst_188 : f32 to vector<2x128xf32>
    %cst_189 = arith.constant 0.000000e+00 : f32
    %871 = vector.broadcast %cst_189 : f32 to vector<2x128xf32>
    %872 = tpu.concatenate %870, %663 in 1 : vector<2x128xf32>, vector<2x128xf32> -> vector<2x256xf32>
    %c0_190 = arith.constant 0 : index
    %c0_191 = arith.constant 0 : index
    %873 = vector.load %arg8[%c0_190, %c0_191] : memref<256x512xf32, #tpu.memory_space<vmem>>, vector<256x512xf32>
    %cst_192 = arith.constant dense<0.000000e+00> : vector<2x512xf32>
    %874 = tpu.matmul %872, %873, %cst_192 {dimension_numbers = #tpu.dot_dimension_numbers<[1], [0], [0], [1], [0, 0, 1, 1], [], []>} : vector<2x256xf32>, vector<256x512xf32>, vector<2x512xf32> -> vector<2x512xf32>
    %875 = arith.addf %874, %869 : vector<2x512xf32>
    %876 = vector.extract_strided_slice %875 {offsets = [0, 0], sizes = [2, 128], strides = [1, 1]} : vector<2x512xf32> to vector<2x128xf32>
    %877 = arith.negf %876 : vector<2x128xf32>
    %878 = math.exp %877 : vector<2x128xf32>
    %cst_193 = arith.constant 1.000000e+00 : f32
    %879 = vector.broadcast %cst_193 : f32 to vector<2x128xf32>
    %880 = arith.addf %879, %878 : vector<2x128xf32>
    %881 = arith.divf %879, %880 : vector<2x128xf32>
    %882 = vector.extract_strided_slice %875 {offsets = [0, 128], sizes = [2, 128], strides = [1, 1]} : vector<2x512xf32> to vector<2x128xf32>
    %883 = arith.negf %882 : vector<2x128xf32>
    %884 = math.exp %883 : vector<2x128xf32>
    %cst_194 = arith.constant 1.000000e+00 : f32
    %885 = vector.broadcast %cst_194 : f32 to vector<2x128xf32>
    %886 = arith.addf %885, %884 : vector<2x128xf32>
    %887 = arith.divf %885, %886 : vector<2x128xf32>
    %888 = vector.extract_strided_slice %875 {offsets = [0, 256], sizes = [2, 128], strides = [1, 1]} : vector<2x512xf32> to vector<2x128xf32>
    %889 = math.tanh %888 : vector<2x128xf32>
    %890 = vector.extract_strided_slice %875 {offsets = [0, 384], sizes = [2, 128], strides = [1, 1]} : vector<2x512xf32> to vector<2x128xf32>
    %891 = arith.negf %890 : vector<2x128xf32>
    %892 = math.exp %891 : vector<2x128xf32>
    %cst_195 = arith.constant 1.000000e+00 : f32
    %893 = vector.broadcast %cst_195 : f32 to vector<2x128xf32>
    %894 = arith.addf %893, %892 : vector<2x128xf32>
    %895 = arith.divf %893, %894 : vector<2x128xf32>
    %896 = arith.mulf %887, %871 : vector<2x128xf32>
    %897 = arith.mulf %881, %889 : vector<2x128xf32>
    %898 = arith.addf %896, %897 : vector<2x128xf32>
    %899 = math.tanh %898 : vector<2x128xf32>
    %900 = arith.mulf %895, %899 : vector<2x128xf32>
    %901 = tpu.concatenate %900, %692 in 1 : vector<2x128xf32>, vector<2x128xf32> -> vector<2x256xf32>
    %c0_196 = arith.constant 0 : index
    %c0_197 = arith.constant 0 : index
    %902 = vector.load %arg8[%c0_196, %c0_197] : memref<256x512xf32, #tpu.memory_space<vmem>>, vector<256x512xf32>
    %cst_198 = arith.constant dense<0.000000e+00> : vector<2x512xf32>
    %903 = tpu.matmul %901, %902, %cst_198 {dimension_numbers = #tpu.dot_dimension_numbers<[1], [0], [0], [1], [0, 0, 1, 1], [], []>} : vector<2x256xf32>, vector<256x512xf32>, vector<2x512xf32> -> vector<2x512xf32>
    %904 = arith.addf %903, %869 : vector<2x512xf32>
    %905 = vector.extract_strided_slice %904 {offsets = [0, 0], sizes = [2, 128], strides = [1, 1]} : vector<2x512xf32> to vector<2x128xf32>
    %906 = arith.negf %905 : vector<2x128xf32>
    %907 = math.exp %906 : vector<2x128xf32>
    %cst_199 = arith.constant 1.000000e+00 : f32
    %908 = vector.broadcast %cst_199 : f32 to vector<2x128xf32>
    %909 = arith.addf %908, %907 : vector<2x128xf32>
    %910 = arith.divf %908, %909 : vector<2x128xf32>
    %911 = vector.extract_strided_slice %904 {offsets = [0, 128], sizes = [2, 128], strides = [1, 1]} : vector<2x512xf32> to vector<2x128xf32>
    %912 = arith.negf %911 : vector<2x128xf32>
    %913 = math.exp %912 : vector<2x128xf32>
    %cst_200 = arith.constant 1.000000e+00 : f32
    %914 = vector.broadcast %cst_200 : f32 to vector<2x128xf32>
    %915 = arith.addf %914, %913 : vector<2x128xf32>
    %916 = arith.divf %914, %915 : vector<2x128xf32>
    %917 = vector.extract_strided_slice %904 {offsets = [0, 256], sizes = [2, 128], strides = [1, 1]} : vector<2x512xf32> to vector<2x128xf32>
    %918 = math.tanh %917 : vector<2x128xf32>
    %919 = vector.extract_strided_slice %904 {offsets = [0, 384], sizes = [2, 128], strides = [1, 1]} : vector<2x512xf32> to vector<2x128xf32>
    %920 = arith.negf %919 : vector<2x128xf32>
    %921 = math.exp %920 : vector<2x128xf32>
    %cst_201 = arith.constant 1.000000e+00 : f32
    %922 = vector.broadcast %cst_201 : f32 to vector<2x128xf32>
    %923 = arith.addf %922, %921 : vector<2x128xf32>
    %924 = arith.divf %922, %923 : vector<2x128xf32>
    %925 = arith.mulf %916, %898 : vector<2x128xf32>
    %926 = arith.mulf %910, %918 : vector<2x128xf32>
    %927 = arith.addf %925, %926 : vector<2x128xf32>
    %928 = math.tanh %927 : vector<2x128xf32>
    %929 = arith.mulf %924, %928 : vector<2x128xf32>
    %930 = tpu.concatenate %929, %721 in 1 : vector<2x128xf32>, vector<2x128xf32> -> vector<2x256xf32>
    %c0_202 = arith.constant 0 : index
    %c0_203 = arith.constant 0 : index
    %931 = vector.load %arg8[%c0_202, %c0_203] : memref<256x512xf32, #tpu.memory_space<vmem>>, vector<256x512xf32>
    %cst_204 = arith.constant dense<0.000000e+00> : vector<2x512xf32>
    %932 = tpu.matmul %930, %931, %cst_204 {dimension_numbers = #tpu.dot_dimension_numbers<[1], [0], [0], [1], [0, 0, 1, 1], [], []>} : vector<2x256xf32>, vector<256x512xf32>, vector<2x512xf32> -> vector<2x512xf32>
    %933 = arith.addf %932, %869 : vector<2x512xf32>
    %934 = vector.extract_strided_slice %933 {offsets = [0, 0], sizes = [2, 128], strides = [1, 1]} : vector<2x512xf32> to vector<2x128xf32>
    %935 = arith.negf %934 : vector<2x128xf32>
    %936 = math.exp %935 : vector<2x128xf32>
    %cst_205 = arith.constant 1.000000e+00 : f32
    %937 = vector.broadcast %cst_205 : f32 to vector<2x128xf32>
    %938 = arith.addf %937, %936 : vector<2x128xf32>
    %939 = arith.divf %937, %938 : vector<2x128xf32>
    %940 = vector.extract_strided_slice %933 {offsets = [0, 128], sizes = [2, 128], strides = [1, 1]} : vector<2x512xf32> to vector<2x128xf32>
    %941 = arith.negf %940 : vector<2x128xf32>
    %942 = math.exp %941 : vector<2x128xf32>
    %cst_206 = arith.constant 1.000000e+00 : f32
    %943 = vector.broadcast %cst_206 : f32 to vector<2x128xf32>
    %944 = arith.addf %943, %942 : vector<2x128xf32>
    %945 = arith.divf %943, %944 : vector<2x128xf32>
    %946 = vector.extract_strided_slice %933 {offsets = [0, 256], sizes = [2, 128], strides = [1, 1]} : vector<2x512xf32> to vector<2x128xf32>
    %947 = math.tanh %946 : vector<2x128xf32>
    %948 = vector.extract_strided_slice %933 {offsets = [0, 384], sizes = [2, 128], strides = [1, 1]} : vector<2x512xf32> to vector<2x128xf32>
    %949 = arith.negf %948 : vector<2x128xf32>
    %950 = math.exp %949 : vector<2x128xf32>
    %cst_207 = arith.constant 1.000000e+00 : f32
    %951 = vector.broadcast %cst_207 : f32 to vector<2x128xf32>
    %952 = arith.addf %951, %950 : vector<2x128xf32>
    %953 = arith.divf %951, %952 : vector<2x128xf32>
    %954 = arith.mulf %945, %927 : vector<2x128xf32>
    %955 = arith.mulf %939, %947 : vector<2x128xf32>
    %956 = arith.addf %954, %955 : vector<2x128xf32>
    %957 = math.tanh %956 : vector<2x128xf32>
    %958 = arith.mulf %953, %957 : vector<2x128xf32>
    %959 = tpu.concatenate %958, %750 in 1 : vector<2x128xf32>, vector<2x128xf32> -> vector<2x256xf32>
    %c0_208 = arith.constant 0 : index
    %c0_209 = arith.constant 0 : index
    %960 = vector.load %arg8[%c0_208, %c0_209] : memref<256x512xf32, #tpu.memory_space<vmem>>, vector<256x512xf32>
    %cst_210 = arith.constant dense<0.000000e+00> : vector<2x512xf32>
    %961 = tpu.matmul %959, %960, %cst_210 {dimension_numbers = #tpu.dot_dimension_numbers<[1], [0], [0], [1], [0, 0, 1, 1], [], []>} : vector<2x256xf32>, vector<256x512xf32>, vector<2x512xf32> -> vector<2x512xf32>
    %962 = arith.addf %961, %869 : vector<2x512xf32>
    %963 = vector.extract_strided_slice %962 {offsets = [0, 0], sizes = [2, 128], strides = [1, 1]} : vector<2x512xf32> to vector<2x128xf32>
    %964 = arith.negf %963 : vector<2x128xf32>
    %965 = math.exp %964 : vector<2x128xf32>
    %cst_211 = arith.constant 1.000000e+00 : f32
    %966 = vector.broadcast %cst_211 : f32 to vector<2x128xf32>
    %967 = arith.addf %966, %965 : vector<2x128xf32>
    %968 = arith.divf %966, %967 : vector<2x128xf32>
    %969 = vector.extract_strided_slice %962 {offsets = [0, 128], sizes = [2, 128], strides = [1, 1]} : vector<2x512xf32> to vector<2x128xf32>
    %970 = arith.negf %969 : vector<2x128xf32>
    %971 = math.exp %970 : vector<2x128xf32>
    %cst_212 = arith.constant 1.000000e+00 : f32
    %972 = vector.broadcast %cst_212 : f32 to vector<2x128xf32>
    %973 = arith.addf %972, %971 : vector<2x128xf32>
    %974 = arith.divf %972, %973 : vector<2x128xf32>
    %975 = vector.extract_strided_slice %962 {offsets = [0, 256], sizes = [2, 128], strides = [1, 1]} : vector<2x512xf32> to vector<2x128xf32>
    %976 = math.tanh %975 : vector<2x128xf32>
    %977 = vector.extract_strided_slice %962 {offsets = [0, 384], sizes = [2, 128], strides = [1, 1]} : vector<2x512xf32> to vector<2x128xf32>
    %978 = arith.negf %977 : vector<2x128xf32>
    %979 = math.exp %978 : vector<2x128xf32>
    %cst_213 = arith.constant 1.000000e+00 : f32
    %980 = vector.broadcast %cst_213 : f32 to vector<2x128xf32>
    %981 = arith.addf %980, %979 : vector<2x128xf32>
    %982 = arith.divf %980, %981 : vector<2x128xf32>
    %983 = arith.mulf %974, %956 : vector<2x128xf32>
    %984 = arith.mulf %968, %976 : vector<2x128xf32>
    %985 = arith.addf %983, %984 : vector<2x128xf32>
    %986 = math.tanh %985 : vector<2x128xf32>
    %987 = arith.mulf %982, %986 : vector<2x128xf32>
    %988 = tpu.concatenate %987, %779 in 1 : vector<2x128xf32>, vector<2x128xf32> -> vector<2x256xf32>
    %c0_214 = arith.constant 0 : index
    %c0_215 = arith.constant 0 : index
    %989 = vector.load %arg8[%c0_214, %c0_215] : memref<256x512xf32, #tpu.memory_space<vmem>>, vector<256x512xf32>
    %cst_216 = arith.constant dense<0.000000e+00> : vector<2x512xf32>
    %990 = tpu.matmul %988, %989, %cst_216 {dimension_numbers = #tpu.dot_dimension_numbers<[1], [0], [0], [1], [0, 0, 1, 1], [], []>} : vector<2x256xf32>, vector<256x512xf32>, vector<2x512xf32> -> vector<2x512xf32>
    %991 = arith.addf %990, %869 : vector<2x512xf32>
    %992 = vector.extract_strided_slice %991 {offsets = [0, 0], sizes = [2, 128], strides = [1, 1]} : vector<2x512xf32> to vector<2x128xf32>
    %993 = arith.negf %992 : vector<2x128xf32>
    %994 = math.exp %993 : vector<2x128xf32>
    %cst_217 = arith.constant 1.000000e+00 : f32
    %995 = vector.broadcast %cst_217 : f32 to vector<2x128xf32>
    %996 = arith.addf %995, %994 : vector<2x128xf32>
    %997 = arith.divf %995, %996 : vector<2x128xf32>
    %998 = vector.extract_strided_slice %991 {offsets = [0, 128], sizes = [2, 128], strides = [1, 1]} : vector<2x512xf32> to vector<2x128xf32>
    %999 = arith.negf %998 : vector<2x128xf32>
    %1000 = math.exp %999 : vector<2x128xf32>
    %cst_218 = arith.constant 1.000000e+00 : f32
    %1001 = vector.broadcast %cst_218 : f32 to vector<2x128xf32>
    %1002 = arith.addf %1001, %1000 : vector<2x128xf32>
    %1003 = arith.divf %1001, %1002 : vector<2x128xf32>
    %1004 = vector.extract_strided_slice %991 {offsets = [0, 256], sizes = [2, 128], strides = [1, 1]} : vector<2x512xf32> to vector<2x128xf32>
    %1005 = math.tanh %1004 : vector<2x128xf32>
    %1006 = vector.extract_strided_slice %991 {offsets = [0, 384], sizes = [2, 128], strides = [1, 1]} : vector<2x512xf32> to vector<2x128xf32>
    %1007 = arith.negf %1006 : vector<2x128xf32>
    %1008 = math.exp %1007 : vector<2x128xf32>
    %cst_219 = arith.constant 1.000000e+00 : f32
    %1009 = vector.broadcast %cst_219 : f32 to vector<2x128xf32>
    %1010 = arith.addf %1009, %1008 : vector<2x128xf32>
    %1011 = arith.divf %1009, %1010 : vector<2x128xf32>
    %1012 = arith.mulf %1003, %985 : vector<2x128xf32>
    %1013 = arith.mulf %997, %1005 : vector<2x128xf32>
    %1014 = arith.addf %1012, %1013 : vector<2x128xf32>
    %1015 = math.tanh %1014 : vector<2x128xf32>
    %1016 = arith.mulf %1011, %1015 : vector<2x128xf32>
    %1017 = tpu.concatenate %1016, %808 in 1 : vector<2x128xf32>, vector<2x128xf32> -> vector<2x256xf32>
    %c0_220 = arith.constant 0 : index
    %c0_221 = arith.constant 0 : index
    %1018 = vector.load %arg8[%c0_220, %c0_221] : memref<256x512xf32, #tpu.memory_space<vmem>>, vector<256x512xf32>
    %cst_222 = arith.constant dense<0.000000e+00> : vector<2x512xf32>
    %1019 = tpu.matmul %1017, %1018, %cst_222 {dimension_numbers = #tpu.dot_dimension_numbers<[1], [0], [0], [1], [0, 0, 1, 1], [], []>} : vector<2x256xf32>, vector<256x512xf32>, vector<2x512xf32> -> vector<2x512xf32>
    %1020 = arith.addf %1019, %869 : vector<2x512xf32>
    %1021 = vector.extract_strided_slice %1020 {offsets = [0, 0], sizes = [2, 128], strides = [1, 1]} : vector<2x512xf32> to vector<2x128xf32>
    %1022 = arith.negf %1021 : vector<2x128xf32>
    %1023 = math.exp %1022 : vector<2x128xf32>
    %cst_223 = arith.constant 1.000000e+00 : f32
    %1024 = vector.broadcast %cst_223 : f32 to vector<2x128xf32>
    %1025 = arith.addf %1024, %1023 : vector<2x128xf32>
    %1026 = arith.divf %1024, %1025 : vector<2x128xf32>
    %1027 = vector.extract_strided_slice %1020 {offsets = [0, 128], sizes = [2, 128], strides = [1, 1]} : vector<2x512xf32> to vector<2x128xf32>
    %1028 = arith.negf %1027 : vector<2x128xf32>
    %1029 = math.exp %1028 : vector<2x128xf32>
    %cst_224 = arith.constant 1.000000e+00 : f32
    %1030 = vector.broadcast %cst_224 : f32 to vector<2x128xf32>
    %1031 = arith.addf %1030, %1029 : vector<2x128xf32>
    %1032 = arith.divf %1030, %1031 : vector<2x128xf32>
    %1033 = vector.extract_strided_slice %1020 {offsets = [0, 256], sizes = [2, 128], strides = [1, 1]} : vector<2x512xf32> to vector<2x128xf32>
    %1034 = math.tanh %1033 : vector<2x128xf32>
    %1035 = vector.extract_strided_slice %1020 {offsets = [0, 384], sizes = [2, 128], strides = [1, 1]} : vector<2x512xf32> to vector<2x128xf32>
    %1036 = arith.negf %1035 : vector<2x128xf32>
    %1037 = math.exp %1036 : vector<2x128xf32>
    %cst_225 = arith.constant 1.000000e+00 : f32
    %1038 = vector.broadcast %cst_225 : f32 to vector<2x128xf32>
    %1039 = arith.addf %1038, %1037 : vector<2x128xf32>
    %1040 = arith.divf %1038, %1039 : vector<2x128xf32>
    %1041 = arith.mulf %1032, %1014 : vector<2x128xf32>
    %1042 = arith.mulf %1026, %1034 : vector<2x128xf32>
    %1043 = arith.addf %1041, %1042 : vector<2x128xf32>
    %1044 = math.tanh %1043 : vector<2x128xf32>
    %1045 = arith.mulf %1040, %1044 : vector<2x128xf32>
    %1046 = tpu.concatenate %1045, %837 in 1 : vector<2x128xf32>, vector<2x128xf32> -> vector<2x256xf32>
    %c0_226 = arith.constant 0 : index
    %c0_227 = arith.constant 0 : index
    %1047 = vector.load %arg8[%c0_226, %c0_227] : memref<256x512xf32, #tpu.memory_space<vmem>>, vector<256x512xf32>
    %cst_228 = arith.constant dense<0.000000e+00> : vector<2x512xf32>
    %1048 = tpu.matmul %1046, %1047, %cst_228 {dimension_numbers = #tpu.dot_dimension_numbers<[1], [0], [0], [1], [0, 0, 1, 1], [], []>} : vector<2x256xf32>, vector<256x512xf32>, vector<2x512xf32> -> vector<2x512xf32>
    %1049 = arith.addf %1048, %869 : vector<2x512xf32>
    %1050 = vector.extract_strided_slice %1049 {offsets = [0, 0], sizes = [2, 128], strides = [1, 1]} : vector<2x512xf32> to vector<2x128xf32>
    %1051 = arith.negf %1050 : vector<2x128xf32>
    %1052 = math.exp %1051 : vector<2x128xf32>
    %cst_229 = arith.constant 1.000000e+00 : f32
    %1053 = vector.broadcast %cst_229 : f32 to vector<2x128xf32>
    %1054 = arith.addf %1053, %1052 : vector<2x128xf32>
    %1055 = arith.divf %1053, %1054 : vector<2x128xf32>
    %1056 = vector.extract_strided_slice %1049 {offsets = [0, 128], sizes = [2, 128], strides = [1, 1]} : vector<2x512xf32> to vector<2x128xf32>
    %1057 = arith.negf %1056 : vector<2x128xf32>
    %1058 = math.exp %1057 : vector<2x128xf32>
    %cst_230 = arith.constant 1.000000e+00 : f32
    %1059 = vector.broadcast %cst_230 : f32 to vector<2x128xf32>
    %1060 = arith.addf %1059, %1058 : vector<2x128xf32>
    %1061 = arith.divf %1059, %1060 : vector<2x128xf32>
    %1062 = vector.extract_strided_slice %1049 {offsets = [0, 256], sizes = [2, 128], strides = [1, 1]} : vector<2x512xf32> to vector<2x128xf32>
    %1063 = math.tanh %1062 : vector<2x128xf32>
    %1064 = vector.extract_strided_slice %1049 {offsets = [0, 384], sizes = [2, 128], strides = [1, 1]} : vector<2x512xf32> to vector<2x128xf32>
    %1065 = arith.negf %1064 : vector<2x128xf32>
    %1066 = math.exp %1065 : vector<2x128xf32>
    %cst_231 = arith.constant 1.000000e+00 : f32
    %1067 = vector.broadcast %cst_231 : f32 to vector<2x128xf32>
    %1068 = arith.addf %1067, %1066 : vector<2x128xf32>
    %1069 = arith.divf %1067, %1068 : vector<2x128xf32>
    %1070 = arith.mulf %1061, %1043 : vector<2x128xf32>
    %1071 = arith.mulf %1055, %1063 : vector<2x128xf32>
    %1072 = arith.addf %1070, %1071 : vector<2x128xf32>
    %1073 = math.tanh %1072 : vector<2x128xf32>
    %1074 = arith.mulf %1069, %1073 : vector<2x128xf32>
    %1075 = tpu.concatenate %1074, %866 in 1 : vector<2x128xf32>, vector<2x128xf32> -> vector<2x256xf32>
    %c0_232 = arith.constant 0 : index
    %c0_233 = arith.constant 0 : index
    %1076 = vector.load %arg8[%c0_232, %c0_233] : memref<256x512xf32, #tpu.memory_space<vmem>>, vector<256x512xf32>
    %cst_234 = arith.constant dense<0.000000e+00> : vector<2x512xf32>
    %1077 = tpu.matmul %1075, %1076, %cst_234 {dimension_numbers = #tpu.dot_dimension_numbers<[1], [0], [0], [1], [0, 0, 1, 1], [], []>} : vector<2x256xf32>, vector<256x512xf32>, vector<2x512xf32> -> vector<2x512xf32>
    %1078 = arith.addf %1077, %869 : vector<2x512xf32>
    %1079 = vector.extract_strided_slice %1078 {offsets = [0, 0], sizes = [2, 128], strides = [1, 1]} : vector<2x512xf32> to vector<2x128xf32>
    %1080 = arith.negf %1079 : vector<2x128xf32>
    %1081 = math.exp %1080 : vector<2x128xf32>
    %cst_235 = arith.constant 1.000000e+00 : f32
    %1082 = vector.broadcast %cst_235 : f32 to vector<2x128xf32>
    %1083 = arith.addf %1082, %1081 : vector<2x128xf32>
    %1084 = arith.divf %1082, %1083 : vector<2x128xf32>
    %1085 = vector.extract_strided_slice %1078 {offsets = [0, 128], sizes = [2, 128], strides = [1, 1]} : vector<2x512xf32> to vector<2x128xf32>
    %1086 = arith.negf %1085 : vector<2x128xf32>
    %1087 = math.exp %1086 : vector<2x128xf32>
    %cst_236 = arith.constant 1.000000e+00 : f32
    %1088 = vector.broadcast %cst_236 : f32 to vector<2x128xf32>
    %1089 = arith.addf %1088, %1087 : vector<2x128xf32>
    %1090 = arith.divf %1088, %1089 : vector<2x128xf32>
    %1091 = vector.extract_strided_slice %1078 {offsets = [0, 256], sizes = [2, 128], strides = [1, 1]} : vector<2x512xf32> to vector<2x128xf32>
    %1092 = math.tanh %1091 : vector<2x128xf32>
    %1093 = vector.extract_strided_slice %1078 {offsets = [0, 384], sizes = [2, 128], strides = [1, 1]} : vector<2x512xf32> to vector<2x128xf32>
    %1094 = arith.negf %1093 : vector<2x128xf32>
    %1095 = math.exp %1094 : vector<2x128xf32>
    %cst_237 = arith.constant 1.000000e+00 : f32
    %1096 = vector.broadcast %cst_237 : f32 to vector<2x128xf32>
    %1097 = arith.addf %1096, %1095 : vector<2x128xf32>
    %1098 = arith.divf %1096, %1097 : vector<2x128xf32>
    %1099 = arith.mulf %1090, %1072 : vector<2x128xf32>
    %1100 = arith.mulf %1084, %1092 : vector<2x128xf32>
    %1101 = arith.addf %1099, %1100 : vector<2x128xf32>
    %1102 = math.tanh %1101 : vector<2x128xf32>
    %1103 = arith.mulf %1098, %1102 : vector<2x128xf32>
    %1104 = tpu.concatenate %900, %929, %958, %987, %1016, %1045, %1074, %1103 in 0 : vector<2x128xf32>, vector<2x128xf32>, vector<2x128xf32>, vector<2x128xf32>, vector<2x128xf32>, vector<2x128xf32>, vector<2x128xf32>, vector<2x128xf32> -> vector<16x128xf32>
    %c0_238 = arith.constant 0 : index
    %c0_239 = arith.constant 0 : index
    %1105 = vector.load %arg10[%c0_238, %c0_239] : memref<128x3xf32, #tpu.memory_space<vmem>>, vector<128x3xf32>
    %cst_240 = arith.constant dense<0.000000e+00> : vector<16x3xf32>
    %1106 = tpu.matmul %1104, %1105, %cst_240 {dimension_numbers = #tpu.dot_dimension_numbers<[1], [0], [0], [1], [0, 0, 1, 1], [], []>} : vector<16x128xf32>, vector<128x3xf32>, vector<16x3xf32> -> vector<16x3xf32>
    %c0_241 = arith.constant 0 : index
    %c0_242 = arith.constant 0 : index
    %1107 = vector.load %arg11[%c0_241, %c0_242] : memref<1x3xf32, #tpu.memory_space<vmem>>, vector<1x3xf32>
    %1108 = vector.broadcast %1107 : vector<1x3xf32> to vector<16x3xf32>
    %1109 = arith.addf %1106, %1108 : vector<16x3xf32>
    %c0_243 = arith.constant 0 : index
    %c0_244 = arith.constant 0 : index
    %1110 = vector.load %arg13[%c0_243, %c0_244] : memref<16x3xf32, #tpu.memory_space<vmem>>, vector<16x3xf32>
    tpu.vector_store %arg13[%c0_243, %c0_244], %1109 {strides = array<i32>} : memref<16x3xf32, #tpu.memory_space<vmem>>, vector<16x3xf32>,
    return
  }
}

</mosaic_0001>

<llo_original>
// kernel: seq2seq_forward.1
$region0: #{seq2seq_forward.1}
  #allocation0 [shape = 'u32[]', space=smem, size = 0x4, offset = 0x4, fixed_abs, tag = 'smem constant byte address 0x4 - core index']
  #allocation1 [shape = 'u32[144,128]{1,0:T(1,128)}', space=vmem, size = 0x12000, scoped, tag = 'internal scratch']
  %s0 = inlined_call_operand.vmem [shape: f32[10,2,3], index: 0, kind: input, shape index: {}]
  %s1 = inlined_call_operand.vmem [shape: f32[8,2,3], index: 1, kind: input, shape index: {}]
  %s2 = inlined_call_operand.vmem [shape: f32[131,512], index: 2, kind: input, shape index: {}]
  %s3 = inlined_call_operand.vmem [shape: f32[1,512], index: 3, kind: input, shape index: {}]
  %s4 = inlined_call_operand.vmem [shape: f32[256,512], index: 4, kind: input, shape index: {}]
  %s5 = inlined_call_operand.vmem [shape: f32[1,512], index: 5, kind: input, shape index: {}]
  %s6 = inlined_call_operand.vmem [shape: f32[131,512], index: 6, kind: input, shape index: {}]
  %s7 = inlined_call_operand.vmem [shape: f32[1,512], index: 7, kind: input, shape index: {}]
  %s8 = inlined_call_operand.vmem [shape: f32[256,512], index: 8, kind: input, shape index: {}]
  %s9 = inlined_call_operand.vmem [shape: f32[1,512], index: 9, kind: input, shape index: {}]
  %s10 = inlined_call_operand.vmem [shape: f32[128,3], index: 10, kind: input, shape index: {}]
  %s11 = inlined_call_operand.vmem [shape: f32[1,3], index: 11, kind: input, shape index: {}]
  %s12 = inlined_call_operand.vmem [shape: f32[20,128], index: 12, kind: output, shape index: {0}]
  %s13 = inlined_call_operand.vmem [shape: f32[16,3], index: 13, kind: output, shape index: {1}]
  %14 = xla_tuple %s12, %s13
  %s15 = sld [smem:[#allocation0]]
  $region66: #{seq2seq_forward.1} parent=0
    _
  %s17 = ssub.s32 1, %s15
  %s18 = scalar_select 0, %s17, %s15
  // Predicated region
  $region2: #{seq2seq_forward.1} parent=0 // pred_check
    _
  $region3: #{seq2seq_forward.1} parent=0 // pred_check_branch
    %20 = sbr.rel (0) target = $region5
  $region4: #{seq2seq_forward.1} parent=0 // pred_region
    _
  $region5: #{seq2seq_forward.1} parent=0 // pred_fallthru
    _
  // Predicated region
  $region6: #{seq2seq_forward.1} parent=0 // pred_check
    _
  $region7: #{seq2seq_forward.1} parent=0 // pred_check_branch
    %22 = sbr.rel (0) target = $region9
  $region8: #{seq2seq_forward.1} parent=0 // pred_region
    _
  $region9: #{seq2seq_forward.1} parent=0 // pred_fallthru
    _
  // Predicated region
  $region10: #{seq2seq_forward.1} parent=0 // pred_check
    _
  $region11: #{seq2seq_forward.1} parent=0 // pred_check_branch
    %24 = sbr.rel (0) target = $region13
  $region12: #{seq2seq_forward.1} parent=0 // pred_region
    _
  $region13: #{seq2seq_forward.1} parent=0 // pred_fallthru
    _
  // Predicated region
  $region14: #{seq2seq_forward.1} parent=0 // pred_check
    _
  $region15: #{seq2seq_forward.1} parent=0 // pred_check_branch
    %26 = sbr.rel (0) target = $region17
  $region16: #{seq2seq_forward.1} parent=0 // pred_region
    _
  $region17: #{seq2seq_forward.1} parent=0 // pred_fallthru
    _
  // Predicated region
  $region18: #{seq2seq_forward.1} parent=0 // pred_check
    _
  $region19: #{seq2seq_forward.1} parent=0 // pred_check_branch
    %28 = sbr.rel (0) target = $region21
  $region20: #{seq2seq_forward.1} parent=0 // pred_region
    _
  $region21: #{seq2seq_forward.1} parent=0 // pred_fallthru
    _
  // Predicated region
  $region22: #{seq2seq_forward.1} parent=0 // pred_check
    _
  $region23: #{seq2seq_forward.1} parent=0 // pred_check_branch
    %30 = sbr.rel (0) target = $region25
  $region24: #{seq2seq_forward.1} parent=0 // pred_region
    _
  $region25: #{seq2seq_forward.1} parent=0 // pred_fallthru
    _
  // Predicated region
  $region26: #{seq2seq_forward.1} parent=0 // pred_check
    _
  $region27: #{seq2seq_forward.1} parent=0 // pred_check_branch
    %32 = sbr.rel (0) target = $region29
  $region28: #{seq2seq_forward.1} parent=0 // pred_region
    _
  $region29: #{seq2seq_forward.1} parent=0 // pred_fallthru
    _
  // Predicated region
  $region30: #{seq2seq_forward.1} parent=0 // pred_check
    _
  $region31: #{seq2seq_forward.1} parent=0 // pred_check_branch
    %34 = sbr.rel (0) target = $region33
  $region32: #{seq2seq_forward.1} parent=0 // pred_region
    _
  $region33: #{seq2seq_forward.1} parent=0 // pred_fallthru
    _
  // Predicated region
  $region34: #{seq2seq_forward.1} parent=0 // pred_check
    _
  $region35: #{seq2seq_forward.1} parent=0 // pred_check_branch
    %36 = sbr.rel (0) target = $region37
  $region36: #{seq2seq_forward.1} parent=0 // pred_region
    _
  $region37: #{seq2seq_forward.1} parent=0 // pred_fallthru
    _
  // Predicated region
  $region38: #{seq2seq_forward.1} parent=0 // pred_check
    _
  $region39: #{seq2seq_forward.1} parent=0 // pred_check_branch
    %38 = sbr.rel (0) target = $region41
  $region40: #{seq2seq_forward.1} parent=0 // pred_region
    _
  $region41: #{seq2seq_forward.1} parent=0 // pred_fallthru
    _
  // Predicated region
  $region42: #{seq2seq_forward.1} parent=0 // pred_check
    _
  $region43: #{seq2seq_forward.1} parent=0 // pred_check_branch
    %40 = sbr.rel (0) target = $region45
  $region44: #{seq2seq_forward.1} parent=0 // pred_region
    _
  $region45: #{seq2seq_forward.1} parent=0 // pred_fallthru
    _
  // Predicated region
  $region46: #{seq2seq_forward.1} parent=0 // pred_check
    _
  $region47: #{seq2seq_forward.1} parent=0 // pred_check_branch
    %42 = sbr.rel (0) target = $region49
  $region48: #{seq2seq_forward.1} parent=0 // pred_region
    _
  $region49: #{seq2seq_forward.1} parent=0 // pred_fallthru
    _
  %v43 = vld [vmem:[%s0] sm:$0x3]
  %v44 = vld [vmem:[%s0 + $0x2] sm:$0x3]
  %v45 = vld [vmem:[%s0 + $0x4] sm:$0x3]
  %v46 = vld [vmem:[%s0 + $0x6] sm:$0x3]
  %v47 = vld [vmem:[%s0 + $0x8] sm:$0x3]
  %v48 = vld [vmem:[%s0 + $0xa] sm:$0x3]
  %v49 = vld [vmem:[%s0 + $0xc] sm:$0x3]
  %v50 = vld [vmem:[%s0 + $0xe] sm:$0x3]
  %v51 = vld [vmem:[%s0 + $0x10] sm:$0x3]
  %v52 = vld [vmem:[%s0 + $0x12] sm:$0x3]
  %v53 = vld [vmem:[%s1] sm:$0x3]
  %v54 = vld [vmem:[%s1 + $0x2] sm:$0x3]
  %v55 = vld [vmem:[%s1 + $0x4] sm:$0x3]
  %v56 = vld [vmem:[%s1 + $0x6] sm:$0x3]
  %v57 = vld [vmem:[%s1 + $0x8] sm:$0x3]
  %v58 = vld [vmem:[%s1 + $0xa] sm:$0x3]
  %v59 = vld [vmem:[%s1 + $0xc] sm:$0x3]
  %v60 = vld [vmem:[%s1 + $0xe] sm:$0x3]
  %v61 = vld [vmem:[%s3] sm:$0xf]
  %v63 = vlaneseq
  %v64 = vshrl.u32 %v63, 7
  %v65 = vsub.s32 0, %v64
  %v66 = vrot.slane %v61, %v65
  %v67 = vlaneseq
  %v68 = vshrl.u32 %v67, 7
  %v69 = vsub.s32 1, %v68
  %v70 = vrot.slane %v61, %v69
  %v71 = vlaneseq
  %v72 = vshrl.u32 %v71, 7
  %v73 = vsub.s32 2, %v72
  %v74 = vrot.slane %v61, %v73
  %v75 = vlaneseq
  %v76 = vshrl.u32 %v75, 7
  %v77 = vsub.s32 3, %v76
  %v78 = vrot.slane %v61, %v77
  %v83 = vld [vmem:[%s2] sm:$0xff]
  %v84 = vld [vmem:[%s2 + $0x8] sm:$0xff]
  %v85 = vld [vmem:[%s2 + $0x10] sm:$0xff]
  %v86 = vld [vmem:[%s2 + $0x18] sm:$0xff]
  %v87 = vld [vmem:[%s2 + $0x20] sm:$0xff]
  %v88 = vld [vmem:[%s2 + $0x28] sm:$0xff]
  %v89 = vld [vmem:[%s2 + $0x30] sm:$0xff]
  %v90 = vld [vmem:[%s2 + $0x38] sm:$0xff]
  %v91 = vld [vmem:[%s2 + $0x40] sm:$0xff]
  %v92 = vld [vmem:[%s2 + $0x48] sm:$0xff]
  %v93 = vld [vmem:[%s2 + $0x50] sm:$0xff]
  %v94 = vld [vmem:[%s2 + $0x58] sm:$0xff]
  %v95 = vld [vmem:[%s2 + $0x60] sm:$0xff]
  %v96 = vld [vmem:[%s2 + $0x68] sm:$0xff]
  %v97 = vld [vmem:[%s2 + $0x70] sm:$0xff]
  %v98 = vld [vmem:[%s2 + $0x78] sm:$0xff]
  %v99 = vld [vmem:[%s2 + $0x80] sm:$0xff]
  %v100 = vld [vmem:[%s2 + $0x88] sm:$0xff]
  %v101 = vld [vmem:[%s2 + $0x90] sm:$0xff]
  %v102 = vld [vmem:[%s2 + $0x98] sm:$0xff]
  %v103 = vld [vmem:[%s2 + $0xa0] sm:$0xff]
  %v104 = vld [vmem:[%s2 + $0xa8] sm:$0xff]
  %v105 = vld [vmem:[%s2 + $0xb0] sm:$0xff]
  %v106 = vld [vmem:[%s2 + $0xb8] sm:$0xff]
  %v107 = vld [vmem:[%s2 + $0xc0] sm:$0xff]
  %v108 = vld [vmem:[%s2 + $0xc8] sm:$0xff]
  %v109 = vld [vmem:[%s2 + $0xd0] sm:$0xff]
  %v110 = vld [vmem:[%s2 + $0xd8] sm:$0xff]
  %v111 = vld [vmem:[%s2 + $0xe0] sm:$0xff]
  %v112 = vld [vmem:[%s2 + $0xe8] sm:$0xff]
  %v113 = vld [vmem:[%s2 + $0xf0] sm:$0xff]
  %v114 = vld [vmem:[%s2 + $0xf8] sm:$0xff]
  %v115 = vld [vmem:[%s2 + $0x100] sm:$0xff]
  %v116 = vld [vmem:[%s2 + $0x108] sm:$0xff]
  %v117 = vld [vmem:[%s2 + $0x110] sm:$0xff]
  %v118 = vld [vmem:[%s2 + $0x118] sm:$0xff]
  %v119 = vld [vmem:[%s2 + $0x120] sm:$0xff]
  %v120 = vld [vmem:[%s2 + $0x128] sm:$0xff]
  %v121 = vld [vmem:[%s2 + $0x130] sm:$0xff]
  %v122 = vld [vmem:[%s2 + $0x138] sm:$0xff]
  %v123 = vld [vmem:[%s2 + $0x140] sm:$0xff]
  %v124 = vld [vmem:[%s2 + $0x148] sm:$0xff]
  %v125 = vld [vmem:[%s2 + $0x150] sm:$0xff]
  %v126 = vld [vmem:[%s2 + $0x158] sm:$0xff]
  %v127 = vld [vmem:[%s2 + $0x160] sm:$0xff]
  %v128 = vld [vmem:[%s2 + $0x168] sm:$0xff]
  %v129 = vld [vmem:[%s2 + $0x170] sm:$0xff]
  %v130 = vld [vmem:[%s2 + $0x178] sm:$0xff]
  %v131 = vld [vmem:[%s2 + $0x180] sm:$0xff]
  %v132 = vld [vmem:[%s2 + $0x188] sm:$0xff]
  %v133 = vld [vmem:[%s2 + $0x190] sm:$0xff]
  %v134 = vld [vmem:[%s2 + $0x198] sm:$0xff]
  %v135 = vld [vmem:[%s2 + $0x1a0] sm:$0xff]
  %v136 = vld [vmem:[%s2 + $0x1a8] sm:$0xff]
  %v137 = vld [vmem:[%s2 + $0x1b0] sm:$0xff]
  %v138 = vld [vmem:[%s2 + $0x1b8] sm:$0xff]
  %v139 = vld [vmem:[%s2 + $0x1c0] sm:$0xff]
  %v140 = vld [vmem:[%s2 + $0x1c8] sm:$0xff]
  %v141 = vld [vmem:[%s2 + $0x1d0] sm:$0xff]
  %v142 = vld [vmem:[%s2 + $0x1d8] sm:$0xff]
  %v143 = vld [vmem:[%s2 + $0x1e0] sm:$0xff]
  %v144 = vld [vmem:[%s2 + $0x1e8] sm:$0xff]
  %v145 = vld [vmem:[%s2 + $0x1f0] sm:$0xff]
  %v146 = vld [vmem:[%s2 + $0x1f8] sm:$0xff]
  %v147 = vld [vmem:[%s2 + $0x200] sm:$0x7]
  %v148 = vld [vmem:[%s2 + $0x208] sm:$0x7]
  %v149 = vld [vmem:[%s2 + $0x210] sm:$0x7]
  %v150 = vld [vmem:[%s2 + $0x218] sm:$0x7]
  %vm151 = vcmask 23552
  %v153 = vsel %vm151, %v43, 0
  %vm155 = vcmask 1042432
  %v157 = vsel %vm155, %v147, 0
  %v160 = vsel %vm155, %v148, 0
  %v163 = vsel %vm155, %v149, 0
  %v166 = vsel %vm155, %v150, 0
  %168 = vmatprep.subr.mxu0 %v84
  %169 = vmatpush1.msra.mxu0 %v83
  %170 = vmatprep.subr.mxu0 %v88
  %171 = vmatpush1.msra.mxu0 %v87
  %172 = vmatprep.subr.mxu0 %v92
  %173 = vmatpush1.msra.mxu0 %v91
  %174 = vmatprep.subr.mxu0 %v96
  %175 = vmatpush1.msra.mxu0 %v95
  %176 = vmatprep.subr.mxu0 %v100
  %177 = vmatpush1.msra.mxu0 %v99
  %178 = vmatprep.subr.mxu0 %v104
  %179 = vmatpush1.msra.mxu0 %v103
  %180 = vmatprep.subr.mxu0 %v108
  %181 = vmatpush1.msra.mxu0 %v107
  %182 = vmatprep.subr.mxu0 %v112
  %183 = vmatpush1.msra.mxu0 %v111
  %184 = vmatprep.subr.mxu0 %v116
  %185 = vmatpush1.msra.mxu0 %v115
  %186 = vmatprep.subr.mxu0 %v120
  %187 = vmatpush1.msra.mxu0 %v119
  %188 = vmatprep.subr.mxu0 %v124
  %189 = vmatpush1.msra.mxu0 %v123
  %190 = vmatprep.subr.mxu0 %v128
  %191 = vmatpush1.msra.mxu0 %v127
  %192 = vmatprep.subr.mxu0 %v132
  %193 = vmatpush1.msra.mxu0 %v131
  %194 = vmatprep.subr.mxu0 %v136
  %195 = vmatpush1.msra.mxu0 %v135
  %196 = vmatprep.subr.mxu0 %v140
  %197 = vmatpush1.msra.mxu0 %v139
  %198 = vmatprep.subr.mxu0 %v144
  %199 = vmatpush1.msra.mxu0 %v143
  %200 = vmatprep.subr.mxu0 %v160
  %201 = vmatpush1.msra.mxu0 %v157
  %202 = vmatprep.subr.mxu0 0.0
  %203 = vmatpush1.msra.mxu0 0.0
  %204 = vmatprep.subr.mxu0 0.0
  %205 = vmatpush1.msra.mxu0 0.0
  %206 = vmatprep.subr.mxu0 0.0
  %207 = vmatpush1.msra.mxu0 0.0
  %208 = vmatprep.subr.mxu0 0.0
  %209 = vmatpush1.msra.mxu0 0.0
  %210 = vmatprep.subr.mxu0 0.0
  %211 = vmatpush1.msra.mxu0 0.0
  %212 = vmatprep.subr.mxu0 0.0
  %213 = vmatpush1.msra.mxu0 0.0
  %214 = vmatprep.subr.mxu0 0.0
  %215 = vmatpush1.msra.mxu0 0.0
  %216 = vmatprep.subr.mxu0 0.0
  %217 = vmatpush1.msra.mxu0 0.0
  %218 = vmatprep.subr.mxu0 0.0
  %219 = vmatpush1.msra.mxu0 0.0
  %220 = vmatprep.subr.mxu0 0.0
  %221 = vmatpush1.msra.mxu0 0.0
  %222 = vmatprep.subr.mxu0 0.0
  %223 = vmatpush1.msra.mxu0 0.0
  %224 = vmatprep.subr.mxu0 0.0
  %225 = vmatpush1.msra.mxu0 0.0
  %226 = vmatprep.subr.mxu0 0.0
  %227 = vmatpush1.msra.mxu0 0.0
  %228 = vmatprep.subr.mxu0 0.0
  %229 = vmatpush1.msra.mxu0 0.0
  %230 = vmatprep.subr.mxu0 0.0
  %231 = vmatpush1.msra.mxu0 0.0
  %232 = vmatprep.mubr.f32.mxu0 %v153
  %233 = vmatmul.mubr.f32.gmra.mrb[0].mxu0 0.0
  %v234 = vpop.f32.mrb[0].mxu0
  %v235 = vadd.f32 %v66, %v234
  %v236 = vpop.f32.mrb[0].mxu0
  %v237 = vadd.f32 %v70, %v236
  %238 = vdwg.mxu0
  %239 = vmatprep.subr.mxu0 %v86
  %240 = vmatpush1.msra.mxu0 %v85
  %241 = vmatprep.subr.mxu0 %v90
  %242 = vmatpush1.msra.mxu0 %v89
  %243 = vmatprep.subr.mxu0 %v94
  %244 = vmatpush1.msra.mxu0 %v93
  %245 = vmatprep.subr.mxu0 %v98
  %246 = vmatpush1.msra.mxu0 %v97
  %247 = vmatprep.subr.mxu0 %v102
  %248 = vmatpush1.msra.mxu0 %v101
  %249 = vmatprep.subr.mxu0 %v106
  %250 = vmatpush1.msra.mxu0 %v105
  %251 = vmatprep.subr.mxu0 %v110
  %252 = vmatpush1.msra.mxu0 %v109
  %253 = vmatprep.subr.mxu0 %v114
  %254 = vmatpush1.msra.mxu0 %v113
  %255 = vmatprep.subr.mxu0 %v118
  %256 = vmatpush1.msra.mxu0 %v117
  %257 = vmatprep.subr.mxu0 %v122
  %258 = vmatpush1.msra.mxu0 %v121
  %259 = vmatprep.subr.mxu0 %v126
  %260 = vmatpush1.msra.mxu0 %v125
  %261 = vmatprep.subr.mxu0 %v130
  %262 = vmatpush1.msra.mxu0 %v129
  %263 = vmatprep.subr.mxu0 %v134
  %264 = vmatpush1.msra.mxu0 %v133
  %265 = vmatprep.subr.mxu0 %v138
  %266 = vmatpush1.msra.mxu0 %v137
  %267 = vmatprep.subr.mxu0 %v142
  %268 = vmatpush1.msra.mxu0 %v141
  %269 = vmatprep.subr.mxu0 %v146
  %270 = vmatpush1.msra.mxu0 %v145
  %271 = vmatprep.subr.mxu0 %v166
  %272 = vmatpush1.msra.mxu0 %v163
  %273 = vmatprep.subr.mxu0 0.0
  %274 = vmatpush1.msra.mxu0 0.0
  %275 = vmatprep.subr.mxu0 0.0
  %276 = vmatpush1.msra.mxu0 0.0
  %277 = vmatprep.subr.mxu0 0.0
  %278 = vmatpush1.msra.mxu0 0.0
  %279 = vmatprep.subr.mxu0 0.0
  %280 = vmatpush1.msra.mxu0 0.0
  %281 = vmatprep.subr.mxu0 0.0
  %282 = vmatpush1.msra.mxu0 0.0
  %283 = vmatprep.subr.mxu0 0.0
  %284 = vmatpush1.msra.mxu0 0.0
  %285 = vmatprep.subr.mxu0 0.0
  %286 = vmatpush1.msra.mxu0 0.0
  %287 = vmatprep.subr.mxu0 0.0
  %288 = vmatpush1.msra.mxu0 0.0
  %289 = vmatprep.subr.mxu0 0.0
  %290 = vmatpush1.msra.mxu0 0.0
  %291 = vmatprep.subr.mxu0 0.0
  %292 = vmatpush1.msra.mxu0 0.0
  %293 = vmatprep.subr.mxu0 0.0
  %294 = vmatpush1.msra.mxu0 0.0
  %295 = vmatprep.subr.mxu0 0.0
  %296 = vmatpush1.msra.mxu0 0.0
  %297 = vmatprep.subr.mxu0 0.0
  %298 = vmatpush1.msra.mxu0 0.0
  %299 = vmatprep.subr.mxu0 0.0
  %300 = vmatpush1.msra.mxu0 0.0
  %301 = vmatprep.subr.mxu0 0.0
  %302 = vmatpush1.msra.mxu0 0.0
  %303 = vmatprep.mubr.f32.mxu0 %v153
  %304 = vmatmul.mubr.f32.gmra.mrb[0].mxu0 0.0
  %v305 = vpop.f32.mrb[0].mxu0
  %v306 = vadd.f32 %v74, %v305
  %v307 = vpop.f32.mrb[0].mxu0
  %v308 = vadd.f32 %v78, %v307
  %309 = vdwg.mxu0
  %v310 = vxor.u32 %v235, 2147483648
  %v311 = vmul.f32 %v310, 1.442695
  %v312 = vpow.pop %v311
  %v313 = vadd.f32 %v312, 1.0
  %v314 = vrcp.pop %v313
  %v315 = vmul.f32 1.0, %v314
  %v316 = vxor.u32 %v237, 2147483648
  %v317 = vmul.f32 %v316, 1.442695
  %v318 = vpow.pop %v317
  %v319 = vadd.f32 %v318, 1.0
  %v320 = vrcp.pop %v319
  %v321 = vmul.f32 1.0, %v320
  %v322 = vtanh.pop %v306
  %v323 = vxor.u32 %v308, 2147483648
  %v324 = vmul.f32 %v323, 1.442695
  %v325 = vpow.pop %v324
  %v326 = vadd.f32 %v325, 1.0
  %v327 = vrcp.pop %v326
  %v328 = vmul.f32 1.0, %v327
  %v329 = vmul.f32 %v321, 0.0
  %v330 = vmul.f32 %v315, %v322
  %v331 = vadd.f32 %v329, %v330
  %v332 = vtanh.pop %v331
  %v333 = vmul.f32 %v328, %v332
  %v335 = vsel %vm151, %v44, 0
  %337 = vmatprep.subr.mxu0 %v84
  %338 = vmatpush1.msra.mxu0 %v83
  %339 = vmatprep.subr.mxu0 %v88
  %340 = vmatpush1.msra.mxu0 %v87
  %341 = vmatprep.subr.mxu0 %v92
  %342 = vmatpush1.msra.mxu0 %v91
  %343 = vmatprep.subr.mxu0 %v96
  %344 = vmatpush1.msra.mxu0 %v95
  %345 = vmatprep.subr.mxu0 %v100
  %346 = vmatpush1.msra.mxu0 %v99
  %347 = vmatprep.subr.mxu0 %v104
  %348 = vmatpush1.msra.mxu0 %v103
  %349 = vmatprep.subr.mxu0 %v108
  %350 = vmatpush1.msra.mxu0 %v107
  %351 = vmatprep.subr.mxu0 %v112
  %352 = vmatpush1.msra.mxu0 %v111
  %353 = vmatprep.subr.mxu0 %v116
  %354 = vmatpush1.msra.mxu0 %v115
  %355 = vmatprep.subr.mxu0 %v120
  %356 = vmatpush1.msra.mxu0 %v119
  %357 = vmatprep.subr.mxu0 %v124
  %358 = vmatpush1.msra.mxu0 %v123
  %359 = vmatprep.subr.mxu0 %v128
  %360 = vmatpush1.msra.mxu0 %v127
  %361 = vmatprep.subr.mxu0 %v132
  %362 = vmatpush1.msra.mxu0 %v131
  %363 = vmatprep.subr.mxu0 %v136
  %364 = vmatpush1.msra.mxu0 %v135
  %365 = vmatprep.subr.mxu0 %v140
  %366 = vmatpush1.msra.mxu0 %v139
  %367 = vmatprep.subr.mxu0 %v144
  %368 = vmatpush1.msra.mxu0 %v143
  %369 = vmatprep.subr.mxu0 %v160
  %370 = vmatpush1.msra.mxu0 %v157
  %371 = vmatprep.subr.mxu0 0.0
  %372 = vmatpush1.msra.mxu0 0.0
  %373 = vmatprep.subr.mxu0 0.0
  %374 = vmatpush1.msra.mxu0 0.0
  %375 = vmatprep.subr.mxu0 0.0
  %376 = vmatpush1.msra.mxu0 0.0
  %377 = vmatprep.subr.mxu0 0.0
  %378 = vmatpush1.msra.mxu0 0.0
  %379 = vmatprep.subr.mxu0 0.0
  %380 = vmatpush1.msra.mxu0 0.0
  %381 = vmatprep.subr.mxu0 0.0
  %382 = vmatpush1.msra.mxu0 0.0
  %383 = vmatprep.subr.mxu0 0.0
  %384 = vmatpush1.msra.mxu0 0.0
  %385 = vmatprep.subr.mxu0 0.0
  %386 = vmatpush1.msra.mxu0 0.0
  %387 = vmatprep.subr.mxu0 0.0
  %388 = vmatpush1.msra.mxu0 0.0
  %389 = vmatprep.subr.mxu0 0.0
  %390 = vmatpush1.msra.mxu0 0.0
  %391 = vmatprep.subr.mxu0 0.0
  %392 = vmatpush1.msra.mxu0 0.0
  %393 = vmatprep.subr.mxu0 0.0
  %394 = vmatpush1.msra.mxu0 0.0
  %395 = vmatprep.subr.mxu0 0.0
  %396 = vmatpush1.msra.mxu0 0.0
  %397 = vmatprep.subr.mxu0 0.0
  %398 = vmatpush1.msra.mxu0 0.0
  %399 = vmatprep.subr.mxu0 0.0
  %400 = vmatpush1.msra.mxu0 0.0
  %401 = vmatprep.mubr.f32.mxu0 %v335
  %402 = vmatmul.mubr.f32.gmra.mrb[0].mxu0 %v333
  %v403 = vpop.f32.mrb[0].mxu0
  %v404 = vadd.f32 %v66, %v403
  %v405 = vpop.f32.mrb[0].mxu0
  %v406 = vadd.f32 %v70, %v405
  %407 = vdwg.mxu0
  %408 = vmatprep.subr.mxu0 %v86
  %409 = vmatpush1.msra.mxu0 %v85
  %410 = vmatprep.subr.mxu0 %v90
  %411 = vmatpush1.msra.mxu0 %v89
  %412 = vmatprep.subr.mxu0 %v94
  %413 = vmatpush1.msra.mxu0 %v93
  %414 = vmatprep.subr.mxu0 %v98
  %415 = vmatpush1.msra.mxu0 %v97
  %416 = vmatprep.subr.mxu0 %v102
  %417 = vmatpush1.msra.mxu0 %v101
  %418 = vmatprep.subr.mxu0 %v106
  %419 = vmatpush1.msra.mxu0 %v105
  %420 = vmatprep.subr.mxu0 %v110
  %421 = vmatpush1.msra.mxu0 %v109
  %422 = vmatprep.subr.mxu0 %v114
  %423 = vmatpush1.msra.mxu0 %v113
  %424 = vmatprep.subr.mxu0 %v118
  %425 = vmatpush1.msra.mxu0 %v117
  %426 = vmatprep.subr.mxu0 %v122
  %427 = vmatpush1.msra.mxu0 %v121
  %428 = vmatprep.subr.mxu0 %v126
  %429 = vmatpush1.msra.mxu0 %v125
  %430 = vmatprep.subr.mxu0 %v130
  %431 = vmatpush1.msra.mxu0 %v129
  %432 = vmatprep.subr.mxu0 %v134
  %433 = vmatpush1.msra.mxu0 %v133
  %434 = vmatprep.subr.mxu0 %v138
  %435 = vmatpush1.msra.mxu0 %v137
  %436 = vmatprep.subr.mxu0 %v142
  %437 = vmatpush1.msra.mxu0 %v141
  %438 = vmatprep.subr.mxu0 %v146
  %439 = vmatpush1.msra.mxu0 %v145
  %440 = vmatprep.subr.mxu0 %v166
  %441 = vmatpush1.msra.mxu0 %v163
  %442 = vmatprep.subr.mxu0 0.0
  %443 = vmatpush1.msra.mxu0 0.0
  %444 = vmatprep.subr.mxu0 0.0
  %445 = vmatpush1.msra.mxu0 0.0
  %446 = vmatprep.subr.mxu0 0.0
  %447 = vmatpush1.msra.mxu0 0.0
  %448 = vmatprep.subr.mxu0 0.0
  %449 = vmatpush1.msra.mxu0 0.0
  %450 = vmatprep.subr.mxu0 0.0
  %451 = vmatpush1.msra.mxu0 0.0
  %452 = vmatprep.subr.mxu0 0.0
  %453 = vmatpush1.msra.mxu0 0.0
  %454 = vmatprep.subr.mxu0 0.0
  %455 = vmatpush1.msra.mxu0 0.0
  %456 = vmatprep.subr.mxu0 0.0
  %457 = vmatpush1.msra.mxu0 0.0
  %458 = vmatprep.subr.mxu0 0.0
  %459 = vmatpush1.msra.mxu0 0.0
  %460 = vmatprep.subr.mxu0 0.0
  %461 = vmatpush1.msra.mxu0 0.0
  %462 = vmatprep.subr.mxu0 0.0
  %463 = vmatpush1.msra.mxu0 0.0
  %464 = vmatprep.subr.mxu0 0.0
  %465 = vmatpush1.msra.mxu0 0.0
  %466 = vmatprep.subr.mxu0 0.0
  %467 = vmatpush1.msra.mxu0 0.0
  %468 = vmatprep.subr.mxu0 0.0
  %469 = vmatpush1.msra.mxu0 0.0
  %470 = vmatprep.subr.mxu0 0.0
  %471 = vmatpush1.msra.mxu0 0.0
  %472 = vmatprep.mubr.f32.mxu0 %v335
  %473 = vmatmul.mubr.f32.gmra.mrb[0].mxu0 %v333
  %v474 = vpop.f32.mrb[0].mxu0
  %v475 = vadd.f32 %v74, %v474
  %v476 = vpop.f32.mrb[0].mxu0
  %v477 = vadd.f32 %v78, %v476
  %478 = vdwg.mxu0
  %v479 = vxor.u32 %v404, 2147483648
  %v480 = vmul.f32 %v479, 1.442695
  %v481 = vpow.pop %v480
  %v482 = vadd.f32 %v481, 1.0
  %v483 = vrcp.pop %v482
  %v484 = vmul.f32 1.0, %v483
  %v485 = vxor.u32 %v406, 2147483648
  %v486 = vmul.f32 %v485, 1.442695
  %v487 = vpow.pop %v486
  %v488 = vadd.f32 %v487, 1.0
  %v489 = vrcp.pop %v488
  %v490 = vmul.f32 1.0, %v489
  %v491 = vtanh.pop %v475
  %v492 = vxor.u32 %v477, 2147483648
  %v493 = vmul.f32 %v492, 1.442695
  %v494 = vpow.pop %v493
  %v495 = vadd.f32 %v494, 1.0
  %v496 = vrcp.pop %v495
  %v497 = vmul.f32 1.0, %v496
  %v498 = vmul.f32 %v490, %v331
  %v499 = vmul.f32 %v484, %v491
  %v500 = vadd.f32 %v498, %v499
  %v501 = vtanh.pop %v500
  %v502 = vmul.f32 %v497, %v501
  %v504 = vsel %vm151, %v45, 0
  %506 = vmatprep.subr.mxu0 %v84
  %507 = vmatpush1.msra.mxu0 %v83
  %508 = vmatprep.subr.mxu0 %v88
  %509 = vmatpush1.msra.mxu0 %v87
  %510 = vmatprep.subr.mxu0 %v92
  %511 = vmatpush1.msra.mxu0 %v91
  %512 = vmatprep.subr.mxu0 %v96
  %513 = vmatpush1.msra.mxu0 %v95
  %514 = vmatprep.subr.mxu0 %v100
  %515 = vmatpush1.msra.mxu0 %v99
  %516 = vmatprep.subr.mxu0 %v104
  %517 = vmatpush1.msra.mxu0 %v103
  %518 = vmatprep.subr.mxu0 %v108
  %519 = vmatpush1.msra.mxu0 %v107
  %520 = vmatprep.subr.mxu0 %v112
  %521 = vmatpush1.msra.mxu0 %v111
  %522 = vmatprep.subr.mxu0 %v116
  %523 = vmatpush1.msra.mxu0 %v115
  %524 = vmatprep.subr.mxu0 %v120
  %525 = vmatpush1.msra.mxu0 %v119
  %526 = vmatprep.subr.mxu0 %v124
  %527 = vmatpush1.msra.mxu0 %v123
  %528 = vmatprep.subr.mxu0 %v128
  %529 = vmatpush1.msra.mxu0 %v127
  %530 = vmatprep.subr.mxu0 %v132
  %531 = vmatpush1.msra.mxu0 %v131
  %532 = vmatprep.subr.mxu0 %v136
  %533 = vmatpush1.msra.mxu0 %v135
  %534 = vmatprep.subr.mxu0 %v140
  %535 = vmatpush1.msra.mxu0 %v139
  %536 = vmatprep.subr.mxu0 %v144
  %537 = vmatpush1.msra.mxu0 %v143
  %538 = vmatprep.subr.mxu0 %v160
  %539 = vmatpush1.msra.mxu0 %v157
  %540 = vmatprep.subr.mxu0 0.0
  %541 = vmatpush1.msra.mxu0 0.0
  %542 = vmatprep.subr.mxu0 0.0
  %543 = vmatpush1.msra.mxu0 0.0
  %544 = vmatprep.subr.mxu0 0.0
  %545 = vmatpush1.msra.mxu0 0.0
  %546 = vmatprep.subr.mxu0 0.0
  %547 = vmatpush1.msra.mxu0 0.0
  %548 = vmatprep.subr.mxu0 0.0
  %549 = vmatpush1.msra.mxu0 0.0
  %550 = vmatprep.subr.mxu0 0.0
  %551 = vmatpush1.msra.mxu0 0.0
  %552 = vmatprep.subr.mxu0 0.0
  %553 = vmatpush1.msra.mxu0 0.0
  %554 = vmatprep.subr.mxu0 0.0
  %555 = vmatpush1.msra.mxu0 0.0
  %556 = vmatprep.subr.mxu0 0.0
  %557 = vmatpush1.msra.mxu0 0.0
  %558 = vmatprep.subr.mxu0 0.0
  %559 = vmatpush1.msra.mxu0 0.0
  %560 = vmatprep.subr.mxu0 0.0
  %561 = vmatpush1.msra.mxu0 0.0
  %562 = vmatprep.subr.mxu0 0.0
  %563 = vmatpush1.msra.mxu0 0.0
  %564 = vmatprep.subr.mxu0 0.0
  %565 = vmatpush1.msra.mxu0 0.0
  %566 = vmatprep.subr.mxu0 0.0
  %567 = vmatpush1.msra.mxu0 0.0
  %568 = vmatprep.subr.mxu0 0.0
  %569 = vmatpush1.msra.mxu0 0.0
  %570 = vmatprep.mubr.f32.mxu0 %v504
  %571 = vmatmul.mubr.f32.gmra.mrb[0].mxu0 %v502
  %v572 = vpop.f32.mrb[0].mxu0
  %v573 = vadd.f32 %v66, %v572
  %v574 = vpop.f32.mrb[0].mxu0
  %v575 = vadd.f32 %v70, %v574
  %576 = vdwg.mxu0
  %577 = vmatprep.subr.mxu0 %v86
  %578 = vmatpush1.msra.mxu0 %v85
  %579 = vmatprep.subr.mxu0 %v90
  %580 = vmatpush1.msra.mxu0 %v89
  %581 = vmatprep.subr.mxu0 %v94
  %582 = vmatpush1.msra.mxu0 %v93
  %583 = vmatprep.subr.mxu0 %v98
  %584 = vmatpush1.msra.mxu0 %v97
  %585 = vmatprep.subr.mxu0 %v102
  %586 = vmatpush1.msra.mxu0 %v101
  %587 = vmatprep.subr.mxu0 %v106
  %588 = vmatpush1.msra.mxu0 %v105
  %589 = vmatprep.subr.mxu0 %v110
  %590 = vmatpush1.msra.mxu0 %v109
  %591 = vmatprep.subr.mxu0 %v114
  %592 = vmatpush1.msra.mxu0 %v113
  %593 = vmatprep.subr.mxu0 %v118
  %594 = vmatpush1.msra.mxu0 %v117
  %595 = vmatprep.subr.mxu0 %v122
  %596 = vmatpush1.msra.mxu0 %v121
  %597 = vmatprep.subr.mxu0 %v126
  %598 = vmatpush1.msra.mxu0 %v125
  %599 = vmatprep.subr.mxu0 %v130
  %600 = vmatpush1.msra.mxu0 %v129
  %601 = vmatprep.subr.mxu0 %v134
  %602 = vmatpush1.msra.mxu0 %v133
  %603 = vmatprep.subr.mxu0 %v138
  %604 = vmatpush1.msra.mxu0 %v137
  %605 = vmatprep.subr.mxu0 %v142
  %606 = vmatpush1.msra.mxu0 %v141
  %607 = vmatprep.subr.mxu0 %v146
  %608 = vmatpush1.msra.mxu0 %v145
  %609 = vmatprep.subr.mxu0 %v166
  %610 = vmatpush1.msra.mxu0 %v163
  %611 = vmatprep.subr.mxu0 0.0
  %612 = vmatpush1.msra.mxu0 0.0
  %613 = vmatprep.subr.mxu0 0.0
  %614 = vmatpush1.msra.mxu0 0.0
  %615 = vmatprep.subr.mxu0 0.0
  %616 = vmatpush1.msra.mxu0 0.0
  %617 = vmatprep.subr.mxu0 0.0
  %618 = vmatpush1.msra.mxu0 0.0
  %619 = vmatprep.subr.mxu0 0.0
  %620 = vmatpush1.msra.mxu0 0.0
  %621 = vmatprep.subr.mxu0 0.0
  %622 = vmatpush1.msra.mxu0 0.0
  %623 = vmatprep.subr.mxu0 0.0
  %624 = vmatpush1.msra.mxu0 0.0
  %625 = vmatprep.subr.mxu0 0.0
  %626 = vmatpush1.msra.mxu0 0.0
  %627 = vmatprep.subr.mxu0 0.0
  %628 = vmatpush1.msra.mxu0 0.0
  %629 = vmatprep.subr.mxu0 0.0
  %630 = vmatpush1.msra.mxu0 0.0
  %631 = vmatprep.subr.mxu0 0.0
  %632 = vmatpush1.msra.mxu0 0.0
  %633 = vmatprep.subr.mxu0 0.0
  %634 = vmatpush1.msra.mxu0 0.0
  %635 = vmatprep.subr.mxu0 0.0
  %636 = vmatpush1.msra.mxu0 0.0
  %637 = vmatprep.subr.mxu0 0.0
  %638 = vmatpush1.msra.mxu0 0.0
  %639 = vmatprep.subr.mxu0 0.0
  %640 = vmatpush1.msra.mxu0 0.0
  %641 = vmatprep.mubr.f32.mxu0 %v504
  %642 = vmatmul.mubr.f32.gmra.mrb[0].mxu0 %v502
  %v643 = vpop.f32.mrb[0].mxu0
  %v644 = vadd.f32 %v74, %v643
  %v645 = vpop.f32.mrb[0].mxu0
  %v646 = vadd.f32 %v78, %v645
  %647 = vdwg.mxu0
  %v648 = vxor.u32 %v573, 2147483648
  %v649 = vmul.f32 %v648, 1.442695
  %v650 = vpow.pop %v649
  %v651 = vadd.f32 %v650, 1.0
  %v652 = vrcp.pop %v651
  %v653 = vmul.f32 1.0, %v652
  %v654 = vxor.u32 %v575, 2147483648
  %v655 = vmul.f32 %v654, 1.442695
  %v656 = vpow.pop %v655
  %v657 = vadd.f32 %v656, 1.0
  %v658 = vrcp.pop %v657
  %v659 = vmul.f32 1.0, %v658
  %v660 = vtanh.pop %v644
  %v661 = vxor.u32 %v646, 2147483648
  %v662 = vmul.f32 %v661, 1.442695
  %v663 = vpow.pop %v662
  %v664 = vadd.f32 %v663, 1.0
  %v665 = vrcp.pop %v664
  %v666 = vmul.f32 1.0, %v665
  %v667 = vmul.f32 %v659, %v500
  %v668 = vmul.f32 %v653, %v660
  %v669 = vadd.f32 %v667, %v668
  %v670 = vtanh.pop %v669
  %v671 = vmul.f32 %v666, %v670
  %v673 = vsel %vm151, %v46, 0
  %675 = vmatprep.subr.mxu0 %v84
  %676 = vmatpush1.msra.mxu0 %v83
  %677 = vmatprep.subr.mxu0 %v88
  %678 = vmatpush1.msra.mxu0 %v87
  %679 = vmatprep.subr.mxu0 %v92
  %680 = vmatpush1.msra.mxu0 %v91
  %681 = vmatprep.subr.mxu0 %v96
  %682 = vmatpush1.msra.mxu0 %v95
  %683 = vmatprep.subr.mxu0 %v100
  %684 = vmatpush1.msra.mxu0 %v99
  %685 = vmatprep.subr.mxu0 %v104
  %686 = vmatpush1.msra.mxu0 %v103
  %687 = vmatprep.subr.mxu0 %v108
  %688 = vmatpush1.msra.mxu0 %v107
  %689 = vmatprep.subr.mxu0 %v112
  %690 = vmatpush1.msra.mxu0 %v111
  %691 = vmatprep.subr.mxu0 %v116
  %692 = vmatpush1.msra.mxu0 %v115
  %693 = vmatprep.subr.mxu0 %v120
  %694 = vmatpush1.msra.mxu0 %v119
  %695 = vmatprep.subr.mxu0 %v124
  %696 = vmatpush1.msra.mxu0 %v123
  %697 = vmatprep.subr.mxu0 %v128
  %698 = vmatpush1.msra.mxu0 %v127
  %699 = vmatprep.subr.mxu0 %v132
  %700 = vmatpush1.msra.mxu0 %v131
  %701 = vmatprep.subr.mxu0 %v136
  %702 = vmatpush1.msra.mxu0 %v135
  %703 = vmatprep.subr.mxu0 %v140
  %704 = vmatpush1.msra.mxu0 %v139
  %705 = vmatprep.subr.mxu0 %v144
  %706 = vmatpush1.msra.mxu0 %v143
  %707 = vmatprep.subr.mxu0 %v160
  %708 = vmatpush1.msra.mxu0 %v157
  %709 = vmatprep.subr.mxu0 0.0
  %710 = vmatpush1.msra.mxu0 0.0
  %711 = vmatprep.subr.mxu0 0.0
  %712 = vmatpush1.msra.mxu0 0.0
  %713 = vmatprep.subr.mxu0 0.0
  %714 = vmatpush1.msra.mxu0 0.0
  %715 = vmatprep.subr.mxu0 0.0
  %716 = vmatpush1.msra.mxu0 0.0
  %717 = vmatprep.subr.mxu0 0.0
  %718 = vmatpush1.msra.mxu0 0.0
  %719 = vmatprep.subr.mxu0 0.0
  %720 = vmatpush1.msra.mxu0 0.0
  %721 = vmatprep.subr.mxu0 0.0
  %722 = vmatpush1.msra.mxu0 0.0
  %723 = vmatprep.subr.mxu0 0.0
  %724 = vmatpush1.msra.mxu0 0.0
  %725 = vmatprep.subr.mxu0 0.0
  %726 = vmatpush1.msra.mxu0 0.0
  %727 = vmatprep.subr.mxu0 0.0
  %728 = vmatpush1.msra.mxu0 0.0
  %729 = vmatprep.subr.mxu0 0.0
  %730 = vmatpush1.msra.mxu0 0.0
  %731 = vmatprep.subr.mxu0 0.0
  %732 = vmatpush1.msra.mxu0 0.0
  %733 = vmatprep.subr.mxu0 0.0
  %734 = vmatpush1.msra.mxu0 0.0
  %735 = vmatprep.subr.mxu0 0.0
  %736 = vmatpush1.msra.mxu0 0.0
  %737 = vmatprep.subr.mxu0 0.0
  %738 = vmatpush1.msra.mxu0 0.0
  %739 = vmatprep.mubr.f32.mxu0 %v673
  %740 = vmatmul.mubr.f32.gmra.mrb[0].mxu0 %v671
  %v741 = vpop.f32.mrb[0].mxu0
  %v742 = vadd.f32 %v66, %v741
  %v743 = vpop.f32.mrb[0].mxu0
  %v744 = vadd.f32 %v70, %v743
  %745 = vdwg.mxu0
  %746 = vmatprep.subr.mxu0 %v86
  %747 = vmatpush1.msra.mxu0 %v85
  %748 = vmatprep.subr.mxu0 %v90
  %749 = vmatpush1.msra.mxu0 %v89
  %750 = vmatprep.subr.mxu0 %v94
  %751 = vmatpush1.msra.mxu0 %v93
  %752 = vmatprep.subr.mxu0 %v98
  %753 = vmatpush1.msra.mxu0 %v97
  %754 = vmatprep.subr.mxu0 %v102
  %755 = vmatpush1.msra.mxu0 %v101
  %756 = vmatprep.subr.mxu0 %v106
  %757 = vmatpush1.msra.mxu0 %v105
  %758 = vmatprep.subr.mxu0 %v110
  %759 = vmatpush1.msra.mxu0 %v109
  %760 = vmatprep.subr.mxu0 %v114
  %761 = vmatpush1.msra.mxu0 %v113
  %762 = vmatprep.subr.mxu0 %v118
  %763 = vmatpush1.msra.mxu0 %v117
  %764 = vmatprep.subr.mxu0 %v122
  %765 = vmatpush1.msra.mxu0 %v121
  %766 = vmatprep.subr.mxu0 %v126
  %767 = vmatpush1.msra.mxu0 %v125
  %768 = vmatprep.subr.mxu0 %v130
  %769 = vmatpush1.msra.mxu0 %v129
  %770 = vmatprep.subr.mxu0 %v134
  %771 = vmatpush1.msra.mxu0 %v133
  %772 = vmatprep.subr.mxu0 %v138
  %773 = vmatpush1.msra.mxu0 %v137
  %774 = vmatprep.subr.mxu0 %v142
  %775 = vmatpush1.msra.mxu0 %v141
  %776 = vmatprep.subr.mxu0 %v146
  %777 = vmatpush1.msra.mxu0 %v145
  %778 = vmatprep.subr.mxu0 %v166
  %779 = vmatpush1.msra.mxu0 %v163
  %780 = vmatprep.subr.mxu0 0.0
  %781 = vmatpush1.msra.mxu0 0.0
  %782 = vmatprep.subr.mxu0 0.0
  %783 = vmatpush1.msra.mxu0 0.0
  %784 = vmatprep.subr.mxu0 0.0
  %785 = vmatpush1.msra.mxu0 0.0
  %786 = vmatprep.subr.mxu0 0.0
  %787 = vmatpush1.msra.mxu0 0.0
  %788 = vmatprep.subr.mxu0 0.0
  %789 = vmatpush1.msra.mxu0 0.0
  %790 = vmatprep.subr.mxu0 0.0
  %791 = vmatpush1.msra.mxu0 0.0
  %792 = vmatprep.subr.mxu0 0.0
  %793 = vmatpush1.msra.mxu0 0.0
  %794 = vmatprep.subr.mxu0 0.0
  %795 = vmatpush1.msra.mxu0 0.0
  %796 = vmatprep.subr.mxu0 0.0
  %797 = vmatpush1.msra.mxu0 0.0
  %798 = vmatprep.subr.mxu0 0.0
  %799 = vmatpush1.msra.mxu0 0.0
  %800 = vmatprep.subr.mxu0 0.0
  %801 = vmatpush1.msra.mxu0 0.0
  %802 = vmatprep.subr.mxu0 0.0
  %803 = vmatpush1.msra.mxu0 0.0
  %804 = vmatprep.subr.mxu0 0.0
  %805 = vmatpush1.msra.mxu0 0.0
  %806 = vmatprep.subr.mxu0 0.0
  %807 = vmatpush1.msra.mxu0 0.0
  %808 = vmatprep.subr.mxu0 0.0
  %809 = vmatpush1.msra.mxu0 0.0
  %810 = vmatprep.mubr.f32.mxu0 %v673
  %811 = vmatmul.mubr.f32.gmra.mrb[0].mxu0 %v671
  %v812 = vpop.f32.mrb[0].mxu0
  %v813 = vadd.f32 %v74, %v812
  %v814 = vpop.f32.mrb[0].mxu0
  %v815 = vadd.f32 %v78, %v814
  %816 = vdwg.mxu0
  %v817 = vxor.u32 %v742, 2147483648
  %v818 = vmul.f32 %v817, 1.442695
  %v819 = vpow.pop %v818
  %v820 = vadd.f32 %v819, 1.0
  %v821 = vrcp.pop %v820
  %v822 = vmul.f32 1.0, %v821
  %v823 = vxor.u32 %v744, 2147483648
  %v824 = vmul.f32 %v823, 1.442695
  %v825 = vpow.pop %v824
  %v826 = vadd.f32 %v825, 1.0
  %v827 = vrcp.pop %v826
  %v828 = vmul.f32 1.0, %v827
  %v829 = vtanh.pop %v813
  %v830 = vxor.u32 %v815, 2147483648
  %v831 = vmul.f32 %v830, 1.442695
  %v832 = vpow.pop %v831
  %v833 = vadd.f32 %v832, 1.0
  %v834 = vrcp.pop %v833
  %v835 = vmul.f32 1.0, %v834
  %v836 = vmul.f32 %v828, %v669
  %v837 = vmul.f32 %v822, %v829
  %v838 = vadd.f32 %v836, %v837
  %v839 = vtanh.pop %v838
  %v840 = vmul.f32 %v835, %v839
  %v842 = vsel %vm151, %v47, 0
  %844 = vmatprep.subr.mxu0 %v84
  %845 = vmatpush1.msra.mxu0 %v83
  %846 = vmatprep.subr.mxu0 %v88
  %847 = vmatpush1.msra.mxu0 %v87
  %848 = vmatprep.subr.mxu0 %v92
  %849 = vmatpush1.msra.mxu0 %v91
  %850 = vmatprep.subr.mxu0 %v96
  %851 = vmatpush1.msra.mxu0 %v95
  %852 = vmatprep.subr.mxu0 %v100
  %853 = vmatpush1.msra.mxu0 %v99
  %854 = vmatprep.subr.mxu0 %v104
  %855 = vmatpush1.msra.mxu0 %v103
  %856 = vmatprep.subr.mxu0 %v108
  %857 = vmatpush1.msra.mxu0 %v107
  %858 = vmatprep.subr.mxu0 %v112
  %859 = vmatpush1.msra.mxu0 %v111
  %860 = vmatprep.subr.mxu0 %v116
  %861 = vmatpush1.msra.mxu0 %v115
  %862 = vmatprep.subr.mxu0 %v120
  %863 = vmatpush1.msra.mxu0 %v119
  %864 = vmatprep.subr.mxu0 %v124
  %865 = vmatpush1.msra.mxu0 %v123
  %866 = vmatprep.subr.mxu0 %v128
  %867 = vmatpush1.msra.mxu0 %v127
  %868 = vmatprep.subr.mxu0 %v132
  %869 = vmatpush1.msra.mxu0 %v131
  %870 = vmatprep.subr.mxu0 %v136
  %871 = vmatpush1.msra.mxu0 %v135
  %872 = vmatprep.subr.mxu0 %v140
  %873 = vmatpush1.msra.mxu0 %v139
  %874 = vmatprep.subr.mxu0 %v144
  %875 = vmatpush1.msra.mxu0 %v143
  %876 = vmatprep.subr.mxu0 %v160
  %877 = vmatpush1.msra.mxu0 %v157
  %878 = vmatprep.subr.mxu0 0.0
  %879 = vmatpush1.msra.mxu0 0.0
  %880 = vmatprep.subr.mxu0 0.0
  %881 = vmatpush1.msra.mxu0 0.0
  %882 = vmatprep.subr.mxu0 0.0
  %883 = vmatpush1.msra.mxu0 0.0
  %884 = vmatprep.subr.mxu0 0.0
  %885 = vmatpush1.msra.mxu0 0.0
  %886 = vmatprep.subr.mxu0 0.0
  %887 = vmatpush1.msra.mxu0 0.0
  %888 = vmatprep.subr.mxu0 0.0
  %889 = vmatpush1.msra.mxu0 0.0
  %890 = vmatprep.subr.mxu0 0.0
  %891 = vmatpush1.msra.mxu0 0.0
  %892 = vmatprep.subr.mxu0 0.0
  %893 = vmatpush1.msra.mxu0 0.0
  %894 = vmatprep.subr.mxu0 0.0
  %895 = vmatpush1.msra.mxu0 0.0
  %896 = vmatprep.subr.mxu0 0.0
  %897 = vmatpush1.msra.mxu0 0.0
  %898 = vmatprep.subr.mxu0 0.0
  %899 = vmatpush1.msra.mxu0 0.0
  %900 = vmatprep.subr.mxu0 0.0
  %901 = vmatpush1.msra.mxu0 0.0
  %902 = vmatprep.subr.mxu0 0.0
  %903 = vmatpush1.msra.mxu0 0.0
  %904 = vmatprep.subr.mxu0 0.0
  %905 = vmatpush1.msra.mxu0 0.0
  %906 = vmatprep.subr.mxu0 0.0
  %907 = vmatpush1.msra.mxu0 0.0
  %908 = vmatprep.mubr.f32.mxu0 %v842
  %909 = vmatmul.mubr.f32.gmra.mrb[0].mxu0 %v840
  %v910 = vpop.f32.mrb[0].mxu0
  %v911 = vadd.f32 %v66, %v910
  %v912 = vpop.f32.mrb[0].mxu0
  %v913 = vadd.f32 %v70, %v912
  %914 = vdwg.mxu0
  %915 = vmatprep.subr.mxu0 %v86
  %916 = vmatpush1.msra.mxu0 %v85
  %917 = vmatprep.subr.mxu0 %v90
  %918 = vmatpush1.msra.mxu0 %v89
  %919 = vmatprep.subr.mxu0 %v94
  %920 = vmatpush1.msra.mxu0 %v93
  %921 = vmatprep.subr.mxu0 %v98
  %922 = vmatpush1.msra.mxu0 %v97
  %923 = vmatprep.subr.mxu0 %v102
  %924 = vmatpush1.msra.mxu0 %v101
  %925 = vmatprep.subr.mxu0 %v106
  %926 = vmatpush1.msra.mxu0 %v105
  %927 = vmatprep.subr.mxu0 %v110
  %928 = vmatpush1.msra.mxu0 %v109
  %929 = vmatprep.subr.mxu0 %v114
  %930 = vmatpush1.msra.mxu0 %v113
  %931 = vmatprep.subr.mxu0 %v118
  %932 = vmatpush1.msra.mxu0 %v117
  %933 = vmatprep.subr.mxu0 %v122
  %934 = vmatpush1.msra.mxu0 %v121
  %935 = vmatprep.subr.mxu0 %v126
  %936 = vmatpush1.msra.mxu0 %v125
  %937 = vmatprep.subr.mxu0 %v130
  %938 = vmatpush1.msra.mxu0 %v129
  %939 = vmatprep.subr.mxu0 %v134
  %940 = vmatpush1.msra.mxu0 %v133
  %941 = vmatprep.subr.mxu0 %v138
  %942 = vmatpush1.msra.mxu0 %v137
  %943 = vmatprep.subr.mxu0 %v142
  %944 = vmatpush1.msra.mxu0 %v141
  %945 = vmatprep.subr.mxu0 %v146
  %946 = vmatpush1.msra.mxu0 %v145
  %947 = vmatprep.subr.mxu0 %v166
  %948 = vmatpush1.msra.mxu0 %v163
  %949 = vmatprep.subr.mxu0 0.0
  %950 = vmatpush1.msra.mxu0 0.0
  %951 = vmatprep.subr.mxu0 0.0
  %952 = vmatpush1.msra.mxu0 0.0
  %953 = vmatprep.subr.mxu0 0.0
  %954 = vmatpush1.msra.mxu0 0.0
  %955 = vmatprep.subr.mxu0 0.0
  %956 = vmatpush1.msra.mxu0 0.0
  %957 = vmatprep.subr.mxu0 0.0
  %958 = vmatpush1.msra.mxu0 0.0
  %959 = vmatprep.subr.mxu0 0.0
  %960 = vmatpush1.msra.mxu0 0.0
  %961 = vmatprep.subr.mxu0 0.0
  %962 = vmatpush1.msra.mxu0 0.0
  %963 = vmatprep.subr.mxu0 0.0
  %964 = vmatpush1.msra.mxu0 0.0
  %965 = vmatprep.subr.mxu0 0.0
  %966 = vmatpush1.msra.mxu0 0.0
  %967 = vmatprep.subr.mxu0 0.0
  %968 = vmatpush1.msra.mxu0 0.0
  %969 = vmatprep.subr.mxu0 0.0
  %970 = vmatpush1.msra.mxu0 0.0
  %971 = vmatprep.subr.mxu0 0.0
  %972 = vmatpush1.msra.mxu0 0.0
  %973 = vmatprep.subr.mxu0 0.0
  %974 = vmatpush1.msra.mxu0 0.0
  %975 = vmatprep.subr.mxu0 0.0
  %976 = vmatpush1.msra.mxu0 0.0
  %977 = vmatprep.subr.mxu0 0.0
  %978 = vmatpush1.msra.mxu0 0.0
  %979 = vmatprep.mubr.f32.mxu0 %v842
  %980 = vmatmul.mubr.f32.gmra.mrb[0].mxu0 %v840
  %v981 = vpop.f32.mrb[0].mxu0
  %v982 = vadd.f32 %v74, %v981
  %v983 = vpop.f32.mrb[0].mxu0
  %v984 = vadd.f32 %v78, %v983
  %985 = vdwg.mxu0
  %v986 = vxor.u32 %v911, 2147483648
  %v987 = vmul.f32 %v986, 1.442695
  %v988 = vpow.pop %v987
  %v989 = vadd.f32 %v988, 1.0
  %v990 = vrcp.pop %v989
  %v991 = vmul.f32 1.0, %v990
  %v992 = vxor.u32 %v913, 2147483648
  %v993 = vmul.f32 %v992, 1.442695
  %v994 = vpow.pop %v993
  %v995 = vadd.f32 %v994, 1.0
  %v996 = vrcp.pop %v995
  %v997 = vmul.f32 1.0, %v996
  %v998 = vtanh.pop %v982
  %v999 = vxor.u32 %v984, 2147483648
  %v1000 = vmul.f32 %v999, 1.442695
  %v1001 = vpow.pop %v1000
  %v1002 = vadd.f32 %v1001, 1.0
  %v1003 = vrcp.pop %v1002
  %v1004 = vmul.f32 1.0, %v1003
  %v1005 = vmul.f32 %v997, %v838
  %v1006 = vmul.f32 %v991, %v998
  %v1007 = vadd.f32 %v1005, %v1006
  %v1008 = vtanh.pop %v1007
  %v1009 = vmul.f32 %v1004, %v1008
  %v1011 = vsel %vm151, %v48, 0
  %1013 = vmatprep.subr.mxu0 %v84
  %1014 = vmatpush1.msra.mxu0 %v83
  %1015 = vmatprep.subr.mxu0 %v88
  %1016 = vmatpush1.msra.mxu0 %v87
  %1017 = vmatprep.subr.mxu0 %v92
  %1018 = vmatpush1.msra.mxu0 %v91
  %1019 = vmatprep.subr.mxu0 %v96
  %1020 = vmatpush1.msra.mxu0 %v95
  %1021 = vmatprep.subr.mxu0 %v100
  %1022 = vmatpush1.msra.mxu0 %v99
  %1023 = vmatprep.subr.mxu0 %v104
  %1024 = vmatpush1.msra.mxu0 %v103
  %1025 = vmatprep.subr.mxu0 %v108
  %1026 = vmatpush1.msra.mxu0 %v107
  %1027 = vmatprep.subr.mxu0 %v112
  %1028 = vmatpush1.msra.mxu0 %v111
  %1029 = vmatprep.subr.mxu0 %v116
  %1030 = vmatpush1.msra.mxu0 %v115
  %1031 = vmatprep.subr.mxu0 %v120
  %1032 = vmatpush1.msra.mxu0 %v119
  %1033 = vmatprep.subr.mxu0 %v124
  %1034 = vmatpush1.msra.mxu0 %v123
  %1035 = vmatprep.subr.mxu0 %v128
  %1036 = vmatpush1.msra.mxu0 %v127
  %1037 = vmatprep.subr.mxu0 %v132
  %1038 = vmatpush1.msra.mxu0 %v131
  %1039 = vmatprep.subr.mxu0 %v136
  %1040 = vmatpush1.msra.mxu0 %v135
  %1041 = vmatprep.subr.mxu0 %v140
  %1042 = vmatpush1.msra.mxu0 %v139
  %1043 = vmatprep.subr.mxu0 %v144
  %1044 = vmatpush1.msra.mxu0 %v143
  %1045 = vmatprep.subr.mxu0 %v160
  %1046 = vmatpush1.msra.mxu0 %v157
  %1047 = vmatprep.subr.mxu0 0.0
  %1048 = vmatpush1.msra.mxu0 0.0
  %1049 = vmatprep.subr.mxu0 0.0
  %1050 = vmatpush1.msra.mxu0 0.0
  %1051 = vmatprep.subr.mxu0 0.0
  %1052 = vmatpush1.msra.mxu0 0.0
  %1053 = vmatprep.subr.mxu0 0.0
  %1054 = vmatpush1.msra.mxu0 0.0
  %1055 = vmatprep.subr.mxu0 0.0
  %1056 = vmatpush1.msra.mxu0 0.0
  %1057 = vmatprep.subr.mxu0 0.0
  %1058 = vmatpush1.msra.mxu0 0.0
  %1059 = vmatprep.subr.mxu0 0.0
  %1060 = vmatpush1.msra.mxu0 0.0
  %1061 = vmatprep.subr.mxu0 0.0
  %1062 = vmatpush1.msra.mxu0 0.0
  %1063 = vmatprep.subr.mxu0 0.0
  %1064 = vmatpush1.msra.mxu0 0.0
  %1065 = vmatprep.subr.mxu0 0.0
  %1066 = vmatpush1.msra.mxu0 0.0
  %1067 = vmatprep.subr.mxu0 0.0
  %1068 = vmatpush1.msra.mxu0 0.0
  %1069 = vmatprep.subr.mxu0 0.0
  %1070 = vmatpush1.msra.mxu0 0.0
  %1071 = vmatprep.subr.mxu0 0.0
  %1072 = vmatpush1.msra.mxu0 0.0
  %1073 = vmatprep.subr.mxu0 0.0
  %1074 = vmatpush1.msra.mxu0 0.0
  %1075 = vmatprep.subr.mxu0 0.0
  %1076 = vmatpush1.msra.mxu0 0.0
  %1077 = vmatprep.mubr.f32.mxu0 %v1011
  %1078 = vmatmul.mubr.f32.gmra.mrb[0].mxu0 %v1009
  %v1079 = vpop.f32.mrb[0].mxu0
  %v1080 = vadd.f32 %v66, %v1079
  %v1081 = vpop.f32.mrb[0].mxu0
  %v1082 = vadd.f32 %v70, %v1081
  %1083 = vdwg.mxu0
  %1084 = vmatprep.subr.mxu0 %v86
  %1085 = vmatpush1.msra.mxu0 %v85
  %1086 = vmatprep.subr.mxu0 %v90
  %1087 = vmatpush1.msra.mxu0 %v89
  %1088 = vmatprep.subr.mxu0 %v94
  %1089 = vmatpush1.msra.mxu0 %v93
  %1090 = vmatprep.subr.mxu0 %v98
  %1091 = vmatpush1.msra.mxu0 %v97
  %1092 = vmatprep.subr.mxu0 %v102
  %1093 = vmatpush1.msra.mxu0 %v101
  %1094 = vmatprep.subr.mxu0 %v106
  %1095 = vmatpush1.msra.mxu0 %v105
  %1096 = vmatprep.subr.mxu0 %v110
  %1097 = vmatpush1.msra.mxu0 %v109
  %1098 = vmatprep.subr.mxu0 %v114
  %1099 = vmatpush1.msra.mxu0 %v113
  %1100 = vmatprep.subr.mxu0 %v118
  %1101 = vmatpush1.msra.mxu0 %v117
  %1102 = vmatprep.subr.mxu0 %v122
  %1103 = vmatpush1.msra.mxu0 %v121
  %1104 = vmatprep.subr.mxu0 %v126
  %1105 = vmatpush1.msra.mxu0 %v125
  %1106 = vmatprep.subr.mxu0 %v130
  %1107 = vmatpush1.msra.mxu0 %v129
  %1108 = vmatprep.subr.mxu0 %v134
  %1109 = vmatpush1.msra.mxu0 %v133
  %1110 = vmatprep.subr.mxu0 %v138
  %1111 = vmatpush1.msra.mxu0 %v137
  %1112 = vmatprep.subr.mxu0 %v142
  %1113 = vmatpush1.msra.mxu0 %v141
  %1114 = vmatprep.subr.mxu0 %v146
  %1115 = vmatpush1.msra.mxu0 %v145
  %1116 = vmatprep.subr.mxu0 %v166
  %1117 = vmatpush1.msra.mxu0 %v163
  %1118 = vmatprep.subr.mxu0 0.0
  %1119 = vmatpush1.msra.mxu0 0.0
  %1120 = vmatprep.subr.mxu0 0.0
  %1121 = vmatpush1.msra.mxu0 0.0
  %1122 = vmatprep.subr.mxu0 0.0
  %1123 = vmatpush1.msra.mxu0 0.0
  %1124 = vmatprep.subr.mxu0 0.0
  %1125 = vmatpush1.msra.mxu0 0.0
  %1126 = vmatprep.subr.mxu0 0.0
  %1127 = vmatpush1.msra.mxu0 0.0
  %1128 = vmatprep.subr.mxu0 0.0
  %1129 = vmatpush1.msra.mxu0 0.0
  %1130 = vmatprep.subr.mxu0 0.0
  %1131 = vmatpush1.msra.mxu0 0.0
  %1132 = vmatprep.subr.mxu0 0.0
  %1133 = vmatpush1.msra.mxu0 0.0
  %1134 = vmatprep.subr.mxu0 0.0
  %1135 = vmatpush1.msra.mxu0 0.0
  %1136 = vmatprep.subr.mxu0 0.0
  %1137 = vmatpush1.msra.mxu0 0.0
  %1138 = vmatprep.subr.mxu0 0.0
  %1139 = vmatpush1.msra.mxu0 0.0
  %1140 = vmatprep.subr.mxu0 0.0
  %1141 = vmatpush1.msra.mxu0 0.0
  %1142 = vmatprep.subr.mxu0 0.0
  %1143 = vmatpush1.msra.mxu0 0.0
  %1144 = vmatprep.subr.mxu0 0.0
  %1145 = vmatpush1.msra.mxu0 0.0
  %1146 = vmatprep.subr.mxu0 0.0
  %1147 = vmatpush1.msra.mxu0 0.0
  %1148 = vmatprep.mubr.f32.mxu0 %v1011
  %1149 = vmatmul.mubr.f32.gmra.mrb[0].mxu0 %v1009
  %v1150 = vpop.f32.mrb[0].mxu0
  %v1151 = vadd.f32 %v74, %v1150
  %v1152 = vpop.f32.mrb[0].mxu0
  %v1153 = vadd.f32 %v78, %v1152
  %1154 = vdwg.mxu0
  %v1155 = vxor.u32 %v1080, 2147483648
  %v1156 = vmul.f32 %v1155, 1.442695
  %v1157 = vpow.pop %v1156
  %v1158 = vadd.f32 %v1157, 1.0
  %v1159 = vrcp.pop %v1158
  %v1160 = vmul.f32 1.0, %v1159
  %v1161 = vxor.u32 %v1082, 2147483648
  %v1162 = vmul.f32 %v1161, 1.442695
  %v1163 = vpow.pop %v1162
  %v1164 = vadd.f32 %v1163, 1.0
  %v1165 = vrcp.pop %v1164
  %v1166 = vmul.f32 1.0, %v1165
  %v1167 = vtanh.pop %v1151
  %v1168 = vxor.u32 %v1153, 2147483648
  %v1169 = vmul.f32 %v1168, 1.442695
  %v1170 = vpow.pop %v1169
  %v1171 = vadd.f32 %v1170, 1.0
  %v1172 = vrcp.pop %v1171
  %v1173 = vmul.f32 1.0, %v1172
  %v1174 = vmul.f32 %v1166, %v1007
  %v1175 = vmul.f32 %v1160, %v1167
  %v1176 = vadd.f32 %v1174, %v1175
  %v1177 = vtanh.pop %v1176
  %v1178 = vmul.f32 %v1173, %v1177
  %v1180 = vsel %vm151, %v49, 0
  %1182 = vmatprep.subr.mxu0 %v84
  %1183 = vmatpush1.msra.mxu0 %v83
  %1184 = vmatprep.subr.mxu0 %v88
  %1185 = vmatpush1.msra.mxu0 %v87
  %1186 = vmatprep.subr.mxu0 %v92
  %1187 = vmatpush1.msra.mxu0 %v91
  %1188 = vmatprep.subr.mxu0 %v96
  %1189 = vmatpush1.msra.mxu0 %v95
  %1190 = vmatprep.subr.mxu0 %v100
  %1191 = vmatpush1.msra.mxu0 %v99
  %1192 = vmatprep.subr.mxu0 %v104
  %1193 = vmatpush1.msra.mxu0 %v103
  %1194 = vmatprep.subr.mxu0 %v108
  %1195 = vmatpush1.msra.mxu0 %v107
  %1196 = vmatprep.subr.mxu0 %v112
  %1197 = vmatpush1.msra.mxu0 %v111
  %1198 = vmatprep.subr.mxu0 %v116
  %1199 = vmatpush1.msra.mxu0 %v115
  %1200 = vmatprep.subr.mxu0 %v120
  %1201 = vmatpush1.msra.mxu0 %v119
  %1202 = vmatprep.subr.mxu0 %v124
  %1203 = vmatpush1.msra.mxu0 %v123
  %1204 = vmatprep.subr.mxu0 %v128
  %1205 = vmatpush1.msra.mxu0 %v127
  %1206 = vmatprep.subr.mxu0 %v132
  %1207 = vmatpush1.msra.mxu0 %v131
  %1208 = vmatprep.subr.mxu0 %v136
  %1209 = vmatpush1.msra.mxu0 %v135
  %1210 = vmatprep.subr.mxu0 %v140
  %1211 = vmatpush1.msra.mxu0 %v139
  %1212 = vmatprep.subr.mxu0 %v144
  %1213 = vmatpush1.msra.mxu0 %v143
  %1214 = vmatprep.subr.mxu0 %v160
  %1215 = vmatpush1.msra.mxu0 %v157
  %1216 = vmatprep.subr.mxu0 0.0
  %1217 = vmatpush1.msra.mxu0 0.0
  %1218 = vmatprep.subr.mxu0 0.0
  %1219 = vmatpush1.msra.mxu0 0.0
  %1220 = vmatprep.subr.mxu0 0.0
  %1221 = vmatpush1.msra.mxu0 0.0
  %1222 = vmatprep.subr.mxu0 0.0
  %1223 = vmatpush1.msra.mxu0 0.0
  %1224 = vmatprep.subr.mxu0 0.0
  %1225 = vmatpush1.msra.mxu0 0.0
  %1226 = vmatprep.subr.mxu0 0.0
  %1227 = vmatpush1.msra.mxu0 0.0
  %1228 = vmatprep.subr.mxu0 0.0
  %1229 = vmatpush1.msra.mxu0 0.0
  %1230 = vmatprep.subr.mxu0 0.0
  %1231 = vmatpush1.msra.mxu0 0.0
  %1232 = vmatprep.subr.mxu0 0.0
  %1233 = vmatpush1.msra.mxu0 0.0
  %1234 = vmatprep.subr.mxu0 0.0
  %1235 = vmatpush1.msra.mxu0 0.0
  %1236 = vmatprep.subr.mxu0 0.0
  %1237 = vmatpush1.msra.mxu0 0.0
  %1238 = vmatprep.subr.mxu0 0.0
  %1239 = vmatpush1.msra.mxu0 0.0
  %1240 = vmatprep.subr.mxu0 0.0
  %1241 = vmatpush1.msra.mxu0 0.0
  %1242 = vmatprep.subr.mxu0 0.0
  %1243 = vmatpush1.msra.mxu0 0.0
  %1244 = vmatprep.subr.mxu0 0.0
  %1245 = vmatpush1.msra.mxu0 0.0
  %1246 = vmatprep.mubr.f32.mxu0 %v1180
  %1247 = vmatmul.mubr.f32.gmra.mrb[0].mxu0 %v1178
  %v1248 = vpop.f32.mrb[0].mxu0
  %v1249 = vadd.f32 %v66, %v1248
  %v1250 = vpop.f32.mrb[0].mxu0
  %v1251 = vadd.f32 %v70, %v1250
  %1252 = vdwg.mxu0
  %1253 = vmatprep.subr.mxu0 %v86
  %1254 = vmatpush1.msra.mxu0 %v85
  %1255 = vmatprep.subr.mxu0 %v90
  %1256 = vmatpush1.msra.mxu0 %v89
  %1257 = vmatprep.subr.mxu0 %v94
  %1258 = vmatpush1.msra.mxu0 %v93
  %1259 = vmatprep.subr.mxu0 %v98
  %1260 = vmatpush1.msra.mxu0 %v97
  %1261 = vmatprep.subr.mxu0 %v102
  %1262 = vmatpush1.msra.mxu0 %v101
  %1263 = vmatprep.subr.mxu0 %v106
  %1264 = vmatpush1.msra.mxu0 %v105
  %1265 = vmatprep.subr.mxu0 %v110
  %1266 = vmatpush1.msra.mxu0 %v109
  %1267 = vmatprep.subr.mxu0 %v114
  %1268 = vmatpush1.msra.mxu0 %v113
  %1269 = vmatprep.subr.mxu0 %v118
  %1270 = vmatpush1.msra.mxu0 %v117
  %1271 = vmatprep.subr.mxu0 %v122
  %1272 = vmatpush1.msra.mxu0 %v121
  %1273 = vmatprep.subr.mxu0 %v126
  %1274 = vmatpush1.msra.mxu0 %v125
  %1275 = vmatprep.subr.mxu0 %v130
  %1276 = vmatpush1.msra.mxu0 %v129
  %1277 = vmatprep.subr.mxu0 %v134
  %1278 = vmatpush1.msra.mxu0 %v133
  %1279 = vmatprep.subr.mxu0 %v138
  %1280 = vmatpush1.msra.mxu0 %v137
  %1281 = vmatprep.subr.mxu0 %v142
  %1282 = vmatpush1.msra.mxu0 %v141
  %1283 = vmatprep.subr.mxu0 %v146
  %1284 = vmatpush1.msra.mxu0 %v145
  %1285 = vmatprep.subr.mxu0 %v166
  %1286 = vmatpush1.msra.mxu0 %v163
  %1287 = vmatprep.subr.mxu0 0.0
  %1288 = vmatpush1.msra.mxu0 0.0
  %1289 = vmatprep.subr.mxu0 0.0
  %1290 = vmatpush1.msra.mxu0 0.0
  %1291 = vmatprep.subr.mxu0 0.0
  %1292 = vmatpush1.msra.mxu0 0.0
  %1293 = vmatprep.subr.mxu0 0.0
  %1294 = vmatpush1.msra.mxu0 0.0
  %1295 = vmatprep.subr.mxu0 0.0
  %1296 = vmatpush1.msra.mxu0 0.0
  %1297 = vmatprep.subr.mxu0 0.0
  %1298 = vmatpush1.msra.mxu0 0.0
  %1299 = vmatprep.subr.mxu0 0.0
  %1300 = vmatpush1.msra.mxu0 0.0
  %1301 = vmatprep.subr.mxu0 0.0
  %1302 = vmatpush1.msra.mxu0 0.0
  %1303 = vmatprep.subr.mxu0 0.0
  %1304 = vmatpush1.msra.mxu0 0.0
  %1305 = vmatprep.subr.mxu0 0.0
  %1306 = vmatpush1.msra.mxu0 0.0
  %1307 = vmatprep.subr.mxu0 0.0
  %1308 = vmatpush1.msra.mxu0 0.0
  %1309 = vmatprep.subr.mxu0 0.0
  %1310 = vmatpush1.msra.mxu0 0.0
  %1311 = vmatprep.subr.mxu0 0.0
  %1312 = vmatpush1.msra.mxu0 0.0
  %1313 = vmatprep.subr.mxu0 0.0
  %1314 = vmatpush1.msra.mxu0 0.0
  %1315 = vmatprep.subr.mxu0 0.0
  %1316 = vmatpush1.msra.mxu0 0.0
  %1317 = vmatprep.mubr.f32.mxu0 %v1180
  %1318 = vmatmul.mubr.f32.gmra.mrb[0].mxu0 %v1178
  %v1319 = vpop.f32.mrb[0].mxu0
  %v1320 = vadd.f32 %v74, %v1319
  %v1321 = vpop.f32.mrb[0].mxu0
  %v1322 = vadd.f32 %v78, %v1321
  %1323 = vdwg.mxu0
  %v1324 = vxor.u32 %v1249, 2147483648
  %v1325 = vmul.f32 %v1324, 1.442695
  %v1326 = vpow.pop %v1325
  %v1327 = vadd.f32 %v1326, 1.0
  %v1328 = vrcp.pop %v1327
  %v1329 = vmul.f32 1.0, %v1328
  %v1330 = vxor.u32 %v1251, 2147483648
  %v1331 = vmul.f32 %v1330, 1.442695
  %v1332 = vpow.pop %v1331
  %v1333 = vadd.f32 %v1332, 1.0
  %v1334 = vrcp.pop %v1333
  %v1335 = vmul.f32 1.0, %v1334
  %v1336 = vtanh.pop %v1320
  %v1337 = vxor.u32 %v1322, 2147483648
  %v1338 = vmul.f32 %v1337, 1.442695
  %v1339 = vpow.pop %v1338
  %v1340 = vadd.f32 %v1339, 1.0
  %v1341 = vrcp.pop %v1340
  %v1342 = vmul.f32 1.0, %v1341
  %v1343 = vmul.f32 %v1335, %v1176
  %v1344 = vmul.f32 %v1329, %v1336
  %v1345 = vadd.f32 %v1343, %v1344
  %v1346 = vtanh.pop %v1345
  %v1347 = vmul.f32 %v1342, %v1346
  %v1349 = vsel %vm151, %v50, 0
  %1351 = vmatprep.subr.mxu0 %v84
  %1352 = vmatpush1.msra.mxu0 %v83
  %1353 = vmatprep.subr.mxu0 %v88
  %1354 = vmatpush1.msra.mxu0 %v87
  %1355 = vmatprep.subr.mxu0 %v92
  %1356 = vmatpush1.msra.mxu0 %v91
  %1357 = vmatprep.subr.mxu0 %v96
  %1358 = vmatpush1.msra.mxu0 %v95
  %1359 = vmatprep.subr.mxu0 %v100
  %1360 = vmatpush1.msra.mxu0 %v99
  %1361 = vmatprep.subr.mxu0 %v104
  %1362 = vmatpush1.msra.mxu0 %v103
  %1363 = vmatprep.subr.mxu0 %v108
  %1364 = vmatpush1.msra.mxu0 %v107
  %1365 = vmatprep.subr.mxu0 %v112
  %1366 = vmatpush1.msra.mxu0 %v111
  %1367 = vmatprep.subr.mxu0 %v116
  %1368 = vmatpush1.msra.mxu0 %v115
  %1369 = vmatprep.subr.mxu0 %v120
  %1370 = vmatpush1.msra.mxu0 %v119
  %1371 = vmatprep.subr.mxu0 %v124
  %1372 = vmatpush1.msra.mxu0 %v123
  %1373 = vmatprep.subr.mxu0 %v128
  %1374 = vmatpush1.msra.mxu0 %v127
  %1375 = vmatprep.subr.mxu0 %v132
  %1376 = vmatpush1.msra.mxu0 %v131
  %1377 = vmatprep.subr.mxu0 %v136
  %1378 = vmatpush1.msra.mxu0 %v135
  %1379 = vmatprep.subr.mxu0 %v140
  %1380 = vmatpush1.msra.mxu0 %v139
  %1381 = vmatprep.subr.mxu0 %v144
  %1382 = vmatpush1.msra.mxu0 %v143
  %1383 = vmatprep.subr.mxu0 %v160
  %1384 = vmatpush1.msra.mxu0 %v157
  %1385 = vmatprep.subr.mxu0 0.0
  %1386 = vmatpush1.msra.mxu0 0.0
  %1387 = vmatprep.subr.mxu0 0.0
  %1388 = vmatpush1.msra.mxu0 0.0
  %1389 = vmatprep.subr.mxu0 0.0
  %1390 = vmatpush1.msra.mxu0 0.0
  %1391 = vmatprep.subr.mxu0 0.0
  %1392 = vmatpush1.msra.mxu0 0.0
  %1393 = vmatprep.subr.mxu0 0.0
  %1394 = vmatpush1.msra.mxu0 0.0
  %1395 = vmatprep.subr.mxu0 0.0
  %1396 = vmatpush1.msra.mxu0 0.0
  %1397 = vmatprep.subr.mxu0 0.0
  %1398 = vmatpush1.msra.mxu0 0.0
  %1399 = vmatprep.subr.mxu0 0.0
  %1400 = vmatpush1.msra.mxu0 0.0
  %1401 = vmatprep.subr.mxu0 0.0
  %1402 = vmatpush1.msra.mxu0 0.0
  %1403 = vmatprep.subr.mxu0 0.0
  %1404 = vmatpush1.msra.mxu0 0.0
  %1405 = vmatprep.subr.mxu0 0.0
  %1406 = vmatpush1.msra.mxu0 0.0
  %1407 = vmatprep.subr.mxu0 0.0
  %1408 = vmatpush1.msra.mxu0 0.0
  %1409 = vmatprep.subr.mxu0 0.0
  %1410 = vmatpush1.msra.mxu0 0.0
  %1411 = vmatprep.subr.mxu0 0.0
  %1412 = vmatpush1.msra.mxu0 0.0
  %1413 = vmatprep.subr.mxu0 0.0
  %1414 = vmatpush1.msra.mxu0 0.0
  %1415 = vmatprep.mubr.f32.mxu0 %v1349
  %1416 = vmatmul.mubr.f32.gmra.mrb[0].mxu0 %v1347
  %v1417 = vpop.f32.mrb[0].mxu0
  %v1418 = vadd.f32 %v66, %v1417
  %v1419 = vpop.f32.mrb[0].mxu0
  %v1420 = vadd.f32 %v70, %v1419
  %1421 = vdwg.mxu0
  %1422 = vmatprep.subr.mxu0 %v86
  %1423 = vmatpush1.msra.mxu0 %v85
  %1424 = vmatprep.subr.mxu0 %v90
  %1425 = vmatpush1.msra.mxu0 %v89
  %1426 = vmatprep.subr.mxu0 %v94
  %1427 = vmatpush1.msra.mxu0 %v93
  %1428 = vmatprep.subr.mxu0 %v98
  %1429 = vmatpush1.msra.mxu0 %v97
  %1430 = vmatprep.subr.mxu0 %v102
  %1431 = vmatpush1.msra.mxu0 %v101
  %1432 = vmatprep.subr.mxu0 %v106
  %1433 = vmatpush1.msra.mxu0 %v105
  %1434 = vmatprep.subr.mxu0 %v110
  %1435 = vmatpush1.msra.mxu0 %v109
  %1436 = vmatprep.subr.mxu0 %v114
  %1437 = vmatpush1.msra.mxu0 %v113
  %1438 = vmatprep.subr.mxu0 %v118
  %1439 = vmatpush1.msra.mxu0 %v117
  %1440 = vmatprep.subr.mxu0 %v122
  %1441 = vmatpush1.msra.mxu0 %v121
  %1442 = vmatprep.subr.mxu0 %v126
  %1443 = vmatpush1.msra.mxu0 %v125
  %1444 = vmatprep.subr.mxu0 %v130
  %1445 = vmatpush1.msra.mxu0 %v129
  %1446 = vmatprep.subr.mxu0 %v134
  %1447 = vmatpush1.msra.mxu0 %v133
  %1448 = vmatprep.subr.mxu0 %v138
  %1449 = vmatpush1.msra.mxu0 %v137
  %1450 = vmatprep.subr.mxu0 %v142
  %1451 = vmatpush1.msra.mxu0 %v141
  %1452 = vmatprep.subr.mxu0 %v146
  %1453 = vmatpush1.msra.mxu0 %v145
  %1454 = vmatprep.subr.mxu0 %v166
  %1455 = vmatpush1.msra.mxu0 %v163
  %1456 = vmatprep.subr.mxu0 0.0
  %1457 = vmatpush1.msra.mxu0 0.0
  %1458 = vmatprep.subr.mxu0 0.0
  %1459 = vmatpush1.msra.mxu0 0.0
  %1460 = vmatprep.subr.mxu0 0.0
  %1461 = vmatpush1.msra.mxu0 0.0
  %1462 = vmatprep.subr.mxu0 0.0
  %1463 = vmatpush1.msra.mxu0 0.0
  %1464 = vmatprep.subr.mxu0 0.0
  %1465 = vmatpush1.msra.mxu0 0.0
  %1466 = vmatprep.subr.mxu0 0.0
  %1467 = vmatpush1.msra.mxu0 0.0
  %1468 = vmatprep.subr.mxu0 0.0
  %1469 = vmatpush1.msra.mxu0 0.0
  %1470 = vmatprep.subr.mxu0 0.0
  %1471 = vmatpush1.msra.mxu0 0.0
  %1472 = vmatprep.subr.mxu0 0.0
  %1473 = vmatpush1.msra.mxu0 0.0
  %1474 = vmatprep.subr.mxu0 0.0
  %1475 = vmatpush1.msra.mxu0 0.0
  %1476 = vmatprep.subr.mxu0 0.0
  %1477 = vmatpush1.msra.mxu0 0.0
  %1478 = vmatprep.subr.mxu0 0.0
  %1479 = vmatpush1.msra.mxu0 0.0
  %1480 = vmatprep.subr.mxu0 0.0
  %1481 = vmatpush1.msra.mxu0 0.0
  %1482 = vmatprep.subr.mxu0 0.0
  %1483 = vmatpush1.msra.mxu0 0.0
  %1484 = vmatprep.subr.mxu0 0.0
  %1485 = vmatpush1.msra.mxu0 0.0
  %1486 = vmatprep.mubr.f32.mxu0 %v1349
  %1487 = vmatmul.mubr.f32.gmra.mrb[0].mxu0 %v1347
  %v1488 = vpop.f32.mrb[0].mxu0
  %v1489 = vadd.f32 %v74, %v1488
  %v1490 = vpop.f32.mrb[0].mxu0
  %v1491 = vadd.f32 %v78, %v1490
  %1492 = vdwg.mxu0
  %v1493 = vxor.u32 %v1418, 2147483648
  %v1494 = vmul.f32 %v1493, 1.442695
  %v1495 = vpow.pop %v1494
  %v1496 = vadd.f32 %v1495, 1.0
  %v1497 = vrcp.pop %v1496
  %v1498 = vmul.f32 1.0, %v1497
  %v1499 = vxor.u32 %v1420, 2147483648
  %v1500 = vmul.f32 %v1499, 1.442695
  %v1501 = vpow.pop %v1500
  %v1502 = vadd.f32 %v1501, 1.0
  %v1503 = vrcp.pop %v1502
  %v1504 = vmul.f32 1.0, %v1503
  %v1505 = vtanh.pop %v1489
  %v1506 = vxor.u32 %v1491, 2147483648
  %v1507 = vmul.f32 %v1506, 1.442695
  %v1508 = vpow.pop %v1507
  %v1509 = vadd.f32 %v1508, 1.0
  %v1510 = vrcp.pop %v1509
  %v1511 = vmul.f32 1.0, %v1510
  %v1512 = vmul.f32 %v1504, %v1345
  %v1513 = vmul.f32 %v1498, %v1505
  %v1514 = vadd.f32 %v1512, %v1513
  %v1515 = vtanh.pop %v1514
  %v1516 = vmul.f32 %v1511, %v1515
  %v1518 = vsel %vm151, %v51, 0
  %1520 = vmatprep.subr.mxu0 %v84
  %1521 = vmatpush1.msra.mxu0 %v83
  %1522 = vmatprep.subr.mxu0 %v88
  %1523 = vmatpush1.msra.mxu0 %v87
  %1524 = vmatprep.subr.mxu0 %v92
  %1525 = vmatpush1.msra.mxu0 %v91
  %1526 = vmatprep.subr.mxu0 %v96
  %1527 = vmatpush1.msra.mxu0 %v95
  %1528 = vmatprep.subr.mxu0 %v100
  %1529 = vmatpush1.msra.mxu0 %v99
  %1530 = vmatprep.subr.mxu0 %v104
  %1531 = vmatpush1.msra.mxu0 %v103
  %1532 = vmatprep.subr.mxu0 %v108
  %1533 = vmatpush1.msra.mxu0 %v107
  %1534 = vmatprep.subr.mxu0 %v112
  %1535 = vmatpush1.msra.mxu0 %v111
  %1536 = vmatprep.subr.mxu0 %v116
  %1537 = vmatpush1.msra.mxu0 %v115
  %1538 = vmatprep.subr.mxu0 %v120
  %1539 = vmatpush1.msra.mxu0 %v119
  %1540 = vmatprep.subr.mxu0 %v124
  %1541 = vmatpush1.msra.mxu0 %v123
  %1542 = vmatprep.subr.mxu0 %v128
  %1543 = vmatpush1.msra.mxu0 %v127
  %1544 = vmatprep.subr.mxu0 %v132
  %1545 = vmatpush1.msra.mxu0 %v131
  %1546 = vmatprep.subr.mxu0 %v136
  %1547 = vmatpush1.msra.mxu0 %v135
  %1548 = vmatprep.subr.mxu0 %v140
  %1549 = vmatpush1.msra.mxu0 %v139
  %1550 = vmatprep.subr.mxu0 %v144
  %1551 = vmatpush1.msra.mxu0 %v143
  %1552 = vmatprep.subr.mxu0 %v160
  %1553 = vmatpush1.msra.mxu0 %v157
  %1554 = vmatprep.subr.mxu0 0.0
  %1555 = vmatpush1.msra.mxu0 0.0
  %1556 = vmatprep.subr.mxu0 0.0
  %1557 = vmatpush1.msra.mxu0 0.0
  %1558 = vmatprep.subr.mxu0 0.0
  %1559 = vmatpush1.msra.mxu0 0.0
  %1560 = vmatprep.subr.mxu0 0.0
  %1561 = vmatpush1.msra.mxu0 0.0
  %1562 = vmatprep.subr.mxu0 0.0
  %1563 = vmatpush1.msra.mxu0 0.0
  %1564 = vmatprep.subr.mxu0 0.0
  %1565 = vmatpush1.msra.mxu0 0.0
  %1566 = vmatprep.subr.mxu0 0.0
  %1567 = vmatpush1.msra.mxu0 0.0
  %1568 = vmatprep.subr.mxu0 0.0
  %1569 = vmatpush1.msra.mxu0 0.0
  %1570 = vmatprep.subr.mxu0 0.0
  %1571 = vmatpush1.msra.mxu0 0.0
  %1572 = vmatprep.subr.mxu0 0.0
  %1573 = vmatpush1.msra.mxu0 0.0
  %1574 = vmatprep.subr.mxu0 0.0
  %1575 = vmatpush1.msra.mxu0 0.0
  %1576 = vmatprep.subr.mxu0 0.0
  %1577 = vmatpush1.msra.mxu0 0.0
  %1578 = vmatprep.subr.mxu0 0.0
  %1579 = vmatpush1.msra.mxu0 0.0
  %1580 = vmatprep.subr.mxu0 0.0
  %1581 = vmatpush1.msra.mxu0 0.0
  %1582 = vmatprep.subr.mxu0 0.0
  %1583 = vmatpush1.msra.mxu0 0.0
  %1584 = vmatprep.mubr.f32.mxu0 %v1518
  %1585 = vmatmul.mubr.f32.gmra.mrb[0].mxu0 %v1516
  %v1586 = vpop.f32.mrb[0].mxu0
  %v1587 = vadd.f32 %v66, %v1586
  %v1588 = vpop.f32.mrb[0].mxu0
  %v1589 = vadd.f32 %v70, %v1588
  %1590 = vdwg.mxu0
  %1591 = vmatprep.subr.mxu0 %v86
  %1592 = vmatpush1.msra.mxu0 %v85
  %1593 = vmatprep.subr.mxu0 %v90
  %1594 = vmatpush1.msra.mxu0 %v89
  %1595 = vmatprep.subr.mxu0 %v94
  %1596 = vmatpush1.msra.mxu0 %v93
  %1597 = vmatprep.subr.mxu0 %v98
  %1598 = vmatpush1.msra.mxu0 %v97
  %1599 = vmatprep.subr.mxu0 %v102
  %1600 = vmatpush1.msra.mxu0 %v101
  %1601 = vmatprep.subr.mxu0 %v106
  %1602 = vmatpush1.msra.mxu0 %v105
  %1603 = vmatprep.subr.mxu0 %v110
  %1604 = vmatpush1.msra.mxu0 %v109
  %1605 = vmatprep.subr.mxu0 %v114
  %1606 = vmatpush1.msra.mxu0 %v113
  %1607 = vmatprep.subr.mxu0 %v118
  %1608 = vmatpush1.msra.mxu0 %v117
  %1609 = vmatprep.subr.mxu0 %v122
  %1610 = vmatpush1.msra.mxu0 %v121
  %1611 = vmatprep.subr.mxu0 %v126
  %1612 = vmatpush1.msra.mxu0 %v125
  %1613 = vmatprep.subr.mxu0 %v130
  %1614 = vmatpush1.msra.mxu0 %v129
  %1615 = vmatprep.subr.mxu0 %v134
  %1616 = vmatpush1.msra.mxu0 %v133
  %1617 = vmatprep.subr.mxu0 %v138
  %1618 = vmatpush1.msra.mxu0 %v137
  %1619 = vmatprep.subr.mxu0 %v142
  %1620 = vmatpush1.msra.mxu0 %v141
  %1621 = vmatprep.subr.mxu0 %v146
  %1622 = vmatpush1.msra.mxu0 %v145
  %1623 = vmatprep.subr.mxu0 %v166
  %1624 = vmatpush1.msra.mxu0 %v163
  %1625 = vmatprep.subr.mxu0 0.0
  %1626 = vmatpush1.msra.mxu0 0.0
  %1627 = vmatprep.subr.mxu0 0.0
  %1628 = vmatpush1.msra.mxu0 0.0
  %1629 = vmatprep.subr.mxu0 0.0
  %1630 = vmatpush1.msra.mxu0 0.0
  %1631 = vmatprep.subr.mxu0 0.0
  %1632 = vmatpush1.msra.mxu0 0.0
  %1633 = vmatprep.subr.mxu0 0.0
  %1634 = vmatpush1.msra.mxu0 0.0
  %1635 = vmatprep.subr.mxu0 0.0
  %1636 = vmatpush1.msra.mxu0 0.0
  %1637 = vmatprep.subr.mxu0 0.0
  %1638 = vmatpush1.msra.mxu0 0.0
  %1639 = vmatprep.subr.mxu0 0.0
  %1640 = vmatpush1.msra.mxu0 0.0
  %1641 = vmatprep.subr.mxu0 0.0
  %1642 = vmatpush1.msra.mxu0 0.0
  %1643 = vmatprep.subr.mxu0 0.0
  %1644 = vmatpush1.msra.mxu0 0.0
  %1645 = vmatprep.subr.mxu0 0.0
  %1646 = vmatpush1.msra.mxu0 0.0
  %1647 = vmatprep.subr.mxu0 0.0
  %1648 = vmatpush1.msra.mxu0 0.0
  %1649 = vmatprep.subr.mxu0 0.0
  %1650 = vmatpush1.msra.mxu0 0.0
  %1651 = vmatprep.subr.mxu0 0.0
  %1652 = vmatpush1.msra.mxu0 0.0
  %1653 = vmatprep.subr.mxu0 0.0
  %1654 = vmatpush1.msra.mxu0 0.0
  %1655 = vmatprep.mubr.f32.mxu0 %v1518
  %1656 = vmatmul.mubr.f32.gmra.mrb[0].mxu0 %v1516
  %v1657 = vpop.f32.mrb[0].mxu0
  %v1658 = vadd.f32 %v74, %v1657
  %v1659 = vpop.f32.mrb[0].mxu0
  %v1660 = vadd.f32 %v78, %v1659
  %1661 = vdwg.mxu0
  %v1662 = vxor.u32 %v1587, 2147483648
  %v1663 = vmul.f32 %v1662, 1.442695
  %v1664 = vpow.pop %v1663
  %v1665 = vadd.f32 %v1664, 1.0
  %v1666 = vrcp.pop %v1665
  %v1667 = vmul.f32 1.0, %v1666
  %v1668 = vxor.u32 %v1589, 2147483648
  %v1669 = vmul.f32 %v1668, 1.442695
  %v1670 = vpow.pop %v1669
  %v1671 = vadd.f32 %v1670, 1.0
  %v1672 = vrcp.pop %v1671
  %v1673 = vmul.f32 1.0, %v1672
  %v1674 = vtanh.pop %v1658
  %v1675 = vxor.u32 %v1660, 2147483648
  %v1676 = vmul.f32 %v1675, 1.442695
  %v1677 = vpow.pop %v1676
  %v1678 = vadd.f32 %v1677, 1.0
  %v1679 = vrcp.pop %v1678
  %v1680 = vmul.f32 1.0, %v1679
  %v1681 = vmul.f32 %v1673, %v1514
  %v1682 = vmul.f32 %v1667, %v1674
  %v1683 = vadd.f32 %v1681, %v1682
  %v1684 = vtanh.pop %v1683
  %v1685 = vmul.f32 %v1680, %v1684
  %v1687 = vsel %vm151, %v52, 0
  %1689 = vmatprep.subr.mxu0 %v84
  %1690 = vmatpush1.msra.mxu0 %v83
  %1691 = vmatprep.subr.mxu0 %v88
  %1692 = vmatpush1.msra.mxu0 %v87
  %1693 = vmatprep.subr.mxu0 %v92
  %1694 = vmatpush1.msra.mxu0 %v91
  %1695 = vmatprep.subr.mxu0 %v96
  %1696 = vmatpush1.msra.mxu0 %v95
  %1697 = vmatprep.subr.mxu0 %v100
  %1698 = vmatpush1.msra.mxu0 %v99
  %1699 = vmatprep.subr.mxu0 %v104
  %1700 = vmatpush1.msra.mxu0 %v103
  %1701 = vmatprep.subr.mxu0 %v108
  %1702 = vmatpush1.msra.mxu0 %v107
  %1703 = vmatprep.subr.mxu0 %v112
  %1704 = vmatpush1.msra.mxu0 %v111
  %1705 = vmatprep.subr.mxu0 %v116
  %1706 = vmatpush1.msra.mxu0 %v115
  %1707 = vmatprep.subr.mxu0 %v120
  %1708 = vmatpush1.msra.mxu0 %v119
  %1709 = vmatprep.subr.mxu0 %v124
  %1710 = vmatpush1.msra.mxu0 %v123
  %1711 = vmatprep.subr.mxu0 %v128
  %1712 = vmatpush1.msra.mxu0 %v127
  %1713 = vmatprep.subr.mxu0 %v132
  %1714 = vmatpush1.msra.mxu0 %v131
  %1715 = vmatprep.subr.mxu0 %v136
  %1716 = vmatpush1.msra.mxu0 %v135
  %1717 = vmatprep.subr.mxu0 %v140
  %1718 = vmatpush1.msra.mxu0 %v139
  %1719 = vmatprep.subr.mxu0 %v144
  %1720 = vmatpush1.msra.mxu0 %v143
  %1721 = vmatprep.subr.mxu0 %v160
  %1722 = vmatpush1.msra.mxu0 %v157
  %1723 = vmatprep.subr.mxu0 0.0
  %1724 = vmatpush1.msra.mxu0 0.0
  %1725 = vmatprep.subr.mxu0 0.0
  %1726 = vmatpush1.msra.mxu0 0.0
  %1727 = vmatprep.subr.mxu0 0.0
  %1728 = vmatpush1.msra.mxu0 0.0
  %1729 = vmatprep.subr.mxu0 0.0
  %1730 = vmatpush1.msra.mxu0 0.0
  %1731 = vmatprep.subr.mxu0 0.0
  %1732 = vmatpush1.msra.mxu0 0.0
  %1733 = vmatprep.subr.mxu0 0.0
  %1734 = vmatpush1.msra.mxu0 0.0
  %1735 = vmatprep.subr.mxu0 0.0
  %1736 = vmatpush1.msra.mxu0 0.0
  %1737 = vmatprep.subr.mxu0 0.0
  %1738 = vmatpush1.msra.mxu0 0.0
  %1739 = vmatprep.subr.mxu0 0.0
  %1740 = vmatpush1.msra.mxu0 0.0
  %1741 = vmatprep.subr.mxu0 0.0
  %1742 = vmatpush1.msra.mxu0 0.0
  %1743 = vmatprep.subr.mxu0 0.0
  %1744 = vmatpush1.msra.mxu0 0.0
  %1745 = vmatprep.subr.mxu0 0.0
  %1746 = vmatpush1.msra.mxu0 0.0
  %1747 = vmatprep.subr.mxu0 0.0
  %1748 = vmatpush1.msra.mxu0 0.0
  %1749 = vmatprep.subr.mxu0 0.0
  %1750 = vmatpush1.msra.mxu0 0.0
  %1751 = vmatprep.subr.mxu0 0.0
  %1752 = vmatpush1.msra.mxu0 0.0
  %1753 = vmatprep.mubr.f32.mxu0 %v1687
  %1754 = vmatmul.mubr.f32.gmra.mrb[0].mxu0 %v1685
  %v1755 = vpop.f32.mrb[0].mxu0
  %v1756 = vadd.f32 %v66, %v1755
  %v1757 = vpop.f32.mrb[0].mxu0
  %v1758 = vadd.f32 %v70, %v1757
  %1759 = vdwg.mxu0
  %1760 = vmatprep.subr.mxu0 %v86
  %1761 = vmatpush1.msra.mxu0 %v85
  %1762 = vmatprep.subr.mxu0 %v90
  %1763 = vmatpush1.msra.mxu0 %v89
  %1764 = vmatprep.subr.mxu0 %v94
  %1765 = vmatpush1.msra.mxu0 %v93
  %1766 = vmatprep.subr.mxu0 %v98
  %1767 = vmatpush1.msra.mxu0 %v97
  %1768 = vmatprep.subr.mxu0 %v102
  %1769 = vmatpush1.msra.mxu0 %v101
  %1770 = vmatprep.subr.mxu0 %v106
  %1771 = vmatpush1.msra.mxu0 %v105
  %1772 = vmatprep.subr.mxu0 %v110
  %1773 = vmatpush1.msra.mxu0 %v109
  %1774 = vmatprep.subr.mxu0 %v114
  %1775 = vmatpush1.msra.mxu0 %v113
  %1776 = vmatprep.subr.mxu0 %v118
  %1777 = vmatpush1.msra.mxu0 %v117
  %1778 = vmatprep.subr.mxu0 %v122
  %1779 = vmatpush1.msra.mxu0 %v121
  %1780 = vmatprep.subr.mxu0 %v126
  %1781 = vmatpush1.msra.mxu0 %v125
  %1782 = vmatprep.subr.mxu0 %v130
  %1783 = vmatpush1.msra.mxu0 %v129
  %1784 = vmatprep.subr.mxu0 %v134
  %1785 = vmatpush1.msra.mxu0 %v133
  %1786 = vmatprep.subr.mxu0 %v138
  %1787 = vmatpush1.msra.mxu0 %v137
  %1788 = vmatprep.subr.mxu0 %v142
  %1789 = vmatpush1.msra.mxu0 %v141
  %1790 = vmatprep.subr.mxu0 %v146
  %1791 = vmatpush1.msra.mxu0 %v145
  %1792 = vmatprep.subr.mxu0 %v166
  %1793 = vmatpush1.msra.mxu0 %v163
  %1794 = vmatprep.subr.mxu0 0.0
  %1795 = vmatpush1.msra.mxu0 0.0
  %1796 = vmatprep.subr.mxu0 0.0
  %1797 = vmatpush1.msra.mxu0 0.0
  %1798 = vmatprep.subr.mxu0 0.0
  %1799 = vmatpush1.msra.mxu0 0.0
  %1800 = vmatprep.subr.mxu0 0.0
  %1801 = vmatpush1.msra.mxu0 0.0
  %1802 = vmatprep.subr.mxu0 0.0
  %1803 = vmatpush1.msra.mxu0 0.0
  %1804 = vmatprep.subr.mxu0 0.0
  %1805 = vmatpush1.msra.mxu0 0.0
  %1806 = vmatprep.subr.mxu0 0.0
  %1807 = vmatpush1.msra.mxu0 0.0
  %1808 = vmatprep.subr.mxu0 0.0
  %1809 = vmatpush1.msra.mxu0 0.0
  %1810 = vmatprep.subr.mxu0 0.0
  %1811 = vmatpush1.msra.mxu0 0.0
  %1812 = vmatprep.subr.mxu0 0.0
  %1813 = vmatpush1.msra.mxu0 0.0
  %1814 = vmatprep.subr.mxu0 0.0
  %1815 = vmatpush1.msra.mxu0 0.0
  %1816 = vmatprep.subr.mxu0 0.0
  %1817 = vmatpush1.msra.mxu0 0.0
  %1818 = vmatprep.subr.mxu0 0.0
  %1819 = vmatpush1.msra.mxu0 0.0
  %1820 = vmatprep.subr.mxu0 0.0
  %1821 = vmatpush1.msra.mxu0 0.0
  %1822 = vmatprep.subr.mxu0 0.0
  %1823 = vmatpush1.msra.mxu0 0.0
  %1824 = vmatprep.mubr.f32.mxu0 %v1687
  %1825 = vmatmul.mubr.f32.gmra.mrb[0].mxu0 %v1685
  %v1826 = vpop.f32.mrb[0].mxu0
  %v1827 = vadd.f32 %v74, %v1826
  %v1828 = vpop.f32.mrb[0].mxu0
  %v1829 = vadd.f32 %v78, %v1828
  %1830 = vdwg.mxu0
  %v1831 = vxor.u32 %v1756, 2147483648
  %v1832 = vmul.f32 %v1831, 1.442695
  %v1833 = vpow.pop %v1832
  %v1834 = vadd.f32 %v1833, 1.0
  %v1835 = vrcp.pop %v1834
  %v1836 = vmul.f32 1.0, %v1835
  %v1837 = vxor.u32 %v1758, 2147483648
  %v1838 = vmul.f32 %v1837, 1.442695
  %v1839 = vpow.pop %v1838
  %v1840 = vadd.f32 %v1839, 1.0
  %v1841 = vrcp.pop %v1840
  %v1842 = vmul.f32 1.0, %v1841
  %v1843 = vtanh.pop %v1827
  %v1844 = vxor.u32 %v1829, 2147483648
  %v1845 = vmul.f32 %v1844, 1.442695
  %v1846 = vpow.pop %v1845
  %v1847 = vadd.f32 %v1846, 1.0
  %v1848 = vrcp.pop %v1847
  %v1849 = vmul.f32 1.0, %v1848
  %v1850 = vmul.f32 %v1842, %v1683
  %v1851 = vmul.f32 %v1836, %v1843
  %v1852 = vadd.f32 %v1850, %v1851
  %v1853 = vtanh.pop %v1852
  %v1854 = vmul.f32 %v1849, %v1853
  %v1855 = vld [vmem:[%s5] sm:$0xf]
  %v1857 = vlaneseq
  %v1858 = vshrl.u32 %v1857, 7
  %v1859 = vsub.s32 0, %v1858
  %v1860 = vrot.slane %v1855, %v1859
  %v1861 = vlaneseq
  %v1862 = vshrl.u32 %v1861, 7
  %v1863 = vsub.s32 1, %v1862
  %v1864 = vrot.slane %v1855, %v1863
  %v1865 = vlaneseq
  %v1866 = vshrl.u32 %v1865, 7
  %v1867 = vsub.s32 2, %v1866
  %v1868 = vrot.slane %v1855, %v1867
  %v1869 = vlaneseq
  %v1870 = vshrl.u32 %v1869, 7
  %v1871 = vsub.s32 3, %v1870
  %v1872 = vrot.slane %v1855, %v1871
  %v1877 = vld [vmem:[%s4] sm:$0xff]
  %v1878 = vld [vmem:[%s4 + $0x8] sm:$0xff]
  %v1879 = vld [vmem:[%s4 + $0x10] sm:$0xff]
  %v1880 = vld [vmem:[%s4 + $0x18] sm:$0xff]
  %v1881 = vld [vmem:[%s4 + $0x20] sm:$0xff]
  %v1882 = vld [vmem:[%s4 + $0x28] sm:$0xff]
  %v1883 = vld [vmem:[%s4 + $0x30] sm:$0xff]
  %v1884 = vld [vmem:[%s4 + $0x38] sm:$0xff]
  %v1885 = vld [vmem:[%s4 + $0x40] sm:$0xff]
  %v1886 = vld [vmem:[%s4 + $0x48] sm:$0xff]
  %v1887 = vld [vmem:[%s4 + $0x50] sm:$0xff]
  %v1888 = vld [vmem:[%s4 + $0x58] sm:$0xff]
  %v1889 = vld [vmem:[%s4 + $0x60] sm:$0xff]
  %v1890 = vld [vmem:[%s4 + $0x68] sm:$0xff]
  %v1891 = vld [vmem:[%s4 + $0x70] sm:$0xff]
  %v1892 = vld [vmem:[%s4 + $0x78] sm:$0xff]
  %v1893 = vld [vmem:[%s4 + $0x80] sm:$0xff]
  %v1894 = vld [vmem:[%s4 + $0x88] sm:$0xff]
  %v1895 = vld [vmem:[%s4 + $0x90] sm:$0xff]
  %v1896 = vld [vmem:[%s4 + $0x98] sm:$0xff]
  %v1897 = vld [vmem:[%s4 + $0xa0] sm:$0xff]
  %v1898 = vld [vmem:[%s4 + $0xa8] sm:$0xff]
  %v1899 = vld [vmem:[%s4 + $0xb0] sm:$0xff]
  %v1900 = vld [vmem:[%s4 + $0xb8] sm:$0xff]
  %v1901 = vld [vmem:[%s4 + $0xc0] sm:$0xff]
  %v1902 = vld [vmem:[%s4 + $0xc8] sm:$0xff]
  %v1903 = vld [vmem:[%s4 + $0xd0] sm:$0xff]
  %v1904 = vld [vmem:[%s4 + $0xd8] sm:$0xff]
  %v1905 = vld [vmem:[%s4 + $0xe0] sm:$0xff]
  %v1906 = vld [vmem:[%s4 + $0xe8] sm:$0xff]
  %v1907 = vld [vmem:[%s4 + $0xf0] sm:$0xff]
  %v1908 = vld [vmem:[%s4 + $0xf8] sm:$0xff]
  %v1909 = vld [vmem:[%s4 + $0x100] sm:$0xff]
  %v1910 = vld [vmem:[%s4 + $0x108] sm:$0xff]
  %v1911 = vld [vmem:[%s4 + $0x110] sm:$0xff]
  %v1912 = vld [vmem:[%s4 + $0x118] sm:$0xff]
  %v1913 = vld [vmem:[%s4 + $0x120] sm:$0xff]
  %v1914 = vld [vmem:[%s4 + $0x128] sm:$0xff]
  %v1915 = vld [vmem:[%s4 + $0x130] sm:$0xff]
  %v1916 = vld [vmem:[%s4 + $0x138] sm:$0xff]
  %v1917 = vld [vmem:[%s4 + $0x140] sm:$0xff]
  %v1918 = vld [vmem:[%s4 + $0x148] sm:$0xff]
  %v1919 = vld [vmem:[%s4 + $0x150] sm:$0xff]
  %v1920 = vld [vmem:[%s4 + $0x158] sm:$0xff]
  %v1921 = vld [vmem:[%s4 + $0x160] sm:$0xff]
  %v1922 = vld [vmem:[%s4 + $0x168] sm:$0xff]
  %v1923 = vld [vmem:[%s4 + $0x170] sm:$0xff]
  %v1924 = vld [vmem:[%s4 + $0x178] sm:$0xff]
  %v1925 = vld [vmem:[%s4 + $0x180] sm:$0xff]
  %v1926 = vld [vmem:[%s4 + $0x188] sm:$0xff]
  %v1927 = vld [vmem:[%s4 + $0x190] sm:$0xff]
  %v1928 = vld [vmem:[%s4 + $0x198] sm:$0xff]
  %v1929 = vld [vmem:[%s4 + $0x1a0] sm:$0xff]
  %v1930 = vld [vmem:[%s4 + $0x1a8] sm:$0xff]
  %v1931 = vld [vmem:[%s4 + $0x1b0] sm:$0xff]
  %v1932 = vld [vmem:[%s4 + $0x1b8] sm:$0xff]
  %v1933 = vld [vmem:[%s4 + $0x1c0] sm:$0xff]
  %v1934 = vld [vmem:[%s4 + $0x1c8] sm:$0xff]
  %v1935 = vld [vmem:[%s4 + $0x1d0] sm:$0xff]
  %v1936 = vld [vmem:[%s4 + $0x1d8] sm:$0xff]
  %v1937 = vld [vmem:[%s4 + $0x1e0] sm:$0xff]
  %v1938 = vld [vmem:[%s4 + $0x1e8] sm:$0xff]
  %v1939 = vld [vmem:[%s4 + $0x1f0] sm:$0xff]
  %v1940 = vld [vmem:[%s4 + $0x1f8] sm:$0xff]
  %v1941 = vld [vmem:[%s4 + $0x200] sm:$0xff]
  %v1942 = vld [vmem:[%s4 + $0x208] sm:$0xff]
  %v1943 = vld [vmem:[%s4 + $0x210] sm:$0xff]
  %v1944 = vld [vmem:[%s4 + $0x218] sm:$0xff]
  %v1945 = vld [vmem:[%s4 + $0x220] sm:$0xff]
  %v1946 = vld [vmem:[%s4 + $0x228] sm:$0xff]
  %v1947 = vld [vmem:[%s4 + $0x230] sm:$0xff]
  %v1948 = vld [vmem:[%s4 + $0x238] sm:$0xff]
  %v1949 = vld [vmem:[%s4 + $0x240] sm:$0xff]
  %v1950 = vld [vmem:[%s4 + $0x248] sm:$0xff]
  %v1951 = vld [vmem:[%s4 + $0x250] sm:$0xff]
  %v1952 = vld [vmem:[%s4 + $0x258] sm:$0xff]
  %v1953 = vld [vmem:[%s4 + $0x260] sm:$0xff]
  %v1954 = vld [vmem:[%s4 + $0x268] sm:$0xff]
  %v1955 = vld [vmem:[%s4 + $0x270] sm:$0xff]
  %v1956 = vld [vmem:[%s4 + $0x278] sm:$0xff]
  %v1957 = vld [vmem:[%s4 + $0x280] sm:$0xff]
  %v1958 = vld [vmem:[%s4 + $0x288] sm:$0xff]
  %v1959 = vld [vmem:[%s4 + $0x290] sm:$0xff]
  %v1960 = vld [vmem:[%s4 + $0x298] sm:$0xff]
  %v1961 = vld [vmem:[%s4 + $0x2a0] sm:$0xff]
  %v1962 = vld [vmem:[%s4 + $0x2a8] sm:$0xff]
  %v1963 = vld [vmem:[%s4 + $0x2b0] sm:$0xff]
  %v1964 = vld [vmem:[%s4 + $0x2b8] sm:$0xff]
  %v1965 = vld [vmem:[%s4 + $0x2c0] sm:$0xff]
  %v1966 = vld [vmem:[%s4 + $0x2c8] sm:$0xff]
  %v1967 = vld [vmem:[%s4 + $0x2d0] sm:$0xff]
  %v1968 = vld [vmem:[%s4 + $0x2d8] sm:$0xff]
  %v1969 = vld [vmem:[%s4 + $0x2e0] sm:$0xff]
  %v1970 = vld [vmem:[%s4 + $0x2e8] sm:$0xff]
  %v1971 = vld [vmem:[%s4 + $0x2f0] sm:$0xff]
  %v1972 = vld [vmem:[%s4 + $0x2f8] sm:$0xff]
  %v1973 = vld [vmem:[%s4 + $0x300] sm:$0xff]
  %v1974 = vld [vmem:[%s4 + $0x308] sm:$0xff]
  %v1975 = vld [vmem:[%s4 + $0x310] sm:$0xff]
  %v1976 = vld [vmem:[%s4 + $0x318] sm:$0xff]
  %v1977 = vld [vmem:[%s4 + $0x320] sm:$0xff]
  %v1978 = vld [vmem:[%s4 + $0x328] sm:$0xff]
  %v1979 = vld [vmem:[%s4 + $0x330] sm:$0xff]
  %v1980 = vld [vmem:[%s4 + $0x338] sm:$0xff]
  %v1981 = vld [vmem:[%s4 + $0x340] sm:$0xff]
  %v1982 = vld [vmem:[%s4 + $0x348] sm:$0xff]
  %v1983 = vld [vmem:[%s4 + $0x350] sm:$0xff]
  %v1984 = vld [vmem:[%s4 + $0x358] sm:$0xff]
  %v1985 = vld [vmem:[%s4 + $0x360] sm:$0xff]
  %v1986 = vld [vmem:[%s4 + $0x368] sm:$0xff]
  %v1987 = vld [vmem:[%s4 + $0x370] sm:$0xff]
  %v1988 = vld [vmem:[%s4 + $0x378] sm:$0xff]
  %v1989 = vld [vmem:[%s4 + $0x380] sm:$0xff]
  %v1990 = vld [vmem:[%s4 + $0x388] sm:$0xff]
  %v1991 = vld [vmem:[%s4 + $0x390] sm:$0xff]
  %v1992 = vld [vmem:[%s4 + $0x398] sm:$0xff]
  %v1993 = vld [vmem:[%s4 + $0x3a0] sm:$0xff]
  %v1994 = vld [vmem:[%s4 + $0x3a8] sm:$0xff]
  %v1995 = vld [vmem:[%s4 + $0x3b0] sm:$0xff]
  %v1996 = vld [vmem:[%s4 + $0x3b8] sm:$0xff]
  %v1997 = vld [vmem:[%s4 + $0x3c0] sm:$0xff]
  %v1998 = vld [vmem:[%s4 + $0x3c8] sm:$0xff]
  %v1999 = vld [vmem:[%s4 + $0x3d0] sm:$0xff]
  %v2000 = vld [vmem:[%s4 + $0x3d8] sm:$0xff]
  %v2001 = vld [vmem:[%s4 + $0x3e0] sm:$0xff]
  %v2002 = vld [vmem:[%s4 + $0x3e8] sm:$0xff]
  %v2003 = vld [vmem:[%s4 + $0x3f0] sm:$0xff]
  %v2004 = vld [vmem:[%s4 + $0x3f8] sm:$0xff]
  %2005 = vmatprep.subr.mxu0 %v1878
  %2006 = vmatpush1.msra.mxu0 %v1877
  %2007 = vmatprep.subr.mxu0 %v1882
  %2008 = vmatpush1.msra.mxu0 %v1881
  %2009 = vmatprep.subr.mxu0 %v1886
  %2010 = vmatpush1.msra.mxu0 %v1885
  %2011 = vmatprep.subr.mxu0 %v1890
  %2012 = vmatpush1.msra.mxu0 %v1889
  %2013 = vmatprep.subr.mxu0 %v1894
  %2014 = vmatpush1.msra.mxu0 %v1893
  %2015 = vmatprep.subr.mxu0 %v1898
  %2016 = vmatpush1.msra.mxu0 %v1897
  %2017 = vmatprep.subr.mxu0 %v1902
  %2018 = vmatpush1.msra.mxu0 %v1901
  %2019 = vmatprep.subr.mxu0 %v1906
  %2020 = vmatpush1.msra.mxu0 %v1905
  %2021 = vmatprep.subr.mxu0 %v1910
  %2022 = vmatpush1.msra.mxu0 %v1909
  %2023 = vmatprep.subr.mxu0 %v1914
  %2024 = vmatpush1.msra.mxu0 %v1913
  %2025 = vmatprep.subr.mxu0 %v1918
  %2026 = vmatpush1.msra.mxu0 %v1917
  %2027 = vmatprep.subr.mxu0 %v1922
  %2028 = vmatpush1.msra.mxu0 %v1921
  %2029 = vmatprep.subr.mxu0 %v1926
  %2030 = vmatpush1.msra.mxu0 %v1925
  %2031 = vmatprep.subr.mxu0 %v1930
  %2032 = vmatpush1.msra.mxu0 %v1929
  %2033 = vmatprep.subr.mxu0 %v1934
  %2034 = vmatpush1.msra.mxu0 %v1933
  %2035 = vmatprep.subr.mxu0 %v1938
  %2036 = vmatpush1.msra.mxu0 %v1937
  %2037 = vmatprep.subr.mxu0 %v1942
  %2038 = vmatpush1.msra.mxu0 %v1941
  %2039 = vmatprep.subr.mxu0 %v1946
  %2040 = vmatpush1.msra.mxu0 %v1945
  %2041 = vmatprep.subr.mxu0 %v1950
  %2042 = vmatpush1.msra.mxu0 %v1949
  %2043 = vmatprep.subr.mxu0 %v1954
  %2044 = vmatpush1.msra.mxu0 %v1953
  %2045 = vmatprep.subr.mxu0 %v1958
  %2046 = vmatpush1.msra.mxu0 %v1957
  %2047 = vmatprep.subr.mxu0 %v1962
  %2048 = vmatpush1.msra.mxu0 %v1961
  %2049 = vmatprep.subr.mxu0 %v1966
  %2050 = vmatpush1.msra.mxu0 %v1965
  %2051 = vmatprep.subr.mxu0 %v1970
  %2052 = vmatpush1.msra.mxu0 %v1969
  %2053 = vmatprep.subr.mxu0 %v1974
  %2054 = vmatpush1.msra.mxu0 %v1973
  %2055 = vmatprep.subr.mxu0 %v1978
  %2056 = vmatpush1.msra.mxu0 %v1977
  %2057 = vmatprep.subr.mxu0 %v1982
  %2058 = vmatpush1.msra.mxu0 %v1981
  %2059 = vmatprep.subr.mxu0 %v1986
  %2060 = vmatpush1.msra.mxu0 %v1985
  %2061 = vmatprep.subr.mxu0 %v1990
  %2062 = vmatpush1.msra.mxu0 %v1989
  %2063 = vmatprep.subr.mxu0 %v1994
  %2064 = vmatpush1.msra.mxu0 %v1993
  %2065 = vmatprep.subr.mxu0 %v1998
  %2066 = vmatpush1.msra.mxu0 %v1997
  %2067 = vmatprep.subr.mxu0 %v2002
  %2068 = vmatpush1.msra.mxu0 %v2001
  %2069 = vmatprep.mubr.f32.mxu0 %v333
  %2070 = vmatmul.mubr.f32.gmra.mrb[0].mxu0 0.0
  %v2071 = vpop.f32.mrb[0].mxu0
  %v2072 = vadd.f32 %v1860, %v2071
  %v2073 = vpop.f32.mrb[0].mxu0
  %v2074 = vadd.f32 %v1864, %v2073
  %2075 = vdwg.mxu0
  %2076 = vmatprep.subr.mxu0 %v1880
  %2077 = vmatpush1.msra.mxu0 %v1879
  %2078 = vmatprep.subr.mxu0 %v1884
  %2079 = vmatpush1.msra.mxu0 %v1883
  %2080 = vmatprep.subr.mxu0 %v1888
  %2081 = vmatpush1.msra.mxu0 %v1887
  %2082 = vmatprep.subr.mxu0 %v1892
  %2083 = vmatpush1.msra.mxu0 %v1891
  %2084 = vmatprep.subr.mxu0 %v1896
  %2085 = vmatpush1.msra.mxu0 %v1895
  %2086 = vmatprep.subr.mxu0 %v1900
  %2087 = vmatpush1.msra.mxu0 %v1899
  %2088 = vmatprep.subr.mxu0 %v1904
  %2089 = vmatpush1.msra.mxu0 %v1903
  %2090 = vmatprep.subr.mxu0 %v1908
  %2091 = vmatpush1.msra.mxu0 %v1907
  %2092 = vmatprep.subr.mxu0 %v1912
  %2093 = vmatpush1.msra.mxu0 %v1911
  %2094 = vmatprep.subr.mxu0 %v1916
  %2095 = vmatpush1.msra.mxu0 %v1915
  %2096 = vmatprep.subr.mxu0 %v1920
  %2097 = vmatpush1.msra.mxu0 %v1919
  %2098 = vmatprep.subr.mxu0 %v1924
  %2099 = vmatpush1.msra.mxu0 %v1923
  %2100 = vmatprep.subr.mxu0 %v1928
  %2101 = vmatpush1.msra.mxu0 %v1927
  %2102 = vmatprep.subr.mxu0 %v1932
  %2103 = vmatpush1.msra.mxu0 %v1931
  %2104 = vmatprep.subr.mxu0 %v1936
  %2105 = vmatpush1.msra.mxu0 %v1935
  %2106 = vmatprep.subr.mxu0 %v1940
  %2107 = vmatpush1.msra.mxu0 %v1939
  %2108 = vmatprep.subr.mxu0 %v1944
  %2109 = vmatpush1.msra.mxu0 %v1943
  %2110 = vmatprep.subr.mxu0 %v1948
  %2111 = vmatpush1.msra.mxu0 %v1947
  %2112 = vmatprep.subr.mxu0 %v1952
  %2113 = vmatpush1.msra.mxu0 %v1951
  %2114 = vmatprep.subr.mxu0 %v1956
  %2115 = vmatpush1.msra.mxu0 %v1955
  %2116 = vmatprep.subr.mxu0 %v1960
  %2117 = vmatpush1.msra.mxu0 %v1959
  %2118 = vmatprep.subr.mxu0 %v1964
  %2119 = vmatpush1.msra.mxu0 %v1963
  %2120 = vmatprep.subr.mxu0 %v1968
  %2121 = vmatpush1.msra.mxu0 %v1967
  %2122 = vmatprep.subr.mxu0 %v1972
  %2123 = vmatpush1.msra.mxu0 %v1971
  %2124 = vmatprep.subr.mxu0 %v1976
  %2125 = vmatpush1.msra.mxu0 %v1975
  %2126 = vmatprep.subr.mxu0 %v1980
  %2127 = vmatpush1.msra.mxu0 %v1979
  %2128 = vmatprep.subr.mxu0 %v1984
  %2129 = vmatpush1.msra.mxu0 %v1983
  %2130 = vmatprep.subr.mxu0 %v1988
  %2131 = vmatpush1.msra.mxu0 %v1987
  %2132 = vmatprep.subr.mxu0 %v1992
  %2133 = vmatpush1.msra.mxu0 %v1991
  %2134 = vmatprep.subr.mxu0 %v1996
  %2135 = vmatpush1.msra.mxu0 %v1995
  %2136 = vmatprep.subr.mxu0 %v2000
  %2137 = vmatpush1.msra.mxu0 %v1999
  %2138 = vmatprep.subr.mxu0 %v2004
  %2139 = vmatpush1.msra.mxu0 %v2003
  %2140 = vmatprep.mubr.f32.mxu0 %v333
  %2141 = vmatmul.mubr.f32.gmra.mrb[0].mxu0 0.0
  %v2142 = vpop.f32.mrb[0].mxu0
  %v2143 = vadd.f32 %v1868, %v2142
  %v2144 = vpop.f32.mrb[0].mxu0
  %v2145 = vadd.f32 %v1872, %v2144
  %2146 = vdwg.mxu0
  %v2147 = vxor.u32 %v2072, 2147483648
  %v2148 = vmul.f32 %v2147, 1.442695
  %v2149 = vpow.pop %v2148
  %v2150 = vadd.f32 %v2149, 1.0
  %v2151 = vrcp.pop %v2150
  %v2152 = vmul.f32 1.0, %v2151
  %v2153 = vxor.u32 %v2074, 2147483648
  %v2154 = vmul.f32 %v2153, 1.442695
  %v2155 = vpow.pop %v2154
  %v2156 = vadd.f32 %v2155, 1.0
  %v2157 = vrcp.pop %v2156
  %v2158 = vmul.f32 1.0, %v2157
  %v2159 = vtanh.pop %v2143
  %v2160 = vxor.u32 %v2145, 2147483648
  %v2161 = vmul.f32 %v2160, 1.442695
  %v2162 = vpow.pop %v2161
  %v2163 = vadd.f32 %v2162, 1.0
  %v2164 = vrcp.pop %v2163
  %v2165 = vmul.f32 1.0, %v2164
  %v2166 = vmul.f32 %v2158, 0.0
  %v2167 = vmul.f32 %v2152, %v2159
  %v2168 = vadd.f32 %v2166, %v2167
  %v2169 = vtanh.pop %v2168
  %v2170 = vmul.f32 %v2165, %v2169
  %2171 = vmatprep.subr.mxu0 %v1878
  %2172 = vmatpush1.msra.mxu0 %v1877
  %2173 = vmatprep.subr.mxu0 %v1882
  %2174 = vmatpush1.msra.mxu0 %v1881
  %2175 = vmatprep.subr.mxu0 %v1886
  %2176 = vmatpush1.msra.mxu0 %v1885
  %2177 = vmatprep.subr.mxu0 %v1890
  %2178 = vmatpush1.msra.mxu0 %v1889
  %2179 = vmatprep.subr.mxu0 %v1894
  %2180 = vmatpush1.msra.mxu0 %v1893
  %2181 = vmatprep.subr.mxu0 %v1898
  %2182 = vmatpush1.msra.mxu0 %v1897
  %2183 = vmatprep.subr.mxu0 %v1902
  %2184 = vmatpush1.msra.mxu0 %v1901
  %2185 = vmatprep.subr.mxu0 %v1906
  %2186 = vmatpush1.msra.mxu0 %v1905
  %2187 = vmatprep.subr.mxu0 %v1910
  %2188 = vmatpush1.msra.mxu0 %v1909
  %2189 = vmatprep.subr.mxu0 %v1914
  %2190 = vmatpush1.msra.mxu0 %v1913
  %2191 = vmatprep.subr.mxu0 %v1918
  %2192 = vmatpush1.msra.mxu0 %v1917
  %2193 = vmatprep.subr.mxu0 %v1922
  %2194 = vmatpush1.msra.mxu0 %v1921
  %2195 = vmatprep.subr.mxu0 %v1926
  %2196 = vmatpush1.msra.mxu0 %v1925
  %2197 = vmatprep.subr.mxu0 %v1930
  %2198 = vmatpush1.msra.mxu0 %v1929
  %2199 = vmatprep.subr.mxu0 %v1934
  %2200 = vmatpush1.msra.mxu0 %v1933
  %2201 = vmatprep.subr.mxu0 %v1938
  %2202 = vmatpush1.msra.mxu0 %v1937
  %2203 = vmatprep.subr.mxu0 %v1942
  %2204 = vmatpush1.msra.mxu0 %v1941
  %2205 = vmatprep.subr.mxu0 %v1946
  %2206 = vmatpush1.msra.mxu0 %v1945
  %2207 = vmatprep.subr.mxu0 %v1950
  %2208 = vmatpush1.msra.mxu0 %v1949
  %2209 = vmatprep.subr.mxu0 %v1954
  %2210 = vmatpush1.msra.mxu0 %v1953
  %2211 = vmatprep.subr.mxu0 %v1958
  %2212 = vmatpush1.msra.mxu0 %v1957
  %2213 = vmatprep.subr.mxu0 %v1962
  %2214 = vmatpush1.msra.mxu0 %v1961
  %2215 = vmatprep.subr.mxu0 %v1966
  %2216 = vmatpush1.msra.mxu0 %v1965
  %2217 = vmatprep.subr.mxu0 %v1970
  %2218 = vmatpush1.msra.mxu0 %v1969
  %2219 = vmatprep.subr.mxu0 %v1974
  %2220 = vmatpush1.msra.mxu0 %v1973
  %2221 = vmatprep.subr.mxu0 %v1978
  %2222 = vmatpush1.msra.mxu0 %v1977
  %2223 = vmatprep.subr.mxu0 %v1982
  %2224 = vmatpush1.msra.mxu0 %v1981
  %2225 = vmatprep.subr.mxu0 %v1986
  %2226 = vmatpush1.msra.mxu0 %v1985
  %2227 = vmatprep.subr.mxu0 %v1990
  %2228 = vmatpush1.msra.mxu0 %v1989
  %2229 = vmatprep.subr.mxu0 %v1994
  %2230 = vmatpush1.msra.mxu0 %v1993
  %2231 = vmatprep.subr.mxu0 %v1998
  %2232 = vmatpush1.msra.mxu0 %v1997
  %2233 = vmatprep.subr.mxu0 %v2002
  %2234 = vmatpush1.msra.mxu0 %v2001
  %2235 = vmatprep.mubr.f32.mxu0 %v502
  %2236 = vmatmul.mubr.f32.gmra.mrb[0].mxu0 %v2170
  %v2237 = vpop.f32.mrb[0].mxu0
  %v2238 = vadd.f32 %v1860, %v2237
  %v2239 = vpop.f32.mrb[0].mxu0
  %v2240 = vadd.f32 %v1864, %v2239
  %2241 = vdwg.mxu0
  %2242 = vmatprep.subr.mxu0 %v1880
  %2243 = vmatpush1.msra.mxu0 %v1879
  %2244 = vmatprep.subr.mxu0 %v1884
  %2245 = vmatpush1.msra.mxu0 %v1883
  %2246 = vmatprep.subr.mxu0 %v1888
  %2247 = vmatpush1.msra.mxu0 %v1887
  %2248 = vmatprep.subr.mxu0 %v1892
  %2249 = vmatpush1.msra.mxu0 %v1891
  %2250 = vmatprep.subr.mxu0 %v1896
  %2251 = vmatpush1.msra.mxu0 %v1895
  %2252 = vmatprep.subr.mxu0 %v1900
  %2253 = vmatpush1.msra.mxu0 %v1899
  %2254 = vmatprep.subr.mxu0 %v1904
  %2255 = vmatpush1.msra.mxu0 %v1903
  %2256 = vmatprep.subr.mxu0 %v1908
  %2257 = vmatpush1.msra.mxu0 %v1907
  %2258 = vmatprep.subr.mxu0 %v1912
  %2259 = vmatpush1.msra.mxu0 %v1911
  %2260 = vmatprep.subr.mxu0 %v1916
  %2261 = vmatpush1.msra.mxu0 %v1915
  %2262 = vmatprep.subr.mxu0 %v1920
  %2263 = vmatpush1.msra.mxu0 %v1919
  %2264 = vmatprep.subr.mxu0 %v1924
  %2265 = vmatpush1.msra.mxu0 %v1923
  %2266 = vmatprep.subr.mxu0 %v1928
  %2267 = vmatpush1.msra.mxu0 %v1927
  %2268 = vmatprep.subr.mxu0 %v1932
  %2269 = vmatpush1.msra.mxu0 %v1931
  %2270 = vmatprep.subr.mxu0 %v1936
  %2271 = vmatpush1.msra.mxu0 %v1935
  %2272 = vmatprep.subr.mxu0 %v1940
  %2273 = vmatpush1.msra.mxu0 %v1939
  %2274 = vmatprep.subr.mxu0 %v1944
  %2275 = vmatpush1.msra.mxu0 %v1943
  %2276 = vmatprep.subr.mxu0 %v1948
  %2277 = vmatpush1.msra.mxu0 %v1947
  %2278 = vmatprep.subr.mxu0 %v1952
  %2279 = vmatpush1.msra.mxu0 %v1951
  %2280 = vmatprep.subr.mxu0 %v1956
  %2281 = vmatpush1.msra.mxu0 %v1955
  %2282 = vmatprep.subr.mxu0 %v1960
  %2283 = vmatpush1.msra.mxu0 %v1959
  %2284 = vmatprep.subr.mxu0 %v1964
  %2285 = vmatpush1.msra.mxu0 %v1963
  %2286 = vmatprep.subr.mxu0 %v1968
  %2287 = vmatpush1.msra.mxu0 %v1967
  %2288 = vmatprep.subr.mxu0 %v1972
  %2289 = vmatpush1.msra.mxu0 %v1971
  %2290 = vmatprep.subr.mxu0 %v1976
  %2291 = vmatpush1.msra.mxu0 %v1975
  %2292 = vmatprep.subr.mxu0 %v1980
  %2293 = vmatpush1.msra.mxu0 %v1979
  %2294 = vmatprep.subr.mxu0 %v1984
  %2295 = vmatpush1.msra.mxu0 %v1983
  %2296 = vmatprep.subr.mxu0 %v1988
  %2297 = vmatpush1.msra.mxu0 %v1987
  %2298 = vmatprep.subr.mxu0 %v1992
  %2299 = vmatpush1.msra.mxu0 %v1991
  %2300 = vmatprep.subr.mxu0 %v1996
  %2301 = vmatpush1.msra.mxu0 %v1995
  %2302 = vmatprep.subr.mxu0 %v2000
  %2303 = vmatpush1.msra.mxu0 %v1999
  %2304 = vmatprep.subr.mxu0 %v2004
  %2305 = vmatpush1.msra.mxu0 %v2003
  %2306 = vmatprep.mubr.f32.mxu0 %v502
  %2307 = vmatmul.mubr.f32.gmra.mrb[0].mxu0 %v2170
  %v2308 = vpop.f32.mrb[0].mxu0
  %v2309 = vadd.f32 %v1868, %v2308
  %v2310 = vpop.f32.mrb[0].mxu0
  %v2311 = vadd.f32 %v1872, %v2310
  %2312 = vdwg.mxu0
  %v2313 = vxor.u32 %v2238, 2147483648
  %v2314 = vmul.f32 %v2313, 1.442695
  %v2315 = vpow.pop %v2314
  %v2316 = vadd.f32 %v2315, 1.0
  %v2317 = vrcp.pop %v2316
  %v2318 = vmul.f32 1.0, %v2317
  %v2319 = vxor.u32 %v2240, 2147483648
  %v2320 = vmul.f32 %v2319, 1.442695
  %v2321 = vpow.pop %v2320
  %v2322 = vadd.f32 %v2321, 1.0
  %v2323 = vrcp.pop %v2322
  %v2324 = vmul.f32 1.0, %v2323
  %v2325 = vtanh.pop %v2309
  %v2326 = vxor.u32 %v2311, 2147483648
  %v2327 = vmul.f32 %v2326, 1.442695
  %v2328 = vpow.pop %v2327
  %v2329 = vadd.f32 %v2328, 1.0
  %v2330 = vrcp.pop %v2329
  %v2331 = vmul.f32 1.0, %v2330
  %v2332 = vmul.f32 %v2324, %v2168
  %v2333 = vmul.f32 %v2318, %v2325
  %v2334 = vadd.f32 %v2332, %v2333
  %v2335 = vtanh.pop %v2334
  %v2336 = vmul.f32 %v2331, %v2335
  %2337 = vmatprep.subr.mxu0 %v1878
  %2338 = vmatpush1.msra.mxu0 %v1877
  %2339 = vmatprep.subr.mxu0 %v1882
  %2340 = vmatpush1.msra.mxu0 %v1881
  %2341 = vmatprep.subr.mxu0 %v1886
  %2342 = vmatpush1.msra.mxu0 %v1885
  %2343 = vmatprep.subr.mxu0 %v1890
  %2344 = vmatpush1.msra.mxu0 %v1889
  %2345 = vmatprep.subr.mxu0 %v1894
  %2346 = vmatpush1.msra.mxu0 %v1893
  %2347 = vmatprep.subr.mxu0 %v1898
  %2348 = vmatpush1.msra.mxu0 %v1897
  %2349 = vmatprep.subr.mxu0 %v1902
  %2350 = vmatpush1.msra.mxu0 %v1901
  %2351 = vmatprep.subr.mxu0 %v1906
  %2352 = vmatpush1.msra.mxu0 %v1905
  %2353 = vmatprep.subr.mxu0 %v1910
  %2354 = vmatpush1.msra.mxu0 %v1909
  %2355 = vmatprep.subr.mxu0 %v1914
  %2356 = vmatpush1.msra.mxu0 %v1913
  %2357 = vmatprep.subr.mxu0 %v1918
  %2358 = vmatpush1.msra.mxu0 %v1917
  %2359 = vmatprep.subr.mxu0 %v1922
  %2360 = vmatpush1.msra.mxu0 %v1921
  %2361 = vmatprep.subr.mxu0 %v1926
  %2362 = vmatpush1.msra.mxu0 %v1925
  %2363 = vmatprep.subr.mxu0 %v1930
  %2364 = vmatpush1.msra.mxu0 %v1929
  %2365 = vmatprep.subr.mxu0 %v1934
  %2366 = vmatpush1.msra.mxu0 %v1933
  %2367 = vmatprep.subr.mxu0 %v1938
  %2368 = vmatpush1.msra.mxu0 %v1937
  %2369 = vmatprep.subr.mxu0 %v1942
  %2370 = vmatpush1.msra.mxu0 %v1941
  %2371 = vmatprep.subr.mxu0 %v1946
  %2372 = vmatpush1.msra.mxu0 %v1945
  %2373 = vmatprep.subr.mxu0 %v1950
  %2374 = vmatpush1.msra.mxu0 %v1949
  %2375 = vmatprep.subr.mxu0 %v1954
  %2376 = vmatpush1.msra.mxu0 %v1953
  %2377 = vmatprep.subr.mxu0 %v1958
  %2378 = vmatpush1.msra.mxu0 %v1957
  %2379 = vmatprep.subr.mxu0 %v1962
  %2380 = vmatpush1.msra.mxu0 %v1961
  %2381 = vmatprep.subr.mxu0 %v1966
  %2382 = vmatpush1.msra.mxu0 %v1965
  %2383 = vmatprep.subr.mxu0 %v1970
  %2384 = vmatpush1.msra.mxu0 %v1969
  %2385 = vmatprep.subr.mxu0 %v1974
  %2386 = vmatpush1.msra.mxu0 %v1973
  %2387 = vmatprep.subr.mxu0 %v1978
  %2388 = vmatpush1.msra.mxu0 %v1977
  %2389 = vmatprep.subr.mxu0 %v1982
  %2390 = vmatpush1.msra.mxu0 %v1981
  %2391 = vmatprep.subr.mxu0 %v1986
  %2392 = vmatpush1.msra.mxu0 %v1985
  %2393 = vmatprep.subr.mxu0 %v1990
  %2394 = vmatpush1.msra.mxu0 %v1989
  %2395 = vmatprep.subr.mxu0 %v1994
  %2396 = vmatpush1.msra.mxu0 %v1993
  %2397 = vmatprep.subr.mxu0 %v1998
  %2398 = vmatpush1.msra.mxu0 %v1997
  %2399 = vmatprep.subr.mxu0 %v2002
  %2400 = vmatpush1.msra.mxu0 %v2001
  %2401 = vmatprep.mubr.f32.mxu0 %v671
  %2402 = vmatmul.mubr.f32.gmra.mrb[0].mxu0 %v2336
  %v2403 = vpop.f32.mrb[0].mxu0
  %v2404 = vadd.f32 %v1860, %v2403
  %v2405 = vpop.f32.mrb[0].mxu0
  %v2406 = vadd.f32 %v1864, %v2405
  %2407 = vdwg.mxu0
  %2408 = vmatprep.subr.mxu0 %v1880
  %2409 = vmatpush1.msra.mxu0 %v1879
  %2410 = vmatprep.subr.mxu0 %v1884
  %2411 = vmatpush1.msra.mxu0 %v1883
  %2412 = vmatprep.subr.mxu0 %v1888
  %2413 = vmatpush1.msra.mxu0 %v1887
  %2414 = vmatprep.subr.mxu0 %v1892
  %2415 = vmatpush1.msra.mxu0 %v1891
  %2416 = vmatprep.subr.mxu0 %v1896
  %2417 = vmatpush1.msra.mxu0 %v1895
  %2418 = vmatprep.subr.mxu0 %v1900
  %2419 = vmatpush1.msra.mxu0 %v1899
  %2420 = vmatprep.subr.mxu0 %v1904
  %2421 = vmatpush1.msra.mxu0 %v1903
  %2422 = vmatprep.subr.mxu0 %v1908
  %2423 = vmatpush1.msra.mxu0 %v1907
  %2424 = vmatprep.subr.mxu0 %v1912
  %2425 = vmatpush1.msra.mxu0 %v1911
  %2426 = vmatprep.subr.mxu0 %v1916
  %2427 = vmatpush1.msra.mxu0 %v1915
  %2428 = vmatprep.subr.mxu0 %v1920
  %2429 = vmatpush1.msra.mxu0 %v1919
  %2430 = vmatprep.subr.mxu0 %v1924
  %2431 = vmatpush1.msra.mxu0 %v1923
  %2432 = vmatprep.subr.mxu0 %v1928
  %2433 = vmatpush1.msra.mxu0 %v1927
  %2434 = vmatprep.subr.mxu0 %v1932
  %2435 = vmatpush1.msra.mxu0 %v1931
  %2436 = vmatprep.subr.mxu0 %v1936
  %2437 = vmatpush1.msra.mxu0 %v1935
  %2438 = vmatprep.subr.mxu0 %v1940
  %2439 = vmatpush1.msra.mxu0 %v1939
  %2440 = vmatprep.subr.mxu0 %v1944
  %2441 = vmatpush1.msra.mxu0 %v1943
  %2442 = vmatprep.subr.mxu0 %v1948
  %2443 = vmatpush1.msra.mxu0 %v1947
  %2444 = vmatprep.subr.mxu0 %v1952
  %2445 = vmatpush1.msra.mxu0 %v1951
  %2446 = vmatprep.subr.mxu0 %v1956
  %2447 = vmatpush1.msra.mxu0 %v1955
  %2448 = vmatprep.subr.mxu0 %v1960
  %2449 = vmatpush1.msra.mxu0 %v1959
  %2450 = vmatprep.subr.mxu0 %v1964
  %2451 = vmatpush1.msra.mxu0 %v1963
  %2452 = vmatprep.subr.mxu0 %v1968
  %2453 = vmatpush1.msra.mxu0 %v1967
  %2454 = vmatprep.subr.mxu0 %v1972
  %2455 = vmatpush1.msra.mxu0 %v1971
  %2456 = vmatprep.subr.mxu0 %v1976
  %2457 = vmatpush1.msra.mxu0 %v1975
  %2458 = vmatprep.subr.mxu0 %v1980
  %2459 = vmatpush1.msra.mxu0 %v1979
  %2460 = vmatprep.subr.mxu0 %v1984
  %2461 = vmatpush1.msra.mxu0 %v1983
  %2462 = vmatprep.subr.mxu0 %v1988
  %2463 = vmatpush1.msra.mxu0 %v1987
  %2464 = vmatprep.subr.mxu0 %v1992
  %2465 = vmatpush1.msra.mxu0 %v1991
  %2466 = vmatprep.subr.mxu0 %v1996
  %2467 = vmatpush1.msra.mxu0 %v1995
  %2468 = vmatprep.subr.mxu0 %v2000
  %2469 = vmatpush1.msra.mxu0 %v1999
  %2470 = vmatprep.subr.mxu0 %v2004
  %2471 = vmatpush1.msra.mxu0 %v2003
  %2472 = vmatprep.mubr.f32.mxu0 %v671
  %2473 = vmatmul.mubr.f32.gmra.mrb[0].mxu0 %v2336
  %v2474 = vpop.f32.mrb[0].mxu0
  %v2475 = vadd.f32 %v1868, %v2474
  %v2476 = vpop.f32.mrb[0].mxu0
  %v2477 = vadd.f32 %v1872, %v2476
  %2478 = vdwg.mxu0
  %v2479 = vxor.u32 %v2404, 2147483648
  %v2480 = vmul.f32 %v2479, 1.442695
  %v2481 = vpow.pop %v2480
  %v2482 = vadd.f32 %v2481, 1.0
  %v2483 = vrcp.pop %v2482
  %v2484 = vmul.f32 1.0, %v2483
  %v2485 = vxor.u32 %v2406, 2147483648
  %v2486 = vmul.f32 %v2485, 1.442695
  %v2487 = vpow.pop %v2486
  %v2488 = vadd.f32 %v2487, 1.0
  %v2489 = vrcp.pop %v2488
  %v2490 = vmul.f32 1.0, %v2489
  %v2491 = vtanh.pop %v2475
  %v2492 = vxor.u32 %v2477, 2147483648
  %v2493 = vmul.f32 %v2492, 1.442695
  %v2494 = vpow.pop %v2493
  %v2495 = vadd.f32 %v2494, 1.0
  %v2496 = vrcp.pop %v2495
  %v2497 = vmul.f32 1.0, %v2496
  %v2498 = vmul.f32 %v2490, %v2334
  %v2499 = vmul.f32 %v2484, %v2491
  %v2500 = vadd.f32 %v2498, %v2499
  %v2501 = vtanh.pop %v2500
  %v2502 = vmul.f32 %v2497, %v2501
  %2503 = vmatprep.subr.mxu0 %v1878
  %2504 = vmatpush1.msra.mxu0 %v1877
  %2505 = vmatprep.subr.mxu0 %v1882
  %2506 = vmatpush1.msra.mxu0 %v1881
  %2507 = vmatprep.subr.mxu0 %v1886
  %2508 = vmatpush1.msra.mxu0 %v1885
  %2509 = vmatprep.subr.mxu0 %v1890
  %2510 = vmatpush1.msra.mxu0 %v1889
  %2511 = vmatprep.subr.mxu0 %v1894
  %2512 = vmatpush1.msra.mxu0 %v1893
  %2513 = vmatprep.subr.mxu0 %v1898
  %2514 = vmatpush1.msra.mxu0 %v1897
  %2515 = vmatprep.subr.mxu0 %v1902
  %2516 = vmatpush1.msra.mxu0 %v1901
  %2517 = vmatprep.subr.mxu0 %v1906
  %2518 = vmatpush1.msra.mxu0 %v1905
  %2519 = vmatprep.subr.mxu0 %v1910
  %2520 = vmatpush1.msra.mxu0 %v1909
  %2521 = vmatprep.subr.mxu0 %v1914
  %2522 = vmatpush1.msra.mxu0 %v1913
  %2523 = vmatprep.subr.mxu0 %v1918
  %2524 = vmatpush1.msra.mxu0 %v1917
  %2525 = vmatprep.subr.mxu0 %v1922
  %2526 = vmatpush1.msra.mxu0 %v1921
  %2527 = vmatprep.subr.mxu0 %v1926
  %2528 = vmatpush1.msra.mxu0 %v1925
  %2529 = vmatprep.subr.mxu0 %v1930
  %2530 = vmatpush1.msra.mxu0 %v1929
  %2531 = vmatprep.subr.mxu0 %v1934
  %2532 = vmatpush1.msra.mxu0 %v1933
  %2533 = vmatprep.subr.mxu0 %v1938
  %2534 = vmatpush1.msra.mxu0 %v1937
  %2535 = vmatprep.subr.mxu0 %v1942
  %2536 = vmatpush1.msra.mxu0 %v1941
  %2537 = vmatprep.subr.mxu0 %v1946
  %2538 = vmatpush1.msra.mxu0 %v1945
  %2539 = vmatprep.subr.mxu0 %v1950
  %2540 = vmatpush1.msra.mxu0 %v1949
  %2541 = vmatprep.subr.mxu0 %v1954
  %2542 = vmatpush1.msra.mxu0 %v1953
  %2543 = vmatprep.subr.mxu0 %v1958
  %2544 = vmatpush1.msra.mxu0 %v1957
  %2545 = vmatprep.subr.mxu0 %v1962
  %2546 = vmatpush1.msra.mxu0 %v1961
  %2547 = vmatprep.subr.mxu0 %v1966
  %2548 = vmatpush1.msra.mxu0 %v1965
  %2549 = vmatprep.subr.mxu0 %v1970
  %2550 = vmatpush1.msra.mxu0 %v1969
  %2551 = vmatprep.subr.mxu0 %v1974
  %2552 = vmatpush1.msra.mxu0 %v1973
  %2553 = vmatprep.subr.mxu0 %v1978
  %2554 = vmatpush1.msra.mxu0 %v1977
  %2555 = vmatprep.subr.mxu0 %v1982
  %2556 = vmatpush1.msra.mxu0 %v1981
  %2557 = vmatprep.subr.mxu0 %v1986
  %2558 = vmatpush1.msra.mxu0 %v1985
  %2559 = vmatprep.subr.mxu0 %v1990
  %2560 = vmatpush1.msra.mxu0 %v1989
  %2561 = vmatprep.subr.mxu0 %v1994
  %2562 = vmatpush1.msra.mxu0 %v1993
  %2563 = vmatprep.subr.mxu0 %v1998
  %2564 = vmatpush1.msra.mxu0 %v1997
  %2565 = vmatprep.subr.mxu0 %v2002
  %2566 = vmatpush1.msra.mxu0 %v2001
  %2567 = vmatprep.mubr.f32.mxu0 %v840
  %2568 = vmatmul.mubr.f32.gmra.mrb[0].mxu0 %v2502
  %v2569 = vpop.f32.mrb[0].mxu0
  %v2570 = vadd.f32 %v1860, %v2569
  %v2571 = vpop.f32.mrb[0].mxu0
  %v2572 = vadd.f32 %v1864, %v2571
  %2573 = vdwg.mxu0
  %2574 = vmatprep.subr.mxu0 %v1880
  %2575 = vmatpush1.msra.mxu0 %v1879
  %2576 = vmatprep.subr.mxu0 %v1884
  %2577 = vmatpush1.msra.mxu0 %v1883
  %2578 = vmatprep.subr.mxu0 %v1888
  %2579 = vmatpush1.msra.mxu0 %v1887
  %2580 = vmatprep.subr.mxu0 %v1892
  %2581 = vmatpush1.msra.mxu0 %v1891
  %2582 = vmatprep.subr.mxu0 %v1896
  %2583 = vmatpush1.msra.mxu0 %v1895
  %2584 = vmatprep.subr.mxu0 %v1900
  %2585 = vmatpush1.msra.mxu0 %v1899
  %2586 = vmatprep.subr.mxu0 %v1904
  %2587 = vmatpush1.msra.mxu0 %v1903
  %2588 = vmatprep.subr.mxu0 %v1908
  %2589 = vmatpush1.msra.mxu0 %v1907
  %2590 = vmatprep.subr.mxu0 %v1912
  %2591 = vmatpush1.msra.mxu0 %v1911
  %2592 = vmatprep.subr.mxu0 %v1916
  %2593 = vmatpush1.msra.mxu0 %v1915
  %2594 = vmatprep.subr.mxu0 %v1920
  %2595 = vmatpush1.msra.mxu0 %v1919
  %2596 = vmatprep.subr.mxu0 %v1924
  %2597 = vmatpush1.msra.mxu0 %v1923
  %2598 = vmatprep.subr.mxu0 %v1928
  %2599 = vmatpush1.msra.mxu0 %v1927
  %2600 = vmatprep.subr.mxu0 %v1932
  %2601 = vmatpush1.msra.mxu0 %v1931
  %2602 = vmatprep.subr.mxu0 %v1936
  %2603 = vmatpush1.msra.mxu0 %v1935
  %2604 = vmatprep.subr.mxu0 %v1940
  %2605 = vmatpush1.msra.mxu0 %v1939
  %2606 = vmatprep.subr.mxu0 %v1944
  %2607 = vmatpush1.msra.mxu0 %v1943
  %2608 = vmatprep.subr.mxu0 %v1948
  %2609 = vmatpush1.msra.mxu0 %v1947
  %2610 = vmatprep.subr.mxu0 %v1952
  %2611 = vmatpush1.msra.mxu0 %v1951
  %2612 = vmatprep.subr.mxu0 %v1956
  %2613 = vmatpush1.msra.mxu0 %v1955
  %2614 = vmatprep.subr.mxu0 %v1960
  %2615 = vmatpush1.msra.mxu0 %v1959
  %2616 = vmatprep.subr.mxu0 %v1964
  %2617 = vmatpush1.msra.mxu0 %v1963
  %2618 = vmatprep.subr.mxu0 %v1968
  %2619 = vmatpush1.msra.mxu0 %v1967
  %2620 = vmatprep.subr.mxu0 %v1972
  %2621 = vmatpush1.msra.mxu0 %v1971
  %2622 = vmatprep.subr.mxu0 %v1976
  %2623 = vmatpush1.msra.mxu0 %v1975
  %2624 = vmatprep.subr.mxu0 %v1980
  %2625 = vmatpush1.msra.mxu0 %v1979
  %2626 = vmatprep.subr.mxu0 %v1984
  %2627 = vmatpush1.msra.mxu0 %v1983
  %2628 = vmatprep.subr.mxu0 %v1988
  %2629 = vmatpush1.msra.mxu0 %v1987
  %2630 = vmatprep.subr.mxu0 %v1992
  %2631 = vmatpush1.msra.mxu0 %v1991
  %2632 = vmatprep.subr.mxu0 %v1996
  %2633 = vmatpush1.msra.mxu0 %v1995
  %2634 = vmatprep.subr.mxu0 %v2000
  %2635 = vmatpush1.msra.mxu0 %v1999
  %2636 = vmatprep.subr.mxu0 %v2004
  %2637 = vmatpush1.msra.mxu0 %v2003
  %2638 = vmatprep.mubr.f32.mxu0 %v840
  %2639 = vmatmul.mubr.f32.gmra.mrb[0].mxu0 %v2502
  %v2640 = vpop.f32.mrb[0].mxu0
  %v2641 = vadd.f32 %v1868, %v2640
  %v2642 = vpop.f32.mrb[0].mxu0
  %v2643 = vadd.f32 %v1872, %v2642
  %2644 = vdwg.mxu0
  %v2645 = vxor.u32 %v2570, 2147483648
  %v2646 = vmul.f32 %v2645, 1.442695
  %v2647 = vpow.pop %v2646
  %v2648 = vadd.f32 %v2647, 1.0
  %v2649 = vrcp.pop %v2648
  %v2650 = vmul.f32 1.0, %v2649
  %v2651 = vxor.u32 %v2572, 2147483648
  %v2652 = vmul.f32 %v2651, 1.442695
  %v2653 = vpow.pop %v2652
  %v2654 = vadd.f32 %v2653, 1.0
  %v2655 = vrcp.pop %v2654
  %v2656 = vmul.f32 1.0, %v2655
  %v2657 = vtanh.pop %v2641
  %v2658 = vxor.u32 %v2643, 2147483648
  %v2659 = vmul.f32 %v2658, 1.442695
  %v2660 = vpow.pop %v2659
  %v2661 = vadd.f32 %v2660, 1.0
  %v2662 = vrcp.pop %v2661
  %v2663 = vmul.f32 1.0, %v2662
  %v2664 = vmul.f32 %v2656, %v2500
  %v2665 = vmul.f32 %v2650, %v2657
  %v2666 = vadd.f32 %v2664, %v2665
  %v2667 = vtanh.pop %v2666
  %v2668 = vmul.f32 %v2663, %v2667
  %2669 = vmatprep.subr.mxu0 %v1878
  %2670 = vmatpush1.msra.mxu0 %v1877
  %2671 = vmatprep.subr.mxu0 %v1882
  %2672 = vmatpush1.msra.mxu0 %v1881
  %2673 = vmatprep.subr.mxu0 %v1886
  %2674 = vmatpush1.msra.mxu0 %v1885
  %2675 = vmatprep.subr.mxu0 %v1890
  %2676 = vmatpush1.msra.mxu0 %v1889
  %2677 = vmatprep.subr.mxu0 %v1894
  %2678 = vmatpush1.msra.mxu0 %v1893
  %2679 = vmatprep.subr.mxu0 %v1898
  %2680 = vmatpush1.msra.mxu0 %v1897
  %2681 = vmatprep.subr.mxu0 %v1902
  %2682 = vmatpush1.msra.mxu0 %v1901
  %2683 = vmatprep.subr.mxu0 %v1906
  %2684 = vmatpush1.msra.mxu0 %v1905
  %2685 = vmatprep.subr.mxu0 %v1910
  %2686 = vmatpush1.msra.mxu0 %v1909
  %2687 = vmatprep.subr.mxu0 %v1914
  %2688 = vmatpush1.msra.mxu0 %v1913
  %2689 = vmatprep.subr.mxu0 %v1918
  %2690 = vmatpush1.msra.mxu0 %v1917
  %2691 = vmatprep.subr.mxu0 %v1922
  %2692 = vmatpush1.msra.mxu0 %v1921
  %2693 = vmatprep.subr.mxu0 %v1926
  %2694 = vmatpush1.msra.mxu0 %v1925
  %2695 = vmatprep.subr.mxu0 %v1930
  %2696 = vmatpush1.msra.mxu0 %v1929
  %2697 = vmatprep.subr.mxu0 %v1934
  %2698 = vmatpush1.msra.mxu0 %v1933
  %2699 = vmatprep.subr.mxu0 %v1938
  %2700 = vmatpush1.msra.mxu0 %v1937
  %2701 = vmatprep.subr.mxu0 %v1942
  %2702 = vmatpush1.msra.mxu0 %v1941
  %2703 = vmatprep.subr.mxu0 %v1946
  %2704 = vmatpush1.msra.mxu0 %v1945
  %2705 = vmatprep.subr.mxu0 %v1950
  %2706 = vmatpush1.msra.mxu0 %v1949
  %2707 = vmatprep.subr.mxu0 %v1954
  %2708 = vmatpush1.msra.mxu0 %v1953
  %2709 = vmatprep.subr.mxu0 %v1958
  %2710 = vmatpush1.msra.mxu0 %v1957
  %2711 = vmatprep.subr.mxu0 %v1962
  %2712 = vmatpush1.msra.mxu0 %v1961
  %2713 = vmatprep.subr.mxu0 %v1966
  %2714 = vmatpush1.msra.mxu0 %v1965
  %2715 = vmatprep.subr.mxu0 %v1970
  %2716 = vmatpush1.msra.mxu0 %v1969
  %2717 = vmatprep.subr.mxu0 %v1974
  %2718 = vmatpush1.msra.mxu0 %v1973
  %2719 = vmatprep.subr.mxu0 %v1978
  %2720 = vmatpush1.msra.mxu0 %v1977
  %2721 = vmatprep.subr.mxu0 %v1982
  %2722 = vmatpush1.msra.mxu0 %v1981
  %2723 = vmatprep.subr.mxu0 %v1986
  %2724 = vmatpush1.msra.mxu0 %v1985
  %2725 = vmatprep.subr.mxu0 %v1990
  %2726 = vmatpush1.msra.mxu0 %v1989
  %2727 = vmatprep.subr.mxu0 %v1994
  %2728 = vmatpush1.msra.mxu0 %v1993
  %2729 = vmatprep.subr.mxu0 %v1998
  %2730 = vmatpush1.msra.mxu0 %v1997
  %2731 = vmatprep.subr.mxu0 %v2002
  %2732 = vmatpush1.msra.mxu0 %v2001
  %2733 = vmatprep.mubr.f32.mxu0 %v1009
  %2734 = vmatmul.mubr.f32.gmra.mrb[0].mxu0 %v2668
  %v2735 = vpop.f32.mrb[0].mxu0
  %v2736 = vadd.f32 %v1860, %v2735
  %v2737 = vpop.f32.mrb[0].mxu0
  %v2738 = vadd.f32 %v1864, %v2737
  %2739 = vdwg.mxu0
  %2740 = vmatprep.subr.mxu0 %v1880
  %2741 = vmatpush1.msra.mxu0 %v1879
  %2742 = vmatprep.subr.mxu0 %v1884
  %2743 = vmatpush1.msra.mxu0 %v1883
  %2744 = vmatprep.subr.mxu0 %v1888
  %2745 = vmatpush1.msra.mxu0 %v1887
  %2746 = vmatprep.subr.mxu0 %v1892
  %2747 = vmatpush1.msra.mxu0 %v1891
  %2748 = vmatprep.subr.mxu0 %v1896
  %2749 = vmatpush1.msra.mxu0 %v1895
  %2750 = vmatprep.subr.mxu0 %v1900
  %2751 = vmatpush1.msra.mxu0 %v1899
  %2752 = vmatprep.subr.mxu0 %v1904
  %2753 = vmatpush1.msra.mxu0 %v1903
  %2754 = vmatprep.subr.mxu0 %v1908
  %2755 = vmatpush1.msra.mxu0 %v1907
  %2756 = vmatprep.subr.mxu0 %v1912
  %2757 = vmatpush1.msra.mxu0 %v1911
  %2758 = vmatprep.subr.mxu0 %v1916
  %2759 = vmatpush1.msra.mxu0 %v1915
  %2760 = vmatprep.subr.mxu0 %v1920
  %2761 = vmatpush1.msra.mxu0 %v1919
  %2762 = vmatprep.subr.mxu0 %v1924
  %2763 = vmatpush1.msra.mxu0 %v1923
  %2764 = vmatprep.subr.mxu0 %v1928
  %2765 = vmatpush1.msra.mxu0 %v1927
  %2766 = vmatprep.subr.mxu0 %v1932
  %2767 = vmatpush1.msra.mxu0 %v1931
  %2768 = vmatprep.subr.mxu0 %v1936
  %2769 = vmatpush1.msra.mxu0 %v1935
  %2770 = vmatprep.subr.mxu0 %v1940
  %2771 = vmatpush1.msra.mxu0 %v1939
  %2772 = vmatprep.subr.mxu0 %v1944
  %2773 = vmatpush1.msra.mxu0 %v1943
  %2774 = vmatprep.subr.mxu0 %v1948
  %2775 = vmatpush1.msra.mxu0 %v1947
  %2776 = vmatprep.subr.mxu0 %v1952
  %2777 = vmatpush1.msra.mxu0 %v1951
  %2778 = vmatprep.subr.mxu0 %v1956
  %2779 = vmatpush1.msra.mxu0 %v1955
  %2780 = vmatprep.subr.mxu0 %v1960
  %2781 = vmatpush1.msra.mxu0 %v1959
  %2782 = vmatprep.subr.mxu0 %v1964
  %2783 = vmatpush1.msra.mxu0 %v1963
  %2784 = vmatprep.subr.mxu0 %v1968
  %2785 = vmatpush1.msra.mxu0 %v1967
  %2786 = vmatprep.subr.mxu0 %v1972
  %2787 = vmatpush1.msra.mxu0 %v1971
  %2788 = vmatprep.subr.mxu0 %v1976
  %2789 = vmatpush1.msra.mxu0 %v1975
  %2790 = vmatprep.subr.mxu0 %v1980
  %2791 = vmatpush1.msra.mxu0 %v1979
  %2792 = vmatprep.subr.mxu0 %v1984
  %2793 = vmatpush1.msra.mxu0 %v1983
  %2794 = vmatprep.subr.mxu0 %v1988
  %2795 = vmatpush1.msra.mxu0 %v1987
  %2796 = vmatprep.subr.mxu0 %v1992
  %2797 = vmatpush1.msra.mxu0 %v1991
  %2798 = vmatprep.subr.mxu0 %v1996
  %2799 = vmatpush1.msra.mxu0 %v1995
  %2800 = vmatprep.subr.mxu0 %v2000
  %2801 = vmatpush1.msra.mxu0 %v1999
  %2802 = vmatprep.subr.mxu0 %v2004
  %2803 = vmatpush1.msra.mxu0 %v2003
  %2804 = vmatprep.mubr.f32.mxu0 %v1009
  %2805 = vmatmul.mubr.f32.gmra.mrb[0].mxu0 %v2668
  %v2806 = vpop.f32.mrb[0].mxu0
  %v2807 = vadd.f32 %v1868, %v2806
  %v2808 = vpop.f32.mrb[0].mxu0
  %v2809 = vadd.f32 %v1872, %v2808
  %2810 = vdwg.mxu0
  %v2811 = vxor.u32 %v2736, 2147483648
  %v2812 = vmul.f32 %v2811, 1.442695
  %v2813 = vpow.pop %v2812
  %v2814 = vadd.f32 %v2813, 1.0
  %v2815 = vrcp.pop %v2814
  %v2816 = vmul.f32 1.0, %v2815
  %v2817 = vxor.u32 %v2738, 2147483648
  %v2818 = vmul.f32 %v2817, 1.442695
  %v2819 = vpow.pop %v2818
  %v2820 = vadd.f32 %v2819, 1.0
  %v2821 = vrcp.pop %v2820
  %v2822 = vmul.f32 1.0, %v2821
  %v2823 = vtanh.pop %v2807
  %v2824 = vxor.u32 %v2809, 2147483648
  %v2825 = vmul.f32 %v2824, 1.442695
  %v2826 = vpow.pop %v2825
  %v2827 = vadd.f32 %v2826, 1.0
  %v2828 = vrcp.pop %v2827
  %v2829 = vmul.f32 1.0, %v2828
  %v2830 = vmul.f32 %v2822, %v2666
  %v2831 = vmul.f32 %v2816, %v2823
  %v2832 = vadd.f32 %v2830, %v2831
  %v2833 = vtanh.pop %v2832
  %v2834 = vmul.f32 %v2829, %v2833
  %2835 = vmatprep.subr.mxu0 %v1878
  %2836 = vmatpush1.msra.mxu0 %v1877
  %2837 = vmatprep.subr.mxu0 %v1882
  %2838 = vmatpush1.msra.mxu0 %v1881
  %2839 = vmatprep.subr.mxu0 %v1886
  %2840 = vmatpush1.msra.mxu0 %v1885
  %2841 = vmatprep.subr.mxu0 %v1890
  %2842 = vmatpush1.msra.mxu0 %v1889
  %2843 = vmatprep.subr.mxu0 %v1894
  %2844 = vmatpush1.msra.mxu0 %v1893
  %2845 = vmatprep.subr.mxu0 %v1898
  %2846 = vmatpush1.msra.mxu0 %v1897
  %2847 = vmatprep.subr.mxu0 %v1902
  %2848 = vmatpush1.msra.mxu0 %v1901
  %2849 = vmatprep.subr.mxu0 %v1906
  %2850 = vmatpush1.msra.mxu0 %v1905
  %2851 = vmatprep.subr.mxu0 %v1910
  %2852 = vmatpush1.msra.mxu0 %v1909
  %2853 = vmatprep.subr.mxu0 %v1914
  %2854 = vmatpush1.msra.mxu0 %v1913
  %2855 = vmatprep.subr.mxu0 %v1918
  %2856 = vmatpush1.msra.mxu0 %v1917
  %2857 = vmatprep.subr.mxu0 %v1922
  %2858 = vmatpush1.msra.mxu0 %v1921
  %2859 = vmatprep.subr.mxu0 %v1926
  %2860 = vmatpush1.msra.mxu0 %v1925
  %2861 = vmatprep.subr.mxu0 %v1930
  %2862 = vmatpush1.msra.mxu0 %v1929
  %2863 = vmatprep.subr.mxu0 %v1934
  %2864 = vmatpush1.msra.mxu0 %v1933
  %2865 = vmatprep.subr.mxu0 %v1938
  %2866 = vmatpush1.msra.mxu0 %v1937
  %2867 = vmatprep.subr.mxu0 %v1942
  %2868 = vmatpush1.msra.mxu0 %v1941
  %2869 = vmatprep.subr.mxu0 %v1946
  %2870 = vmatpush1.msra.mxu0 %v1945
  %2871 = vmatprep.subr.mxu0 %v1950
  %2872 = vmatpush1.msra.mxu0 %v1949
  %2873 = vmatprep.subr.mxu0 %v1954
  %2874 = vmatpush1.msra.mxu0 %v1953
  %2875 = vmatprep.subr.mxu0 %v1958
  %2876 = vmatpush1.msra.mxu0 %v1957
  %2877 = vmatprep.subr.mxu0 %v1962
  %2878 = vmatpush1.msra.mxu0 %v1961
  %2879 = vmatprep.subr.mxu0 %v1966
  %2880 = vmatpush1.msra.mxu0 %v1965
  %2881 = vmatprep.subr.mxu0 %v1970
  %2882 = vmatpush1.msra.mxu0 %v1969
  %2883 = vmatprep.subr.mxu0 %v1974
  %2884 = vmatpush1.msra.mxu0 %v1973
  %2885 = vmatprep.subr.mxu0 %v1978
  %2886 = vmatpush1.msra.mxu0 %v1977
  %2887 = vmatprep.subr.mxu0 %v1982
  %2888 = vmatpush1.msra.mxu0 %v1981
  %2889 = vmatprep.subr.mxu0 %v1986
  %2890 = vmatpush1.msra.mxu0 %v1985
  %2891 = vmatprep.subr.mxu0 %v1990
  %2892 = vmatpush1.msra.mxu0 %v1989
  %2893 = vmatprep.subr.mxu0 %v1994
  %2894 = vmatpush1.msra.mxu0 %v1993
  %2895 = vmatprep.subr.mxu0 %v1998
  %2896 = vmatpush1.msra.mxu0 %v1997
  %2897 = vmatprep.subr.mxu0 %v2002
  %2898 = vmatpush1.msra.mxu0 %v2001
  %2899 = vmatprep.mubr.f32.mxu0 %v1178
  %2900 = vmatmul.mubr.f32.gmra.mrb[0].mxu0 %v2834
  %v2901 = vpop.f32.mrb[0].mxu0
  %v2902 = vadd.f32 %v1860, %v2901
  %v2903 = vpop.f32.mrb[0].mxu0
  %v2904 = vadd.f32 %v1864, %v2903
  %2905 = vdwg.mxu0
  %2906 = vmatprep.subr.mxu0 %v1880
  %2907 = vmatpush1.msra.mxu0 %v1879
  %2908 = vmatprep.subr.mxu0 %v1884
  %2909 = vmatpush1.msra.mxu0 %v1883
  %2910 = vmatprep.subr.mxu0 %v1888
  %2911 = vmatpush1.msra.mxu0 %v1887
  %2912 = vmatprep.subr.mxu0 %v1892
  %2913 = vmatpush1.msra.mxu0 %v1891
  %2914 = vmatprep.subr.mxu0 %v1896
  %2915 = vmatpush1.msra.mxu0 %v1895
  %2916 = vmatprep.subr.mxu0 %v1900
  %2917 = vmatpush1.msra.mxu0 %v1899
  %2918 = vmatprep.subr.mxu0 %v1904
  %2919 = vmatpush1.msra.mxu0 %v1903
  %2920 = vmatprep.subr.mxu0 %v1908
  %2921 = vmatpush1.msra.mxu0 %v1907
  %2922 = vmatprep.subr.mxu0 %v1912
  %2923 = vmatpush1.msra.mxu0 %v1911
  %2924 = vmatprep.subr.mxu0 %v1916
  %2925 = vmatpush1.msra.mxu0 %v1915
  %2926 = vmatprep.subr.mxu0 %v1920
  %2927 = vmatpush1.msra.mxu0 %v1919
  %2928 = vmatprep.subr.mxu0 %v1924
  %2929 = vmatpush1.msra.mxu0 %v1923
  %2930 = vmatprep.subr.mxu0 %v1928
  %2931 = vmatpush1.msra.mxu0 %v1927
  %2932 = vmatprep.subr.mxu0 %v1932
  %2933 = vmatpush1.msra.mxu0 %v1931
  %2934 = vmatprep.subr.mxu0 %v1936
  %2935 = vmatpush1.msra.mxu0 %v1935
  %2936 = vmatprep.subr.mxu0 %v1940
  %2937 = vmatpush1.msra.mxu0 %v1939
  %2938 = vmatprep.subr.mxu0 %v1944
  %2939 = vmatpush1.msra.mxu0 %v1943
  %2940 = vmatprep.subr.mxu0 %v1948
  %2941 = vmatpush1.msra.mxu0 %v1947
  %2942 = vmatprep.subr.mxu0 %v1952
  %2943 = vmatpush1.msra.mxu0 %v1951
  %2944 = vmatprep.subr.mxu0 %v1956
  %2945 = vmatpush1.msra.mxu0 %v1955
  %2946 = vmatprep.subr.mxu0 %v1960
  %2947 = vmatpush1.msra.mxu0 %v1959
  %2948 = vmatprep.subr.mxu0 %v1964
  %2949 = vmatpush1.msra.mxu0 %v1963
  %2950 = vmatprep.subr.mxu0 %v1968
  %2951 = vmatpush1.msra.mxu0 %v1967
  %2952 = vmatprep.subr.mxu0 %v1972
  %2953 = vmatpush1.msra.mxu0 %v1971
  %2954 = vmatprep.subr.mxu0 %v1976
  %2955 = vmatpush1.msra.mxu0 %v1975
  %2956 = vmatprep.subr.mxu0 %v1980
  %2957 = vmatpush1.msra.mxu0 %v1979
  %2958 = vmatprep.subr.mxu0 %v1984
  %2959 = vmatpush1.msra.mxu0 %v1983
  %2960 = vmatprep.subr.mxu0 %v1988
  %2961 = vmatpush1.msra.mxu0 %v1987
  %2962 = vmatprep.subr.mxu0 %v1992
  %2963 = vmatpush1.msra.mxu0 %v1991
  %2964 = vmatprep.subr.mxu0 %v1996
  %2965 = vmatpush1.msra.mxu0 %v1995
  %2966 = vmatprep.subr.mxu0 %v2000
  %2967 = vmatpush1.msra.mxu0 %v1999
  %2968 = vmatprep.subr.mxu0 %v2004
  %2969 = vmatpush1.msra.mxu0 %v2003
  %2970 = vmatprep.mubr.f32.mxu0 %v1178
  %2971 = vmatmul.mubr.f32.gmra.mrb[0].mxu0 %v2834
  %v2972 = vpop.f32.mrb[0].mxu0
  %v2973 = vadd.f32 %v1868, %v2972
  %v2974 = vpop.f32.mrb[0].mxu0
  %v2975 = vadd.f32 %v1872, %v2974
  %2976 = vdwg.mxu0
  %v2977 = vxor.u32 %v2902, 2147483648
  %v2978 = vmul.f32 %v2977, 1.442695
  %v2979 = vpow.pop %v2978
  %v2980 = vadd.f32 %v2979, 1.0
  %v2981 = vrcp.pop %v2980
  %v2982 = vmul.f32 1.0, %v2981
  %v2983 = vxor.u32 %v2904, 2147483648
  %v2984 = vmul.f32 %v2983, 1.442695
  %v2985 = vpow.pop %v2984
  %v2986 = vadd.f32 %v2985, 1.0
  %v2987 = vrcp.pop %v2986
  %v2988 = vmul.f32 1.0, %v2987
  %v2989 = vtanh.pop %v2973
  %v2990 = vxor.u32 %v2975, 2147483648
  %v2991 = vmul.f32 %v2990, 1.442695
  %v2992 = vpow.pop %v2991
  %v2993 = vadd.f32 %v2992, 1.0
  %v2994 = vrcp.pop %v2993
  %v2995 = vmul.f32 1.0, %v2994
  %v2996 = vmul.f32 %v2988, %v2832
  %v2997 = vmul.f32 %v2982, %v2989
  %v2998 = vadd.f32 %v2996, %v2997
  %v2999 = vtanh.pop %v2998
  %v3000 = vmul.f32 %v2995, %v2999
  %3001 = vmatprep.subr.mxu0 %v1878
  %3002 = vmatpush1.msra.mxu0 %v1877
  %3003 = vmatprep.subr.mxu0 %v1882
  %3004 = vmatpush1.msra.mxu0 %v1881
  %3005 = vmatprep.subr.mxu0 %v1886
  %3006 = vmatpush1.msra.mxu0 %v1885
  %3007 = vmatprep.subr.mxu0 %v1890
  %3008 = vmatpush1.msra.mxu0 %v1889
  %3009 = vmatprep.subr.mxu0 %v1894
  %3010 = vmatpush1.msra.mxu0 %v1893
  %3011 = vmatprep.subr.mxu0 %v1898
  %3012 = vmatpush1.msra.mxu0 %v1897
  %3013 = vmatprep.subr.mxu0 %v1902
  %3014 = vmatpush1.msra.mxu0 %v1901
  %3015 = vmatprep.subr.mxu0 %v1906
  %3016 = vmatpush1.msra.mxu0 %v1905
  %3017 = vmatprep.subr.mxu0 %v1910
  %3018 = vmatpush1.msra.mxu0 %v1909
  %3019 = vmatprep.subr.mxu0 %v1914
  %3020 = vmatpush1.msra.mxu0 %v1913
  %3021 = vmatprep.subr.mxu0 %v1918
  %3022 = vmatpush1.msra.mxu0 %v1917
  %3023 = vmatprep.subr.mxu0 %v1922
  %3024 = vmatpush1.msra.mxu0 %v1921
  %3025 = vmatprep.subr.mxu0 %v1926
  %3026 = vmatpush1.msra.mxu0 %v1925
  %3027 = vmatprep.subr.mxu0 %v1930
  %3028 = vmatpush1.msra.mxu0 %v1929
  %3029 = vmatprep.subr.mxu0 %v1934
  %3030 = vmatpush1.msra.mxu0 %v1933
  %3031 = vmatprep.subr.mxu0 %v1938
  %3032 = vmatpush1.msra.mxu0 %v1937
  %3033 = vmatprep.subr.mxu0 %v1942
  %3034 = vmatpush1.msra.mxu0 %v1941
  %3035 = vmatprep.subr.mxu0 %v1946
  %3036 = vmatpush1.msra.mxu0 %v1945
  %3037 = vmatprep.subr.mxu0 %v1950
  %3038 = vmatpush1.msra.mxu0 %v1949
  %3039 = vmatprep.subr.mxu0 %v1954
  %3040 = vmatpush1.msra.mxu0 %v1953
  %3041 = vmatprep.subr.mxu0 %v1958
  %3042 = vmatpush1.msra.mxu0 %v1957
  %3043 = vmatprep.subr.mxu0 %v1962
  %3044 = vmatpush1.msra.mxu0 %v1961
  %3045 = vmatprep.subr.mxu0 %v1966
  %3046 = vmatpush1.msra.mxu0 %v1965
  %3047 = vmatprep.subr.mxu0 %v1970
  %3048 = vmatpush1.msra.mxu0 %v1969
  %3049 = vmatprep.subr.mxu0 %v1974
  %3050 = vmatpush1.msra.mxu0 %v1973
  %3051 = vmatprep.subr.mxu0 %v1978
  %3052 = vmatpush1.msra.mxu0 %v1977
  %3053 = vmatprep.subr.mxu0 %v1982
  %3054 = vmatpush1.msra.mxu0 %v1981
  %3055 = vmatprep.subr.mxu0 %v1986
  %3056 = vmatpush1.msra.mxu0 %v1985
  %3057 = vmatprep.subr.mxu0 %v1990
  %3058 = vmatpush1.msra.mxu0 %v1989
  %3059 = vmatprep.subr.mxu0 %v1994
  %3060 = vmatpush1.msra.mxu0 %v1993
  %3061 = vmatprep.subr.mxu0 %v1998
  %3062 = vmatpush1.msra.mxu0 %v1997
  %3063 = vmatprep.subr.mxu0 %v2002
  %3064 = vmatpush1.msra.mxu0 %v2001
  %3065 = vmatprep.mubr.f32.mxu0 %v1347
  %3066 = vmatmul.mubr.f32.gmra.mrb[0].mxu0 %v3000
  %v3067 = vpop.f32.mrb[0].mxu0
  %v3068 = vadd.f32 %v1860, %v3067
  %v3069 = vpop.f32.mrb[0].mxu0
  %v3070 = vadd.f32 %v1864, %v3069
  %3071 = vdwg.mxu0
  %3072 = vmatprep.subr.mxu0 %v1880
  %3073 = vmatpush1.msra.mxu0 %v1879
  %3074 = vmatprep.subr.mxu0 %v1884
  %3075 = vmatpush1.msra.mxu0 %v1883
  %3076 = vmatprep.subr.mxu0 %v1888
  %3077 = vmatpush1.msra.mxu0 %v1887
  %3078 = vmatprep.subr.mxu0 %v1892
  %3079 = vmatpush1.msra.mxu0 %v1891
  %3080 = vmatprep.subr.mxu0 %v1896
  %3081 = vmatpush1.msra.mxu0 %v1895
  %3082 = vmatprep.subr.mxu0 %v1900
  %3083 = vmatpush1.msra.mxu0 %v1899
  %3084 = vmatprep.subr.mxu0 %v1904
  %3085 = vmatpush1.msra.mxu0 %v1903
  %3086 = vmatprep.subr.mxu0 %v1908
  %3087 = vmatpush1.msra.mxu0 %v1907
  %3088 = vmatprep.subr.mxu0 %v1912
  %3089 = vmatpush1.msra.mxu0 %v1911
  %3090 = vmatprep.subr.mxu0 %v1916
  %3091 = vmatpush1.msra.mxu0 %v1915
  %3092 = vmatprep.subr.mxu0 %v1920
  %3093 = vmatpush1.msra.mxu0 %v1919
  %3094 = vmatprep.subr.mxu0 %v1924
  %3095 = vmatpush1.msra.mxu0 %v1923
  %3096 = vmatprep.subr.mxu0 %v1928
  %3097 = vmatpush1.msra.mxu0 %v1927
  %3098 = vmatprep.subr.mxu0 %v1932
  %3099 = vmatpush1.msra.mxu0 %v1931
  %3100 = vmatprep.subr.mxu0 %v1936
  %3101 = vmatpush1.msra.mxu0 %v1935
  %3102 = vmatprep.subr.mxu0 %v1940
  %3103 = vmatpush1.msra.mxu0 %v1939
  %3104 = vmatprep.subr.mxu0 %v1944
  %3105 = vmatpush1.msra.mxu0 %v1943
  %3106 = vmatprep.subr.mxu0 %v1948
  %3107 = vmatpush1.msra.mxu0 %v1947
  %3108 = vmatprep.subr.mxu0 %v1952
  %3109 = vmatpush1.msra.mxu0 %v1951
  %3110 = vmatprep.subr.mxu0 %v1956
  %3111 = vmatpush1.msra.mxu0 %v1955
  %3112 = vmatprep.subr.mxu0 %v1960
  %3113 = vmatpush1.msra.mxu0 %v1959
  %3114 = vmatprep.subr.mxu0 %v1964
  %3115 = vmatpush1.msra.mxu0 %v1963
  %3116 = vmatprep.subr.mxu0 %v1968
  %3117 = vmatpush1.msra.mxu0 %v1967
  %3118 = vmatprep.subr.mxu0 %v1972
  %3119 = vmatpush1.msra.mxu0 %v1971
  %3120 = vmatprep.subr.mxu0 %v1976
  %3121 = vmatpush1.msra.mxu0 %v1975
  %3122 = vmatprep.subr.mxu0 %v1980
  %3123 = vmatpush1.msra.mxu0 %v1979
  %3124 = vmatprep.subr.mxu0 %v1984
  %3125 = vmatpush1.msra.mxu0 %v1983
  %3126 = vmatprep.subr.mxu0 %v1988
  %3127 = vmatpush1.msra.mxu0 %v1987
  %3128 = vmatprep.subr.mxu0 %v1992
  %3129 = vmatpush1.msra.mxu0 %v1991
  %3130 = vmatprep.subr.mxu0 %v1996
  %3131 = vmatpush1.msra.mxu0 %v1995
  %3132 = vmatprep.subr.mxu0 %v2000
  %3133 = vmatpush1.msra.mxu0 %v1999
  %3134 = vmatprep.subr.mxu0 %v2004
  %3135 = vmatpush1.msra.mxu0 %v2003
  %3136 = vmatprep.mubr.f32.mxu0 %v1347
  %3137 = vmatmul.mubr.f32.gmra.mrb[0].mxu0 %v3000
  %v3138 = vpop.f32.mrb[0].mxu0
  %v3139 = vadd.f32 %v1868, %v3138
  %v3140 = vpop.f32.mrb[0].mxu0
  %v3141 = vadd.f32 %v1872, %v3140
  %3142 = vdwg.mxu0
  %v3143 = vxor.u32 %v3068, 2147483648
  %v3144 = vmul.f32 %v3143, 1.442695
  %v3145 = vpow.pop %v3144
  %v3146 = vadd.f32 %v3145, 1.0
  %v3147 = vrcp.pop %v3146
  %v3148 = vmul.f32 1.0, %v3147
  %v3149 = vxor.u32 %v3070, 2147483648
  %v3150 = vmul.f32 %v3149, 1.442695
  %v3151 = vpow.pop %v3150
  %v3152 = vadd.f32 %v3151, 1.0
  %v3153 = vrcp.pop %v3152
  %v3154 = vmul.f32 1.0, %v3153
  %v3155 = vtanh.pop %v3139
  %v3156 = vxor.u32 %v3141, 2147483648
  %v3157 = vmul.f32 %v3156, 1.442695
  %v3158 = vpow.pop %v3157
  %v3159 = vadd.f32 %v3158, 1.0
  %v3160 = vrcp.pop %v3159
  %v3161 = vmul.f32 1.0, %v3160
  %v3162 = vmul.f32 %v3154, %v2998
  %v3163 = vmul.f32 %v3148, %v3155
  %v3164 = vadd.f32 %v3162, %v3163
  %v3165 = vtanh.pop %v3164
  %v3166 = vmul.f32 %v3161, %v3165
  %3167 = vmatprep.subr.mxu0 %v1878
  %3168 = vmatpush1.msra.mxu0 %v1877
  %3169 = vmatprep.subr.mxu0 %v1882
  %3170 = vmatpush1.msra.mxu0 %v1881
  %3171 = vmatprep.subr.mxu0 %v1886
  %3172 = vmatpush1.msra.mxu0 %v1885
  %3173 = vmatprep.subr.mxu0 %v1890
  %3174 = vmatpush1.msra.mxu0 %v1889
  %3175 = vmatprep.subr.mxu0 %v1894
  %3176 = vmatpush1.msra.mxu0 %v1893
  %3177 = vmatprep.subr.mxu0 %v1898
  %3178 = vmatpush1.msra.mxu0 %v1897
  %3179 = vmatprep.subr.mxu0 %v1902
  %3180 = vmatpush1.msra.mxu0 %v1901
  %3181 = vmatprep.subr.mxu0 %v1906
  %3182 = vmatpush1.msra.mxu0 %v1905
  %3183 = vmatprep.subr.mxu0 %v1910
  %3184 = vmatpush1.msra.mxu0 %v1909
  %3185 = vmatprep.subr.mxu0 %v1914
  %3186 = vmatpush1.msra.mxu0 %v1913
  %3187 = vmatprep.subr.mxu0 %v1918
  %3188 = vmatpush1.msra.mxu0 %v1917
  %3189 = vmatprep.subr.mxu0 %v1922
  %3190 = vmatpush1.msra.mxu0 %v1921
  %3191 = vmatprep.subr.mxu0 %v1926
  %3192 = vmatpush1.msra.mxu0 %v1925
  %3193 = vmatprep.subr.mxu0 %v1930
  %3194 = vmatpush1.msra.mxu0 %v1929
  %3195 = vmatprep.subr.mxu0 %v1934
  %3196 = vmatpush1.msra.mxu0 %v1933
  %3197 = vmatprep.subr.mxu0 %v1938
  %3198 = vmatpush1.msra.mxu0 %v1937
  %3199 = vmatprep.subr.mxu0 %v1942
  %3200 = vmatpush1.msra.mxu0 %v1941
  %3201 = vmatprep.subr.mxu0 %v1946
  %3202 = vmatpush1.msra.mxu0 %v1945
  %3203 = vmatprep.subr.mxu0 %v1950
  %3204 = vmatpush1.msra.mxu0 %v1949
  %3205 = vmatprep.subr.mxu0 %v1954
  %3206 = vmatpush1.msra.mxu0 %v1953
  %3207 = vmatprep.subr.mxu0 %v1958
  %3208 = vmatpush1.msra.mxu0 %v1957
  %3209 = vmatprep.subr.mxu0 %v1962
  %3210 = vmatpush1.msra.mxu0 %v1961
  %3211 = vmatprep.subr.mxu0 %v1966
  %3212 = vmatpush1.msra.mxu0 %v1965
  %3213 = vmatprep.subr.mxu0 %v1970
  %3214 = vmatpush1.msra.mxu0 %v1969
  %3215 = vmatprep.subr.mxu0 %v1974
  %3216 = vmatpush1.msra.mxu0 %v1973
  %3217 = vmatprep.subr.mxu0 %v1978
  %3218 = vmatpush1.msra.mxu0 %v1977
  %3219 = vmatprep.subr.mxu0 %v1982
  %3220 = vmatpush1.msra.mxu0 %v1981
  %3221 = vmatprep.subr.mxu0 %v1986
  %3222 = vmatpush1.msra.mxu0 %v1985
  %3223 = vmatprep.subr.mxu0 %v1990
  %3224 = vmatpush1.msra.mxu0 %v1989
  %3225 = vmatprep.subr.mxu0 %v1994
  %3226 = vmatpush1.msra.mxu0 %v1993
  %3227 = vmatprep.subr.mxu0 %v1998
  %3228 = vmatpush1.msra.mxu0 %v1997
  %3229 = vmatprep.subr.mxu0 %v2002
  %3230 = vmatpush1.msra.mxu0 %v2001
  %3231 = vmatprep.mubr.f32.mxu0 %v1516
  %3232 = vmatmul.mubr.f32.gmra.mrb[0].mxu0 %v3166
  %v3233 = vpop.f32.mrb[0].mxu0
  %v3234 = vadd.f32 %v1860, %v3233
  %v3235 = vpop.f32.mrb[0].mxu0
  %v3236 = vadd.f32 %v1864, %v3235
  %3237 = vdwg.mxu0
  %3238 = vmatprep.subr.mxu0 %v1880
  %3239 = vmatpush1.msra.mxu0 %v1879
  %3240 = vmatprep.subr.mxu0 %v1884
  %3241 = vmatpush1.msra.mxu0 %v1883
  %3242 = vmatprep.subr.mxu0 %v1888
  %3243 = vmatpush1.msra.mxu0 %v1887
  %3244 = vmatprep.subr.mxu0 %v1892
  %3245 = vmatpush1.msra.mxu0 %v1891
  %3246 = vmatprep.subr.mxu0 %v1896
  %3247 = vmatpush1.msra.mxu0 %v1895
  %3248 = vmatprep.subr.mxu0 %v1900
  %3249 = vmatpush1.msra.mxu0 %v1899
  %3250 = vmatprep.subr.mxu0 %v1904
  %3251 = vmatpush1.msra.mxu0 %v1903
  %3252 = vmatprep.subr.mxu0 %v1908
  %3253 = vmatpush1.msra.mxu0 %v1907
  %3254 = vmatprep.subr.mxu0 %v1912
  %3255 = vmatpush1.msra.mxu0 %v1911
  %3256 = vmatprep.subr.mxu0 %v1916
  %3257 = vmatpush1.msra.mxu0 %v1915
  %3258 = vmatprep.subr.mxu0 %v1920
  %3259 = vmatpush1.msra.mxu0 %v1919
  %3260 = vmatprep.subr.mxu0 %v1924
  %3261 = vmatpush1.msra.mxu0 %v1923
  %3262 = vmatprep.subr.mxu0 %v1928
  %3263 = vmatpush1.msra.mxu0 %v1927
  %3264 = vmatprep.subr.mxu0 %v1932
  %3265 = vmatpush1.msra.mxu0 %v1931
  %3266 = vmatprep.subr.mxu0 %v1936
  %3267 = vmatpush1.msra.mxu0 %v1935
  %3268 = vmatprep.subr.mxu0 %v1940
  %3269 = vmatpush1.msra.mxu0 %v1939
  %3270 = vmatprep.subr.mxu0 %v1944
  %3271 = vmatpush1.msra.mxu0 %v1943
  %3272 = vmatprep.subr.mxu0 %v1948
  %3273 = vmatpush1.msra.mxu0 %v1947
  %3274 = vmatprep.subr.mxu0 %v1952
  %3275 = vmatpush1.msra.mxu0 %v1951
  %3276 = vmatprep.subr.mxu0 %v1956
  %3277 = vmatpush1.msra.mxu0 %v1955
  %3278 = vmatprep.subr.mxu0 %v1960
  %3279 = vmatpush1.msra.mxu0 %v1959
  %3280 = vmatprep.subr.mxu0 %v1964
  %3281 = vmatpush1.msra.mxu0 %v1963
  %3282 = vmatprep.subr.mxu0 %v1968
  %3283 = vmatpush1.msra.mxu0 %v1967
  %3284 = vmatprep.subr.mxu0 %v1972
  %3285 = vmatpush1.msra.mxu0 %v1971
  %3286 = vmatprep.subr.mxu0 %v1976
  %3287 = vmatpush1.msra.mxu0 %v1975
  %3288 = vmatprep.subr.mxu0 %v1980
  %3289 = vmatpush1.msra.mxu0 %v1979
  %3290 = vmatprep.subr.mxu0 %v1984
  %3291 = vmatpush1.msra.mxu0 %v1983
  %3292 = vmatprep.subr.mxu0 %v1988
  %3293 = vmatpush1.msra.mxu0 %v1987
  %3294 = vmatprep.subr.mxu0 %v1992
  %3295 = vmatpush1.msra.mxu0 %v1991
  %3296 = vmatprep.subr.mxu0 %v1996
  %3297 = vmatpush1.msra.mxu0 %v1995
  %3298 = vmatprep.subr.mxu0 %v2000
  %3299 = vmatpush1.msra.mxu0 %v1999
  %3300 = vmatprep.subr.mxu0 %v2004
  %3301 = vmatpush1.msra.mxu0 %v2003
  %3302 = vmatprep.mubr.f32.mxu0 %v1516
  %3303 = vmatmul.mubr.f32.gmra.mrb[0].mxu0 %v3166
  %v3304 = vpop.f32.mrb[0].mxu0
  %v3305 = vadd.f32 %v1868, %v3304
  %v3306 = vpop.f32.mrb[0].mxu0
  %v3307 = vadd.f32 %v1872, %v3306
  %3308 = vdwg.mxu0
  %v3309 = vxor.u32 %v3234, 2147483648
  %v3310 = vmul.f32 %v3309, 1.442695
  %v3311 = vpow.pop %v3310
  %v3312 = vadd.f32 %v3311, 1.0
  %v3313 = vrcp.pop %v3312
  %v3314 = vmul.f32 1.0, %v3313
  %v3315 = vxor.u32 %v3236, 2147483648
  %v3316 = vmul.f32 %v3315, 1.442695
  %v3317 = vpow.pop %v3316
  %v3318 = vadd.f32 %v3317, 1.0
  %v3319 = vrcp.pop %v3318
  %v3320 = vmul.f32 1.0, %v3319
  %v3321 = vtanh.pop %v3305
  %v3322 = vxor.u32 %v3307, 2147483648
  %v3323 = vmul.f32 %v3322, 1.442695
  %v3324 = vpow.pop %v3323
  %v3325 = vadd.f32 %v3324, 1.0
  %v3326 = vrcp.pop %v3325
  %v3327 = vmul.f32 1.0, %v3326
  %v3328 = vmul.f32 %v3320, %v3164
  %v3329 = vmul.f32 %v3314, %v3321
  %v3330 = vadd.f32 %v3328, %v3329
  %v3331 = vtanh.pop %v3330
  %v3332 = vmul.f32 %v3327, %v3331
  %3333 = vmatprep.subr.mxu0 %v1878
  %3334 = vmatpush1.msra.mxu0 %v1877
  %3335 = vmatprep.subr.mxu0 %v1882
  %3336 = vmatpush1.msra.mxu0 %v1881
  %3337 = vmatprep.subr.mxu0 %v1886
  %3338 = vmatpush1.msra.mxu0 %v1885
  %3339 = vmatprep.subr.mxu0 %v1890
  %3340 = vmatpush1.msra.mxu0 %v1889
  %3341 = vmatprep.subr.mxu0 %v1894
  %3342 = vmatpush1.msra.mxu0 %v1893
  %3343 = vmatprep.subr.mxu0 %v1898
  %3344 = vmatpush1.msra.mxu0 %v1897
  %3345 = vmatprep.subr.mxu0 %v1902
  %3346 = vmatpush1.msra.mxu0 %v1901
  %3347 = vmatprep.subr.mxu0 %v1906
  %3348 = vmatpush1.msra.mxu0 %v1905
  %3349 = vmatprep.subr.mxu0 %v1910
  %3350 = vmatpush1.msra.mxu0 %v1909
  %3351 = vmatprep.subr.mxu0 %v1914
  %3352 = vmatpush1.msra.mxu0 %v1913
  %3353 = vmatprep.subr.mxu0 %v1918
  %3354 = vmatpush1.msra.mxu0 %v1917
  %3355 = vmatprep.subr.mxu0 %v1922
  %3356 = vmatpush1.msra.mxu0 %v1921
  %3357 = vmatprep.subr.mxu0 %v1926
  %3358 = vmatpush1.msra.mxu0 %v1925
  %3359 = vmatprep.subr.mxu0 %v1930
  %3360 = vmatpush1.msra.mxu0 %v1929
  %3361 = vmatprep.subr.mxu0 %v1934
  %3362 = vmatpush1.msra.mxu0 %v1933
  %3363 = vmatprep.subr.mxu0 %v1938
  %3364 = vmatpush1.msra.mxu0 %v1937
  %3365 = vmatprep.subr.mxu0 %v1942
  %3366 = vmatpush1.msra.mxu0 %v1941
  %3367 = vmatprep.subr.mxu0 %v1946
  %3368 = vmatpush1.msra.mxu0 %v1945
  %3369 = vmatprep.subr.mxu0 %v1950
  %3370 = vmatpush1.msra.mxu0 %v1949
  %3371 = vmatprep.subr.mxu0 %v1954
  %3372 = vmatpush1.msra.mxu0 %v1953
  %3373 = vmatprep.subr.mxu0 %v1958
  %3374 = vmatpush1.msra.mxu0 %v1957
  %3375 = vmatprep.subr.mxu0 %v1962
  %3376 = vmatpush1.msra.mxu0 %v1961
  %3377 = vmatprep.subr.mxu0 %v1966
  %3378 = vmatpush1.msra.mxu0 %v1965
  %3379 = vmatprep.subr.mxu0 %v1970
  %3380 = vmatpush1.msra.mxu0 %v1969
  %3381 = vmatprep.subr.mxu0 %v1974
  %3382 = vmatpush1.msra.mxu0 %v1973
  %3383 = vmatprep.subr.mxu0 %v1978
  %3384 = vmatpush1.msra.mxu0 %v1977
  %3385 = vmatprep.subr.mxu0 %v1982
  %3386 = vmatpush1.msra.mxu0 %v1981
  %3387 = vmatprep.subr.mxu0 %v1986
  %3388 = vmatpush1.msra.mxu0 %v1985
  %3389 = vmatprep.subr.mxu0 %v1990
  %3390 = vmatpush1.msra.mxu0 %v1989
  %3391 = vmatprep.subr.mxu0 %v1994
  %3392 = vmatpush1.msra.mxu0 %v1993
  %3393 = vmatprep.subr.mxu0 %v1998
  %3394 = vmatpush1.msra.mxu0 %v1997
  %3395 = vmatprep.subr.mxu0 %v2002
  %3396 = vmatpush1.msra.mxu0 %v2001
  %3397 = vmatprep.mubr.f32.mxu0 %v1685
  %3398 = vmatmul.mubr.f32.gmra.mrb[0].mxu0 %v3332
  %v3399 = vpop.f32.mrb[0].mxu0
  %v3400 = vadd.f32 %v1860, %v3399
  %v3401 = vpop.f32.mrb[0].mxu0
  %v3402 = vadd.f32 %v1864, %v3401
  %3403 = vdwg.mxu0
  %3404 = vmatprep.subr.mxu0 %v1880
  %3405 = vmatpush1.msra.mxu0 %v1879
  %3406 = vmatprep.subr.mxu0 %v1884
  %3407 = vmatpush1.msra.mxu0 %v1883
  %3408 = vmatprep.subr.mxu0 %v1888
  %3409 = vmatpush1.msra.mxu0 %v1887
  %3410 = vmatprep.subr.mxu0 %v1892
  %3411 = vmatpush1.msra.mxu0 %v1891
  %3412 = vmatprep.subr.mxu0 %v1896
  %3413 = vmatpush1.msra.mxu0 %v1895
  %3414 = vmatprep.subr.mxu0 %v1900
  %3415 = vmatpush1.msra.mxu0 %v1899
  %3416 = vmatprep.subr.mxu0 %v1904
  %3417 = vmatpush1.msra.mxu0 %v1903
  %3418 = vmatprep.subr.mxu0 %v1908
  %3419 = vmatpush1.msra.mxu0 %v1907
  %3420 = vmatprep.subr.mxu0 %v1912
  %3421 = vmatpush1.msra.mxu0 %v1911
  %3422 = vmatprep.subr.mxu0 %v1916
  %3423 = vmatpush1.msra.mxu0 %v1915
  %3424 = vmatprep.subr.mxu0 %v1920
  %3425 = vmatpush1.msra.mxu0 %v1919
  %3426 = vmatprep.subr.mxu0 %v1924
  %3427 = vmatpush1.msra.mxu0 %v1923
  %3428 = vmatprep.subr.mxu0 %v1928
  %3429 = vmatpush1.msra.mxu0 %v1927
  %3430 = vmatprep.subr.mxu0 %v1932
  %3431 = vmatpush1.msra.mxu0 %v1931
  %3432 = vmatprep.subr.mxu0 %v1936
  %3433 = vmatpush1.msra.mxu0 %v1935
  %3434 = vmatprep.subr.mxu0 %v1940
  %3435 = vmatpush1.msra.mxu0 %v1939
  %3436 = vmatprep.subr.mxu0 %v1944
  %3437 = vmatpush1.msra.mxu0 %v1943
  %3438 = vmatprep.subr.mxu0 %v1948
  %3439 = vmatpush1.msra.mxu0 %v1947
  %3440 = vmatprep.subr.mxu0 %v1952
  %3441 = vmatpush1.msra.mxu0 %v1951
  %3442 = vmatprep.subr.mxu0 %v1956
  %3443 = vmatpush1.msra.mxu0 %v1955
  %3444 = vmatprep.subr.mxu0 %v1960
  %3445 = vmatpush1.msra.mxu0 %v1959
  %3446 = vmatprep.subr.mxu0 %v1964
  %3447 = vmatpush1.msra.mxu0 %v1963
  %3448 = vmatprep.subr.mxu0 %v1968
  %3449 = vmatpush1.msra.mxu0 %v1967
  %3450 = vmatprep.subr.mxu0 %v1972
  %3451 = vmatpush1.msra.mxu0 %v1971
  %3452 = vmatprep.subr.mxu0 %v1976
  %3453 = vmatpush1.msra.mxu0 %v1975
  %3454 = vmatprep.subr.mxu0 %v1980
  %3455 = vmatpush1.msra.mxu0 %v1979
  %3456 = vmatprep.subr.mxu0 %v1984
  %3457 = vmatpush1.msra.mxu0 %v1983
  %3458 = vmatprep.subr.mxu0 %v1988
  %3459 = vmatpush1.msra.mxu0 %v1987
  %3460 = vmatprep.subr.mxu0 %v1992
  %3461 = vmatpush1.msra.mxu0 %v1991
  %3462 = vmatprep.subr.mxu0 %v1996
  %3463 = vmatpush1.msra.mxu0 %v1995
  %3464 = vmatprep.subr.mxu0 %v2000
  %3465 = vmatpush1.msra.mxu0 %v1999
  %3466 = vmatprep.subr.mxu0 %v2004
  %3467 = vmatpush1.msra.mxu0 %v2003
  %3468 = vmatprep.mubr.f32.mxu0 %v1685
  %3469 = vmatmul.mubr.f32.gmra.mrb[0].mxu0 %v3332
  %v3470 = vpop.f32.mrb[0].mxu0
  %v3471 = vadd.f32 %v1868, %v3470
  %v3472 = vpop.f32.mrb[0].mxu0
  %v3473 = vadd.f32 %v1872, %v3472
  %3474 = vdwg.mxu0
  %v3475 = vxor.u32 %v3400, 2147483648
  %v3476 = vmul.f32 %v3475, 1.442695
  %v3477 = vpow.pop %v3476
  %v3478 = vadd.f32 %v3477, 1.0
  %v3479 = vrcp.pop %v3478
  %v3480 = vmul.f32 1.0, %v3479
  %v3481 = vxor.u32 %v3402, 2147483648
  %v3482 = vmul.f32 %v3481, 1.442695
  %v3483 = vpow.pop %v3482
  %v3484 = vadd.f32 %v3483, 1.0
  %v3485 = vrcp.pop %v3484
  %v3486 = vmul.f32 1.0, %v3485
  %v3487 = vtanh.pop %v3471
  %v3488 = vxor.u32 %v3473, 2147483648
  %v3489 = vmul.f32 %v3488, 1.442695
  %v3490 = vpow.pop %v3489
  %v3491 = vadd.f32 %v3490, 1.0
  %v3492 = vrcp.pop %v3491
  %v3493 = vmul.f32 1.0, %v3492
  %v3494 = vmul.f32 %v3486, %v3330
  %v3495 = vmul.f32 %v3480, %v3487
  %v3496 = vadd.f32 %v3494, %v3495
  %v3497 = vtanh.pop %v3496
  %v3498 = vmul.f32 %v3493, %v3497
  %3499 = vmatprep.subr.mxu0 %v1878
  %3500 = vmatpush1.msra.mxu0 %v1877
  %3501 = vmatprep.subr.mxu0 %v1882
  %3502 = vmatpush1.msra.mxu0 %v1881
  %3503 = vmatprep.subr.mxu0 %v1886
  %3504 = vmatpush1.msra.mxu0 %v1885
  %3505 = vmatprep.subr.mxu0 %v1890
  %3506 = vmatpush1.msra.mxu0 %v1889
  %3507 = vmatprep.subr.mxu0 %v1894
  %3508 = vmatpush1.msra.mxu0 %v1893
  %3509 = vmatprep.subr.mxu0 %v1898
  %3510 = vmatpush1.msra.mxu0 %v1897
  %3511 = vmatprep.subr.mxu0 %v1902
  %3512 = vmatpush1.msra.mxu0 %v1901
  %3513 = vmatprep.subr.mxu0 %v1906
  %3514 = vmatpush1.msra.mxu0 %v1905
  %3515 = vmatprep.subr.mxu0 %v1910
  %3516 = vmatpush1.msra.mxu0 %v1909
  %3517 = vmatprep.subr.mxu0 %v1914
  %3518 = vmatpush1.msra.mxu0 %v1913
  %3519 = vmatprep.subr.mxu0 %v1918
  %3520 = vmatpush1.msra.mxu0 %v1917
  %3521 = vmatprep.subr.mxu0 %v1922
  %3522 = vmatpush1.msra.mxu0 %v1921
  %3523 = vmatprep.subr.mxu0 %v1926
  %3524 = vmatpush1.msra.mxu0 %v1925
  %3525 = vmatprep.subr.mxu0 %v1930
  %3526 = vmatpush1.msra.mxu0 %v1929
  %3527 = vmatprep.subr.mxu0 %v1934
  %3528 = vmatpush1.msra.mxu0 %v1933
  %3529 = vmatprep.subr.mxu0 %v1938
  %3530 = vmatpush1.msra.mxu0 %v1937
  %3531 = vmatprep.subr.mxu0 %v1942
  %3532 = vmatpush1.msra.mxu0 %v1941
  %3533 = vmatprep.subr.mxu0 %v1946
  %3534 = vmatpush1.msra.mxu0 %v1945
  %3535 = vmatprep.subr.mxu0 %v1950
  %3536 = vmatpush1.msra.mxu0 %v1949
  %3537 = vmatprep.subr.mxu0 %v1954
  %3538 = vmatpush1.msra.mxu0 %v1953
  %3539 = vmatprep.subr.mxu0 %v1958
  %3540 = vmatpush1.msra.mxu0 %v1957
  %3541 = vmatprep.subr.mxu0 %v1962
  %3542 = vmatpush1.msra.mxu0 %v1961
  %3543 = vmatprep.subr.mxu0 %v1966
  %3544 = vmatpush1.msra.mxu0 %v1965
  %3545 = vmatprep.subr.mxu0 %v1970
  %3546 = vmatpush1.msra.mxu0 %v1969
  %3547 = vmatprep.subr.mxu0 %v1974
  %3548 = vmatpush1.msra.mxu0 %v1973
  %3549 = vmatprep.subr.mxu0 %v1978
  %3550 = vmatpush1.msra.mxu0 %v1977
  %3551 = vmatprep.subr.mxu0 %v1982
  %3552 = vmatpush1.msra.mxu0 %v1981
  %3553 = vmatprep.subr.mxu0 %v1986
  %3554 = vmatpush1.msra.mxu0 %v1985
  %3555 = vmatprep.subr.mxu0 %v1990
  %3556 = vmatpush1.msra.mxu0 %v1989
  %3557 = vmatprep.subr.mxu0 %v1994
  %3558 = vmatpush1.msra.mxu0 %v1993
  %3559 = vmatprep.subr.mxu0 %v1998
  %3560 = vmatpush1.msra.mxu0 %v1997
  %3561 = vmatprep.subr.mxu0 %v2002
  %3562 = vmatpush1.msra.mxu0 %v2001
  %3563 = vmatprep.mubr.f32.mxu0 %v1854
  %3564 = vmatmul.mubr.f32.gmra.mrb[0].mxu0 %v3498
  %v3565 = vpop.f32.mrb[0].mxu0
  %v3566 = vadd.f32 %v1860, %v3565
  %v3567 = vpop.f32.mrb[0].mxu0
  %v3568 = vadd.f32 %v1864, %v3567
  %3569 = vdwg.mxu0
  %3570 = vmatprep.subr.mxu0 %v1880
  %3571 = vmatpush1.msra.mxu0 %v1879
  %3572 = vmatprep.subr.mxu0 %v1884
  %3573 = vmatpush1.msra.mxu0 %v1883
  %3574 = vmatprep.subr.mxu0 %v1888
  %3575 = vmatpush1.msra.mxu0 %v1887
  %3576 = vmatprep.subr.mxu0 %v1892
  %3577 = vmatpush1.msra.mxu0 %v1891
  %3578 = vmatprep.subr.mxu0 %v1896
  %3579 = vmatpush1.msra.mxu0 %v1895
  %3580 = vmatprep.subr.mxu0 %v1900
  %3581 = vmatpush1.msra.mxu0 %v1899
  %3582 = vmatprep.subr.mxu0 %v1904
  %3583 = vmatpush1.msra.mxu0 %v1903
  %3584 = vmatprep.subr.mxu0 %v1908
  %3585 = vmatpush1.msra.mxu0 %v1907
  %3586 = vmatprep.subr.mxu0 %v1912
  %3587 = vmatpush1.msra.mxu0 %v1911
  %3588 = vmatprep.subr.mxu0 %v1916
  %3589 = vmatpush1.msra.mxu0 %v1915
  %3590 = vmatprep.subr.mxu0 %v1920
  %3591 = vmatpush1.msra.mxu0 %v1919
  %3592 = vmatprep.subr.mxu0 %v1924
  %3593 = vmatpush1.msra.mxu0 %v1923
  %3594 = vmatprep.subr.mxu0 %v1928
  %3595 = vmatpush1.msra.mxu0 %v1927
  %3596 = vmatprep.subr.mxu0 %v1932
  %3597 = vmatpush1.msra.mxu0 %v1931
  %3598 = vmatprep.subr.mxu0 %v1936
  %3599 = vmatpush1.msra.mxu0 %v1935
  %3600 = vmatprep.subr.mxu0 %v1940
  %3601 = vmatpush1.msra.mxu0 %v1939
  %3602 = vmatprep.subr.mxu0 %v1944
  %3603 = vmatpush1.msra.mxu0 %v1943
  %3604 = vmatprep.subr.mxu0 %v1948
  %3605 = vmatpush1.msra.mxu0 %v1947
  %3606 = vmatprep.subr.mxu0 %v1952
  %3607 = vmatpush1.msra.mxu0 %v1951
  %3608 = vmatprep.subr.mxu0 %v1956
  %3609 = vmatpush1.msra.mxu0 %v1955
  %3610 = vmatprep.subr.mxu0 %v1960
  %3611 = vmatpush1.msra.mxu0 %v1959
  %3612 = vmatprep.subr.mxu0 %v1964
  %3613 = vmatpush1.msra.mxu0 %v1963
  %3614 = vmatprep.subr.mxu0 %v1968
  %3615 = vmatpush1.msra.mxu0 %v1967
  %3616 = vmatprep.subr.mxu0 %v1972
  %3617 = vmatpush1.msra.mxu0 %v1971
  %3618 = vmatprep.subr.mxu0 %v1976
  %3619 = vmatpush1.msra.mxu0 %v1975
  %3620 = vmatprep.subr.mxu0 %v1980
  %3621 = vmatpush1.msra.mxu0 %v1979
  %3622 = vmatprep.subr.mxu0 %v1984
  %3623 = vmatpush1.msra.mxu0 %v1983
  %3624 = vmatprep.subr.mxu0 %v1988
  %3625 = vmatpush1.msra.mxu0 %v1987
  %3626 = vmatprep.subr.mxu0 %v1992
  %3627 = vmatpush1.msra.mxu0 %v1991
  %3628 = vmatprep.subr.mxu0 %v1996
  %3629 = vmatpush1.msra.mxu0 %v1995
  %3630 = vmatprep.subr.mxu0 %v2000
  %3631 = vmatpush1.msra.mxu0 %v1999
  %3632 = vmatprep.subr.mxu0 %v2004
  %3633 = vmatpush1.msra.mxu0 %v2003
  %3634 = vmatprep.mubr.f32.mxu0 %v1854
  %3635 = vmatmul.mubr.f32.gmra.mrb[0].mxu0 %v3498
  %v3636 = vpop.f32.mrb[0].mxu0
  %v3637 = vadd.f32 %v1868, %v3636
  %v3638 = vpop.f32.mrb[0].mxu0
  %v3639 = vadd.f32 %v1872, %v3638
  %3640 = vdwg.mxu0
  %v3641 = vxor.u32 %v3566, 2147483648
  %v3642 = vmul.f32 %v3641, 1.442695
  %v3643 = vpow.pop %v3642
  %v3644 = vadd.f32 %v3643, 1.0
  %v3645 = vrcp.pop %v3644
  %v3646 = vmul.f32 1.0, %v3645
  %v3647 = vxor.u32 %v3568, 2147483648
  %v3648 = vmul.f32 %v3647, 1.442695
  %v3649 = vpow.pop %v3648
  %v3650 = vadd.f32 %v3649, 1.0
  %v3651 = vrcp.pop %v3650
  %v3652 = vmul.f32 1.0, %v3651
  %v3653 = vtanh.pop %v3637
  %v3654 = vxor.u32 %v3639, 2147483648
  %v3655 = vmul.f32 %v3654, 1.442695
  %v3656 = vpow.pop %v3655
  %v3657 = vadd.f32 %v3656, 1.0
  %v3658 = vrcp.pop %v3657
  %v3659 = vmul.f32 1.0, %v3658
  %v3660 = vmul.f32 %v3652, %v3496
  %v3661 = vmul.f32 %v3646, %v3653
  %v3662 = vadd.f32 %v3660, %v3661
  %v3663 = vtanh.pop %v3662
  %v3664 = vmul.f32 %v3659, %v3663
  %v3666 = vrot.slane %v2336, 6
  %v3669 = vrot.slane %v2502, 4
  %v3672 = vrot.slane %v2668, 2
  %v3675 = vrot.slane %v3000, 6
  %v3678 = vrot.slane %v3166, 4
  %v3681 = vrot.slane %v3332, 2
  %v3684 = vrot.slane %v3664, 6
  %vm3686 = vcmask 1041408
  %v3687 = vsel %vm3686, %v2170, %v3666
  %vm3688 = vcmask 1043456
  %v3689 = vsel %vm3688, %v3687, %v3669
  %vm3690 = vcmask 1045504
  %v3691 = vsel %vm3690, %v3689, %v3672
  %v3692 = vsel %vm3686, %v2834, %v3675
  %v3693 = vsel %vm3688, %v3692, %v3678
  %v3694 = vsel %vm3690, %v3693, %v3681
  %v3695 = vsel %vm3686, %v3498, %v3684
  %3696 = vst [vmem:[%s12] sm:$0xff] %v3691
  %3697 = vst [vmem:[%s12 + $0x8] sm:$0xff] %v3694
  %3698 = vst [vmem:[%s12 + $0x10] sm:$0xf] %v3695
  %v3699 = vld [vmem:[%s7] sm:$0xf]
  %v3701 = vlaneseq
  %v3702 = vshrl.u32 %v3701, 7
  %v3703 = vsub.s32 0, %v3702
  %v3704 = vrot.slane %v3699, %v3703
  %v3705 = vlaneseq
  %v3706 = vshrl.u32 %v3705, 7
  %v3707 = vsub.s32 1, %v3706
  %v3708 = vrot.slane %v3699, %v3707
  %v3709 = vlaneseq
  %v3710 = vshrl.u32 %v3709, 7
  %v3711 = vsub.s32 2, %v3710
  %v3712 = vrot.slane %v3699, %v3711
  %v3713 = vlaneseq
  %v3714 = vshrl.u32 %v3713, 7
  %v3715 = vsub.s32 3, %v3714
  %v3716 = vrot.slane %v3699, %v3715
  %v3721 = vld [vmem:[%s6] sm:$0xff]
  %v3722 = vld [vmem:[%s6 + $0x8] sm:$0xff]
  %v3723 = vld [vmem:[%s6 + $0x10] sm:$0xff]
  %v3724 = vld [vmem:[%s6 + $0x18] sm:$0xff]
  %v3725 = vld [vmem:[%s6 + $0x20] sm:$0xff]
  %v3726 = vld [vmem:[%s6 + $0x28] sm:$0xff]
  %v3727 = vld [vmem:[%s6 + $0x30] sm:$0xff]
  %v3728 = vld [vmem:[%s6 + $0x38] sm:$0xff]
  %v3729 = vld [vmem:[%s6 + $0x40] sm:$0xff]
  %v3730 = vld [vmem:[%s6 + $0x48] sm:$0xff]
  %v3731 = vld [vmem:[%s6 + $0x50] sm:$0xff]
  %v3732 = vld [vmem:[%s6 + $0x58] sm:$0xff]
  %v3733 = vld [vmem:[%s6 + $0x60] sm:$0xff]
  %v3734 = vld [vmem:[%s6 + $0x68] sm:$0xff]
  %v3735 = vld [vmem:[%s6 + $0x70] sm:$0xff]
  %v3736 = vld [vmem:[%s6 + $0x78] sm:$0xff]
  %v3737 = vld [vmem:[%s6 + $0x80] sm:$0xff]
  %v3738 = vld [vmem:[%s6 + $0x88] sm:$0xff]
  %v3739 = vld [vmem:[%s6 + $0x90] sm:$0xff]
  %v3740 = vld [vmem:[%s6 + $0x98] sm:$0xff]
  %v3741 = vld [vmem:[%s6 + $0xa0] sm:$0xff]
  %v3742 = vld [vmem:[%s6 + $0xa8] sm:$0xff]
  %v3743 = vld [vmem:[%s6 + $0xb0] sm:$0xff]
  %v3744 = vld [vmem:[%s6 + $0xb8] sm:$0xff]
  %v3745 = vld [vmem:[%s6 + $0xc0] sm:$0xff]
  %v3746 = vld [vmem:[%s6 + $0xc8] sm:$0xff]
  %v3747 = vld [vmem:[%s6 + $0xd0] sm:$0xff]
  %v3748 = vld [vmem:[%s6 + $0xd8] sm:$0xff]
  %v3749 = vld [vmem:[%s6 + $0xe0] sm:$0xff]
  %v3750 = vld [vmem:[%s6 + $0xe8] sm:$0xff]
  %v3751 = vld [vmem:[%s6 + $0xf0] sm:$0xff]
  %v3752 = vld [vmem:[%s6 + $0xf8] sm:$0xff]
  %v3753 = vld [vmem:[%s6 + $0x100] sm:$0xff]
  %v3754 = vld [vmem:[%s6 + $0x108] sm:$0xff]
  %v3755 = vld [vmem:[%s6 + $0x110] sm:$0xff]
  %v3756 = vld [vmem:[%s6 + $0x118] sm:$0xff]
  %v3757 = vld [vmem:[%s6 + $0x120] sm:$0xff]
  %v3758 = vld [vmem:[%s6 + $0x128] sm:$0xff]
  %v3759 = vld [vmem:[%s6 + $0x130] sm:$0xff]
  %v3760 = vld [vmem:[%s6 + $0x138] sm:$0xff]
  %v3761 = vld [vmem:[%s6 + $0x140] sm:$0xff]
  %v3762 = vld [vmem:[%s6 + $0x148] sm:$0xff]
  %v3763 = vld [vmem:[%s6 + $0x150] sm:$0xff]
  %v3764 = vld [vmem:[%s6 + $0x158] sm:$0xff]
  %v3765 = vld [vmem:[%s6 + $0x160] sm:$0xff]
  %v3766 = vld [vmem:[%s6 + $0x168] sm:$0xff]
  %v3767 = vld [vmem:[%s6 + $0x170] sm:$0xff]
  %v3768 = vld [vmem:[%s6 + $0x178] sm:$0xff]
  %v3769 = vld [vmem:[%s6 + $0x180] sm:$0xff]
  %v3770 = vld [vmem:[%s6 + $0x188] sm:$0xff]
  %v3771 = vld [vmem:[%s6 + $0x190] sm:$0xff]
  %v3772 = vld [vmem:[%s6 + $0x198] sm:$0xff]
  %v3773 = vld [vmem:[%s6 + $0x1a0] sm:$0xff]
  %v3774 = vld [vmem:[%s6 + $0x1a8] sm:$0xff]
  %v3775 = vld [vmem:[%s6 + $0x1b0] sm:$0xff]
  %v3776 = vld [vmem:[%s6 + $0x1b8] sm:$0xff]
  %v3777 = vld [vmem:[%s6 + $0x1c0] sm:$0xff]
  %v3778 = vld [vmem:[%s6 + $0x1c8] sm:$0xff]
  %v3779 = vld [vmem:[%s6 + $0x1d0] sm:$0xff]
  %v3780 = vld [vmem:[%s6 + $0x1d8] sm:$0xff]
  %v3781 = vld [vmem:[%s6 + $0x1e0] sm:$0xff]
  %v3782 = vld [vmem:[%s6 + $0x1e8] sm:$0xff]
  %v3783 = vld [vmem:[%s6 + $0x1f0] sm:$0xff]
  %v3784 = vld [vmem:[%s6 + $0x1f8] sm:$0xff]
  %v3785 = vld [vmem:[%s6 + $0x200] sm:$0x7]
  %v3786 = vld [vmem:[%s6 + $0x208] sm:$0x7]
  %v3787 = vld [vmem:[%s6 + $0x210] sm:$0x7]
  %v3788 = vld [vmem:[%s6 + $0x218] sm:$0x7]
  %v3790 = vsel %vm151, %v53, 0
  %v3793 = vsel %vm155, %v3785, 0
  %v3796 = vsel %vm155, %v3786, 0
  %v3799 = vsel %vm155, %v3787, 0
  %v3802 = vsel %vm155, %v3788, 0
  %3804 = vmatprep.subr.mxu0 %v3722
  %3805 = vmatpush1.msra.mxu0 %v3721
  %3806 = vmatprep.subr.mxu0 %v3726
  %3807 = vmatpush1.msra.mxu0 %v3725
  %3808 = vmatprep.subr.mxu0 %v3730
  %3809 = vmatpush1.msra.mxu0 %v3729
  %3810 = vmatprep.subr.mxu0 %v3734
  %3811 = vmatpush1.msra.mxu0 %v3733
  %3812 = vmatprep.subr.mxu0 %v3738
  %3813 = vmatpush1.msra.mxu0 %v3737
  %3814 = vmatprep.subr.mxu0 %v3742
  %3815 = vmatpush1.msra.mxu0 %v3741
  %3816 = vmatprep.subr.mxu0 %v3746
  %3817 = vmatpush1.msra.mxu0 %v3745
  %3818 = vmatprep.subr.mxu0 %v3750
  %3819 = vmatpush1.msra.mxu0 %v3749
  %3820 = vmatprep.subr.mxu0 %v3754
  %3821 = vmatpush1.msra.mxu0 %v3753
  %3822 = vmatprep.subr.mxu0 %v3758
  %3823 = vmatpush1.msra.mxu0 %v3757
  %3824 = vmatprep.subr.mxu0 %v3762
  %3825 = vmatpush1.msra.mxu0 %v3761
  %3826 = vmatprep.subr.mxu0 %v3766
  %3827 = vmatpush1.msra.mxu0 %v3765
  %3828 = vmatprep.subr.mxu0 %v3770
  %3829 = vmatpush1.msra.mxu0 %v3769
  %3830 = vmatprep.subr.mxu0 %v3774
  %3831 = vmatpush1.msra.mxu0 %v3773
  %3832 = vmatprep.subr.mxu0 %v3778
  %3833 = vmatpush1.msra.mxu0 %v3777
  %3834 = vmatprep.subr.mxu0 %v3782
  %3835 = vmatpush1.msra.mxu0 %v3781
  %3836 = vmatprep.subr.mxu0 %v3796
  %3837 = vmatpush1.msra.mxu0 %v3793
  %3838 = vmatprep.subr.mxu0 0.0
  %3839 = vmatpush1.msra.mxu0 0.0
  %3840 = vmatprep.subr.mxu0 0.0
  %3841 = vmatpush1.msra.mxu0 0.0
  %3842 = vmatprep.subr.mxu0 0.0
  %3843 = vmatpush1.msra.mxu0 0.0
  %3844 = vmatprep.subr.mxu0 0.0
  %3845 = vmatpush1.msra.mxu0 0.0
  %3846 = vmatprep.subr.mxu0 0.0
  %3847 = vmatpush1.msra.mxu0 0.0
  %3848 = vmatprep.subr.mxu0 0.0
  %3849 = vmatpush1.msra.mxu0 0.0
  %3850 = vmatprep.subr.mxu0 0.0
  %3851 = vmatpush1.msra.mxu0 0.0
  %3852 = vmatprep.subr.mxu0 0.0
  %3853 = vmatpush1.msra.mxu0 0.0
  %3854 = vmatprep.subr.mxu0 0.0
  %3855 = vmatpush1.msra.mxu0 0.0
  %3856 = vmatprep.subr.mxu0 0.0
  %3857 = vmatpush1.msra.mxu0 0.0
  %3858 = vmatprep.subr.mxu0 0.0
  %3859 = vmatpush1.msra.mxu0 0.0
  %3860 = vmatprep.subr.mxu0 0.0
  %3861 = vmatpush1.msra.mxu0 0.0
  %3862 = vmatprep.subr.mxu0 0.0
  %3863 = vmatpush1.msra.mxu0 0.0
  %3864 = vmatprep.subr.mxu0 0.0
  %3865 = vmatpush1.msra.mxu0 0.0
  %3866 = vmatprep.subr.mxu0 0.0
  %3867 = vmatpush1.msra.mxu0 0.0
  %3868 = vmatprep.mubr.f32.mxu0 %v3790
  %3869 = vmatmul.mubr.f32.gmra.mrb[0].mxu0 0.0
  %v3870 = vpop.f32.mrb[0].mxu0
  %v3871 = vadd.f32 %v3704, %v3870
  %v3872 = vpop.f32.mrb[0].mxu0
  %v3873 = vadd.f32 %v3708, %v3872
  %3874 = vdwg.mxu0
  %3875 = vmatprep.subr.mxu0 %v3724
  %3876 = vmatpush1.msra.mxu0 %v3723
  %3877 = vmatprep.subr.mxu0 %v3728
  %3878 = vmatpush1.msra.mxu0 %v3727
  %3879 = vmatprep.subr.mxu0 %v3732
  %3880 = vmatpush1.msra.mxu0 %v3731
  %3881 = vmatprep.subr.mxu0 %v3736
  %3882 = vmatpush1.msra.mxu0 %v3735
  %3883 = vmatprep.subr.mxu0 %v3740
  %3884 = vmatpush1.msra.mxu0 %v3739
  %3885 = vmatprep.subr.mxu0 %v3744
  %3886 = vmatpush1.msra.mxu0 %v3743
  %3887 = vmatprep.subr.mxu0 %v3748
  %3888 = vmatpush1.msra.mxu0 %v3747
  %3889 = vmatprep.subr.mxu0 %v3752
  %3890 = vmatpush1.msra.mxu0 %v3751
  %3891 = vmatprep.subr.mxu0 %v3756
  %3892 = vmatpush1.msra.mxu0 %v3755
  %3893 = vmatprep.subr.mxu0 %v3760
  %3894 = vmatpush1.msra.mxu0 %v3759
  %3895 = vmatprep.subr.mxu0 %v3764
  %3896 = vmatpush1.msra.mxu0 %v3763
  %3897 = vmatprep.subr.mxu0 %v3768
  %3898 = vmatpush1.msra.mxu0 %v3767
  %3899 = vmatprep.subr.mxu0 %v3772
  %3900 = vmatpush1.msra.mxu0 %v3771
  %3901 = vmatprep.subr.mxu0 %v3776
  %3902 = vmatpush1.msra.mxu0 %v3775
  %3903 = vmatprep.subr.mxu0 %v3780
  %3904 = vmatpush1.msra.mxu0 %v3779
  %3905 = vmatprep.subr.mxu0 %v3784
  %3906 = vmatpush1.msra.mxu0 %v3783
  %3907 = vmatprep.subr.mxu0 %v3802
  %3908 = vmatpush1.msra.mxu0 %v3799
  %3909 = vmatprep.subr.mxu0 0.0
  %3910 = vmatpush1.msra.mxu0 0.0
  %3911 = vmatprep.subr.mxu0 0.0
  %3912 = vmatpush1.msra.mxu0 0.0
  %3913 = vmatprep.subr.mxu0 0.0
  %3914 = vmatpush1.msra.mxu0 0.0
  %3915 = vmatprep.subr.mxu0 0.0
  %3916 = vmatpush1.msra.mxu0 0.0
  %3917 = vmatprep.subr.mxu0 0.0
  %3918 = vmatpush1.msra.mxu0 0.0
  %3919 = vmatprep.subr.mxu0 0.0
  %3920 = vmatpush1.msra.mxu0 0.0
  %3921 = vmatprep.subr.mxu0 0.0
  %3922 = vmatpush1.msra.mxu0 0.0
  %3923 = vmatprep.subr.mxu0 0.0
  %3924 = vmatpush1.msra.mxu0 0.0
  %3925 = vmatprep.subr.mxu0 0.0
  %3926 = vmatpush1.msra.mxu0 0.0
  %3927 = vmatprep.subr.mxu0 0.0
  %3928 = vmatpush1.msra.mxu0 0.0
  %3929 = vmatprep.subr.mxu0 0.0
  %3930 = vmatpush1.msra.mxu0 0.0
  %3931 = vmatprep.subr.mxu0 0.0
  %3932 = vmatpush1.msra.mxu0 0.0
  %3933 = vmatprep.subr.mxu0 0.0
  %3934 = vmatpush1.msra.mxu0 0.0
  %3935 = vmatprep.subr.mxu0 0.0
  %3936 = vmatpush1.msra.mxu0 0.0
  %3937 = vmatprep.subr.mxu0 0.0
  %3938 = vmatpush1.msra.mxu0 0.0
  %3939 = vmatprep.mubr.f32.mxu0 %v3790
  %3940 = vmatmul.mubr.f32.gmra.mrb[0].mxu0 0.0
  %v3941 = vpop.f32.mrb[0].mxu0
  %v3942 = vadd.f32 %v3712, %v3941
  %v3943 = vpop.f32.mrb[0].mxu0
  %v3944 = vadd.f32 %v3716, %v3943
  %3945 = vdwg.mxu0
  %v3946 = vxor.u32 %v3871, 2147483648
  %v3947 = vmul.f32 %v3946, 1.442695
  %v3948 = vpow.pop %v3947
  %v3949 = vadd.f32 %v3948, 1.0
  %v3950 = vrcp.pop %v3949
  %v3951 = vmul.f32 1.0, %v3950
  %v3952 = vxor.u32 %v3873, 2147483648
  %v3953 = vmul.f32 %v3952, 1.442695
  %v3954 = vpow.pop %v3953
  %v3955 = vadd.f32 %v3954, 1.0
  %v3956 = vrcp.pop %v3955
  %v3957 = vmul.f32 1.0, %v3956
  %v3958 = vtanh.pop %v3942
  %v3959 = vxor.u32 %v3944, 2147483648
  %v3960 = vmul.f32 %v3959, 1.442695
  %v3961 = vpow.pop %v3960
  %v3962 = vadd.f32 %v3961, 1.0
  %v3963 = vrcp.pop %v3962
  %v3964 = vmul.f32 1.0, %v3963
  %v3965 = vmul.f32 %v3957, 0.0
  %v3966 = vmul.f32 %v3951, %v3958
  %v3967 = vadd.f32 %v3965, %v3966
  %v3968 = vtanh.pop %v3967
  %v3969 = vmul.f32 %v3964, %v3968
  %v3971 = vsel %vm151, %v54, 0
  %3973 = vmatprep.subr.mxu0 %v3722
  %3974 = vmatpush1.msra.mxu0 %v3721
  %3975 = vmatprep.subr.mxu0 %v3726
  %3976 = vmatpush1.msra.mxu0 %v3725
  %3977 = vmatprep.subr.mxu0 %v3730
  %3978 = vmatpush1.msra.mxu0 %v3729
  %3979 = vmatprep.subr.mxu0 %v3734
  %3980 = vmatpush1.msra.mxu0 %v3733
  %3981 = vmatprep.subr.mxu0 %v3738
  %3982 = vmatpush1.msra.mxu0 %v3737
  %3983 = vmatprep.subr.mxu0 %v3742
  %3984 = vmatpush1.msra.mxu0 %v3741
  %3985 = vmatprep.subr.mxu0 %v3746
  %3986 = vmatpush1.msra.mxu0 %v3745
  %3987 = vmatprep.subr.mxu0 %v3750
  %3988 = vmatpush1.msra.mxu0 %v3749
  %3989 = vmatprep.subr.mxu0 %v3754
  %3990 = vmatpush1.msra.mxu0 %v3753
  %3991 = vmatprep.subr.mxu0 %v3758
  %3992 = vmatpush1.msra.mxu0 %v3757
  %3993 = vmatprep.subr.mxu0 %v3762
  %3994 = vmatpush1.msra.mxu0 %v3761
  %3995 = vmatprep.subr.mxu0 %v3766
  %3996 = vmatpush1.msra.mxu0 %v3765
  %3997 = vmatprep.subr.mxu0 %v3770
  %3998 = vmatpush1.msra.mxu0 %v3769
  %3999 = vmatprep.subr.mxu0 %v3774
  %4000 = vmatpush1.msra.mxu0 %v3773
  %4001 = vmatprep.subr.mxu0 %v3778
  %4002 = vmatpush1.msra.mxu0 %v3777
  %4003 = vmatprep.subr.mxu0 %v3782
  %4004 = vmatpush1.msra.mxu0 %v3781
  %4005 = vmatprep.subr.mxu0 %v3796
  %4006 = vmatpush1.msra.mxu0 %v3793
  %4007 = vmatprep.subr.mxu0 0.0
  %4008 = vmatpush1.msra.mxu0 0.0
  %4009 = vmatprep.subr.mxu0 0.0
  %4010 = vmatpush1.msra.mxu0 0.0
  %4011 = vmatprep.subr.mxu0 0.0
  %4012 = vmatpush1.msra.mxu0 0.0
  %4013 = vmatprep.subr.mxu0 0.0
  %4014 = vmatpush1.msra.mxu0 0.0
  %4015 = vmatprep.subr.mxu0 0.0
  %4016 = vmatpush1.msra.mxu0 0.0
  %4017 = vmatprep.subr.mxu0 0.0
  %4018 = vmatpush1.msra.mxu0 0.0
  %4019 = vmatprep.subr.mxu0 0.0
  %4020 = vmatpush1.msra.mxu0 0.0
  %4021 = vmatprep.subr.mxu0 0.0
  %4022 = vmatpush1.msra.mxu0 0.0
  %4023 = vmatprep.subr.mxu0 0.0
  %4024 = vmatpush1.msra.mxu0 0.0
  %4025 = vmatprep.subr.mxu0 0.0
  %4026 = vmatpush1.msra.mxu0 0.0
  %4027 = vmatprep.subr.mxu0 0.0
  %4028 = vmatpush1.msra.mxu0 0.0
  %4029 = vmatprep.subr.mxu0 0.0
  %4030 = vmatpush1.msra.mxu0 0.0
  %4031 = vmatprep.subr.mxu0 0.0
  %4032 = vmatpush1.msra.mxu0 0.0
  %4033 = vmatprep.subr.mxu0 0.0
  %4034 = vmatpush1.msra.mxu0 0.0
  %4035 = vmatprep.subr.mxu0 0.0
  %4036 = vmatpush1.msra.mxu0 0.0
  %4037 = vmatprep.mubr.f32.mxu0 %v3971
  %4038 = vmatmul.mubr.f32.gmra.mrb[0].mxu0 %v3969
  %v4039 = vpop.f32.mrb[0].mxu0
  %v4040 = vadd.f32 %v3704, %v4039
  %v4041 = vpop.f32.mrb[0].mxu0
  %v4042 = vadd.f32 %v3708, %v4041
  %4043 = vdwg.mxu0
  %4044 = vmatprep.subr.mxu0 %v3724
  %4045 = vmatpush1.msra.mxu0 %v3723
  %4046 = vmatprep.subr.mxu0 %v3728
  %4047 = vmatpush1.msra.mxu0 %v3727
  %4048 = vmatprep.subr.mxu0 %v3732
  %4049 = vmatpush1.msra.mxu0 %v3731
  %4050 = vmatprep.subr.mxu0 %v3736
  %4051 = vmatpush1.msra.mxu0 %v3735
  %4052 = vmatprep.subr.mxu0 %v3740
  %4053 = vmatpush1.msra.mxu0 %v3739
  %4054 = vmatprep.subr.mxu0 %v3744
  %4055 = vmatpush1.msra.mxu0 %v3743
  %4056 = vmatprep.subr.mxu0 %v3748
  %4057 = vmatpush1.msra.mxu0 %v3747
  %4058 = vmatprep.subr.mxu0 %v3752
  %4059 = vmatpush1.msra.mxu0 %v3751
  %4060 = vmatprep.subr.mxu0 %v3756
  %4061 = vmatpush1.msra.mxu0 %v3755
  %4062 = vmatprep.subr.mxu0 %v3760
  %4063 = vmatpush1.msra.mxu0 %v3759
  %4064 = vmatprep.subr.mxu0 %v3764
  %4065 = vmatpush1.msra.mxu0 %v3763
  %4066 = vmatprep.subr.mxu0 %v3768
  %4067 = vmatpush1.msra.mxu0 %v3767
  %4068 = vmatprep.subr.mxu0 %v3772
  %4069 = vmatpush1.msra.mxu0 %v3771
  %4070 = vmatprep.subr.mxu0 %v3776
  %4071 = vmatpush1.msra.mxu0 %v3775
  %4072 = vmatprep.subr.mxu0 %v3780
  %4073 = vmatpush1.msra.mxu0 %v3779
  %4074 = vmatprep.subr.mxu0 %v3784
  %4075 = vmatpush1.msra.mxu0 %v3783
  %4076 = vmatprep.subr.mxu0 %v3802
  %4077 = vmatpush1.msra.mxu0 %v3799
  %4078 = vmatprep.subr.mxu0 0.0
  %4079 = vmatpush1.msra.mxu0 0.0
  %4080 = vmatprep.subr.mxu0 0.0
  %4081 = vmatpush1.msra.mxu0 0.0
  %4082 = vmatprep.subr.mxu0 0.0
  %4083 = vmatpush1.msra.mxu0 0.0
  %4084 = vmatprep.subr.mxu0 0.0
  %4085 = vmatpush1.msra.mxu0 0.0
  %4086 = vmatprep.subr.mxu0 0.0
  %4087 = vmatpush1.msra.mxu0 0.0
  %4088 = vmatprep.subr.mxu0 0.0
  %4089 = vmatpush1.msra.mxu0 0.0
  %4090 = vmatprep.subr.mxu0 0.0
  %4091 = vmatpush1.msra.mxu0 0.0
  %4092 = vmatprep.subr.mxu0 0.0
  %4093 = vmatpush1.msra.mxu0 0.0
  %4094 = vmatprep.subr.mxu0 0.0
  %4095 = vmatpush1.msra.mxu0 0.0
  %4096 = vmatprep.subr.mxu0 0.0
  %4097 = vmatpush1.msra.mxu0 0.0
  %4098 = vmatprep.subr.mxu0 0.0
  %4099 = vmatpush1.msra.mxu0 0.0
  %4100 = vmatprep.subr.mxu0 0.0
  %4101 = vmatpush1.msra.mxu0 0.0
  %4102 = vmatprep.subr.mxu0 0.0
  %4103 = vmatpush1.msra.mxu0 0.0
  %4104 = vmatprep.subr.mxu0 0.0
  %4105 = vmatpush1.msra.mxu0 0.0
  %4106 = vmatprep.subr.mxu0 0.0
  %4107 = vmatpush1.msra.mxu0 0.0
  %4108 = vmatprep.mubr.f32.mxu0 %v3971
  %4109 = vmatmul.mubr.f32.gmra.mrb[0].mxu0 %v3969
  %v4110 = vpop.f32.mrb[0].mxu0
  %v4111 = vadd.f32 %v3712, %v4110
  %v4112 = vpop.f32.mrb[0].mxu0
  %v4113 = vadd.f32 %v3716, %v4112
  %4114 = vdwg.mxu0
  %v4115 = vxor.u32 %v4040, 2147483648
  %v4116 = vmul.f32 %v4115, 1.442695
  %v4117 = vpow.pop %v4116
  %v4118 = vadd.f32 %v4117, 1.0
  %v4119 = vrcp.pop %v4118
  %v4120 = vmul.f32 1.0, %v4119
  %v4121 = vxor.u32 %v4042, 2147483648
  %v4122 = vmul.f32 %v4121, 1.442695
  %v4123 = vpow.pop %v4122
  %v4124 = vadd.f32 %v4123, 1.0
  %v4125 = vrcp.pop %v4124
  %v4126 = vmul.f32 1.0, %v4125
  %v4127 = vtanh.pop %v4111
  %v4128 = vxor.u32 %v4113, 2147483648
  %v4129 = vmul.f32 %v4128, 1.442695
  %v4130 = vpow.pop %v4129
  %v4131 = vadd.f32 %v4130, 1.0
  %v4132 = vrcp.pop %v4131
  %v4133 = vmul.f32 1.0, %v4132
  %v4134 = vmul.f32 %v4126, %v3967
  %v4135 = vmul.f32 %v4120, %v4127
  %v4136 = vadd.f32 %v4134, %v4135
  %v4137 = vtanh.pop %v4136
  %v4138 = vmul.f32 %v4133, %v4137
  %v4140 = vsel %vm151, %v55, 0
  %4142 = vmatprep.subr.mxu0 %v3722
  %4143 = vmatpush1.msra.mxu0 %v3721
  %4144 = vmatprep.subr.mxu0 %v3726
  %4145 = vmatpush1.msra.mxu0 %v3725
  %4146 = vmatprep.subr.mxu0 %v3730
  %4147 = vmatpush1.msra.mxu0 %v3729
  %4148 = vmatprep.subr.mxu0 %v3734
  %4149 = vmatpush1.msra.mxu0 %v3733
  %4150 = vmatprep.subr.mxu0 %v3738
  %4151 = vmatpush1.msra.mxu0 %v3737
  %4152 = vmatprep.subr.mxu0 %v3742
  %4153 = vmatpush1.msra.mxu0 %v3741
  %4154 = vmatprep.subr.mxu0 %v3746
  %4155 = vmatpush1.msra.mxu0 %v3745
  %4156 = vmatprep.subr.mxu0 %v3750
  %4157 = vmatpush1.msra.mxu0 %v3749
  %4158 = vmatprep.subr.mxu0 %v3754
  %4159 = vmatpush1.msra.mxu0 %v3753
  %4160 = vmatprep.subr.mxu0 %v3758
  %4161 = vmatpush1.msra.mxu0 %v3757
  %4162 = vmatprep.subr.mxu0 %v3762
  %4163 = vmatpush1.msra.mxu0 %v3761
  %4164 = vmatprep.subr.mxu0 %v3766
  %4165 = vmatpush1.msra.mxu0 %v3765
  %4166 = vmatprep.subr.mxu0 %v3770
  %4167 = vmatpush1.msra.mxu0 %v3769
  %4168 = vmatprep.subr.mxu0 %v3774
  %4169 = vmatpush1.msra.mxu0 %v3773
  %4170 = vmatprep.subr.mxu0 %v3778
  %4171 = vmatpush1.msra.mxu0 %v3777
  %4172 = vmatprep.subr.mxu0 %v3782
  %4173 = vmatpush1.msra.mxu0 %v3781
  %4174 = vmatprep.subr.mxu0 %v3796
  %4175 = vmatpush1.msra.mxu0 %v3793
  %4176 = vmatprep.subr.mxu0 0.0
  %4177 = vmatpush1.msra.mxu0 0.0
  %4178 = vmatprep.subr.mxu0 0.0
  %4179 = vmatpush1.msra.mxu0 0.0
  %4180 = vmatprep.subr.mxu0 0.0
  %4181 = vmatpush1.msra.mxu0 0.0
  %4182 = vmatprep.subr.mxu0 0.0
  %4183 = vmatpush1.msra.mxu0 0.0
  %4184 = vmatprep.subr.mxu0 0.0
  %4185 = vmatpush1.msra.mxu0 0.0
  %4186 = vmatprep.subr.mxu0 0.0
  %4187 = vmatpush1.msra.mxu0 0.0
  %4188 = vmatprep.subr.mxu0 0.0
  %4189 = vmatpush1.msra.mxu0 0.0
  %4190 = vmatprep.subr.mxu0 0.0
  %4191 = vmatpush1.msra.mxu0 0.0
  %4192 = vmatprep.subr.mxu0 0.0
  %4193 = vmatpush1.msra.mxu0 0.0
  %4194 = vmatprep.subr.mxu0 0.0
  %4195 = vmatpush1.msra.mxu0 0.0
  %4196 = vmatprep.subr.mxu0 0.0
  %4197 = vmatpush1.msra.mxu0 0.0
  %4198 = vmatprep.subr.mxu0 0.0
  %4199 = vmatpush1.msra.mxu0 0.0
  %4200 = vmatprep.subr.mxu0 0.0
  %4201 = vmatpush1.msra.mxu0 0.0
  %4202 = vmatprep.subr.mxu0 0.0
  %4203 = vmatpush1.msra.mxu0 0.0
  %4204 = vmatprep.subr.mxu0 0.0
  %4205 = vmatpush1.msra.mxu0 0.0
  %4206 = vmatprep.mubr.f32.mxu0 %v4140
  %4207 = vmatmul.mubr.f32.gmra.mrb[0].mxu0 %v4138
  %v4208 = vpop.f32.mrb[0].mxu0
  %v4209 = vadd.f32 %v3704, %v4208
  %v4210 = vpop.f32.mrb[0].mxu0
  %v4211 = vadd.f32 %v3708, %v4210
  %4212 = vdwg.mxu0
  %4213 = vmatprep.subr.mxu0 %v3724
  %4214 = vmatpush1.msra.mxu0 %v3723
  %4215 = vmatprep.subr.mxu0 %v3728
  %4216 = vmatpush1.msra.mxu0 %v3727
  %4217 = vmatprep.subr.mxu0 %v3732
  %4218 = vmatpush1.msra.mxu0 %v3731
  %4219 = vmatprep.subr.mxu0 %v3736
  %4220 = vmatpush1.msra.mxu0 %v3735
  %4221 = vmatprep.subr.mxu0 %v3740
  %4222 = vmatpush1.msra.mxu0 %v3739
  %4223 = vmatprep.subr.mxu0 %v3744
  %4224 = vmatpush1.msra.mxu0 %v3743
  %4225 = vmatprep.subr.mxu0 %v3748
  %4226 = vmatpush1.msra.mxu0 %v3747
  %4227 = vmatprep.subr.mxu0 %v3752
  %4228 = vmatpush1.msra.mxu0 %v3751
  %4229 = vmatprep.subr.mxu0 %v3756
  %4230 = vmatpush1.msra.mxu0 %v3755
  %4231 = vmatprep.subr.mxu0 %v3760
  %4232 = vmatpush1.msra.mxu0 %v3759
  %4233 = vmatprep.subr.mxu0 %v3764
  %4234 = vmatpush1.msra.mxu0 %v3763
  %4235 = vmatprep.subr.mxu0 %v3768
  %4236 = vmatpush1.msra.mxu0 %v3767
  %4237 = vmatprep.subr.mxu0 %v3772
  %4238 = vmatpush1.msra.mxu0 %v3771
  %4239 = vmatprep.subr.mxu0 %v3776
  %4240 = vmatpush1.msra.mxu0 %v3775
  %4241 = vmatprep.subr.mxu0 %v3780
  %4242 = vmatpush1.msra.mxu0 %v3779
  %4243 = vmatprep.subr.mxu0 %v3784
  %4244 = vmatpush1.msra.mxu0 %v3783
  %4245 = vmatprep.subr.mxu0 %v3802
  %4246 = vmatpush1.msra.mxu0 %v3799
  %4247 = vmatprep.subr.mxu0 0.0
  %4248 = vmatpush1.msra.mxu0 0.0
  %4249 = vmatprep.subr.mxu0 0.0
  %4250 = vmatpush1.msra.mxu0 0.0
  %4251 = vmatprep.subr.mxu0 0.0
  %4252 = vmatpush1.msra.mxu0 0.0
  %4253 = vmatprep.subr.mxu0 0.0
  %4254 = vmatpush1.msra.mxu0 0.0
  %4255 = vmatprep.subr.mxu0 0.0
  %4256 = vmatpush1.msra.mxu0 0.0
  %4257 = vmatprep.subr.mxu0 0.0
  %4258 = vmatpush1.msra.mxu0 0.0
  %4259 = vmatprep.subr.mxu0 0.0
  %4260 = vmatpush1.msra.mxu0 0.0
  %4261 = vmatprep.subr.mxu0 0.0
  %4262 = vmatpush1.msra.mxu0 0.0
  %4263 = vmatprep.subr.mxu0 0.0
  %4264 = vmatpush1.msra.mxu0 0.0
  %4265 = vmatprep.subr.mxu0 0.0
  %4266 = vmatpush1.msra.mxu0 0.0
  %4267 = vmatprep.subr.mxu0 0.0
  %4268 = vmatpush1.msra.mxu0 0.0
  %4269 = vmatprep.subr.mxu0 0.0
  %4270 = vmatpush1.msra.mxu0 0.0
  %4271 = vmatprep.subr.mxu0 0.0
  %4272 = vmatpush1.msra.mxu0 0.0
  %4273 = vmatprep.subr.mxu0 0.0
  %4274 = vmatpush1.msra.mxu0 0.0
  %4275 = vmatprep.subr.mxu0 0.0
  %4276 = vmatpush1.msra.mxu0 0.0
  %4277 = vmatprep.mubr.f32.mxu0 %v4140
  %4278 = vmatmul.mubr.f32.gmra.mrb[0].mxu0 %v4138
  %v4279 = vpop.f32.mrb[0].mxu0
  %v4280 = vadd.f32 %v3712, %v4279
  %v4281 = vpop.f32.mrb[0].mxu0
  %v4282 = vadd.f32 %v3716, %v4281
  %4283 = vdwg.mxu0
  %v4284 = vxor.u32 %v4209, 2147483648
  %v4285 = vmul.f32 %v4284, 1.442695
  %v4286 = vpow.pop %v4285
  %v4287 = vadd.f32 %v4286, 1.0
  %v4288 = vrcp.pop %v4287
  %v4289 = vmul.f32 1.0, %v4288
  %v4290 = vxor.u32 %v4211, 2147483648
  %v4291 = vmul.f32 %v4290, 1.442695
  %v4292 = vpow.pop %v4291
  %v4293 = vadd.f32 %v4292, 1.0
  %v4294 = vrcp.pop %v4293
  %v4295 = vmul.f32 1.0, %v4294
  %v4296 = vtanh.pop %v4280
  %v4297 = vxor.u32 %v4282, 2147483648
  %v4298 = vmul.f32 %v4297, 1.442695
  %v4299 = vpow.pop %v4298
  %v4300 = vadd.f32 %v4299, 1.0
  %v4301 = vrcp.pop %v4300
  %v4302 = vmul.f32 1.0, %v4301
  %v4303 = vmul.f32 %v4295, %v4136
  %v4304 = vmul.f32 %v4289, %v4296
  %v4305 = vadd.f32 %v4303, %v4304
  %v4306 = vtanh.pop %v4305
  %v4307 = vmul.f32 %v4302, %v4306
  %v4309 = vsel %vm151, %v56, 0
  %4311 = vmatprep.subr.mxu0 %v3722
  %4312 = vmatpush1.msra.mxu0 %v3721
  %4313 = vmatprep.subr.mxu0 %v3726
  %4314 = vmatpush1.msra.mxu0 %v3725
  %4315 = vmatprep.subr.mxu0 %v3730
  %4316 = vmatpush1.msra.mxu0 %v3729
  %4317 = vmatprep.subr.mxu0 %v3734
  %4318 = vmatpush1.msra.mxu0 %v3733
  %4319 = vmatprep.subr.mxu0 %v3738
  %4320 = vmatpush1.msra.mxu0 %v3737
  %4321 = vmatprep.subr.mxu0 %v3742
  %4322 = vmatpush1.msra.mxu0 %v3741
  %4323 = vmatprep.subr.mxu0 %v3746
  %4324 = vmatpush1.msra.mxu0 %v3745
  %4325 = vmatprep.subr.mxu0 %v3750
  %4326 = vmatpush1.msra.mxu0 %v3749
  %4327 = vmatprep.subr.mxu0 %v3754
  %4328 = vmatpush1.msra.mxu0 %v3753
  %4329 = vmatprep.subr.mxu0 %v3758
  %4330 = vmatpush1.msra.mxu0 %v3757
  %4331 = vmatprep.subr.mxu0 %v3762
  %4332 = vmatpush1.msra.mxu0 %v3761
  %4333 = vmatprep.subr.mxu0 %v3766
  %4334 = vmatpush1.msra.mxu0 %v3765
  %4335 = vmatprep.subr.mxu0 %v3770
  %4336 = vmatpush1.msra.mxu0 %v3769
  %4337 = vmatprep.subr.mxu0 %v3774
  %4338 = vmatpush1.msra.mxu0 %v3773
  %4339 = vmatprep.subr.mxu0 %v3778
  %4340 = vmatpush1.msra.mxu0 %v3777
  %4341 = vmatprep.subr.mxu0 %v3782
  %4342 = vmatpush1.msra.mxu0 %v3781
  %4343 = vmatprep.subr.mxu0 %v3796
  %4344 = vmatpush1.msra.mxu0 %v3793
  %4345 = vmatprep.subr.mxu0 0.0
  %4346 = vmatpush1.msra.mxu0 0.0
  %4347 = vmatprep.subr.mxu0 0.0
  %4348 = vmatpush1.msra.mxu0 0.0
  %4349 = vmatprep.subr.mxu0 0.0
  %4350 = vmatpush1.msra.mxu0 0.0
  %4351 = vmatprep.subr.mxu0 0.0
  %4352 = vmatpush1.msra.mxu0 0.0
  %4353 = vmatprep.subr.mxu0 0.0
  %4354 = vmatpush1.msra.mxu0 0.0
  %4355 = vmatprep.subr.mxu0 0.0
  %4356 = vmatpush1.msra.mxu0 0.0
  %4357 = vmatprep.subr.mxu0 0.0
  %4358 = vmatpush1.msra.mxu0 0.0
  %4359 = vmatprep.subr.mxu0 0.0
  %4360 = vmatpush1.msra.mxu0 0.0
  %4361 = vmatprep.subr.mxu0 0.0
  %4362 = vmatpush1.msra.mxu0 0.0
  %4363 = vmatprep.subr.mxu0 0.0
  %4364 = vmatpush1.msra.mxu0 0.0
  %4365 = vmatprep.subr.mxu0 0.0
  %4366 = vmatpush1.msra.mxu0 0.0
  %4367 = vmatprep.subr.mxu0 0.0
  %4368 = vmatpush1.msra.mxu0 0.0
  %4369 = vmatprep.subr.mxu0 0.0
  %4370 = vmatpush1.msra.mxu0 0.0
  %4371 = vmatprep.subr.mxu0 0.0
  %4372 = vmatpush1.msra.mxu0 0.0
  %4373 = vmatprep.subr.mxu0 0.0
  %4374 = vmatpush1.msra.mxu0 0.0
  %4375 = vmatprep.mubr.f32.mxu0 %v4309
  %4376 = vmatmul.mubr.f32.gmra.mrb[0].mxu0 %v4307
  %v4377 = vpop.f32.mrb[0].mxu0
  %v4378 = vadd.f32 %v3704, %v4377
  %v4379 = vpop.f32.mrb[0].mxu0
  %v4380 = vadd.f32 %v3708, %v4379
  %4381 = vdwg.mxu0
  %4382 = vmatprep.subr.mxu0 %v3724
  %4383 = vmatpush1.msra.mxu0 %v3723
  %4384 = vmatprep.subr.mxu0 %v3728
  %4385 = vmatpush1.msra.mxu0 %v3727
  %4386 = vmatprep.subr.mxu0 %v3732
  %4387 = vmatpush1.msra.mxu0 %v3731
  %4388 = vmatprep.subr.mxu0 %v3736
  %4389 = vmatpush1.msra.mxu0 %v3735
  %4390 = vmatprep.subr.mxu0 %v3740
  %4391 = vmatpush1.msra.mxu0 %v3739
  %4392 = vmatprep.subr.mxu0 %v3744
  %4393 = vmatpush1.msra.mxu0 %v3743
  %4394 = vmatprep.subr.mxu0 %v3748
  %4395 = vmatpush1.msra.mxu0 %v3747
  %4396 = vmatprep.subr.mxu0 %v3752
  %4397 = vmatpush1.msra.mxu0 %v3751
  %4398 = vmatprep.subr.mxu0 %v3756
  %4399 = vmatpush1.msra.mxu0 %v3755
  %4400 = vmatprep.subr.mxu0 %v3760
  %4401 = vmatpush1.msra.mxu0 %v3759
  %4402 = vmatprep.subr.mxu0 %v3764
  %4403 = vmatpush1.msra.mxu0 %v3763
  %4404 = vmatprep.subr.mxu0 %v3768
  %4405 = vmatpush1.msra.mxu0 %v3767
  %4406 = vmatprep.subr.mxu0 %v3772
  %4407 = vmatpush1.msra.mxu0 %v3771
  %4408 = vmatprep.subr.mxu0 %v3776
  %4409 = vmatpush1.msra.mxu0 %v3775
  %4410 = vmatprep.subr.mxu0 %v3780
  %4411 = vmatpush1.msra.mxu0 %v3779
  %4412 = vmatprep.subr.mxu0 %v3784
  %4413 = vmatpush1.msra.mxu0 %v3783
  %4414 = vmatprep.subr.mxu0 %v3802
  %4415 = vmatpush1.msra.mxu0 %v3799
  %4416 = vmatprep.subr.mxu0 0.0
  %4417 = vmatpush1.msra.mxu0 0.0
  %4418 = vmatprep.subr.mxu0 0.0
  %4419 = vmatpush1.msra.mxu0 0.0
  %4420 = vmatprep.subr.mxu0 0.0
  %4421 = vmatpush1.msra.mxu0 0.0
  %4422 = vmatprep.subr.mxu0 0.0
  %4423 = vmatpush1.msra.mxu0 0.0
  %4424 = vmatprep.subr.mxu0 0.0
  %4425 = vmatpush1.msra.mxu0 0.0
  %4426 = vmatprep.subr.mxu0 0.0
  %4427 = vmatpush1.msra.mxu0 0.0
  %4428 = vmatprep.subr.mxu0 0.0
  %4429 = vmatpush1.msra.mxu0 0.0
  %4430 = vmatprep.subr.mxu0 0.0
  %4431 = vmatpush1.msra.mxu0 0.0
  %4432 = vmatprep.subr.mxu0 0.0
  %4433 = vmatpush1.msra.mxu0 0.0
  %4434 = vmatprep.subr.mxu0 0.0
  %4435 = vmatpush1.msra.mxu0 0.0
  %4436 = vmatprep.subr.mxu0 0.0
  %4437 = vmatpush1.msra.mxu0 0.0
  %4438 = vmatprep.subr.mxu0 0.0
  %4439 = vmatpush1.msra.mxu0 0.0
  %4440 = vmatprep.subr.mxu0 0.0
  %4441 = vmatpush1.msra.mxu0 0.0
  %4442 = vmatprep.subr.mxu0 0.0
  %4443 = vmatpush1.msra.mxu0 0.0
  %4444 = vmatprep.subr.mxu0 0.0
  %4445 = vmatpush1.msra.mxu0 0.0
  %4446 = vmatprep.mubr.f32.mxu0 %v4309
  %4447 = vmatmul.mubr.f32.gmra.mrb[0].mxu0 %v4307
  %v4448 = vpop.f32.mrb[0].mxu0
  %v4449 = vadd.f32 %v3712, %v4448
  %v4450 = vpop.f32.mrb[0].mxu0
  %v4451 = vadd.f32 %v3716, %v4450
  %4452 = vdwg.mxu0
  %v4453 = vxor.u32 %v4378, 2147483648
  %v4454 = vmul.f32 %v4453, 1.442695
  %v4455 = vpow.pop %v4454
  %v4456 = vadd.f32 %v4455, 1.0
  %v4457 = vrcp.pop %v4456
  %v4458 = vmul.f32 1.0, %v4457
  %v4459 = vxor.u32 %v4380, 2147483648
  %v4460 = vmul.f32 %v4459, 1.442695
  %v4461 = vpow.pop %v4460
  %v4462 = vadd.f32 %v4461, 1.0
  %v4463 = vrcp.pop %v4462
  %v4464 = vmul.f32 1.0, %v4463
  %v4465 = vtanh.pop %v4449
  %v4466 = vxor.u32 %v4451, 2147483648
  %v4467 = vmul.f32 %v4466, 1.442695
  %v4468 = vpow.pop %v4467
  %v4469 = vadd.f32 %v4468, 1.0
  %v4470 = vrcp.pop %v4469
  %v4471 = vmul.f32 1.0, %v4470
  %v4472 = vmul.f32 %v4464, %v4305
  %v4473 = vmul.f32 %v4458, %v4465
  %v4474 = vadd.f32 %v4472, %v4473
  %v4475 = vtanh.pop %v4474
  %v4476 = vmul.f32 %v4471, %v4475
  %v4478 = vsel %vm151, %v57, 0
  %4480 = vmatprep.subr.mxu0 %v3722
  %4481 = vmatpush1.msra.mxu0 %v3721
  %4482 = vmatprep.subr.mxu0 %v3726
  %4483 = vmatpush1.msra.mxu0 %v3725
  %4484 = vmatprep.subr.mxu0 %v3730
  %4485 = vmatpush1.msra.mxu0 %v3729
  %4486 = vmatprep.subr.mxu0 %v3734
  %4487 = vmatpush1.msra.mxu0 %v3733
  %4488 = vmatprep.subr.mxu0 %v3738
  %4489 = vmatpush1.msra.mxu0 %v3737
  %4490 = vmatprep.subr.mxu0 %v3742
  %4491 = vmatpush1.msra.mxu0 %v3741
  %4492 = vmatprep.subr.mxu0 %v3746
  %4493 = vmatpush1.msra.mxu0 %v3745
  %4494 = vmatprep.subr.mxu0 %v3750
  %4495 = vmatpush1.msra.mxu0 %v3749
  %4496 = vmatprep.subr.mxu0 %v3754
  %4497 = vmatpush1.msra.mxu0 %v3753
  %4498 = vmatprep.subr.mxu0 %v3758
  %4499 = vmatpush1.msra.mxu0 %v3757
  %4500 = vmatprep.subr.mxu0 %v3762
  %4501 = vmatpush1.msra.mxu0 %v3761
  %4502 = vmatprep.subr.mxu0 %v3766
  %4503 = vmatpush1.msra.mxu0 %v3765
  %4504 = vmatprep.subr.mxu0 %v3770
  %4505 = vmatpush1.msra.mxu0 %v3769
  %4506 = vmatprep.subr.mxu0 %v3774
  %4507 = vmatpush1.msra.mxu0 %v3773
  %4508 = vmatprep.subr.mxu0 %v3778
  %4509 = vmatpush1.msra.mxu0 %v3777
  %4510 = vmatprep.subr.mxu0 %v3782
  %4511 = vmatpush1.msra.mxu0 %v3781
  %4512 = vmatprep.subr.mxu0 %v3796
  %4513 = vmatpush1.msra.mxu0 %v3793
  %4514 = vmatprep.subr.mxu0 0.0
  %4515 = vmatpush1.msra.mxu0 0.0
  %4516 = vmatprep.subr.mxu0 0.0
  %4517 = vmatpush1.msra.mxu0 0.0
  %4518 = vmatprep.subr.mxu0 0.0
  %4519 = vmatpush1.msra.mxu0 0.0
  %4520 = vmatprep.subr.mxu0 0.0
  %4521 = vmatpush1.msra.mxu0 0.0
  %4522 = vmatprep.subr.mxu0 0.0
  %4523 = vmatpush1.msra.mxu0 0.0
  %4524 = vmatprep.subr.mxu0 0.0
  %4525 = vmatpush1.msra.mxu0 0.0
  %4526 = vmatprep.subr.mxu0 0.0
  %4527 = vmatpush1.msra.mxu0 0.0
  %4528 = vmatprep.subr.mxu0 0.0
  %4529 = vmatpush1.msra.mxu0 0.0
  %4530 = vmatprep.subr.mxu0 0.0
  %4531 = vmatpush1.msra.mxu0 0.0
  %4532 = vmatprep.subr.mxu0 0.0
  %4533 = vmatpush1.msra.mxu0 0.0
  %4534 = vmatprep.subr.mxu0 0.0
  %4535 = vmatpush1.msra.mxu0 0.0
  %4536 = vmatprep.subr.mxu0 0.0
  %4537 = vmatpush1.msra.mxu0 0.0
  %4538 = vmatprep.subr.mxu0 0.0
  %4539 = vmatpush1.msra.mxu0 0.0
  %4540 = vmatprep.subr.mxu0 0.0
  %4541 = vmatpush1.msra.mxu0 0.0
  %4542 = vmatprep.subr.mxu0 0.0
  %4543 = vmatpush1.msra.mxu0 0.0
  %4544 = vmatprep.mubr.f32.mxu0 %v4478
  %4545 = vmatmul.mubr.f32.gmra.mrb[0].mxu0 %v4476
  %v4546 = vpop.f32.mrb[0].mxu0
  %v4547 = vadd.f32 %v3704, %v4546
  %v4548 = vpop.f32.mrb[0].mxu0
  %v4549 = vadd.f32 %v3708, %v4548
  %4550 = vdwg.mxu0
  %4551 = vmatprep.subr.mxu0 %v3724
  %4552 = vmatpush1.msra.mxu0 %v3723
  %4553 = vmatprep.subr.mxu0 %v3728
  %4554 = vmatpush1.msra.mxu0 %v3727
  %4555 = vmatprep.subr.mxu0 %v3732
  %4556 = vmatpush1.msra.mxu0 %v3731
  %4557 = vmatprep.subr.mxu0 %v3736
  %4558 = vmatpush1.msra.mxu0 %v3735
  %4559 = vmatprep.subr.mxu0 %v3740
  %4560 = vmatpush1.msra.mxu0 %v3739
  %4561 = vmatprep.subr.mxu0 %v3744
  %4562 = vmatpush1.msra.mxu0 %v3743
  %4563 = vmatprep.subr.mxu0 %v3748
  %4564 = vmatpush1.msra.mxu0 %v3747
  %4565 = vmatprep.subr.mxu0 %v3752
  %4566 = vmatpush1.msra.mxu0 %v3751
  %4567 = vmatprep.subr.mxu0 %v3756
  %4568 = vmatpush1.msra.mxu0 %v3755
  %4569 = vmatprep.subr.mxu0 %v3760
  %4570 = vmatpush1.msra.mxu0 %v3759
  %4571 = vmatprep.subr.mxu0 %v3764
  %4572 = vmatpush1.msra.mxu0 %v3763
  %4573 = vmatprep.subr.mxu0 %v3768
  %4574 = vmatpush1.msra.mxu0 %v3767
  %4575 = vmatprep.subr.mxu0 %v3772
  %4576 = vmatpush1.msra.mxu0 %v3771
  %4577 = vmatprep.subr.mxu0 %v3776
  %4578 = vmatpush1.msra.mxu0 %v3775
  %4579 = vmatprep.subr.mxu0 %v3780
  %4580 = vmatpush1.msra.mxu0 %v3779
  %4581 = vmatprep.subr.mxu0 %v3784
  %4582 = vmatpush1.msra.mxu0 %v3783
  %4583 = vmatprep.subr.mxu0 %v3802
  %4584 = vmatpush1.msra.mxu0 %v3799
  %4585 = vmatprep.subr.mxu0 0.0
  %4586 = vmatpush1.msra.mxu0 0.0
  %4587 = vmatprep.subr.mxu0 0.0
  %4588 = vmatpush1.msra.mxu0 0.0
  %4589 = vmatprep.subr.mxu0 0.0
  %4590 = vmatpush1.msra.mxu0 0.0
  %4591 = vmatprep.subr.mxu0 0.0
  %4592 = vmatpush1.msra.mxu0 0.0
  %4593 = vmatprep.subr.mxu0 0.0
  %4594 = vmatpush1.msra.mxu0 0.0
  %4595 = vmatprep.subr.mxu0 0.0
  %4596 = vmatpush1.msra.mxu0 0.0
  %4597 = vmatprep.subr.mxu0 0.0
  %4598 = vmatpush1.msra.mxu0 0.0
  %4599 = vmatprep.subr.mxu0 0.0
  %4600 = vmatpush1.msra.mxu0 0.0
  %4601 = vmatprep.subr.mxu0 0.0
  %4602 = vmatpush1.msra.mxu0 0.0
  %4603 = vmatprep.subr.mxu0 0.0
  %4604 = vmatpush1.msra.mxu0 0.0
  %4605 = vmatprep.subr.mxu0 0.0
  %4606 = vmatpush1.msra.mxu0 0.0
  %4607 = vmatprep.subr.mxu0 0.0
  %4608 = vmatpush1.msra.mxu0 0.0
  %4609 = vmatprep.subr.mxu0 0.0
  %4610 = vmatpush1.msra.mxu0 0.0
  %4611 = vmatprep.subr.mxu0 0.0
  %4612 = vmatpush1.msra.mxu0 0.0
  %4613 = vmatprep.subr.mxu0 0.0
  %4614 = vmatpush1.msra.mxu0 0.0
  %4615 = vmatprep.mubr.f32.mxu0 %v4478
  %4616 = vmatmul.mubr.f32.gmra.mrb[0].mxu0 %v4476
  %v4617 = vpop.f32.mrb[0].mxu0
  %v4618 = vadd.f32 %v3712, %v4617
  %v4619 = vpop.f32.mrb[0].mxu0
  %v4620 = vadd.f32 %v3716, %v4619
  %4621 = vdwg.mxu0
  %v4622 = vxor.u32 %v4547, 2147483648
  %v4623 = vmul.f32 %v4622, 1.442695
  %v4624 = vpow.pop %v4623
  %v4625 = vadd.f32 %v4624, 1.0
  %v4626 = vrcp.pop %v4625
  %v4627 = vmul.f32 1.0, %v4626
  %v4628 = vxor.u32 %v4549, 2147483648
  %v4629 = vmul.f32 %v4628, 1.442695
  %v4630 = vpow.pop %v4629
  %v4631 = vadd.f32 %v4630, 1.0
  %v4632 = vrcp.pop %v4631
  %v4633 = vmul.f32 1.0, %v4632
  %v4634 = vtanh.pop %v4618
  %v4635 = vxor.u32 %v4620, 2147483648
  %v4636 = vmul.f32 %v4635, 1.442695
  %v4637 = vpow.pop %v4636
  %v4638 = vadd.f32 %v4637, 1.0
  %v4639 = vrcp.pop %v4638
  %v4640 = vmul.f32 1.0, %v4639
  %v4641 = vmul.f32 %v4633, %v4474
  %v4642 = vmul.f32 %v4627, %v4634
  %v4643 = vadd.f32 %v4641, %v4642
  %v4644 = vtanh.pop %v4643
  %v4645 = vmul.f32 %v4640, %v4644
  %v4647 = vsel %vm151, %v58, 0
  %4649 = vmatprep.subr.mxu0 %v3722
  %4650 = vmatpush1.msra.mxu0 %v3721
  %4651 = vmatprep.subr.mxu0 %v3726
  %4652 = vmatpush1.msra.mxu0 %v3725
  %4653 = vmatprep.subr.mxu0 %v3730
  %4654 = vmatpush1.msra.mxu0 %v3729
  %4655 = vmatprep.subr.mxu0 %v3734
  %4656 = vmatpush1.msra.mxu0 %v3733
  %4657 = vmatprep.subr.mxu0 %v3738
  %4658 = vmatpush1.msra.mxu0 %v3737
  %4659 = vmatprep.subr.mxu0 %v3742
  %4660 = vmatpush1.msra.mxu0 %v3741
  %4661 = vmatprep.subr.mxu0 %v3746
  %4662 = vmatpush1.msra.mxu0 %v3745
  %4663 = vmatprep.subr.mxu0 %v3750
  %4664 = vmatpush1.msra.mxu0 %v3749
  %4665 = vmatprep.subr.mxu0 %v3754
  %4666 = vmatpush1.msra.mxu0 %v3753
  %4667 = vmatprep.subr.mxu0 %v3758
  %4668 = vmatpush1.msra.mxu0 %v3757
  %4669 = vmatprep.subr.mxu0 %v3762
  %4670 = vmatpush1.msra.mxu0 %v3761
  %4671 = vmatprep.subr.mxu0 %v3766
  %4672 = vmatpush1.msra.mxu0 %v3765
  %4673 = vmatprep.subr.mxu0 %v3770
  %4674 = vmatpush1.msra.mxu0 %v3769
  %4675 = vmatprep.subr.mxu0 %v3774
  %4676 = vmatpush1.msra.mxu0 %v3773
  %4677 = vmatprep.subr.mxu0 %v3778
  %4678 = vmatpush1.msra.mxu0 %v3777
  %4679 = vmatprep.subr.mxu0 %v3782
  %4680 = vmatpush1.msra.mxu0 %v3781
  %4681 = vmatprep.subr.mxu0 %v3796
  %4682 = vmatpush1.msra.mxu0 %v3793
  %4683 = vmatprep.subr.mxu0 0.0
  %4684 = vmatpush1.msra.mxu0 0.0
  %4685 = vmatprep.subr.mxu0 0.0
  %4686 = vmatpush1.msra.mxu0 0.0
  %4687 = vmatprep.subr.mxu0 0.0
  %4688 = vmatpush1.msra.mxu0 0.0
  %4689 = vmatprep.subr.mxu0 0.0
  %4690 = vmatpush1.msra.mxu0 0.0
  %4691 = vmatprep.subr.mxu0 0.0
  %4692 = vmatpush1.msra.mxu0 0.0
  %4693 = vmatprep.subr.mxu0 0.0
  %4694 = vmatpush1.msra.mxu0 0.0
  %4695 = vmatprep.subr.mxu0 0.0
  %4696 = vmatpush1.msra.mxu0 0.0
  %4697 = vmatprep.subr.mxu0 0.0
  %4698 = vmatpush1.msra.mxu0 0.0
  %4699 = vmatprep.subr.mxu0 0.0
  %4700 = vmatpush1.msra.mxu0 0.0
  %4701 = vmatprep.subr.mxu0 0.0
  %4702 = vmatpush1.msra.mxu0 0.0
  %4703 = vmatprep.subr.mxu0 0.0
  %4704 = vmatpush1.msra.mxu0 0.0
  %4705 = vmatprep.subr.mxu0 0.0
  %4706 = vmatpush1.msra.mxu0 0.0
  %4707 = vmatprep.subr.mxu0 0.0
  %4708 = vmatpush1.msra.mxu0 0.0
  %4709 = vmatprep.subr.mxu0 0.0
  %4710 = vmatpush1.msra.mxu0 0.0
  %4711 = vmatprep.subr.mxu0 0.0
  %4712 = vmatpush1.msra.mxu0 0.0
  %4713 = vmatprep.mubr.f32.mxu0 %v4647
  %4714 = vmatmul.mubr.f32.gmra.mrb[0].mxu0 %v4645
  %v4715 = vpop.f32.mrb[0].mxu0
  %v4716 = vadd.f32 %v3704, %v4715
  %v4717 = vpop.f32.mrb[0].mxu0
  %v4718 = vadd.f32 %v3708, %v4717
  %4719 = vdwg.mxu0
  %4720 = vmatprep.subr.mxu0 %v3724
  %4721 = vmatpush1.msra.mxu0 %v3723
  %4722 = vmatprep.subr.mxu0 %v3728
  %4723 = vmatpush1.msra.mxu0 %v3727
  %4724 = vmatprep.subr.mxu0 %v3732
  %4725 = vmatpush1.msra.mxu0 %v3731
  %4726 = vmatprep.subr.mxu0 %v3736
  %4727 = vmatpush1.msra.mxu0 %v3735
  %4728 = vmatprep.subr.mxu0 %v3740
  %4729 = vmatpush1.msra.mxu0 %v3739
  %4730 = vmatprep.subr.mxu0 %v3744
  %4731 = vmatpush1.msra.mxu0 %v3743
  %4732 = vmatprep.subr.mxu0 %v3748
  %4733 = vmatpush1.msra.mxu0 %v3747
  %4734 = vmatprep.subr.mxu0 %v3752
  %4735 = vmatpush1.msra.mxu0 %v3751
  %4736 = vmatprep.subr.mxu0 %v3756
  %4737 = vmatpush1.msra.mxu0 %v3755
  %4738 = vmatprep.subr.mxu0 %v3760
  %4739 = vmatpush1.msra.mxu0 %v3759
  %4740 = vmatprep.subr.mxu0 %v3764
  %4741 = vmatpush1.msra.mxu0 %v3763
  %4742 = vmatprep.subr.mxu0 %v3768
  %4743 = vmatpush1.msra.mxu0 %v3767
  %4744 = vmatprep.subr.mxu0 %v3772
  %4745 = vmatpush1.msra.mxu0 %v3771
  %4746 = vmatprep.subr.mxu0 %v3776
  %4747 = vmatpush1.msra.mxu0 %v3775
  %4748 = vmatprep.subr.mxu0 %v3780
  %4749 = vmatpush1.msra.mxu0 %v3779
  %4750 = vmatprep.subr.mxu0 %v3784
  %4751 = vmatpush1.msra.mxu0 %v3783
  %4752 = vmatprep.subr.mxu0 %v3802
  %4753 = vmatpush1.msra.mxu0 %v3799
  %4754 = vmatprep.subr.mxu0 0.0
  %4755 = vmatpush1.msra.mxu0 0.0
  %4756 = vmatprep.subr.mxu0 0.0
  %4757 = vmatpush1.msra.mxu0 0.0
  %4758 = vmatprep.subr.mxu0 0.0
  %4759 = vmatpush1.msra.mxu0 0.0
  %4760 = vmatprep.subr.mxu0 0.0
  %4761 = vmatpush1.msra.mxu0 0.0
  %4762 = vmatprep.subr.mxu0 0.0
  %4763 = vmatpush1.msra.mxu0 0.0
  %4764 = vmatprep.subr.mxu0 0.0
  %4765 = vmatpush1.msra.mxu0 0.0
  %4766 = vmatprep.subr.mxu0 0.0
  %4767 = vmatpush1.msra.mxu0 0.0
  %4768 = vmatprep.subr.mxu0 0.0
  %4769 = vmatpush1.msra.mxu0 0.0
  %4770 = vmatprep.subr.mxu0 0.0
  %4771 = vmatpush1.msra.mxu0 0.0
  %4772 = vmatprep.subr.mxu0 0.0
  %4773 = vmatpush1.msra.mxu0 0.0
  %4774 = vmatprep.subr.mxu0 0.0
  %4775 = vmatpush1.msra.mxu0 0.0
  %4776 = vmatprep.subr.mxu0 0.0
  %4777 = vmatpush1.msra.mxu0 0.0
  %4778 = vmatprep.subr.mxu0 0.0
  %4779 = vmatpush1.msra.mxu0 0.0
  %4780 = vmatprep.subr.mxu0 0.0
  %4781 = vmatpush1.msra.mxu0 0.0
  %4782 = vmatprep.subr.mxu0 0.0
  %4783 = vmatpush1.msra.mxu0 0.0
  %4784 = vmatprep.mubr.f32.mxu0 %v4647
  %4785 = vmatmul.mubr.f32.gmra.mrb[0].mxu0 %v4645
  %v4786 = vpop.f32.mrb[0].mxu0
  %v4787 = vadd.f32 %v3712, %v4786
  %v4788 = vpop.f32.mrb[0].mxu0
  %v4789 = vadd.f32 %v3716, %v4788
  %4790 = vdwg.mxu0
  %v4791 = vxor.u32 %v4716, 2147483648
  %v4792 = vmul.f32 %v4791, 1.442695
  %v4793 = vpow.pop %v4792
  %v4794 = vadd.f32 %v4793, 1.0
  %v4795 = vrcp.pop %v4794
  %v4796 = vmul.f32 1.0, %v4795
  %v4797 = vxor.u32 %v4718, 2147483648
  %v4798 = vmul.f32 %v4797, 1.442695
  %v4799 = vpow.pop %v4798
  %v4800 = vadd.f32 %v4799, 1.0
  %v4801 = vrcp.pop %v4800
  %v4802 = vmul.f32 1.0, %v4801
  %v4803 = vtanh.pop %v4787
  %v4804 = vxor.u32 %v4789, 2147483648
  %v4805 = vmul.f32 %v4804, 1.442695
  %v4806 = vpow.pop %v4805
  %v4807 = vadd.f32 %v4806, 1.0
  %v4808 = vrcp.pop %v4807
  %v4809 = vmul.f32 1.0, %v4808
  %v4810 = vmul.f32 %v4802, %v4643
  %v4811 = vmul.f32 %v4796, %v4803
  %v4812 = vadd.f32 %v4810, %v4811
  %v4813 = vtanh.pop %v4812
  %v4814 = vmul.f32 %v4809, %v4813
  %v4816 = vsel %vm151, %v59, 0
  %4818 = vmatprep.subr.mxu0 %v3722
  %4819 = vmatpush1.msra.mxu0 %v3721
  %4820 = vmatprep.subr.mxu0 %v3726
  %4821 = vmatpush1.msra.mxu0 %v3725
  %4822 = vmatprep.subr.mxu0 %v3730
  %4823 = vmatpush1.msra.mxu0 %v3729
  %4824 = vmatprep.subr.mxu0 %v3734
  %4825 = vmatpush1.msra.mxu0 %v3733
  %4826 = vmatprep.subr.mxu0 %v3738
  %4827 = vmatpush1.msra.mxu0 %v3737
  %4828 = vmatprep.subr.mxu0 %v3742
  %4829 = vmatpush1.msra.mxu0 %v3741
  %4830 = vmatprep.subr.mxu0 %v3746
  %4831 = vmatpush1.msra.mxu0 %v3745
  %4832 = vmatprep.subr.mxu0 %v3750
  %4833 = vmatpush1.msra.mxu0 %v3749
  %4834 = vmatprep.subr.mxu0 %v3754
  %4835 = vmatpush1.msra.mxu0 %v3753
  %4836 = vmatprep.subr.mxu0 %v3758
  %4837 = vmatpush1.msra.mxu0 %v3757
  %4838 = vmatprep.subr.mxu0 %v3762
  %4839 = vmatpush1.msra.mxu0 %v3761
  %4840 = vmatprep.subr.mxu0 %v3766
  %4841 = vmatpush1.msra.mxu0 %v3765
  %4842 = vmatprep.subr.mxu0 %v3770
  %4843 = vmatpush1.msra.mxu0 %v3769
  %4844 = vmatprep.subr.mxu0 %v3774
  %4845 = vmatpush1.msra.mxu0 %v3773
  %4846 = vmatprep.subr.mxu0 %v3778
  %4847 = vmatpush1.msra.mxu0 %v3777
  %4848 = vmatprep.subr.mxu0 %v3782
  %4849 = vmatpush1.msra.mxu0 %v3781
  %4850 = vmatprep.subr.mxu0 %v3796
  %4851 = vmatpush1.msra.mxu0 %v3793
  %4852 = vmatprep.subr.mxu0 0.0
  %4853 = vmatpush1.msra.mxu0 0.0
  %4854 = vmatprep.subr.mxu0 0.0
  %4855 = vmatpush1.msra.mxu0 0.0
  %4856 = vmatprep.subr.mxu0 0.0
  %4857 = vmatpush1.msra.mxu0 0.0
  %4858 = vmatprep.subr.mxu0 0.0
  %4859 = vmatpush1.msra.mxu0 0.0
  %4860 = vmatprep.subr.mxu0 0.0
  %4861 = vmatpush1.msra.mxu0 0.0
  %4862 = vmatprep.subr.mxu0 0.0
  %4863 = vmatpush1.msra.mxu0 0.0
  %4864 = vmatprep.subr.mxu0 0.0
  %4865 = vmatpush1.msra.mxu0 0.0
  %4866 = vmatprep.subr.mxu0 0.0
  %4867 = vmatpush1.msra.mxu0 0.0
  %4868 = vmatprep.subr.mxu0 0.0
  %4869 = vmatpush1.msra.mxu0 0.0
  %4870 = vmatprep.subr.mxu0 0.0
  %4871 = vmatpush1.msra.mxu0 0.0
  %4872 = vmatprep.subr.mxu0 0.0
  %4873 = vmatpush1.msra.mxu0 0.0
  %4874 = vmatprep.subr.mxu0 0.0
  %4875 = vmatpush1.msra.mxu0 0.0
  %4876 = vmatprep.subr.mxu0 0.0
  %4877 = vmatpush1.msra.mxu0 0.0
  %4878 = vmatprep.subr.mxu0 0.0
  %4879 = vmatpush1.msra.mxu0 0.0
  %4880 = vmatprep.subr.mxu0 0.0
  %4881 = vmatpush1.msra.mxu0 0.0
  %4882 = vmatprep.mubr.f32.mxu0 %v4816
  %4883 = vmatmul.mubr.f32.gmra.mrb[0].mxu0 %v4814
  %v4884 = vpop.f32.mrb[0].mxu0
  %v4885 = vadd.f32 %v3704, %v4884
  %v4886 = vpop.f32.mrb[0].mxu0
  %v4887 = vadd.f32 %v3708, %v4886
  %4888 = vdwg.mxu0
  %4889 = vmatprep.subr.mxu0 %v3724
  %4890 = vmatpush1.msra.mxu0 %v3723
  %4891 = vmatprep.subr.mxu0 %v3728
  %4892 = vmatpush1.msra.mxu0 %v3727
  %4893 = vmatprep.subr.mxu0 %v3732
  %4894 = vmatpush1.msra.mxu0 %v3731
  %4895 = vmatprep.subr.mxu0 %v3736
  %4896 = vmatpush1.msra.mxu0 %v3735
  %4897 = vmatprep.subr.mxu0 %v3740
  %4898 = vmatpush1.msra.mxu0 %v3739
  %4899 = vmatprep.subr.mxu0 %v3744
  %4900 = vmatpush1.msra.mxu0 %v3743
  %4901 = vmatprep.subr.mxu0 %v3748
  %4902 = vmatpush1.msra.mxu0 %v3747
  %4903 = vmatprep.subr.mxu0 %v3752
  %4904 = vmatpush1.msra.mxu0 %v3751
  %4905 = vmatprep.subr.mxu0 %v3756
  %4906 = vmatpush1.msra.mxu0 %v3755
  %4907 = vmatprep.subr.mxu0 %v3760
  %4908 = vmatpush1.msra.mxu0 %v3759
  %4909 = vmatprep.subr.mxu0 %v3764
  %4910 = vmatpush1.msra.mxu0 %v3763
  %4911 = vmatprep.subr.mxu0 %v3768
  %4912 = vmatpush1.msra.mxu0 %v3767
  %4913 = vmatprep.subr.mxu0 %v3772
  %4914 = vmatpush1.msra.mxu0 %v3771
  %4915 = vmatprep.subr.mxu0 %v3776
  %4916 = vmatpush1.msra.mxu0 %v3775
  %4917 = vmatprep.subr.mxu0 %v3780
  %4918 = vmatpush1.msra.mxu0 %v3779
  %4919 = vmatprep.subr.mxu0 %v3784
  %4920 = vmatpush1.msra.mxu0 %v3783
  %4921 = vmatprep.subr.mxu0 %v3802
  %4922 = vmatpush1.msra.mxu0 %v3799
  %4923 = vmatprep.subr.mxu0 0.0
  %4924 = vmatpush1.msra.mxu0 0.0
  %4925 = vmatprep.subr.mxu0 0.0
  %4926 = vmatpush1.msra.mxu0 0.0
  %4927 = vmatprep.subr.mxu0 0.0
  %4928 = vmatpush1.msra.mxu0 0.0
  %4929 = vmatprep.subr.mxu0 0.0
  %4930 = vmatpush1.msra.mxu0 0.0
  %4931 = vmatprep.subr.mxu0 0.0
  %4932 = vmatpush1.msra.mxu0 0.0
  %4933 = vmatprep.subr.mxu0 0.0
  %4934 = vmatpush1.msra.mxu0 0.0
  %4935 = vmatprep.subr.mxu0 0.0
  %4936 = vmatpush1.msra.mxu0 0.0
  %4937 = vmatprep.subr.mxu0 0.0
  %4938 = vmatpush1.msra.mxu0 0.0
  %4939 = vmatprep.subr.mxu0 0.0
  %4940 = vmatpush1.msra.mxu0 0.0
  %4941 = vmatprep.subr.mxu0 0.0
  %4942 = vmatpush1.msra.mxu0 0.0
  %4943 = vmatprep.subr.mxu0 0.0
  %4944 = vmatpush1.msra.mxu0 0.0
  %4945 = vmatprep.subr.mxu0 0.0
  %4946 = vmatpush1.msra.mxu0 0.0
  %4947 = vmatprep.subr.mxu0 0.0
  %4948 = vmatpush1.msra.mxu0 0.0
  %4949 = vmatprep.subr.mxu0 0.0
  %4950 = vmatpush1.msra.mxu0 0.0
  %4951 = vmatprep.subr.mxu0 0.0
  %4952 = vmatpush1.msra.mxu0 0.0
  %4953 = vmatprep.mubr.f32.mxu0 %v4816
  %4954 = vmatmul.mubr.f32.gmra.mrb[0].mxu0 %v4814
  %v4955 = vpop.f32.mrb[0].mxu0
  %v4956 = vadd.f32 %v3712, %v4955
  %v4957 = vpop.f32.mrb[0].mxu0
  %v4958 = vadd.f32 %v3716, %v4957
  %4959 = vdwg.mxu0
  %v4960 = vxor.u32 %v4885, 2147483648
  %v4961 = vmul.f32 %v4960, 1.442695
  %v4962 = vpow.pop %v4961
  %v4963 = vadd.f32 %v4962, 1.0
  %v4964 = vrcp.pop %v4963
  %v4965 = vmul.f32 1.0, %v4964
  %v4966 = vxor.u32 %v4887, 2147483648
  %v4967 = vmul.f32 %v4966, 1.442695
  %v4968 = vpow.pop %v4967
  %v4969 = vadd.f32 %v4968, 1.0
  %v4970 = vrcp.pop %v4969
  %v4971 = vmul.f32 1.0, %v4970
  %v4972 = vtanh.pop %v4956
  %v4973 = vxor.u32 %v4958, 2147483648
  %v4974 = vmul.f32 %v4973, 1.442695
  %v4975 = vpow.pop %v4974
  %v4976 = vadd.f32 %v4975, 1.0
  %v4977 = vrcp.pop %v4976
  %v4978 = vmul.f32 1.0, %v4977
  %v4979 = vmul.f32 %v4971, %v4812
  %v4980 = vmul.f32 %v4965, %v4972
  %v4981 = vadd.f32 %v4979, %v4980
  %v4982 = vtanh.pop %v4981
  %v4983 = vmul.f32 %v4978, %v4982
  %v4985 = vsel %vm151, %v60, 0
  %4987 = vmatprep.subr.mxu0 %v3722
  %4988 = vmatpush1.msra.mxu0 %v3721
  %4989 = vmatprep.subr.mxu0 %v3726
  %4990 = vmatpush1.msra.mxu0 %v3725
  %4991 = vmatprep.subr.mxu0 %v3730
  %4992 = vmatpush1.msra.mxu0 %v3729
  %4993 = vmatprep.subr.mxu0 %v3734
  %4994 = vmatpush1.msra.mxu0 %v3733
  %4995 = vmatprep.subr.mxu0 %v3738
  %4996 = vmatpush1.msra.mxu0 %v3737
  %4997 = vmatprep.subr.mxu0 %v3742
  %4998 = vmatpush1.msra.mxu0 %v3741
  %4999 = vmatprep.subr.mxu0 %v3746
  %5000 = vmatpush1.msra.mxu0 %v3745
  %5001 = vmatprep.subr.mxu0 %v3750
  %5002 = vmatpush1.msra.mxu0 %v3749
  %5003 = vmatprep.subr.mxu0 %v3754
  %5004 = vmatpush1.msra.mxu0 %v3753
  %5005 = vmatprep.subr.mxu0 %v3758
  %5006 = vmatpush1.msra.mxu0 %v3757
  %5007 = vmatprep.subr.mxu0 %v3762
  %5008 = vmatpush1.msra.mxu0 %v3761
  %5009 = vmatprep.subr.mxu0 %v3766
  %5010 = vmatpush1.msra.mxu0 %v3765
  %5011 = vmatprep.subr.mxu0 %v3770
  %5012 = vmatpush1.msra.mxu0 %v3769
  %5013 = vmatprep.subr.mxu0 %v3774
  %5014 = vmatpush1.msra.mxu0 %v3773
  %5015 = vmatprep.subr.mxu0 %v3778
  %5016 = vmatpush1.msra.mxu0 %v3777
  %5017 = vmatprep.subr.mxu0 %v3782
  %5018 = vmatpush1.msra.mxu0 %v3781
  %5019 = vmatprep.subr.mxu0 %v3796
  %5020 = vmatpush1.msra.mxu0 %v3793
  %5021 = vmatprep.subr.mxu0 0.0
  %5022 = vmatpush1.msra.mxu0 0.0
  %5023 = vmatprep.subr.mxu0 0.0
  %5024 = vmatpush1.msra.mxu0 0.0
  %5025 = vmatprep.subr.mxu0 0.0
  %5026 = vmatpush1.msra.mxu0 0.0
  %5027 = vmatprep.subr.mxu0 0.0
  %5028 = vmatpush1.msra.mxu0 0.0
  %5029 = vmatprep.subr.mxu0 0.0
  %5030 = vmatpush1.msra.mxu0 0.0
  %5031 = vmatprep.subr.mxu0 0.0
  %5032 = vmatpush1.msra.mxu0 0.0
  %5033 = vmatprep.subr.mxu0 0.0
  %5034 = vmatpush1.msra.mxu0 0.0
  %5035 = vmatprep.subr.mxu0 0.0
  %5036 = vmatpush1.msra.mxu0 0.0
  %5037 = vmatprep.subr.mxu0 0.0
  %5038 = vmatpush1.msra.mxu0 0.0
  %5039 = vmatprep.subr.mxu0 0.0
  %5040 = vmatpush1.msra.mxu0 0.0
  %5041 = vmatprep.subr.mxu0 0.0
  %5042 = vmatpush1.msra.mxu0 0.0
  %5043 = vmatprep.subr.mxu0 0.0
  %5044 = vmatpush1.msra.mxu0 0.0
  %5045 = vmatprep.subr.mxu0 0.0
  %5046 = vmatpush1.msra.mxu0 0.0
  %5047 = vmatprep.subr.mxu0 0.0
  %5048 = vmatpush1.msra.mxu0 0.0
  %5049 = vmatprep.subr.mxu0 0.0
  %5050 = vmatpush1.msra.mxu0 0.0
  %5051 = vmatprep.mubr.f32.mxu0 %v4985
  %5052 = vmatmul.mubr.f32.gmra.mrb[0].mxu0 %v4983
  %v5053 = vpop.f32.mrb[0].mxu0
  %v5054 = vadd.f32 %v3704, %v5053
  %v5055 = vpop.f32.mrb[0].mxu0
  %v5056 = vadd.f32 %v3708, %v5055
  %5057 = vdwg.mxu0
  %5058 = vmatprep.subr.mxu0 %v3724
  %5059 = vmatpush1.msra.mxu0 %v3723
  %5060 = vmatprep.subr.mxu0 %v3728
  %5061 = vmatpush1.msra.mxu0 %v3727
  %5062 = vmatprep.subr.mxu0 %v3732
  %5063 = vmatpush1.msra.mxu0 %v3731
  %5064 = vmatprep.subr.mxu0 %v3736
  %5065 = vmatpush1.msra.mxu0 %v3735
  %5066 = vmatprep.subr.mxu0 %v3740
  %5067 = vmatpush1.msra.mxu0 %v3739
  %5068 = vmatprep.subr.mxu0 %v3744
  %5069 = vmatpush1.msra.mxu0 %v3743
  %5070 = vmatprep.subr.mxu0 %v3748
  %5071 = vmatpush1.msra.mxu0 %v3747
  %5072 = vmatprep.subr.mxu0 %v3752
  %5073 = vmatpush1.msra.mxu0 %v3751
  %5074 = vmatprep.subr.mxu0 %v3756
  %5075 = vmatpush1.msra.mxu0 %v3755
  %5076 = vmatprep.subr.mxu0 %v3760
  %5077 = vmatpush1.msra.mxu0 %v3759
  %5078 = vmatprep.subr.mxu0 %v3764
  %5079 = vmatpush1.msra.mxu0 %v3763
  %5080 = vmatprep.subr.mxu0 %v3768
  %5081 = vmatpush1.msra.mxu0 %v3767
  %5082 = vmatprep.subr.mxu0 %v3772
  %5083 = vmatpush1.msra.mxu0 %v3771
  %5084 = vmatprep.subr.mxu0 %v3776
  %5085 = vmatpush1.msra.mxu0 %v3775
  %5086 = vmatprep.subr.mxu0 %v3780
  %5087 = vmatpush1.msra.mxu0 %v3779
  %5088 = vmatprep.subr.mxu0 %v3784
  %5089 = vmatpush1.msra.mxu0 %v3783
  %5090 = vmatprep.subr.mxu0 %v3802
  %5091 = vmatpush1.msra.mxu0 %v3799
  %5092 = vmatprep.subr.mxu0 0.0
  %5093 = vmatpush1.msra.mxu0 0.0
  %5094 = vmatprep.subr.mxu0 0.0
  %5095 = vmatpush1.msra.mxu0 0.0
  %5096 = vmatprep.subr.mxu0 0.0
  %5097 = vmatpush1.msra.mxu0 0.0
  %5098 = vmatprep.subr.mxu0 0.0
  %5099 = vmatpush1.msra.mxu0 0.0
  %5100 = vmatprep.subr.mxu0 0.0
  %5101 = vmatpush1.msra.mxu0 0.0
  %5102 = vmatprep.subr.mxu0 0.0
  %5103 = vmatpush1.msra.mxu0 0.0
  %5104 = vmatprep.subr.mxu0 0.0
  %5105 = vmatpush1.msra.mxu0 0.0
  %5106 = vmatprep.subr.mxu0 0.0
  %5107 = vmatpush1.msra.mxu0 0.0
  %5108 = vmatprep.subr.mxu0 0.0
  %5109 = vmatpush1.msra.mxu0 0.0
  %5110 = vmatprep.subr.mxu0 0.0
  %5111 = vmatpush1.msra.mxu0 0.0
  %5112 = vmatprep.subr.mxu0 0.0
  %5113 = vmatpush1.msra.mxu0 0.0
  %5114 = vmatprep.subr.mxu0 0.0
  %5115 = vmatpush1.msra.mxu0 0.0
  %5116 = vmatprep.subr.mxu0 0.0
  %5117 = vmatpush1.msra.mxu0 0.0
  %5118 = vmatprep.subr.mxu0 0.0
  %5119 = vmatpush1.msra.mxu0 0.0
  %5120 = vmatprep.subr.mxu0 0.0
  %5121 = vmatpush1.msra.mxu0 0.0
  %5122 = vmatprep.mubr.f32.mxu0 %v4985
  %5123 = vmatmul.mubr.f32.gmra.mrb[0].mxu0 %v4983
  %v5124 = vpop.f32.mrb[0].mxu0
  %v5125 = vadd.f32 %v3712, %v5124
  %v5126 = vpop.f32.mrb[0].mxu0
  %v5127 = vadd.f32 %v3716, %v5126
  %5128 = vdwg.mxu0
  %v5129 = vxor.u32 %v5054, 2147483648
  %v5130 = vmul.f32 %v5129, 1.442695
  %v5131 = vpow.pop %v5130
  %v5132 = vadd.f32 %v5131, 1.0
  %v5133 = vrcp.pop %v5132
  %v5134 = vmul.f32 1.0, %v5133
  %v5135 = vxor.u32 %v5056, 2147483648
  %v5136 = vmul.f32 %v5135, 1.442695
  %v5137 = vpow.pop %v5136
  %v5138 = vadd.f32 %v5137, 1.0
  %v5139 = vrcp.pop %v5138
  %v5140 = vmul.f32 1.0, %v5139
  %v5141 = vtanh.pop %v5125
  %v5142 = vxor.u32 %v5127, 2147483648
  %v5143 = vmul.f32 %v5142, 1.442695
  %v5144 = vpow.pop %v5143
  %v5145 = vadd.f32 %v5144, 1.0
  %v5146 = vrcp.pop %v5145
  %v5147 = vmul.f32 1.0, %v5146
  %v5148 = vmul.f32 %v5140, %v4981
  %v5149 = vmul.f32 %v5134, %v5141
  %v5150 = vadd.f32 %v5148, %v5149
  %v5151 = vtanh.pop %v5150
  %v5152 = vmul.f32 %v5147, %v5151
  %v5153 = vld [vmem:[%s9] sm:$0xf]
  %v5155 = vlaneseq
  %v5156 = vshrl.u32 %v5155, 7
  %v5157 = vsub.s32 0, %v5156
  %v5158 = vrot.slane %v5153, %v5157
  %v5159 = vlaneseq
  %v5160 = vshrl.u32 %v5159, 7
  %v5161 = vsub.s32 1, %v5160
  %v5162 = vrot.slane %v5153, %v5161
  %v5163 = vlaneseq
  %v5164 = vshrl.u32 %v5163, 7
  %v5165 = vsub.s32 2, %v5164
  %v5166 = vrot.slane %v5153, %v5165
  %v5167 = vlaneseq
  %v5168 = vshrl.u32 %v5167, 7
  %v5169 = vsub.s32 3, %v5168
  %v5170 = vrot.slane %v5153, %v5169
  %v5175 = vld [vmem:[%s8] sm:$0xff]
  %v5176 = vld [vmem:[%s8 + $0x8] sm:$0xff]
  %v5177 = vld [vmem:[%s8 + $0x10] sm:$0xff]
  %v5178 = vld [vmem:[%s8 + $0x18] sm:$0xff]
  %v5179 = vld [vmem:[%s8 + $0x20] sm:$0xff]
  %v5180 = vld [vmem:[%s8 + $0x28] sm:$0xff]
  %v5181 = vld [vmem:[%s8 + $0x30] sm:$0xff]
  %v5182 = vld [vmem:[%s8 + $0x38] sm:$0xff]
  %v5183 = vld [vmem:[%s8 + $0x40] sm:$0xff]
  %v5184 = vld [vmem:[%s8 + $0x48] sm:$0xff]
  %v5185 = vld [vmem:[%s8 + $0x50] sm:$0xff]
  %v5186 = vld [vmem:[%s8 + $0x58] sm:$0xff]
  %v5187 = vld [vmem:[%s8 + $0x60] sm:$0xff]
  %v5188 = vld [vmem:[%s8 + $0x68] sm:$0xff]
  %v5189 = vld [vmem:[%s8 + $0x70] sm:$0xff]
  %v5190 = vld [vmem:[%s8 + $0x78] sm:$0xff]
  %v5191 = vld [vmem:[%s8 + $0x80] sm:$0xff]
  %v5192 = vld [vmem:[%s8 + $0x88] sm:$0xff]
  %v5193 = vld [vmem:[%s8 + $0x90] sm:$0xff]
  %v5194 = vld [vmem:[%s8 + $0x98] sm:$0xff]
  %v5195 = vld [vmem:[%s8 + $0xa0] sm:$0xff]
  %v5196 = vld [vmem:[%s8 + $0xa8] sm:$0xff]
  %v5197 = vld [vmem:[%s8 + $0xb0] sm:$0xff]
  %v5198 = vld [vmem:[%s8 + $0xb8] sm:$0xff]
  %v5199 = vld [vmem:[%s8 + $0xc0] sm:$0xff]
  %v5200 = vld [vmem:[%s8 + $0xc8] sm:$0xff]
  %v5201 = vld [vmem:[%s8 + $0xd0] sm:$0xff]
  %v5202 = vld [vmem:[%s8 + $0xd8] sm:$0xff]
  %v5203 = vld [vmem:[%s8 + $0xe0] sm:$0xff]
  %v5204 = vld [vmem:[%s8 + $0xe8] sm:$0xff]
  %v5205 = vld [vmem:[%s8 + $0xf0] sm:$0xff]
  %v5206 = vld [vmem:[%s8 + $0xf8] sm:$0xff]
  %v5207 = vld [vmem:[%s8 + $0x100] sm:$0xff]
  %v5208 = vld [vmem:[%s8 + $0x108] sm:$0xff]
  %v5209 = vld [vmem:[%s8 + $0x110] sm:$0xff]
  %v5210 = vld [vmem:[%s8 + $0x118] sm:$0xff]
  %v5211 = vld [vmem:[%s8 + $0x120] sm:$0xff]
  %v5212 = vld [vmem:[%s8 + $0x128] sm:$0xff]
  %v5213 = vld [vmem:[%s8 + $0x130] sm:$0xff]
  %v5214 = vld [vmem:[%s8 + $0x138] sm:$0xff]
  %v5215 = vld [vmem:[%s8 + $0x140] sm:$0xff]
  %v5216 = vld [vmem:[%s8 + $0x148] sm:$0xff]
  %v5217 = vld [vmem:[%s8 + $0x150] sm:$0xff]
  %v5218 = vld [vmem:[%s8 + $0x158] sm:$0xff]
  %v5219 = vld [vmem:[%s8 + $0x160] sm:$0xff]
  %v5220 = vld [vmem:[%s8 + $0x168] sm:$0xff]
  %v5221 = vld [vmem:[%s8 + $0x170] sm:$0xff]
  %v5222 = vld [vmem:[%s8 + $0x178] sm:$0xff]
  %v5223 = vld [vmem:[%s8 + $0x180] sm:$0xff]
  %v5224 = vld [vmem:[%s8 + $0x188] sm:$0xff]
  %v5225 = vld [vmem:[%s8 + $0x190] sm:$0xff]
  %v5226 = vld [vmem:[%s8 + $0x198] sm:$0xff]
  %v5227 = vld [vmem:[%s8 + $0x1a0] sm:$0xff]
  %v5228 = vld [vmem:[%s8 + $0x1a8] sm:$0xff]
  %v5229 = vld [vmem:[%s8 + $0x1b0] sm:$0xff]
  %v5230 = vld [vmem:[%s8 + $0x1b8] sm:$0xff]
  %v5231 = vld [vmem:[%s8 + $0x1c0] sm:$0xff]
  %v5232 = vld [vmem:[%s8 + $0x1c8] sm:$0xff]
  %v5233 = vld [vmem:[%s8 + $0x1d0] sm:$0xff]
  %v5234 = vld [vmem:[%s8 + $0x1d8] sm:$0xff]
  %v5235 = vld [vmem:[%s8 + $0x1e0] sm:$0xff]
  %v5236 = vld [vmem:[%s8 + $0x1e8] sm:$0xff]
  %v5237 = vld [vmem:[%s8 + $0x1f0] sm:$0xff]
  %v5238 = vld [vmem:[%s8 + $0x1f8] sm:$0xff]
  %v5239 = vld [vmem:[%s8 + $0x200] sm:$0xff]
  %v5240 = vld [vmem:[%s8 + $0x208] sm:$0xff]
  %v5241 = vld [vmem:[%s8 + $0x210] sm:$0xff]
  %v5242 = vld [vmem:[%s8 + $0x218] sm:$0xff]
  %v5243 = vld [vmem:[%s8 + $0x220] sm:$0xff]
  %v5244 = vld [vmem:[%s8 + $0x228] sm:$0xff]
  %v5245 = vld [vmem:[%s8 + $0x230] sm:$0xff]
  %v5246 = vld [vmem:[%s8 + $0x238] sm:$0xff]
  %v5247 = vld [vmem:[%s8 + $0x240] sm:$0xff]
  %v5248 = vld [vmem:[%s8 + $0x248] sm:$0xff]
  %v5249 = vld [vmem:[%s8 + $0x250] sm:$0xff]
  %v5250 = vld [vmem:[%s8 + $0x258] sm:$0xff]
  %v5251 = vld [vmem:[%s8 + $0x260] sm:$0xff]
  %v5252 = vld [vmem:[%s8 + $0x268] sm:$0xff]
  %v5253 = vld [vmem:[%s8 + $0x270] sm:$0xff]
  %v5254 = vld [vmem:[%s8 + $0x278] sm:$0xff]
  %v5255 = vld [vmem:[%s8 + $0x280] sm:$0xff]
  %v5256 = vld [vmem:[%s8 + $0x288] sm:$0xff]
  %v5257 = vld [vmem:[%s8 + $0x290] sm:$0xff]
  %v5258 = vld [vmem:[%s8 + $0x298] sm:$0xff]
  %v5259 = vld [vmem:[%s8 + $0x2a0] sm:$0xff]
  %v5260 = vld [vmem:[%s8 + $0x2a8] sm:$0xff]
  %v5261 = vld [vmem:[%s8 + $0x2b0] sm:$0xff]
  %v5262 = vld [vmem:[%s8 + $0x2b8] sm:$0xff]
  %v5263 = vld [vmem:[%s8 + $0x2c0] sm:$0xff]
  %v5264 = vld [vmem:[%s8 + $0x2c8] sm:$0xff]
  %v5265 = vld [vmem:[%s8 + $0x2d0] sm:$0xff]
  %v5266 = vld [vmem:[%s8 + $0x2d8] sm:$0xff]
  %v5267 = vld [vmem:[%s8 + $0x2e0] sm:$0xff]
  %v5268 = vld [vmem:[%s8 + $0x2e8] sm:$0xff]
  %v5269 = vld [vmem:[%s8 + $0x2f0] sm:$0xff]
  %v5270 = vld [vmem:[%s8 + $0x2f8] sm:$0xff]
  %v5271 = vld [vmem:[%s8 + $0x300] sm:$0xff]
  %v5272 = vld [vmem:[%s8 + $0x308] sm:$0xff]
  %v5273 = vld [vmem:[%s8 + $0x310] sm:$0xff]
  %v5274 = vld [vmem:[%s8 + $0x318] sm:$0xff]
  %v5275 = vld [vmem:[%s8 + $0x320] sm:$0xff]
  %v5276 = vld [vmem:[%s8 + $0x328] sm:$0xff]
  %v5277 = vld [vmem:[%s8 + $0x330] sm:$0xff]
  %v5278 = vld [vmem:[%s8 + $0x338] sm:$0xff]
  %v5279 = vld [vmem:[%s8 + $0x340] sm:$0xff]
  %v5280 = vld [vmem:[%s8 + $0x348] sm:$0xff]
  %v5281 = vld [vmem:[%s8 + $0x350] sm:$0xff]
  %v5282 = vld [vmem:[%s8 + $0x358] sm:$0xff]
  %v5283 = vld [vmem:[%s8 + $0x360] sm:$0xff]
  %v5284 = vld [vmem:[%s8 + $0x368] sm:$0xff]
  %v5285 = vld [vmem:[%s8 + $0x370] sm:$0xff]
  %v5286 = vld [vmem:[%s8 + $0x378] sm:$0xff]
  %v5287 = vld [vmem:[%s8 + $0x380] sm:$0xff]
  %v5288 = vld [vmem:[%s8 + $0x388] sm:$0xff]
  %v5289 = vld [vmem:[%s8 + $0x390] sm:$0xff]
  %v5290 = vld [vmem:[%s8 + $0x398] sm:$0xff]
  %v5291 = vld [vmem:[%s8 + $0x3a0] sm:$0xff]
  %v5292 = vld [vmem:[%s8 + $0x3a8] sm:$0xff]
  %v5293 = vld [vmem:[%s8 + $0x3b0] sm:$0xff]
  %v5294 = vld [vmem:[%s8 + $0x3b8] sm:$0xff]
  %v5295 = vld [vmem:[%s8 + $0x3c0] sm:$0xff]
  %v5296 = vld [vmem:[%s8 + $0x3c8] sm:$0xff]
  %v5297 = vld [vmem:[%s8 + $0x3d0] sm:$0xff]
  %v5298 = vld [vmem:[%s8 + $0x3d8] sm:$0xff]
  %v5299 = vld [vmem:[%s8 + $0x3e0] sm:$0xff]
  %v5300 = vld [vmem:[%s8 + $0x3e8] sm:$0xff]
  %v5301 = vld [vmem:[%s8 + $0x3f0] sm:$0xff]
  %v5302 = vld [vmem:[%s8 + $0x3f8] sm:$0xff]
  %5303 = vmatprep.subr.mxu0 %v5176
  %5304 = vmatpush1.msra.mxu0 %v5175
  %5305 = vmatprep.subr.mxu0 %v5180
  %5306 = vmatpush1.msra.mxu0 %v5179
  %5307 = vmatprep.subr.mxu0 %v5184
  %5308 = vmatpush1.msra.mxu0 %v5183
  %5309 = vmatprep.subr.mxu0 %v5188
  %5310 = vmatpush1.msra.mxu0 %v5187
  %5311 = vmatprep.subr.mxu0 %v5192
  %5312 = vmatpush1.msra.mxu0 %v5191
  %5313 = vmatprep.subr.mxu0 %v5196
  %5314 = vmatpush1.msra.mxu0 %v5195
  %5315 = vmatprep.subr.mxu0 %v5200
  %5316 = vmatpush1.msra.mxu0 %v5199
  %5317 = vmatprep.subr.mxu0 %v5204
  %5318 = vmatpush1.msra.mxu0 %v5203
  %5319 = vmatprep.subr.mxu0 %v5208
  %5320 = vmatpush1.msra.mxu0 %v5207
  %5321 = vmatprep.subr.mxu0 %v5212
  %5322 = vmatpush1.msra.mxu0 %v5211
  %5323 = vmatprep.subr.mxu0 %v5216
  %5324 = vmatpush1.msra.mxu0 %v5215
  %5325 = vmatprep.subr.mxu0 %v5220
  %5326 = vmatpush1.msra.mxu0 %v5219
  %5327 = vmatprep.subr.mxu0 %v5224
  %5328 = vmatpush1.msra.mxu0 %v5223
  %5329 = vmatprep.subr.mxu0 %v5228
  %5330 = vmatpush1.msra.mxu0 %v5227
  %5331 = vmatprep.subr.mxu0 %v5232
  %5332 = vmatpush1.msra.mxu0 %v5231
  %5333 = vmatprep.subr.mxu0 %v5236
  %5334 = vmatpush1.msra.mxu0 %v5235
  %5335 = vmatprep.subr.mxu0 %v5240
  %5336 = vmatpush1.msra.mxu0 %v5239
  %5337 = vmatprep.subr.mxu0 %v5244
  %5338 = vmatpush1.msra.mxu0 %v5243
  %5339 = vmatprep.subr.mxu0 %v5248
  %5340 = vmatpush1.msra.mxu0 %v5247
  %5341 = vmatprep.subr.mxu0 %v5252
  %5342 = vmatpush1.msra.mxu0 %v5251
  %5343 = vmatprep.subr.mxu0 %v5256
  %5344 = vmatpush1.msra.mxu0 %v5255
  %5345 = vmatprep.subr.mxu0 %v5260
  %5346 = vmatpush1.msra.mxu0 %v5259
  %5347 = vmatprep.subr.mxu0 %v5264
  %5348 = vmatpush1.msra.mxu0 %v5263
  %5349 = vmatprep.subr.mxu0 %v5268
  %5350 = vmatpush1.msra.mxu0 %v5267
  %5351 = vmatprep.subr.mxu0 %v5272
  %5352 = vmatpush1.msra.mxu0 %v5271
  %5353 = vmatprep.subr.mxu0 %v5276
  %5354 = vmatpush1.msra.mxu0 %v5275
  %5355 = vmatprep.subr.mxu0 %v5280
  %5356 = vmatpush1.msra.mxu0 %v5279
  %5357 = vmatprep.subr.mxu0 %v5284
  %5358 = vmatpush1.msra.mxu0 %v5283
  %5359 = vmatprep.subr.mxu0 %v5288
  %5360 = vmatpush1.msra.mxu0 %v5287
  %5361 = vmatprep.subr.mxu0 %v5292
  %5362 = vmatpush1.msra.mxu0 %v5291
  %5363 = vmatprep.subr.mxu0 %v5296
  %5364 = vmatpush1.msra.mxu0 %v5295
  %5365 = vmatprep.subr.mxu0 %v5300
  %5366 = vmatpush1.msra.mxu0 %v5299
  %5367 = vmatprep.mubr.f32.mxu0 %v3969
  %5368 = vmatmul.mubr.f32.gmra.mrb[0].mxu0 0.0
  %v5369 = vpop.f32.mrb[0].mxu0
  %v5370 = vadd.f32 %v5158, %v5369
  %v5371 = vpop.f32.mrb[0].mxu0
  %v5372 = vadd.f32 %v5162, %v5371
  %5373 = vdwg.mxu0
  %5374 = vmatprep.subr.mxu0 %v5178
  %5375 = vmatpush1.msra.mxu0 %v5177
  %5376 = vmatprep.subr.mxu0 %v5182
  %5377 = vmatpush1.msra.mxu0 %v5181
  %5378 = vmatprep.subr.mxu0 %v5186
  %5379 = vmatpush1.msra.mxu0 %v5185
  %5380 = vmatprep.subr.mxu0 %v5190
  %5381 = vmatpush1.msra.mxu0 %v5189
  %5382 = vmatprep.subr.mxu0 %v5194
  %5383 = vmatpush1.msra.mxu0 %v5193
  %5384 = vmatprep.subr.mxu0 %v5198
  %5385 = vmatpush1.msra.mxu0 %v5197
  %5386 = vmatprep.subr.mxu0 %v5202
  %5387 = vmatpush1.msra.mxu0 %v5201
  %5388 = vmatprep.subr.mxu0 %v5206
  %5389 = vmatpush1.msra.mxu0 %v5205
  %5390 = vmatprep.subr.mxu0 %v5210
  %5391 = vmatpush1.msra.mxu0 %v5209
  %5392 = vmatprep.subr.mxu0 %v5214
  %5393 = vmatpush1.msra.mxu0 %v5213
  %5394 = vmatprep.subr.mxu0 %v5218
  %5395 = vmatpush1.msra.mxu0 %v5217
  %5396 = vmatprep.subr.mxu0 %v5222
  %5397 = vmatpush1.msra.mxu0 %v5221
  %5398 = vmatprep.subr.mxu0 %v5226
  %5399 = vmatpush1.msra.mxu0 %v5225
  %5400 = vmatprep.subr.mxu0 %v5230
  %5401 = vmatpush1.msra.mxu0 %v5229
  %5402 = vmatprep.subr.mxu0 %v5234
  %5403 = vmatpush1.msra.mxu0 %v5233
  %5404 = vmatprep.subr.mxu0 %v5238
  %5405 = vmatpush1.msra.mxu0 %v5237
  %5406 = vmatprep.subr.mxu0 %v5242
  %5407 = vmatpush1.msra.mxu0 %v5241
  %5408 = vmatprep.subr.mxu0 %v5246
  %5409 = vmatpush1.msra.mxu0 %v5245
  %5410 = vmatprep.subr.mxu0 %v5250
  %5411 = vmatpush1.msra.mxu0 %v5249
  %5412 = vmatprep.subr.mxu0 %v5254
  %5413 = vmatpush1.msra.mxu0 %v5253
  %5414 = vmatprep.subr.mxu0 %v5258
  %5415 = vmatpush1.msra.mxu0 %v5257
  %5416 = vmatprep.subr.mxu0 %v5262
  %5417 = vmatpush1.msra.mxu0 %v5261
  %5418 = vmatprep.subr.mxu0 %v5266
  %5419 = vmatpush1.msra.mxu0 %v5265
  %5420 = vmatprep.subr.mxu0 %v5270
  %5421 = vmatpush1.msra.mxu0 %v5269
  %5422 = vmatprep.subr.mxu0 %v5274
  %5423 = vmatpush1.msra.mxu0 %v5273
  %5424 = vmatprep.subr.mxu0 %v5278
  %5425 = vmatpush1.msra.mxu0 %v5277
  %5426 = vmatprep.subr.mxu0 %v5282
  %5427 = vmatpush1.msra.mxu0 %v5281
  %5428 = vmatprep.subr.mxu0 %v5286
  %5429 = vmatpush1.msra.mxu0 %v5285
  %5430 = vmatprep.subr.mxu0 %v5290
  %5431 = vmatpush1.msra.mxu0 %v5289
  %5432 = vmatprep.subr.mxu0 %v5294
  %5433 = vmatpush1.msra.mxu0 %v5293
  %5434 = vmatprep.subr.mxu0 %v5298
  %5435 = vmatpush1.msra.mxu0 %v5297
  %5436 = vmatprep.subr.mxu0 %v5302
  %5437 = vmatpush1.msra.mxu0 %v5301
  %5438 = vmatprep.mubr.f32.mxu0 %v3969
  %5439 = vmatmul.mubr.f32.gmra.mrb[0].mxu0 0.0
  %v5440 = vpop.f32.mrb[0].mxu0
  %v5441 = vadd.f32 %v5166, %v5440
  %v5442 = vpop.f32.mrb[0].mxu0
  %v5443 = vadd.f32 %v5170, %v5442
  %5444 = vdwg.mxu0
  %v5445 = vxor.u32 %v5370, 2147483648
  %v5446 = vmul.f32 %v5445, 1.442695
  %v5447 = vpow.pop %v5446
  %v5448 = vadd.f32 %v5447, 1.0
  %v5449 = vrcp.pop %v5448
  %v5450 = vmul.f32 1.0, %v5449
  %v5451 = vxor.u32 %v5372, 2147483648
  %v5452 = vmul.f32 %v5451, 1.442695
  %v5453 = vpow.pop %v5452
  %v5454 = vadd.f32 %v5453, 1.0
  %v5455 = vrcp.pop %v5454
  %v5456 = vmul.f32 1.0, %v5455
  %v5457 = vtanh.pop %v5441
  %v5458 = vxor.u32 %v5443, 2147483648
  %v5459 = vmul.f32 %v5458, 1.442695
  %v5460 = vpow.pop %v5459
  %v5461 = vadd.f32 %v5460, 1.0
  %v5462 = vrcp.pop %v5461
  %v5463 = vmul.f32 1.0, %v5462
  %v5464 = vmul.f32 %v5456, 0.0
  %v5465 = vmul.f32 %v5450, %v5457
  %v5466 = vadd.f32 %v5464, %v5465
  %v5467 = vtanh.pop %v5466
  %v5468 = vmul.f32 %v5463, %v5467
  %5469 = vmatprep.subr.mxu0 %v5176
  %5470 = vmatpush1.msra.mxu0 %v5175
  %5471 = vmatprep.subr.mxu0 %v5180
  %5472 = vmatpush1.msra.mxu0 %v5179
  %5473 = vmatprep.subr.mxu0 %v5184
  %5474 = vmatpush1.msra.mxu0 %v5183
  %5475 = vmatprep.subr.mxu0 %v5188
  %5476 = vmatpush1.msra.mxu0 %v5187
  %5477 = vmatprep.subr.mxu0 %v5192
  %5478 = vmatpush1.msra.mxu0 %v5191
  %5479 = vmatprep.subr.mxu0 %v5196
  %5480 = vmatpush1.msra.mxu0 %v5195
  %5481 = vmatprep.subr.mxu0 %v5200
  %5482 = vmatpush1.msra.mxu0 %v5199
  %5483 = vmatprep.subr.mxu0 %v5204
  %5484 = vmatpush1.msra.mxu0 %v5203
  %5485 = vmatprep.subr.mxu0 %v5208
  %5486 = vmatpush1.msra.mxu0 %v5207
  %5487 = vmatprep.subr.mxu0 %v5212
  %5488 = vmatpush1.msra.mxu0 %v5211
  %5489 = vmatprep.subr.mxu0 %v5216
  %5490 = vmatpush1.msra.mxu0 %v5215
  %5491 = vmatprep.subr.mxu0 %v5220
  %5492 = vmatpush1.msra.mxu0 %v5219
  %5493 = vmatprep.subr.mxu0 %v5224
  %5494 = vmatpush1.msra.mxu0 %v5223
  %5495 = vmatprep.subr.mxu0 %v5228
  %5496 = vmatpush1.msra.mxu0 %v5227
  %5497 = vmatprep.subr.mxu0 %v5232
  %5498 = vmatpush1.msra.mxu0 %v5231
  %5499 = vmatprep.subr.mxu0 %v5236
  %5500 = vmatpush1.msra.mxu0 %v5235
  %5501 = vmatprep.subr.mxu0 %v5240
  %5502 = vmatpush1.msra.mxu0 %v5239
  %5503 = vmatprep.subr.mxu0 %v5244
  %5504 = vmatpush1.msra.mxu0 %v5243
  %5505 = vmatprep.subr.mxu0 %v5248
  %5506 = vmatpush1.msra.mxu0 %v5247
  %5507 = vmatprep.subr.mxu0 %v5252
  %5508 = vmatpush1.msra.mxu0 %v5251
  %5509 = vmatprep.subr.mxu0 %v5256
  %5510 = vmatpush1.msra.mxu0 %v5255
  %5511 = vmatprep.subr.mxu0 %v5260
  %5512 = vmatpush1.msra.mxu0 %v5259
  %5513 = vmatprep.subr.mxu0 %v5264
  %5514 = vmatpush1.msra.mxu0 %v5263
  %5515 = vmatprep.subr.mxu0 %v5268
  %5516 = vmatpush1.msra.mxu0 %v5267
  %5517 = vmatprep.subr.mxu0 %v5272
  %5518 = vmatpush1.msra.mxu0 %v5271
  %5519 = vmatprep.subr.mxu0 %v5276
  %5520 = vmatpush1.msra.mxu0 %v5275
  %5521 = vmatprep.subr.mxu0 %v5280
  %5522 = vmatpush1.msra.mxu0 %v5279
  %5523 = vmatprep.subr.mxu0 %v5284
  %5524 = vmatpush1.msra.mxu0 %v5283
  %5525 = vmatprep.subr.mxu0 %v5288
  %5526 = vmatpush1.msra.mxu0 %v5287
  %5527 = vmatprep.subr.mxu0 %v5292
  %5528 = vmatpush1.msra.mxu0 %v5291
  %5529 = vmatprep.subr.mxu0 %v5296
  %5530 = vmatpush1.msra.mxu0 %v5295
  %5531 = vmatprep.subr.mxu0 %v5300
  %5532 = vmatpush1.msra.mxu0 %v5299
  %5533 = vmatprep.mubr.f32.mxu0 %v4138
  %5534 = vmatmul.mubr.f32.gmra.mrb[0].mxu0 %v5468
  %v5535 = vpop.f32.mrb[0].mxu0
  %v5536 = vadd.f32 %v5158, %v5535
  %v5537 = vpop.f32.mrb[0].mxu0
  %v5538 = vadd.f32 %v5162, %v5537
  %5539 = vdwg.mxu0
  %5540 = vmatprep.subr.mxu0 %v5178
  %5541 = vmatpush1.msra.mxu0 %v5177
  %5542 = vmatprep.subr.mxu0 %v5182
  %5543 = vmatpush1.msra.mxu0 %v5181
  %5544 = vmatprep.subr.mxu0 %v5186
  %5545 = vmatpush1.msra.mxu0 %v5185
  %5546 = vmatprep.subr.mxu0 %v5190
  %5547 = vmatpush1.msra.mxu0 %v5189
  %5548 = vmatprep.subr.mxu0 %v5194
  %5549 = vmatpush1.msra.mxu0 %v5193
  %5550 = vmatprep.subr.mxu0 %v5198
  %5551 = vmatpush1.msra.mxu0 %v5197
  %5552 = vmatprep.subr.mxu0 %v5202
  %5553 = vmatpush1.msra.mxu0 %v5201
  %5554 = vmatprep.subr.mxu0 %v5206
  %5555 = vmatpush1.msra.mxu0 %v5205
  %5556 = vmatprep.subr.mxu0 %v5210
  %5557 = vmatpush1.msra.mxu0 %v5209
  %5558 = vmatprep.subr.mxu0 %v5214
  %5559 = vmatpush1.msra.mxu0 %v5213
  %5560 = vmatprep.subr.mxu0 %v5218
  %5561 = vmatpush1.msra.mxu0 %v5217
  %5562 = vmatprep.subr.mxu0 %v5222
  %5563 = vmatpush1.msra.mxu0 %v5221
  %5564 = vmatprep.subr.mxu0 %v5226
  %5565 = vmatpush1.msra.mxu0 %v5225
  %5566 = vmatprep.subr.mxu0 %v5230
  %5567 = vmatpush1.msra.mxu0 %v5229
  %5568 = vmatprep.subr.mxu0 %v5234
  %5569 = vmatpush1.msra.mxu0 %v5233
  %5570 = vmatprep.subr.mxu0 %v5238
  %5571 = vmatpush1.msra.mxu0 %v5237
  %5572 = vmatprep.subr.mxu0 %v5242
  %5573 = vmatpush1.msra.mxu0 %v5241
  %5574 = vmatprep.subr.mxu0 %v5246
  %5575 = vmatpush1.msra.mxu0 %v5245
  %5576 = vmatprep.subr.mxu0 %v5250
  %5577 = vmatpush1.msra.mxu0 %v5249
  %5578 = vmatprep.subr.mxu0 %v5254
  %5579 = vmatpush1.msra.mxu0 %v5253
  %5580 = vmatprep.subr.mxu0 %v5258
  %5581 = vmatpush1.msra.mxu0 %v5257
  %5582 = vmatprep.subr.mxu0 %v5262
  %5583 = vmatpush1.msra.mxu0 %v5261
  %5584 = vmatprep.subr.mxu0 %v5266
  %5585 = vmatpush1.msra.mxu0 %v5265
  %5586 = vmatprep.subr.mxu0 %v5270
  %5587 = vmatpush1.msra.mxu0 %v5269
  %5588 = vmatprep.subr.mxu0 %v5274
  %5589 = vmatpush1.msra.mxu0 %v5273
  %5590 = vmatprep.subr.mxu0 %v5278
  %5591 = vmatpush1.msra.mxu0 %v5277
  %5592 = vmatprep.subr.mxu0 %v5282
  %5593 = vmatpush1.msra.mxu0 %v5281
  %5594 = vmatprep.subr.mxu0 %v5286
  %5595 = vmatpush1.msra.mxu0 %v5285
  %5596 = vmatprep.subr.mxu0 %v5290
  %5597 = vmatpush1.msra.mxu0 %v5289
  %5598 = vmatprep.subr.mxu0 %v5294
  %5599 = vmatpush1.msra.mxu0 %v5293
  %5600 = vmatprep.subr.mxu0 %v5298
  %5601 = vmatpush1.msra.mxu0 %v5297
  %5602 = vmatprep.subr.mxu0 %v5302
  %5603 = vmatpush1.msra.mxu0 %v5301
  %5604 = vmatprep.mubr.f32.mxu0 %v4138
  %5605 = vmatmul.mubr.f32.gmra.mrb[0].mxu0 %v5468
  %v5606 = vpop.f32.mrb[0].mxu0
  %v5607 = vadd.f32 %v5166, %v5606
  %v5608 = vpop.f32.mrb[0].mxu0
  %v5609 = vadd.f32 %v5170, %v5608
  %5610 = vdwg.mxu0
  %v5611 = vxor.u32 %v5536, 2147483648
  %v5612 = vmul.f32 %v5611, 1.442695
  %v5613 = vpow.pop %v5612
  %v5614 = vadd.f32 %v5613, 1.0
  %v5615 = vrcp.pop %v5614
  %v5616 = vmul.f32 1.0, %v5615
  %v5617 = vxor.u32 %v5538, 2147483648
  %v5618 = vmul.f32 %v5617, 1.442695
  %v5619 = vpow.pop %v5618
  %v5620 = vadd.f32 %v5619, 1.0
  %v5621 = vrcp.pop %v5620
  %v5622 = vmul.f32 1.0, %v5621
  %v5623 = vtanh.pop %v5607
  %v5624 = vxor.u32 %v5609, 2147483648
  %v5625 = vmul.f32 %v5624, 1.442695
  %v5626 = vpow.pop %v5625
  %v5627 = vadd.f32 %v5626, 1.0
  %v5628 = vrcp.pop %v5627
  %v5629 = vmul.f32 1.0, %v5628
  %v5630 = vmul.f32 %v5622, %v5466
  %v5631 = vmul.f32 %v5616, %v5623
  %v5632 = vadd.f32 %v5630, %v5631
  %v5633 = vtanh.pop %v5632
  %v5634 = vmul.f32 %v5629, %v5633
  %5635 = vmatprep.subr.mxu0 %v5176
  %5636 = vmatpush1.msra.mxu0 %v5175
  %5637 = vmatprep.subr.mxu0 %v5180
  %5638 = vmatpush1.msra.mxu0 %v5179
  %5639 = vmatprep.subr.mxu0 %v5184
  %5640 = vmatpush1.msra.mxu0 %v5183
  %5641 = vmatprep.subr.mxu0 %v5188
  %5642 = vmatpush1.msra.mxu0 %v5187
  %5643 = vmatprep.subr.mxu0 %v5192
  %5644 = vmatpush1.msra.mxu0 %v5191
  %5645 = vmatprep.subr.mxu0 %v5196
  %5646 = vmatpush1.msra.mxu0 %v5195
  %5647 = vmatprep.subr.mxu0 %v5200
  %5648 = vmatpush1.msra.mxu0 %v5199
  %5649 = vmatprep.subr.mxu0 %v5204
  %5650 = vmatpush1.msra.mxu0 %v5203
  %5651 = vmatprep.subr.mxu0 %v5208
  %5652 = vmatpush1.msra.mxu0 %v5207
  %5653 = vmatprep.subr.mxu0 %v5212
  %5654 = vmatpush1.msra.mxu0 %v5211
  %5655 = vmatprep.subr.mxu0 %v5216
  %5656 = vmatpush1.msra.mxu0 %v5215
  %5657 = vmatprep.subr.mxu0 %v5220
  %5658 = vmatpush1.msra.mxu0 %v5219
  %5659 = vmatprep.subr.mxu0 %v5224
  %5660 = vmatpush1.msra.mxu0 %v5223
  %5661 = vmatprep.subr.mxu0 %v5228
  %5662 = vmatpush1.msra.mxu0 %v5227
  %5663 = vmatprep.subr.mxu0 %v5232
  %5664 = vmatpush1.msra.mxu0 %v5231
  %5665 = vmatprep.subr.mxu0 %v5236
  %5666 = vmatpush1.msra.mxu0 %v5235
  %5667 = vmatprep.subr.mxu0 %v5240
  %5668 = vmatpush1.msra.mxu0 %v5239
  %5669 = vmatprep.subr.mxu0 %v5244
  %5670 = vmatpush1.msra.mxu0 %v5243
  %5671 = vmatprep.subr.mxu0 %v5248
  %5672 = vmatpush1.msra.mxu0 %v5247
  %5673 = vmatprep.subr.mxu0 %v5252
  %5674 = vmatpush1.msra.mxu0 %v5251
  %5675 = vmatprep.subr.mxu0 %v5256
  %5676 = vmatpush1.msra.mxu0 %v5255
  %5677 = vmatprep.subr.mxu0 %v5260
  %5678 = vmatpush1.msra.mxu0 %v5259
  %5679 = vmatprep.subr.mxu0 %v5264
  %5680 = vmatpush1.msra.mxu0 %v5263
  %5681 = vmatprep.subr.mxu0 %v5268
  %5682 = vmatpush1.msra.mxu0 %v5267
  %5683 = vmatprep.subr.mxu0 %v5272
  %5684 = vmatpush1.msra.mxu0 %v5271
  %5685 = vmatprep.subr.mxu0 %v5276
  %5686 = vmatpush1.msra.mxu0 %v5275
  %5687 = vmatprep.subr.mxu0 %v5280
  %5688 = vmatpush1.msra.mxu0 %v5279
  %5689 = vmatprep.subr.mxu0 %v5284
  %5690 = vmatpush1.msra.mxu0 %v5283
  %5691 = vmatprep.subr.mxu0 %v5288
  %5692 = vmatpush1.msra.mxu0 %v5287
  %5693 = vmatprep.subr.mxu0 %v5292
  %5694 = vmatpush1.msra.mxu0 %v5291
  %5695 = vmatprep.subr.mxu0 %v5296
  %5696 = vmatpush1.msra.mxu0 %v5295
  %5697 = vmatprep.subr.mxu0 %v5300
  %5698 = vmatpush1.msra.mxu0 %v5299
  %5699 = vmatprep.mubr.f32.mxu0 %v4307
  %5700 = vmatmul.mubr.f32.gmra.mrb[0].mxu0 %v5634
  %v5701 = vpop.f32.mrb[0].mxu0
  %v5702 = vadd.f32 %v5158, %v5701
  %v5703 = vpop.f32.mrb[0].mxu0
  %v5704 = vadd.f32 %v5162, %v5703
  %5705 = vdwg.mxu0
  %5706 = vmatprep.subr.mxu0 %v5178
  %5707 = vmatpush1.msra.mxu0 %v5177
  %5708 = vmatprep.subr.mxu0 %v5182
  %5709 = vmatpush1.msra.mxu0 %v5181
  %5710 = vmatprep.subr.mxu0 %v5186
  %5711 = vmatpush1.msra.mxu0 %v5185
  %5712 = vmatprep.subr.mxu0 %v5190
  %5713 = vmatpush1.msra.mxu0 %v5189
  %5714 = vmatprep.subr.mxu0 %v5194
  %5715 = vmatpush1.msra.mxu0 %v5193
  %5716 = vmatprep.subr.mxu0 %v5198
  %5717 = vmatpush1.msra.mxu0 %v5197
  %5718 = vmatprep.subr.mxu0 %v5202
  %5719 = vmatpush1.msra.mxu0 %v5201
  %5720 = vmatprep.subr.mxu0 %v5206
  %5721 = vmatpush1.msra.mxu0 %v5205
  %5722 = vmatprep.subr.mxu0 %v5210
  %5723 = vmatpush1.msra.mxu0 %v5209
  %5724 = vmatprep.subr.mxu0 %v5214
  %5725 = vmatpush1.msra.mxu0 %v5213
  %5726 = vmatprep.subr.mxu0 %v5218
  %5727 = vmatpush1.msra.mxu0 %v5217
  %5728 = vmatprep.subr.mxu0 %v5222
  %5729 = vmatpush1.msra.mxu0 %v5221
  %5730 = vmatprep.subr.mxu0 %v5226
  %5731 = vmatpush1.msra.mxu0 %v5225
  %5732 = vmatprep.subr.mxu0 %v5230
  %5733 = vmatpush1.msra.mxu0 %v5229
  %5734 = vmatprep.subr.mxu0 %v5234
  %5735 = vmatpush1.msra.mxu0 %v5233
  %5736 = vmatprep.subr.mxu0 %v5238
  %5737 = vmatpush1.msra.mxu0 %v5237
  %5738 = vmatprep.subr.mxu0 %v5242
  %5739 = vmatpush1.msra.mxu0 %v5241
  %5740 = vmatprep.subr.mxu0 %v5246
  %5741 = vmatpush1.msra.mxu0 %v5245
  %5742 = vmatprep.subr.mxu0 %v5250
  %5743 = vmatpush1.msra.mxu0 %v5249
  %5744 = vmatprep.subr.mxu0 %v5254
  %5745 = vmatpush1.msra.mxu0 %v5253
  %5746 = vmatprep.subr.mxu0 %v5258
  %5747 = vmatpush1.msra.mxu0 %v5257
  %5748 = vmatprep.subr.mxu0 %v5262
  %5749 = vmatpush1.msra.mxu0 %v5261
  %5750 = vmatprep.subr.mxu0 %v5266
  %5751 = vmatpush1.msra.mxu0 %v5265
  %5752 = vmatprep.subr.mxu0 %v5270
  %5753 = vmatpush1.msra.mxu0 %v5269
  %5754 = vmatprep.subr.mxu0 %v5274
  %5755 = vmatpush1.msra.mxu0 %v5273
  %5756 = vmatprep.subr.mxu0 %v5278
  %5757 = vmatpush1.msra.mxu0 %v5277
  %5758 = vmatprep.subr.mxu0 %v5282
  %5759 = vmatpush1.msra.mxu0 %v5281
  %5760 = vmatprep.subr.mxu0 %v5286
  %5761 = vmatpush1.msra.mxu0 %v5285
  %5762 = vmatprep.subr.mxu0 %v5290
  %5763 = vmatpush1.msra.mxu0 %v5289
  %5764 = vmatprep.subr.mxu0 %v5294
  %5765 = vmatpush1.msra.mxu0 %v5293
  %5766 = vmatprep.subr.mxu0 %v5298
  %5767 = vmatpush1.msra.mxu0 %v5297
  %5768 = vmatprep.subr.mxu0 %v5302
  %5769 = vmatpush1.msra.mxu0 %v5301
  %5770 = vmatprep.mubr.f32.mxu0 %v4307
  %5771 = vmatmul.mubr.f32.gmra.mrb[0].mxu0 %v5634
  %v5772 = vpop.f32.mrb[0].mxu0
  %v5773 = vadd.f32 %v5166, %v5772
  %v5774 = vpop.f32.mrb[0].mxu0
  %v5775 = vadd.f32 %v5170, %v5774
  %5776 = vdwg.mxu0
  %v5777 = vxor.u32 %v5702, 2147483648
  %v5778 = vmul.f32 %v5777, 1.442695
  %v5779 = vpow.pop %v5778
  %v5780 = vadd.f32 %v5779, 1.0
  %v5781 = vrcp.pop %v5780
  %v5782 = vmul.f32 1.0, %v5781
  %v5783 = vxor.u32 %v5704, 2147483648
  %v5784 = vmul.f32 %v5783, 1.442695
  %v5785 = vpow.pop %v5784
  %v5786 = vadd.f32 %v5785, 1.0
  %v5787 = vrcp.pop %v5786
  %v5788 = vmul.f32 1.0, %v5787
  %v5789 = vtanh.pop %v5773
  %v5790 = vxor.u32 %v5775, 2147483648
  %v5791 = vmul.f32 %v5790, 1.442695
  %v5792 = vpow.pop %v5791
  %v5793 = vadd.f32 %v5792, 1.0
  %v5794 = vrcp.pop %v5793
  %v5795 = vmul.f32 1.0, %v5794
  %v5796 = vmul.f32 %v5788, %v5632
  %v5797 = vmul.f32 %v5782, %v5789
  %v5798 = vadd.f32 %v5796, %v5797
  %v5799 = vtanh.pop %v5798
  %v5800 = vmul.f32 %v5795, %v5799
  %5801 = vmatprep.subr.mxu0 %v5176
  %5802 = vmatpush1.msra.mxu0 %v5175
  %5803 = vmatprep.subr.mxu0 %v5180
  %5804 = vmatpush1.msra.mxu0 %v5179
  %5805 = vmatprep.subr.mxu0 %v5184
  %5806 = vmatpush1.msra.mxu0 %v5183
  %5807 = vmatprep.subr.mxu0 %v5188
  %5808 = vmatpush1.msra.mxu0 %v5187
  %5809 = vmatprep.subr.mxu0 %v5192
  %5810 = vmatpush1.msra.mxu0 %v5191
  %5811 = vmatprep.subr.mxu0 %v5196
  %5812 = vmatpush1.msra.mxu0 %v5195
  %5813 = vmatprep.subr.mxu0 %v5200
  %5814 = vmatpush1.msra.mxu0 %v5199
  %5815 = vmatprep.subr.mxu0 %v5204
  %5816 = vmatpush1.msra.mxu0 %v5203
  %5817 = vmatprep.subr.mxu0 %v5208
  %5818 = vmatpush1.msra.mxu0 %v5207
  %5819 = vmatprep.subr.mxu0 %v5212
  %5820 = vmatpush1.msra.mxu0 %v5211
  %5821 = vmatprep.subr.mxu0 %v5216
  %5822 = vmatpush1.msra.mxu0 %v5215
  %5823 = vmatprep.subr.mxu0 %v5220
  %5824 = vmatpush1.msra.mxu0 %v5219
  %5825 = vmatprep.subr.mxu0 %v5224
  %5826 = vmatpush1.msra.mxu0 %v5223
  %5827 = vmatprep.subr.mxu0 %v5228
  %5828 = vmatpush1.msra.mxu0 %v5227
  %5829 = vmatprep.subr.mxu0 %v5232
  %5830 = vmatpush1.msra.mxu0 %v5231
  %5831 = vmatprep.subr.mxu0 %v5236
  %5832 = vmatpush1.msra.mxu0 %v5235
  %5833 = vmatprep.subr.mxu0 %v5240
  %5834 = vmatpush1.msra.mxu0 %v5239
  %5835 = vmatprep.subr.mxu0 %v5244
  %5836 = vmatpush1.msra.mxu0 %v5243
  %5837 = vmatprep.subr.mxu0 %v5248
  %5838 = vmatpush1.msra.mxu0 %v5247
  %5839 = vmatprep.subr.mxu0 %v5252
  %5840 = vmatpush1.msra.mxu0 %v5251
  %5841 = vmatprep.subr.mxu0 %v5256
  %5842 = vmatpush1.msra.mxu0 %v5255
  %5843 = vmatprep.subr.mxu0 %v5260
  %5844 = vmatpush1.msra.mxu0 %v5259
  %5845 = vmatprep.subr.mxu0 %v5264
  %5846 = vmatpush1.msra.mxu0 %v5263
  %5847 = vmatprep.subr.mxu0 %v5268
  %5848 = vmatpush1.msra.mxu0 %v5267
  %5849 = vmatprep.subr.mxu0 %v5272
  %5850 = vmatpush1.msra.mxu0 %v5271
  %5851 = vmatprep.subr.mxu0 %v5276
  %5852 = vmatpush1.msra.mxu0 %v5275
  %5853 = vmatprep.subr.mxu0 %v5280
  %5854 = vmatpush1.msra.mxu0 %v5279
  %5855 = vmatprep.subr.mxu0 %v5284
  %5856 = vmatpush1.msra.mxu0 %v5283
  %5857 = vmatprep.subr.mxu0 %v5288
  %5858 = vmatpush1.msra.mxu0 %v5287
  %5859 = vmatprep.subr.mxu0 %v5292
  %5860 = vmatpush1.msra.mxu0 %v5291
  %5861 = vmatprep.subr.mxu0 %v5296
  %5862 = vmatpush1.msra.mxu0 %v5295
  %5863 = vmatprep.subr.mxu0 %v5300
  %5864 = vmatpush1.msra.mxu0 %v5299
  %5865 = vmatprep.mubr.f32.mxu0 %v4476
  %5866 = vmatmul.mubr.f32.gmra.mrb[0].mxu0 %v5800
  %v5867 = vpop.f32.mrb[0].mxu0
  %v5868 = vadd.f32 %v5158, %v5867
  %v5869 = vpop.f32.mrb[0].mxu0
  %v5870 = vadd.f32 %v5162, %v5869
  %5871 = vdwg.mxu0
  %5872 = vmatprep.subr.mxu0 %v5178
  %5873 = vmatpush1.msra.mxu0 %v5177
  %5874 = vmatprep.subr.mxu0 %v5182
  %5875 = vmatpush1.msra.mxu0 %v5181
  %5876 = vmatprep.subr.mxu0 %v5186
  %5877 = vmatpush1.msra.mxu0 %v5185
  %5878 = vmatprep.subr.mxu0 %v5190
  %5879 = vmatpush1.msra.mxu0 %v5189
  %5880 = vmatprep.subr.mxu0 %v5194
  %5881 = vmatpush1.msra.mxu0 %v5193
  %5882 = vmatprep.subr.mxu0 %v5198
  %5883 = vmatpush1.msra.mxu0 %v5197
  %5884 = vmatprep.subr.mxu0 %v5202
  %5885 = vmatpush1.msra.mxu0 %v5201
  %5886 = vmatprep.subr.mxu0 %v5206
  %5887 = vmatpush1.msra.mxu0 %v5205
  %5888 = vmatprep.subr.mxu0 %v5210
  %5889 = vmatpush1.msra.mxu0 %v5209
  %5890 = vmatprep.subr.mxu0 %v5214
  %5891 = vmatpush1.msra.mxu0 %v5213
  %5892 = vmatprep.subr.mxu0 %v5218
  %5893 = vmatpush1.msra.mxu0 %v5217
  %5894 = vmatprep.subr.mxu0 %v5222
  %5895 = vmatpush1.msra.mxu0 %v5221
  %5896 = vmatprep.subr.mxu0 %v5226
  %5897 = vmatpush1.msra.mxu0 %v5225
  %5898 = vmatprep.subr.mxu0 %v5230
  %5899 = vmatpush1.msra.mxu0 %v5229
  %5900 = vmatprep.subr.mxu0 %v5234
  %5901 = vmatpush1.msra.mxu0 %v5233
  %5902 = vmatprep.subr.mxu0 %v5238
  %5903 = vmatpush1.msra.mxu0 %v5237
  %5904 = vmatprep.subr.mxu0 %v5242
  %5905 = vmatpush1.msra.mxu0 %v5241
  %5906 = vmatprep.subr.mxu0 %v5246
  %5907 = vmatpush1.msra.mxu0 %v5245
  %5908 = vmatprep.subr.mxu0 %v5250
  %5909 = vmatpush1.msra.mxu0 %v5249
  %5910 = vmatprep.subr.mxu0 %v5254
  %5911 = vmatpush1.msra.mxu0 %v5253
  %5912 = vmatprep.subr.mxu0 %v5258
  %5913 = vmatpush1.msra.mxu0 %v5257
  %5914 = vmatprep.subr.mxu0 %v5262
  %5915 = vmatpush1.msra.mxu0 %v5261
  %5916 = vmatprep.subr.mxu0 %v5266
  %5917 = vmatpush1.msra.mxu0 %v5265
  %5918 = vmatprep.subr.mxu0 %v5270
  %5919 = vmatpush1.msra.mxu0 %v5269
  %5920 = vmatprep.subr.mxu0 %v5274
  %5921 = vmatpush1.msra.mxu0 %v5273
  %5922 = vmatprep.subr.mxu0 %v5278
  %5923 = vmatpush1.msra.mxu0 %v5277
  %5924 = vmatprep.subr.mxu0 %v5282
  %5925 = vmatpush1.msra.mxu0 %v5281
  %5926 = vmatprep.subr.mxu0 %v5286
  %5927 = vmatpush1.msra.mxu0 %v5285
  %5928 = vmatprep.subr.mxu0 %v5290
  %5929 = vmatpush1.msra.mxu0 %v5289
  %5930 = vmatprep.subr.mxu0 %v5294
  %5931 = vmatpush1.msra.mxu0 %v5293
  %5932 = vmatprep.subr.mxu0 %v5298
  %5933 = vmatpush1.msra.mxu0 %v5297
  %5934 = vmatprep.subr.mxu0 %v5302
  %5935 = vmatpush1.msra.mxu0 %v5301
  %5936 = vmatprep.mubr.f32.mxu0 %v4476
  %5937 = vmatmul.mubr.f32.gmra.mrb[0].mxu0 %v5800
  %v5938 = vpop.f32.mrb[0].mxu0
  %v5939 = vadd.f32 %v5166, %v5938
  %v5940 = vpop.f32.mrb[0].mxu0
  %v5941 = vadd.f32 %v5170, %v5940
  %5942 = vdwg.mxu0
  %v5943 = vxor.u32 %v5868, 2147483648
  %v5944 = vmul.f32 %v5943, 1.442695
  %v5945 = vpow.pop %v5944
  %v5946 = vadd.f32 %v5945, 1.0
  %v5947 = vrcp.pop %v5946
  %v5948 = vmul.f32 1.0, %v5947
  %v5949 = vxor.u32 %v5870, 2147483648
  %v5950 = vmul.f32 %v5949, 1.442695
  %v5951 = vpow.pop %v5950
  %v5952 = vadd.f32 %v5951, 1.0
  %v5953 = vrcp.pop %v5952
  %v5954 = vmul.f32 1.0, %v5953
  %v5955 = vtanh.pop %v5939
  %v5956 = vxor.u32 %v5941, 2147483648
  %v5957 = vmul.f32 %v5956, 1.442695
  %v5958 = vpow.pop %v5957
  %v5959 = vadd.f32 %v5958, 1.0
  %v5960 = vrcp.pop %v5959
  %v5961 = vmul.f32 1.0, %v5960
  %v5962 = vmul.f32 %v5954, %v5798
  %v5963 = vmul.f32 %v5948, %v5955
  %v5964 = vadd.f32 %v5962, %v5963
  %v5965 = vtanh.pop %v5964
  %v5966 = vmul.f32 %v5961, %v5965
  %5967 = vmatprep.subr.mxu0 %v5176
  %5968 = vmatpush1.msra.mxu0 %v5175
  %5969 = vmatprep.subr.mxu0 %v5180
  %5970 = vmatpush1.msra.mxu0 %v5179
  %5971 = vmatprep.subr.mxu0 %v5184
  %5972 = vmatpush1.msra.mxu0 %v5183
  %5973 = vmatprep.subr.mxu0 %v5188
  %5974 = vmatpush1.msra.mxu0 %v5187
  %5975 = vmatprep.subr.mxu0 %v5192
  %5976 = vmatpush1.msra.mxu0 %v5191
  %5977 = vmatprep.subr.mxu0 %v5196
  %5978 = vmatpush1.msra.mxu0 %v5195
  %5979 = vmatprep.subr.mxu0 %v5200
  %5980 = vmatpush1.msra.mxu0 %v5199
  %5981 = vmatprep.subr.mxu0 %v5204
  %5982 = vmatpush1.msra.mxu0 %v5203
  %5983 = vmatprep.subr.mxu0 %v5208
  %5984 = vmatpush1.msra.mxu0 %v5207
  %5985 = vmatprep.subr.mxu0 %v5212
  %5986 = vmatpush1.msra.mxu0 %v5211
  %5987 = vmatprep.subr.mxu0 %v5216
  %5988 = vmatpush1.msra.mxu0 %v5215
  %5989 = vmatprep.subr.mxu0 %v5220
  %5990 = vmatpush1.msra.mxu0 %v5219
  %5991 = vmatprep.subr.mxu0 %v5224
  %5992 = vmatpush1.msra.mxu0 %v5223
  %5993 = vmatprep.subr.mxu0 %v5228
  %5994 = vmatpush1.msra.mxu0 %v5227
  %5995 = vmatprep.subr.mxu0 %v5232
  %5996 = vmatpush1.msra.mxu0 %v5231
  %5997 = vmatprep.subr.mxu0 %v5236
  %5998 = vmatpush1.msra.mxu0 %v5235
  %5999 = vmatprep.subr.mxu0 %v5240
  %6000 = vmatpush1.msra.mxu0 %v5239
  %6001 = vmatprep.subr.mxu0 %v5244
  %6002 = vmatpush1.msra.mxu0 %v5243
  %6003 = vmatprep.subr.mxu0 %v5248
  %6004 = vmatpush1.msra.mxu0 %v5247
  %6005 = vmatprep.subr.mxu0 %v5252
  %6006 = vmatpush1.msra.mxu0 %v5251
  %6007 = vmatprep.subr.mxu0 %v5256
  %6008 = vmatpush1.msra.mxu0 %v5255
  %6009 = vmatprep.subr.mxu0 %v5260
  %6010 = vmatpush1.msra.mxu0 %v5259
  %6011 = vmatprep.subr.mxu0 %v5264
  %6012 = vmatpush1.msra.mxu0 %v5263
  %6013 = vmatprep.subr.mxu0 %v5268
  %6014 = vmatpush1.msra.mxu0 %v5267
  %6015 = vmatprep.subr.mxu0 %v5272
  %6016 = vmatpush1.msra.mxu0 %v5271
  %6017 = vmatprep.subr.mxu0 %v5276
  %6018 = vmatpush1.msra.mxu0 %v5275
  %6019 = vmatprep.subr.mxu0 %v5280
  %6020 = vmatpush1.msra.mxu0 %v5279
  %6021 = vmatprep.subr.mxu0 %v5284
  %6022 = vmatpush1.msra.mxu0 %v5283
  %6023 = vmatprep.subr.mxu0 %v5288
  %6024 = vmatpush1.msra.mxu0 %v5287
  %6025 = vmatprep.subr.mxu0 %v5292
  %6026 = vmatpush1.msra.mxu0 %v5291
  %6027 = vmatprep.subr.mxu0 %v5296
  %6028 = vmatpush1.msra.mxu0 %v5295
  %6029 = vmatprep.subr.mxu0 %v5300
  %6030 = vmatpush1.msra.mxu0 %v5299
  %6031 = vmatprep.mubr.f32.mxu0 %v4645
  %6032 = vmatmul.mubr.f32.gmra.mrb[0].mxu0 %v5966
  %v6033 = vpop.f32.mrb[0].mxu0
  %v6034 = vadd.f32 %v5158, %v6033
  %v6035 = vpop.f32.mrb[0].mxu0
  %v6036 = vadd.f32 %v5162, %v6035
  %6037 = vdwg.mxu0
  %6038 = vmatprep.subr.mxu0 %v5178
  %6039 = vmatpush1.msra.mxu0 %v5177
  %6040 = vmatprep.subr.mxu0 %v5182
  %6041 = vmatpush1.msra.mxu0 %v5181
  %6042 = vmatprep.subr.mxu0 %v5186
  %6043 = vmatpush1.msra.mxu0 %v5185
  %6044 = vmatprep.subr.mxu0 %v5190
  %6045 = vmatpush1.msra.mxu0 %v5189
  %6046 = vmatprep.subr.mxu0 %v5194
  %6047 = vmatpush1.msra.mxu0 %v5193
  %6048 = vmatprep.subr.mxu0 %v5198
  %6049 = vmatpush1.msra.mxu0 %v5197
  %6050 = vmatprep.subr.mxu0 %v5202
  %6051 = vmatpush1.msra.mxu0 %v5201
  %6052 = vmatprep.subr.mxu0 %v5206
  %6053 = vmatpush1.msra.mxu0 %v5205
  %6054 = vmatprep.subr.mxu0 %v5210
  %6055 = vmatpush1.msra.mxu0 %v5209
  %6056 = vmatprep.subr.mxu0 %v5214
  %6057 = vmatpush1.msra.mxu0 %v5213
  %6058 = vmatprep.subr.mxu0 %v5218
  %6059 = vmatpush1.msra.mxu0 %v5217
  %6060 = vmatprep.subr.mxu0 %v5222
  %6061 = vmatpush1.msra.mxu0 %v5221
  %6062 = vmatprep.subr.mxu0 %v5226
  %6063 = vmatpush1.msra.mxu0 %v5225
  %6064 = vmatprep.subr.mxu0 %v5230
  %6065 = vmatpush1.msra.mxu0 %v5229
  %6066 = vmatprep.subr.mxu0 %v5234
  %6067 = vmatpush1.msra.mxu0 %v5233
  %6068 = vmatprep.subr.mxu0 %v5238
  %6069 = vmatpush1.msra.mxu0 %v5237
  %6070 = vmatprep.subr.mxu0 %v5242
  %6071 = vmatpush1.msra.mxu0 %v5241
  %6072 = vmatprep.subr.mxu0 %v5246
  %6073 = vmatpush1.msra.mxu0 %v5245
  %6074 = vmatprep.subr.mxu0 %v5250
  %6075 = vmatpush1.msra.mxu0 %v5249
  %6076 = vmatprep.subr.mxu0 %v5254
  %6077 = vmatpush1.msra.mxu0 %v5253
  %6078 = vmatprep.subr.mxu0 %v5258
  %6079 = vmatpush1.msra.mxu0 %v5257
  %6080 = vmatprep.subr.mxu0 %v5262
  %6081 = vmatpush1.msra.mxu0 %v5261
  %6082 = vmatprep.subr.mxu0 %v5266
  %6083 = vmatpush1.msra.mxu0 %v5265
  %6084 = vmatprep.subr.mxu0 %v5270
  %6085 = vmatpush1.msra.mxu0 %v5269
  %6086 = vmatprep.subr.mxu0 %v5274
  %6087 = vmatpush1.msra.mxu0 %v5273
  %6088 = vmatprep.subr.mxu0 %v5278
  %6089 = vmatpush1.msra.mxu0 %v5277
  %6090 = vmatprep.subr.mxu0 %v5282
  %6091 = vmatpush1.msra.mxu0 %v5281
  %6092 = vmatprep.subr.mxu0 %v5286
  %6093 = vmatpush1.msra.mxu0 %v5285
  %6094 = vmatprep.subr.mxu0 %v5290
  %6095 = vmatpush1.msra.mxu0 %v5289
  %6096 = vmatprep.subr.mxu0 %v5294
  %6097 = vmatpush1.msra.mxu0 %v5293
  %6098 = vmatprep.subr.mxu0 %v5298
  %6099 = vmatpush1.msra.mxu0 %v5297
  %6100 = vmatprep.subr.mxu0 %v5302
  %6101 = vmatpush1.msra.mxu0 %v5301
  %6102 = vmatprep.mubr.f32.mxu0 %v4645
  %6103 = vmatmul.mubr.f32.gmra.mrb[0].mxu0 %v5966
  %v6104 = vpop.f32.mrb[0].mxu0
  %v6105 = vadd.f32 %v5166, %v6104
  %v6106 = vpop.f32.mrb[0].mxu0
  %v6107 = vadd.f32 %v5170, %v6106
  %6108 = vdwg.mxu0
  %v6109 = vxor.u32 %v6034, 2147483648
  %v6110 = vmul.f32 %v6109, 1.442695
  %v6111 = vpow.pop %v6110
  %v6112 = vadd.f32 %v6111, 1.0
  %v6113 = vrcp.pop %v6112
  %v6114 = vmul.f32 1.0, %v6113
  %v6115 = vxor.u32 %v6036, 2147483648
  %v6116 = vmul.f32 %v6115, 1.442695
  %v6117 = vpow.pop %v6116
  %v6118 = vadd.f32 %v6117, 1.0
  %v6119 = vrcp.pop %v6118
  %v6120 = vmul.f32 1.0, %v6119
  %v6121 = vtanh.pop %v6105
  %v6122 = vxor.u32 %v6107, 2147483648
  %v6123 = vmul.f32 %v6122, 1.442695
  %v6124 = vpow.pop %v6123
  %v6125 = vadd.f32 %v6124, 1.0
  %v6126 = vrcp.pop %v6125
  %v6127 = vmul.f32 1.0, %v6126
  %v6128 = vmul.f32 %v6120, %v5964
  %v6129 = vmul.f32 %v6114, %v6121
  %v6130 = vadd.f32 %v6128, %v6129
  %v6131 = vtanh.pop %v6130
  %v6132 = vmul.f32 %v6127, %v6131
  %6133 = vmatprep.subr.mxu0 %v5176
  %6134 = vmatpush1.msra.mxu0 %v5175
  %6135 = vmatprep.subr.mxu0 %v5180
  %6136 = vmatpush1.msra.mxu0 %v5179
  %6137 = vmatprep.subr.mxu0 %v5184
  %6138 = vmatpush1.msra.mxu0 %v5183
  %6139 = vmatprep.subr.mxu0 %v5188
  %6140 = vmatpush1.msra.mxu0 %v5187
  %6141 = vmatprep.subr.mxu0 %v5192
  %6142 = vmatpush1.msra.mxu0 %v5191
  %6143 = vmatprep.subr.mxu0 %v5196
  %6144 = vmatpush1.msra.mxu0 %v5195
  %6145 = vmatprep.subr.mxu0 %v5200
  %6146 = vmatpush1.msra.mxu0 %v5199
  %6147 = vmatprep.subr.mxu0 %v5204
  %6148 = vmatpush1.msra.mxu0 %v5203
  %6149 = vmatprep.subr.mxu0 %v5208
  %6150 = vmatpush1.msra.mxu0 %v5207
  %6151 = vmatprep.subr.mxu0 %v5212
  %6152 = vmatpush1.msra.mxu0 %v5211
  %6153 = vmatprep.subr.mxu0 %v5216
  %6154 = vmatpush1.msra.mxu0 %v5215
  %6155 = vmatprep.subr.mxu0 %v5220
  %6156 = vmatpush1.msra.mxu0 %v5219
  %6157 = vmatprep.subr.mxu0 %v5224
  %6158 = vmatpush1.msra.mxu0 %v5223
  %6159 = vmatprep.subr.mxu0 %v5228
  %6160 = vmatpush1.msra.mxu0 %v5227
  %6161 = vmatprep.subr.mxu0 %v5232
  %6162 = vmatpush1.msra.mxu0 %v5231
  %6163 = vmatprep.subr.mxu0 %v5236
  %6164 = vmatpush1.msra.mxu0 %v5235
  %6165 = vmatprep.subr.mxu0 %v5240
  %6166 = vmatpush1.msra.mxu0 %v5239
  %6167 = vmatprep.subr.mxu0 %v5244
  %6168 = vmatpush1.msra.mxu0 %v5243
  %6169 = vmatprep.subr.mxu0 %v5248
  %6170 = vmatpush1.msra.mxu0 %v5247
  %6171 = vmatprep.subr.mxu0 %v5252
  %6172 = vmatpush1.msra.mxu0 %v5251
  %6173 = vmatprep.subr.mxu0 %v5256
  %6174 = vmatpush1.msra.mxu0 %v5255
  %6175 = vmatprep.subr.mxu0 %v5260
  %6176 = vmatpush1.msra.mxu0 %v5259
  %6177 = vmatprep.subr.mxu0 %v5264
  %6178 = vmatpush1.msra.mxu0 %v5263
  %6179 = vmatprep.subr.mxu0 %v5268
  %6180 = vmatpush1.msra.mxu0 %v5267
  %6181 = vmatprep.subr.mxu0 %v5272
  %6182 = vmatpush1.msra.mxu0 %v5271
  %6183 = vmatprep.subr.mxu0 %v5276
  %6184 = vmatpush1.msra.mxu0 %v5275
  %6185 = vmatprep.subr.mxu0 %v5280
  %6186 = vmatpush1.msra.mxu0 %v5279
  %6187 = vmatprep.subr.mxu0 %v5284
  %6188 = vmatpush1.msra.mxu0 %v5283
  %6189 = vmatprep.subr.mxu0 %v5288
  %6190 = vmatpush1.msra.mxu0 %v5287
  %6191 = vmatprep.subr.mxu0 %v5292
  %6192 = vmatpush1.msra.mxu0 %v5291
  %6193 = vmatprep.subr.mxu0 %v5296
  %6194 = vmatpush1.msra.mxu0 %v5295
  %6195 = vmatprep.subr.mxu0 %v5300
  %6196 = vmatpush1.msra.mxu0 %v5299
  %6197 = vmatprep.mubr.f32.mxu0 %v4814
  %6198 = vmatmul.mubr.f32.gmra.mrb[0].mxu0 %v6132
  %v6199 = vpop.f32.mrb[0].mxu0
  %v6200 = vadd.f32 %v5158, %v6199
  %v6201 = vpop.f32.mrb[0].mxu0
  %v6202 = vadd.f32 %v5162, %v6201
  %6203 = vdwg.mxu0
  %6204 = vmatprep.subr.mxu0 %v5178
  %6205 = vmatpush1.msra.mxu0 %v5177
  %6206 = vmatprep.subr.mxu0 %v5182
  %6207 = vmatpush1.msra.mxu0 %v5181
  %6208 = vmatprep.subr.mxu0 %v5186
  %6209 = vmatpush1.msra.mxu0 %v5185
  %6210 = vmatprep.subr.mxu0 %v5190
  %6211 = vmatpush1.msra.mxu0 %v5189
  %6212 = vmatprep.subr.mxu0 %v5194
  %6213 = vmatpush1.msra.mxu0 %v5193
  %6214 = vmatprep.subr.mxu0 %v5198
  %6215 = vmatpush1.msra.mxu0 %v5197
  %6216 = vmatprep.subr.mxu0 %v5202
  %6217 = vmatpush1.msra.mxu0 %v5201
  %6218 = vmatprep.subr.mxu0 %v5206
  %6219 = vmatpush1.msra.mxu0 %v5205
  %6220 = vmatprep.subr.mxu0 %v5210
  %6221 = vmatpush1.msra.mxu0 %v5209
  %6222 = vmatprep.subr.mxu0 %v5214
  %6223 = vmatpush1.msra.mxu0 %v5213
  %6224 = vmatprep.subr.mxu0 %v5218
  %6225 = vmatpush1.msra.mxu0 %v5217
  %6226 = vmatprep.subr.mxu0 %v5222
  %6227 = vmatpush1.msra.mxu0 %v5221
  %6228 = vmatprep.subr.mxu0 %v5226
  %6229 = vmatpush1.msra.mxu0 %v5225
  %6230 = vmatprep.subr.mxu0 %v5230
  %6231 = vmatpush1.msra.mxu0 %v5229
  %6232 = vmatprep.subr.mxu0 %v5234
  %6233 = vmatpush1.msra.mxu0 %v5233
  %6234 = vmatprep.subr.mxu0 %v5238
  %6235 = vmatpush1.msra.mxu0 %v5237
  %6236 = vmatprep.subr.mxu0 %v5242
  %6237 = vmatpush1.msra.mxu0 %v5241
  %6238 = vmatprep.subr.mxu0 %v5246
  %6239 = vmatpush1.msra.mxu0 %v5245
  %6240 = vmatprep.subr.mxu0 %v5250
  %6241 = vmatpush1.msra.mxu0 %v5249
  %6242 = vmatprep.subr.mxu0 %v5254
  %6243 = vmatpush1.msra.mxu0 %v5253
  %6244 = vmatprep.subr.mxu0 %v5258
  %6245 = vmatpush1.msra.mxu0 %v5257
  %6246 = vmatprep.subr.mxu0 %v5262
  %6247 = vmatpush1.msra.mxu0 %v5261
  %6248 = vmatprep.subr.mxu0 %v5266
  %6249 = vmatpush1.msra.mxu0 %v5265
  %6250 = vmatprep.subr.mxu0 %v5270
  %6251 = vmatpush1.msra.mxu0 %v5269
  %6252 = vmatprep.subr.mxu0 %v5274
  %6253 = vmatpush1.msra.mxu0 %v5273
  %6254 = vmatprep.subr.mxu0 %v5278
  %6255 = vmatpush1.msra.mxu0 %v5277
  %6256 = vmatprep.subr.mxu0 %v5282
  %6257 = vmatpush1.msra.mxu0 %v5281
  %6258 = vmatprep.subr.mxu0 %v5286
  %6259 = vmatpush1.msra.mxu0 %v5285
  %6260 = vmatprep.subr.mxu0 %v5290
  %6261 = vmatpush1.msra.mxu0 %v5289
  %6262 = vmatprep.subr.mxu0 %v5294
  %6263 = vmatpush1.msra.mxu0 %v5293
  %6264 = vmatprep.subr.mxu0 %v5298
  %6265 = vmatpush1.msra.mxu0 %v5297
  %6266 = vmatprep.subr.mxu0 %v5302
  %6267 = vmatpush1.msra.mxu0 %v5301
  %6268 = vmatprep.mubr.f32.mxu0 %v4814
  %6269 = vmatmul.mubr.f32.gmra.mrb[0].mxu0 %v6132
  %v6270 = vpop.f32.mrb[0].mxu0
  %v6271 = vadd.f32 %v5166, %v6270
  %v6272 = vpop.f32.mrb[0].mxu0
  %v6273 = vadd.f32 %v5170, %v6272
  %6274 = vdwg.mxu0
  %v6275 = vxor.u32 %v6200, 2147483648
  %v6276 = vmul.f32 %v6275, 1.442695
  %v6277 = vpow.pop %v6276
  %v6278 = vadd.f32 %v6277, 1.0
  %v6279 = vrcp.pop %v6278
  %v6280 = vmul.f32 1.0, %v6279
  %v6281 = vxor.u32 %v6202, 2147483648
  %v6282 = vmul.f32 %v6281, 1.442695
  %v6283 = vpow.pop %v6282
  %v6284 = vadd.f32 %v6283, 1.0
  %v6285 = vrcp.pop %v6284
  %v6286 = vmul.f32 1.0, %v6285
  %v6287 = vtanh.pop %v6271
  %v6288 = vxor.u32 %v6273, 2147483648
  %v6289 = vmul.f32 %v6288, 1.442695
  %v6290 = vpow.pop %v6289
  %v6291 = vadd.f32 %v6290, 1.0
  %v6292 = vrcp.pop %v6291
  %v6293 = vmul.f32 1.0, %v6292
  %v6294 = vmul.f32 %v6286, %v6130
  %v6295 = vmul.f32 %v6280, %v6287
  %v6296 = vadd.f32 %v6294, %v6295
  %v6297 = vtanh.pop %v6296
  %v6298 = vmul.f32 %v6293, %v6297
  %6299 = vmatprep.subr.mxu0 %v5176
  %6300 = vmatpush1.msra.mxu0 %v5175
  %6301 = vmatprep.subr.mxu0 %v5180
  %6302 = vmatpush1.msra.mxu0 %v5179
  %6303 = vmatprep.subr.mxu0 %v5184
  %6304 = vmatpush1.msra.mxu0 %v5183
  %6305 = vmatprep.subr.mxu0 %v5188
  %6306 = vmatpush1.msra.mxu0 %v5187
  %6307 = vmatprep.subr.mxu0 %v5192
  %6308 = vmatpush1.msra.mxu0 %v5191
  %6309 = vmatprep.subr.mxu0 %v5196
  %6310 = vmatpush1.msra.mxu0 %v5195
  %6311 = vmatprep.subr.mxu0 %v5200
  %6312 = vmatpush1.msra.mxu0 %v5199
  %6313 = vmatprep.subr.mxu0 %v5204
  %6314 = vmatpush1.msra.mxu0 %v5203
  %6315 = vmatprep.subr.mxu0 %v5208
  %6316 = vmatpush1.msra.mxu0 %v5207
  %6317 = vmatprep.subr.mxu0 %v5212
  %6318 = vmatpush1.msra.mxu0 %v5211
  %6319 = vmatprep.subr.mxu0 %v5216
  %6320 = vmatpush1.msra.mxu0 %v5215
  %6321 = vmatprep.subr.mxu0 %v5220
  %6322 = vmatpush1.msra.mxu0 %v5219
  %6323 = vmatprep.subr.mxu0 %v5224
  %6324 = vmatpush1.msra.mxu0 %v5223
  %6325 = vmatprep.subr.mxu0 %v5228
  %6326 = vmatpush1.msra.mxu0 %v5227
  %6327 = vmatprep.subr.mxu0 %v5232
  %6328 = vmatpush1.msra.mxu0 %v5231
  %6329 = vmatprep.subr.mxu0 %v5236
  %6330 = vmatpush1.msra.mxu0 %v5235
  %6331 = vmatprep.subr.mxu0 %v5240
  %6332 = vmatpush1.msra.mxu0 %v5239
  %6333 = vmatprep.subr.mxu0 %v5244
  %6334 = vmatpush1.msra.mxu0 %v5243
  %6335 = vmatprep.subr.mxu0 %v5248
  %6336 = vmatpush1.msra.mxu0 %v5247
  %6337 = vmatprep.subr.mxu0 %v5252
  %6338 = vmatpush1.msra.mxu0 %v5251
  %6339 = vmatprep.subr.mxu0 %v5256
  %6340 = vmatpush1.msra.mxu0 %v5255
  %6341 = vmatprep.subr.mxu0 %v5260
  %6342 = vmatpush1.msra.mxu0 %v5259
  %6343 = vmatprep.subr.mxu0 %v5264
  %6344 = vmatpush1.msra.mxu0 %v5263
  %6345 = vmatprep.subr.mxu0 %v5268
  %6346 = vmatpush1.msra.mxu0 %v5267
  %6347 = vmatprep.subr.mxu0 %v5272
  %6348 = vmatpush1.msra.mxu0 %v5271
  %6349 = vmatprep.subr.mxu0 %v5276
  %6350 = vmatpush1.msra.mxu0 %v5275
  %6351 = vmatprep.subr.mxu0 %v5280
  %6352 = vmatpush1.msra.mxu0 %v5279
  %6353 = vmatprep.subr.mxu0 %v5284
  %6354 = vmatpush1.msra.mxu0 %v5283
  %6355 = vmatprep.subr.mxu0 %v5288
  %6356 = vmatpush1.msra.mxu0 %v5287
  %6357 = vmatprep.subr.mxu0 %v5292
  %6358 = vmatpush1.msra.mxu0 %v5291
  %6359 = vmatprep.subr.mxu0 %v5296
  %6360 = vmatpush1.msra.mxu0 %v5295
  %6361 = vmatprep.subr.mxu0 %v5300
  %6362 = vmatpush1.msra.mxu0 %v5299
  %6363 = vmatprep.mubr.f32.mxu0 %v4983
  %6364 = vmatmul.mubr.f32.gmra.mrb[0].mxu0 %v6298
  %v6365 = vpop.f32.mrb[0].mxu0
  %v6366 = vadd.f32 %v5158, %v6365
  %v6367 = vpop.f32.mrb[0].mxu0
  %v6368 = vadd.f32 %v5162, %v6367
  %6369 = vdwg.mxu0
  %6370 = vmatprep.subr.mxu0 %v5178
  %6371 = vmatpush1.msra.mxu0 %v5177
  %6372 = vmatprep.subr.mxu0 %v5182
  %6373 = vmatpush1.msra.mxu0 %v5181
  %6374 = vmatprep.subr.mxu0 %v5186
  %6375 = vmatpush1.msra.mxu0 %v5185
  %6376 = vmatprep.subr.mxu0 %v5190
  %6377 = vmatpush1.msra.mxu0 %v5189
  %6378 = vmatprep.subr.mxu0 %v5194
  %6379 = vmatpush1.msra.mxu0 %v5193
  %6380 = vmatprep.subr.mxu0 %v5198
  %6381 = vmatpush1.msra.mxu0 %v5197
  %6382 = vmatprep.subr.mxu0 %v5202
  %6383 = vmatpush1.msra.mxu0 %v5201
  %6384 = vmatprep.subr.mxu0 %v5206
  %6385 = vmatpush1.msra.mxu0 %v5205
  %6386 = vmatprep.subr.mxu0 %v5210
  %6387 = vmatpush1.msra.mxu0 %v5209
  %6388 = vmatprep.subr.mxu0 %v5214
  %6389 = vmatpush1.msra.mxu0 %v5213
  %6390 = vmatprep.subr.mxu0 %v5218
  %6391 = vmatpush1.msra.mxu0 %v5217
  %6392 = vmatprep.subr.mxu0 %v5222
  %6393 = vmatpush1.msra.mxu0 %v5221
  %6394 = vmatprep.subr.mxu0 %v5226
  %6395 = vmatpush1.msra.mxu0 %v5225
  %6396 = vmatprep.subr.mxu0 %v5230
  %6397 = vmatpush1.msra.mxu0 %v5229
  %6398 = vmatprep.subr.mxu0 %v5234
  %6399 = vmatpush1.msra.mxu0 %v5233
  %6400 = vmatprep.subr.mxu0 %v5238
  %6401 = vmatpush1.msra.mxu0 %v5237
  %6402 = vmatprep.subr.mxu0 %v5242
  %6403 = vmatpush1.msra.mxu0 %v5241
  %6404 = vmatprep.subr.mxu0 %v5246
  %6405 = vmatpush1.msra.mxu0 %v5245
  %6406 = vmatprep.subr.mxu0 %v5250
  %6407 = vmatpush1.msra.mxu0 %v5249
  %6408 = vmatprep.subr.mxu0 %v5254
  %6409 = vmatpush1.msra.mxu0 %v5253
  %6410 = vmatprep.subr.mxu0 %v5258
  %6411 = vmatpush1.msra.mxu0 %v5257
  %6412 = vmatprep.subr.mxu0 %v5262
  %6413 = vmatpush1.msra.mxu0 %v5261
  %6414 = vmatprep.subr.mxu0 %v5266
  %6415 = vmatpush1.msra.mxu0 %v5265
  %6416 = vmatprep.subr.mxu0 %v5270
  %6417 = vmatpush1.msra.mxu0 %v5269
  %6418 = vmatprep.subr.mxu0 %v5274
  %6419 = vmatpush1.msra.mxu0 %v5273
  %6420 = vmatprep.subr.mxu0 %v5278
  %6421 = vmatpush1.msra.mxu0 %v5277
  %6422 = vmatprep.subr.mxu0 %v5282
  %6423 = vmatpush1.msra.mxu0 %v5281
  %6424 = vmatprep.subr.mxu0 %v5286
  %6425 = vmatpush1.msra.mxu0 %v5285
  %6426 = vmatprep.subr.mxu0 %v5290
  %6427 = vmatpush1.msra.mxu0 %v5289
  %6428 = vmatprep.subr.mxu0 %v5294
  %6429 = vmatpush1.msra.mxu0 %v5293
  %6430 = vmatprep.subr.mxu0 %v5298
  %6431 = vmatpush1.msra.mxu0 %v5297
  %6432 = vmatprep.subr.mxu0 %v5302
  %6433 = vmatpush1.msra.mxu0 %v5301
  %6434 = vmatprep.mubr.f32.mxu0 %v4983
  %6435 = vmatmul.mubr.f32.gmra.mrb[0].mxu0 %v6298
  %v6436 = vpop.f32.mrb[0].mxu0
  %v6437 = vadd.f32 %v5166, %v6436
  %v6438 = vpop.f32.mrb[0].mxu0
  %v6439 = vadd.f32 %v5170, %v6438
  %6440 = vdwg.mxu0
  %v6441 = vxor.u32 %v6366, 2147483648
  %v6442 = vmul.f32 %v6441, 1.442695
  %v6443 = vpow.pop %v6442
  %v6444 = vadd.f32 %v6443, 1.0
  %v6445 = vrcp.pop %v6444
  %v6446 = vmul.f32 1.0, %v6445
  %v6447 = vxor.u32 %v6368, 2147483648
  %v6448 = vmul.f32 %v6447, 1.442695
  %v6449 = vpow.pop %v6448
  %v6450 = vadd.f32 %v6449, 1.0
  %v6451 = vrcp.pop %v6450
  %v6452 = vmul.f32 1.0, %v6451
  %v6453 = vtanh.pop %v6437
  %v6454 = vxor.u32 %v6439, 2147483648
  %v6455 = vmul.f32 %v6454, 1.442695
  %v6456 = vpow.pop %v6455
  %v6457 = vadd.f32 %v6456, 1.0
  %v6458 = vrcp.pop %v6457
  %v6459 = vmul.f32 1.0, %v6458
  %v6460 = vmul.f32 %v6452, %v6296
  %v6461 = vmul.f32 %v6446, %v6453
  %v6462 = vadd.f32 %v6460, %v6461
  %v6463 = vtanh.pop %v6462
  %v6464 = vmul.f32 %v6459, %v6463
  %6465 = vmatprep.subr.mxu0 %v5176
  %6466 = vmatpush1.msra.mxu0 %v5175
  %6467 = vmatprep.subr.mxu0 %v5180
  %6468 = vmatpush1.msra.mxu0 %v5179
  %6469 = vmatprep.subr.mxu0 %v5184
  %6470 = vmatpush1.msra.mxu0 %v5183
  %6471 = vmatprep.subr.mxu0 %v5188
  %6472 = vmatpush1.msra.mxu0 %v5187
  %6473 = vmatprep.subr.mxu0 %v5192
  %6474 = vmatpush1.msra.mxu0 %v5191
  %6475 = vmatprep.subr.mxu0 %v5196
  %6476 = vmatpush1.msra.mxu0 %v5195
  %6477 = vmatprep.subr.mxu0 %v5200
  %6478 = vmatpush1.msra.mxu0 %v5199
  %6479 = vmatprep.subr.mxu0 %v5204
  %6480 = vmatpush1.msra.mxu0 %v5203
  %6481 = vmatprep.subr.mxu0 %v5208
  %6482 = vmatpush1.msra.mxu0 %v5207
  %6483 = vmatprep.subr.mxu0 %v5212
  %6484 = vmatpush1.msra.mxu0 %v5211
  %6485 = vmatprep.subr.mxu0 %v5216
  %6486 = vmatpush1.msra.mxu0 %v5215
  %6487 = vmatprep.subr.mxu0 %v5220
  %6488 = vmatpush1.msra.mxu0 %v5219
  %6489 = vmatprep.subr.mxu0 %v5224
  %6490 = vmatpush1.msra.mxu0 %v5223
  %6491 = vmatprep.subr.mxu0 %v5228
  %6492 = vmatpush1.msra.mxu0 %v5227
  %6493 = vmatprep.subr.mxu0 %v5232
  %6494 = vmatpush1.msra.mxu0 %v5231
  %6495 = vmatprep.subr.mxu0 %v5236
  %6496 = vmatpush1.msra.mxu0 %v5235
  %6497 = vmatprep.subr.mxu0 %v5240
  %6498 = vmatpush1.msra.mxu0 %v5239
  %6499 = vmatprep.subr.mxu0 %v5244
  %6500 = vmatpush1.msra.mxu0 %v5243
  %6501 = vmatprep.subr.mxu0 %v5248
  %6502 = vmatpush1.msra.mxu0 %v5247
  %6503 = vmatprep.subr.mxu0 %v5252
  %6504 = vmatpush1.msra.mxu0 %v5251
  %6505 = vmatprep.subr.mxu0 %v5256
  %6506 = vmatpush1.msra.mxu0 %v5255
  %6507 = vmatprep.subr.mxu0 %v5260
  %6508 = vmatpush1.msra.mxu0 %v5259
  %6509 = vmatprep.subr.mxu0 %v5264
  %6510 = vmatpush1.msra.mxu0 %v5263
  %6511 = vmatprep.subr.mxu0 %v5268
  %6512 = vmatpush1.msra.mxu0 %v5267
  %6513 = vmatprep.subr.mxu0 %v5272
  %6514 = vmatpush1.msra.mxu0 %v5271
  %6515 = vmatprep.subr.mxu0 %v5276
  %6516 = vmatpush1.msra.mxu0 %v5275
  %6517 = vmatprep.subr.mxu0 %v5280
  %6518 = vmatpush1.msra.mxu0 %v5279
  %6519 = vmatprep.subr.mxu0 %v5284
  %6520 = vmatpush1.msra.mxu0 %v5283
  %6521 = vmatprep.subr.mxu0 %v5288
  %6522 = vmatpush1.msra.mxu0 %v5287
  %6523 = vmatprep.subr.mxu0 %v5292
  %6524 = vmatpush1.msra.mxu0 %v5291
  %6525 = vmatprep.subr.mxu0 %v5296
  %6526 = vmatpush1.msra.mxu0 %v5295
  %6527 = vmatprep.subr.mxu0 %v5300
  %6528 = vmatpush1.msra.mxu0 %v5299
  %6529 = vmatprep.mubr.f32.mxu0 %v5152
  %6530 = vmatmul.mubr.f32.gmra.mrb[0].mxu0 %v6464
  %v6531 = vpop.f32.mrb[0].mxu0
  %v6532 = vadd.f32 %v5158, %v6531
  %v6533 = vpop.f32.mrb[0].mxu0
  %v6534 = vadd.f32 %v5162, %v6533
  %6535 = vdwg.mxu0
  %6536 = vmatprep.subr.mxu0 %v5178
  %6537 = vmatpush1.msra.mxu0 %v5177
  %6538 = vmatprep.subr.mxu0 %v5182
  %6539 = vmatpush1.msra.mxu0 %v5181
  %6540 = vmatprep.subr.mxu0 %v5186
  %6541 = vmatpush1.msra.mxu0 %v5185
  %6542 = vmatprep.subr.mxu0 %v5190
  %6543 = vmatpush1.msra.mxu0 %v5189
  %6544 = vmatprep.subr.mxu0 %v5194
  %6545 = vmatpush1.msra.mxu0 %v5193
  %6546 = vmatprep.subr.mxu0 %v5198
  %6547 = vmatpush1.msra.mxu0 %v5197
  %6548 = vmatprep.subr.mxu0 %v5202
  %6549 = vmatpush1.msra.mxu0 %v5201
  %6550 = vmatprep.subr.mxu0 %v5206
  %6551 = vmatpush1.msra.mxu0 %v5205
  %6552 = vmatprep.subr.mxu0 %v5210
  %6553 = vmatpush1.msra.mxu0 %v5209
  %6554 = vmatprep.subr.mxu0 %v5214
  %6555 = vmatpush1.msra.mxu0 %v5213
  %6556 = vmatprep.subr.mxu0 %v5218
  %6557 = vmatpush1.msra.mxu0 %v5217
  %6558 = vmatprep.subr.mxu0 %v5222
  %6559 = vmatpush1.msra.mxu0 %v5221
  %6560 = vmatprep.subr.mxu0 %v5226
  %6561 = vmatpush1.msra.mxu0 %v5225
  %6562 = vmatprep.subr.mxu0 %v5230
  %6563 = vmatpush1.msra.mxu0 %v5229
  %6564 = vmatprep.subr.mxu0 %v5234
  %6565 = vmatpush1.msra.mxu0 %v5233
  %6566 = vmatprep.subr.mxu0 %v5238
  %6567 = vmatpush1.msra.mxu0 %v5237
  %6568 = vmatprep.subr.mxu0 %v5242
  %6569 = vmatpush1.msra.mxu0 %v5241
  %6570 = vmatprep.subr.mxu0 %v5246
  %6571 = vmatpush1.msra.mxu0 %v5245
  %6572 = vmatprep.subr.mxu0 %v5250
  %6573 = vmatpush1.msra.mxu0 %v5249
  %6574 = vmatprep.subr.mxu0 %v5254
  %6575 = vmatpush1.msra.mxu0 %v5253
  %6576 = vmatprep.subr.mxu0 %v5258
  %6577 = vmatpush1.msra.mxu0 %v5257
  %6578 = vmatprep.subr.mxu0 %v5262
  %6579 = vmatpush1.msra.mxu0 %v5261
  %6580 = vmatprep.subr.mxu0 %v5266
  %6581 = vmatpush1.msra.mxu0 %v5265
  %6582 = vmatprep.subr.mxu0 %v5270
  %6583 = vmatpush1.msra.mxu0 %v5269
  %6584 = vmatprep.subr.mxu0 %v5274
  %6585 = vmatpush1.msra.mxu0 %v5273
  %6586 = vmatprep.subr.mxu0 %v5278
  %6587 = vmatpush1.msra.mxu0 %v5277
  %6588 = vmatprep.subr.mxu0 %v5282
  %6589 = vmatpush1.msra.mxu0 %v5281
  %6590 = vmatprep.subr.mxu0 %v5286
  %6591 = vmatpush1.msra.mxu0 %v5285
  %6592 = vmatprep.subr.mxu0 %v5290
  %6593 = vmatpush1.msra.mxu0 %v5289
  %6594 = vmatprep.subr.mxu0 %v5294
  %6595 = vmatpush1.msra.mxu0 %v5293
  %6596 = vmatprep.subr.mxu0 %v5298
  %6597 = vmatpush1.msra.mxu0 %v5297
  %6598 = vmatprep.subr.mxu0 %v5302
  %6599 = vmatpush1.msra.mxu0 %v5301
  %6600 = vmatprep.mubr.f32.mxu0 %v5152
  %6601 = vmatmul.mubr.f32.gmra.mrb[0].mxu0 %v6464
  %v6602 = vpop.f32.mrb[0].mxu0
  %v6603 = vadd.f32 %v5166, %v6602
  %v6604 = vpop.f32.mrb[0].mxu0
  %v6605 = vadd.f32 %v5170, %v6604
  %6606 = vdwg.mxu0
  %v6607 = vxor.u32 %v6532, 2147483648
  %v6608 = vmul.f32 %v6607, 1.442695
  %v6609 = vpow.pop %v6608
  %v6610 = vadd.f32 %v6609, 1.0
  %v6611 = vrcp.pop %v6610
  %v6612 = vmul.f32 1.0, %v6611
  %v6613 = vxor.u32 %v6534, 2147483648
  %v6614 = vmul.f32 %v6613, 1.442695
  %v6615 = vpow.pop %v6614
  %v6616 = vadd.f32 %v6615, 1.0
  %v6617 = vrcp.pop %v6616
  %v6618 = vmul.f32 1.0, %v6617
  %v6619 = vtanh.pop %v6603
  %v6620 = vxor.u32 %v6605, 2147483648
  %v6621 = vmul.f32 %v6620, 1.442695
  %v6622 = vpow.pop %v6621
  %v6623 = vadd.f32 %v6622, 1.0
  %v6624 = vrcp.pop %v6623
  %v6625 = vmul.f32 1.0, %v6624
  %v6626 = vmul.f32 %v6618, %v6462
  %v6627 = vmul.f32 %v6612, %v6619
  %v6628 = vadd.f32 %v6626, %v6627
  %v6629 = vtanh.pop %v6628
  %v6630 = vmul.f32 %v6625, %v6629
  %v6632 = vrot.slane %v5634, 6
  %v6635 = vrot.slane %v5800, 4
  %v6638 = vrot.slane %v5966, 2
  %v6641 = vrot.slane %v6298, 6
  %v6644 = vrot.slane %v6464, 4
  %v6647 = vrot.slane %v6630, 2
  %v6649 = vsel %vm3686, %v5468, %v6632
  %v6650 = vsel %vm3688, %v6649, %v6635
  %v6651 = vsel %vm3690, %v6650, %v6638
  %v6652 = vsel %vm3686, %v6132, %v6641
  %v6653 = vsel %vm3688, %v6652, %v6644
  %v6654 = vsel %vm3690, %v6653, %v6647
  %v6655 = vld [vmem:[%s10] sm:$0xff]
  %v6656 = vld [vmem:[%s10 + $0x8] sm:$0xff]
  %v6657 = vld [vmem:[%s10 + $0x10] sm:$0xff]
  %v6658 = vld [vmem:[%s10 + $0x18] sm:$0xff]
  %v6659 = vld [vmem:[%s10 + $0x20] sm:$0xff]
  %v6660 = vld [vmem:[%s10 + $0x28] sm:$0xff]
  %v6661 = vld [vmem:[%s10 + $0x30] sm:$0xff]
  %v6662 = vld [vmem:[%s10 + $0x38] sm:$0xff]
  %v6663 = vld [vmem:[%s10 + $0x40] sm:$0xff]
  %v6664 = vld [vmem:[%s10 + $0x48] sm:$0xff]
  %v6665 = vld [vmem:[%s10 + $0x50] sm:$0xff]
  %v6666 = vld [vmem:[%s10 + $0x58] sm:$0xff]
  %v6667 = vld [vmem:[%s10 + $0x60] sm:$0xff]
  %v6668 = vld [vmem:[%s10 + $0x68] sm:$0xff]
  %v6669 = vld [vmem:[%s10 + $0x70] sm:$0xff]
  %v6670 = vld [vmem:[%s10 + $0x78] sm:$0xff]
  %v6671 = vld [vmem:[%s11] sm:$0x1]
  %v6673 = vlaneseq
  %v6674 = vshrl.u32 %v6673, 7
  %v6675 = vsub.s32 0, %v6674
  %v6676 = vrot.slane %v6671, %v6675
  %6678 = vmatprep.subr.mxu0 0.0
  %6679 = vmatpush1.msra.mxu0 %v6655
  %6680 = vmatprep.subr.mxu0 0.0
  %6681 = vmatpush1.msra.mxu0 %v6656
  %6682 = vmatprep.subr.mxu0 0.0
  %6683 = vmatpush1.msra.mxu0 %v6657
  %6684 = vmatprep.subr.mxu0 0.0
  %6685 = vmatpush1.msra.mxu0 %v6658
  %6686 = vmatprep.subr.mxu0 0.0
  %6687 = vmatpush1.msra.mxu0 %v6659
  %6688 = vmatprep.subr.mxu0 0.0
  %6689 = vmatpush1.msra.mxu0 %v6660
  %6690 = vmatprep.subr.mxu0 0.0
  %6691 = vmatpush1.msra.mxu0 %v6661
  %6692 = vmatprep.subr.mxu0 0.0
  %6693 = vmatpush1.msra.mxu0 %v6662
  %6694 = vmatprep.subr.mxu0 0.0
  %6695 = vmatpush1.msra.mxu0 %v6663
  %6696 = vmatprep.subr.mxu0 0.0
  %6697 = vmatpush1.msra.mxu0 %v6664
  %6698 = vmatprep.subr.mxu0 0.0
  %6699 = vmatpush1.msra.mxu0 %v6665
  %6700 = vmatprep.subr.mxu0 0.0
  %6701 = vmatpush1.msra.mxu0 %v6666
  %6702 = vmatprep.subr.mxu0 0.0
  %6703 = vmatpush1.msra.mxu0 %v6667
  %6704 = vmatprep.subr.mxu0 0.0
  %6705 = vmatpush1.msra.mxu0 %v6668
  %6706 = vmatprep.subr.mxu0 0.0
  %6707 = vmatpush1.msra.mxu0 %v6669
  %6708 = vmatprep.subr.mxu0 0.0
  %6709 = vmatpush1.msra.mxu0 %v6670
  %6710 = vmatprep.subr.mxu0 0.0
  %6711 = vmatpush1.msra.mxu0 0.0
  %6712 = vmatprep.subr.mxu0 0.0
  %6713 = vmatpush1.msra.mxu0 0.0
  %6714 = vmatprep.subr.mxu0 0.0
  %6715 = vmatpush1.msra.mxu0 0.0
  %6716 = vmatprep.subr.mxu0 0.0
  %6717 = vmatpush1.msra.mxu0 0.0
  %6718 = vmatprep.subr.mxu0 0.0
  %6719 = vmatpush1.msra.mxu0 0.0
  %6720 = vmatprep.subr.mxu0 0.0
  %6721 = vmatpush1.msra.mxu0 0.0
  %6722 = vmatprep.subr.mxu0 0.0
  %6723 = vmatpush1.msra.mxu0 0.0
  %6724 = vmatprep.subr.mxu0 0.0
  %6725 = vmatpush1.msra.mxu0 0.0
  %6726 = vmatprep.subr.mxu0 0.0
  %6727 = vmatpush1.msra.mxu0 0.0
  %6728 = vmatprep.subr.mxu0 0.0
  %6729 = vmatpush1.msra.mxu0 0.0
  %6730 = vmatprep.subr.mxu0 0.0
  %6731 = vmatpush1.msra.mxu0 0.0
  %6732 = vmatprep.subr.mxu0 0.0
  %6733 = vmatpush1.msra.mxu0 0.0
  %6734 = vmatprep.subr.mxu0 0.0
  %6735 = vmatpush1.msra.mxu0 0.0
  %6736 = vmatprep.subr.mxu0 0.0
  %6737 = vmatpush1.msra.mxu0 0.0
  %6738 = vmatprep.subr.mxu0 0.0
  %6739 = vmatpush1.msra.mxu0 0.0
  %6740 = vmatprep.subr.mxu0 0.0
  %6741 = vmatpush1.msra.mxu0 0.0
  %6742 = vmatprep.mubr.f32.mxu0 0.0
  %6743 = vmatmul.mubr.f32.gmra.mrb[0].mxu0 %v6651
  %v6744 = vpop.f32.mrb[0].mxu0
  %v6745 = vadd.f32 %v6676, %v6744
  %v6746 = vpop.f32.mrb[0].mxu0
  %6747 = vmatprep.mubr.f32.mxu0 0.0
  %6748 = vmatmul.mubr.f32.gmra.mrb[0].mxu0 %v6654
  %v6749 = vpop.f32.mrb[0].mxu0
  %v6750 = vadd.f32 %v6676, %v6749
  %v6751 = vpop.f32.mrb[0].mxu0
  %6752 = vdwg.mxu0
  %6753 = vst.msk [vmem:[%s13] sm:$0xff] %vm151, %v6745
  %6754 = vst.msk [vmem:[%s13 + $0x8] sm:$0xff] %vm151, %v6750
  // Predicated region
  $region50: #{seq2seq_forward.1} parent=0 // pred_check
    _
  $region51: #{seq2seq_forward.1} parent=0 // pred_check_branch
    %6756 = sbr.rel (0) target = $region53
  $region52: #{seq2seq_forward.1} parent=0 // pred_region
    _
  $region53: #{seq2seq_forward.1} parent=0 // pred_fallthru
    _
  // Predicated region
  $region54: #{seq2seq_forward.1} parent=0 // pred_check
    _
  $region55: #{seq2seq_forward.1} parent=0 // pred_check_branch
    %6758 = sbr.rel (0) target = $region57
  $region56: #{seq2seq_forward.1} parent=0 // pred_region
    _
  $region57: #{seq2seq_forward.1} parent=0 // pred_fallthru
    _
  // Predicated region
  $region58: #{seq2seq_forward.1} parent=0 // pred_check
    _
  $region59: #{seq2seq_forward.1} parent=0 // pred_check_branch
    %6760 = sbr.rel (0) target = $region61
  $region60: #{seq2seq_forward.1} parent=0 // pred_region
    _
  $region61: #{seq2seq_forward.1} parent=0 // pred_fallthru
    _
  // Predicated region
  $region62: #{seq2seq_forward.1} parent=0 // pred_check
    _
  $region63: #{seq2seq_forward.1} parent=0 // pred_check_branch
    %6762 = sbr.rel (0) target = $region65
  $region64: #{seq2seq_forward.1} parent=0 // pred_region
    _
  $region65: #{seq2seq_forward.1} parent=0 // pred_fallthru
    _

</llo_original>
